<compile_context>
chip_gen: v5e
topology: v5e:2x2
jax: 0.10.0
libtpu: 0.0.40
codegen_flags: <defaults>
</compile_context>

<pallas_src>
import jax
import jax.numpy as jnp
from jax.experimental import pallas as pl
from jax.experimental.pallas import tpu as pltpu


# ------------------------------ tiling helpers --------------------------------
def _fit_tile(dim, pref, align):
    """Largest tile <= pref that divides `dim` and is a multiple of `align`,
    else the full dim (full-extent blocks are always legal)."""
    t = min(pref, dim)
    t -= t % align
    while t >= align:
        if dim % t == 0:
            return t
        t -= align
    return dim


def _divisor_chunk(dim, pref):
    """Largest divisor of `dim` that is <= pref."""
    t = min(pref, dim)
    while dim % t:
        t -= 1
    return t


# --------------------------- tiled matmul + bias -------------------------------
def _matmul_bias_kernel(x_ref, w_ref, b_ref, o_ref, acc_ref):
    k = pl.program_id(2)

    @pl.when(k == 0)
    def _():
        acc_ref[...] = jnp.zeros_like(acc_ref)

    acc_ref[...] += jnp.dot(x_ref[...], w_ref[...],
                            preferred_element_type=jnp.float32)

    @pl.when(k == pl.num_programs(2) - 1)
    def _():
        o_ref[...] = (acc_ref[...] + b_ref[...]).astype(o_ref.dtype)


def matmul_bias(x, w, b, *, out_dtype=jnp.float32,
                tm_pref=256, tn_pref=256, tk_pref=512):
    """(M, K) @ (K, N) + (1, N) -> (M, N); MXU-tiled, f32 accumulation."""
    M, K = x.shape
    K2, N = w.shape
    assert K == K2
    tm = _fit_tile(M, tm_pref, 8)
    tn = _fit_tile(N, tn_pref, 128)
    tk = _fit_tile(K, tk_pref, 128)
    grid = (M // tm, N // tn, K // tk)
    return pl.pallas_call(
        _matmul_bias_kernel,
        out_shape=jax.ShapeDtypeStruct((M, N), out_dtype),
        grid_spec=pltpu.PrefetchScalarGridSpec(
            num_scalar_prefetch=0,
            grid=grid,
            in_specs=[
                pl.BlockSpec((tm, tk), lambda i, j, k: (i, k)),   # activations
                pl.BlockSpec((tk, tn), lambda i, j, k: (k, j)),   # weights (pre-T)
                pl.BlockSpec((1, tn), lambda i, j, k: (0, j)),    # bias
            ],
            out_specs=pl.BlockSpec((tm, tn), lambda i, j, k: (i, j)),
            scratch_shapes=[pltpu.VMEM((tm, tn), jnp.float32)],
        ),
        compiler_params=pltpu.CompilerParams(
            dimension_semantics=("parallel", "parallel", "arbitrary")),
    )(x, w, b)


# --------------------------- recurrent LSTM kernel -----------------------------
def _lstm_recurrent_kernel(gx_ref, whh_ref, h0_ref, c0_ref,
                           y_ref, hT_ref, cT_ref, h_sc, c_sc):
    chunk = pl.program_id(0)

    @pl.when(chunk == 0)
    def _():
        h_sc[...] = h0_ref[...]
        c_sc[...] = c0_ref[...]

    H = h0_ref.shape[-1]
    TT = gx_ref.shape[0]
    whh = whh_ref[...]                       # (H, 4H) bf16, VMEM-resident

    def step(tt, carry):
        h, c = carry
        # Serial critical path: one (B,H)x(H,4H) MXU matmul + VPU/EUP gate math.
        gates = gx_ref[tt] + jnp.dot(h.astype(whh.dtype), whh,
                                     preferred_element_type=jnp.float32)
        i_g = jax.nn.sigmoid(gates[:, 0 * H:1 * H])   # lane-aligned (H % 128 == 0)
        f_g = jax.nn.sigmoid(gates[:, 1 * H:2 * H])
        g_g = jnp.tanh(gates[:, 2 * H:3 * H])
        o_g = jax.nn.sigmoid(gates[:, 3 * H:4 * H])
        c_new = f_g * c + i_g * g_g
        h_new = o_g * jnp.tanh(c_new)
        y_ref[tt] = h_new.astype(y_ref.dtype)
        return h_new, c_new

    h_f, c_f = jax.lax.fori_loop(0, TT, step, (h_sc[...], c_sc[...]),
                                 unroll=True)
    h_sc[...] = h_f
    c_sc[...] = c_f

    @pl.when(chunk == pl.num_programs(0) - 1)
    def _():
        hT_ref[...] = h_f
        cT_ref[...] = c_f


def lstm_recurrent(gates_x, w_hh, h0, c0, *, time_chunk=32,
                   y_dtype=jnp.bfloat16):
    """gates_x: (T, B, 4H) f32 precomputed x@W_ih+b; returns (y, h_T, c_T)."""
    T, B, G = gates_x.shape
    H = h0.shape[-1]
    assert G == 4 * H
    TT = _divisor_chunk(T, time_chunk)
    out_shapes = (jax.ShapeDtypeStruct((T, B, H), y_dtype),
                  jax.ShapeDtypeStruct((B, H), jnp.float32),
                  jax.ShapeDtypeStruct((B, H), jnp.float32))
    return pl.pallas_call(
        _lstm_recurrent_kernel,
        out_shape=out_shapes,
        grid_spec=pltpu.PrefetchScalarGridSpec(
            num_scalar_prefetch=0,
            grid=(T // TT,),
            in_specs=[
                pl.BlockSpec((TT, B, G), lambda c: (c, 0, 0)),   # precomputed gates
                pl.BlockSpec((H, G), lambda c: (0, 0)),          # W_hh^T (resident)
                pl.BlockSpec((B, H), lambda c: (0, 0)),          # h0 (resident)
                pl.BlockSpec((B, H), lambda c: (0, 0)),          # c0 (resident)
            ],
            out_specs=[
                pl.BlockSpec((TT, B, H), lambda c: (c, 0, 0)),   # per-step hidden
                pl.BlockSpec((B, H), lambda c: (0, 0)),          # h_T (last chunk)
                pl.BlockSpec((B, H), lambda c: (0, 0)),          # c_T (last chunk)
            ],
            scratch_shapes=[pltpu.VMEM((B, H), jnp.float32),     # h carry
                            pltpu.VMEM((B, H), jnp.float32)],    # c carry
        ),
        compiler_params=pltpu.CompilerParams(
            dimension_semantics=("arbitrary",)),                 # serial in time
    )(gates_x, w_hh, h0, c0)


# ------------------------------ model (forward) --------------------------------
def init_params(key, vocab_size, embed_size, hidden_size, num_layers):
    ks = jax.random.split(key, 2 + 3 * num_layers)
    params = {
        "embed": (0.1 * jax.random.normal(ks[0], (vocab_size, embed_size),
                                          jnp.float32)).astype(jnp.bfloat16),
        "w_out": (0.1 * jax.random.normal(ks[1], (hidden_size, vocab_size),
                                          jnp.float32)).astype(jnp.bfloat16),
        "b_out": jnp.zeros((1, vocab_size), jnp.float32),
        "lstm": [],
    }
    for l in range(num_layers):
        in_size = embed_size if l == 0 else hidden_size
        k0, k1, k2 = ks[2 + 3 * l: 5 + 3 * l]
        # Stored transposed relative to PyTorch: (in, 4H), (H, 4H); bias pre-summed.
        w_ih = (0.1 * jax.random.normal(k0, (in_size, 4 * hidden_size),
                                        jnp.float32)).astype(jnp.bfloat16)
        w_hh = (0.1 * jax.random.normal(k1, (hidden_size, 4 * hidden_size),
                                        jnp.float32)).astype(jnp.bfloat16)
        b = 0.1 * jax.random.normal(k2, (1, 4 * hidden_size), jnp.float32)
        params["lstm"].append((w_ih, w_hh, b))
    return params


def lstm_model_forward(params, ids, h0, c0):
    B, T = ids.shape
    # Embedding gather emitted directly time-major (gather with ids.T), so no
    # transpose pass over the embedded activations is needed.
    # TODO(synk): for production vocab sizes, replace with a scalar-prefetch
    # Pallas row-gather kernel (pl.Element row blocks indexed by prefetched ids).
    x = jnp.take(params["embed"], ids.T, axis=0)                 # (T, B, E) bf16

    hs, cs = [], []
    for l, (w_ih, w_hh, b) in enumerate(params["lstm"]):
        T_, B_, E_ = x.shape
        H = w_hh.shape[0]
        # Hoisted input projection: one big MXU matmul for all timesteps.
        gates_x = matmul_bias(x.reshape(T_ * B_, E_), w_ih, b,
                              out_dtype=jnp.float32).reshape(T_, B_, 4 * H)
        x, hT, cT = lstm_recurrent(gates_x, w_hh, h0[l], c0[l])
        hs.append(hT)
        cs.append(cT)

    # PyTorch batch_first flatten: row index = b*T + t.
    # TODO(synk): this transpose could be folded into the recurrent kernel's
    # out_spec (batch-first block) to save one HBM pass on the last layer.
    y = jnp.transpose(x, (1, 0, 2)).reshape(B * T, -1)           # (B*T, H) bf16
    logits = matmul_bias(y, params["w_out"], params["b_out"],
                         out_dtype=jnp.float32)                  # (B*T, vocab)
    return logits, (jnp.stack(hs), jnp.stack(cs))


# ------------------------------------ main --------------------------------------
if __name__ == "__main__":
    # Small but hardware-aligned dims (B mult of 8, E/H mult of 128, vocab mult
    # of 128) consistent with the module's embed -> multi-layer LSTM -> linear.
    vocab_size = 256
    embed_size = 128
    hidden_size = 128
    num_layers = 2
    batch = 8
    seq = 16

    key = jax.random.PRNGKey(0)
    k_param, k_ids, k_h, k_c = jax.random.split(key, 4)

    params = init_params(k_param, vocab_size, embed_size, hidden_size,
                         num_layers)
    ids = jax.random.randint(k_ids, (batch, seq), 0, vocab_size, jnp.int32)
    h0 = 0.1 * jax.random.normal(k_h, (num_layers, batch, hidden_size),
                                 jnp.float32)
    c0 = 0.1 * jax.random.normal(k_c, (num_layers, batch, hidden_size),
                                 jnp.float32)

    logits, (hN, cN) = jax.jit(lstm_model_forward)(params, ids, h0, c0)
    jax.block_until_ready((logits, hN, cN))

    assert logits.shape == (batch * seq, vocab_size)
    assert hN.shape == (num_layers, batch, hidden_size)
    assert cN.shape == (num_layers, batch, hidden_size)
    assert bool(jnp.all(jnp.isfinite(logits)))
    assert bool(jnp.all(jnp.isfinite(hN))) and bool(jnp.all(jnp.isfinite(cN)))
    print("KERNEL_OK")
</pallas_src>

<mosaic_0001>
module attributes {stable_mosaic.version = 11 : i64} {
  func.func @_matmul_bias_kernel(%arg0: i32, %arg1: i32, %arg2: i32, %arg3: memref<128x128xbf16, #tpu.memory_space<vmem>>, %arg4: memref<128x256xbf16, #tpu.memory_space<vmem>>, %arg5: memref<1x256xf32, #tpu.memory_space<vmem>>, %arg6: memref<128x256xf32, #tpu.memory_space<vmem>>, %arg7: memref<128x256xf32, #tpu.memory_space<vmem>>) attributes {dimension_semantics = [#tpu.dimension_semantics<parallel>, #tpu.dimension_semantics<parallel>, #tpu.dimension_semantics<arbitrary>], iteration_bounds = array<i64: 1, 2, 1>, scalar_prefetch = 0 : i64, scratch_operands = 1 : i64, tpu.core_type = #tpu.core_type<tc>, window_params = [{transform_indices = @transform_0, window_bounds = array<i64: 128, 128>}, {transform_indices = @transform_1, window_bounds = array<i64: 128, 256>}, {transform_indices = @transform_2, window_bounds = array<i64: 1, 256>}, {transform_indices = @transform_3, window_bounds = array<i64: 128, 256>}]} {
    %c0_i32 = arith.constant 0 : i32
    %0 = arith.cmpi eq, %arg2, %c0_i32 : i32
    %1 = arith.extui %0 : i1 to i32
    %c0_i32_0 = arith.constant 0 : i32
    %2 = arith.cmpi ne, %1, %c0_i32_0 : i32
    scf.if %2 {
      %cst_10 = arith.constant 0.000000e+00 : f32
      %12 = vector.broadcast %cst_10 : f32 to vector<128x256xf32>
      %c0_11 = arith.constant 0 : index
      %c0_12 = arith.constant 0 : index
      %13 = vector.load %arg7[%c0_11, %c0_12] : memref<128x256xf32, #tpu.memory_space<vmem>>, vector<128x256xf32>
      tpu.vector_store %arg7[%c0_11, %c0_12], %12 {strides = array<i32>} : memref<128x256xf32, #tpu.memory_space<vmem>>, vector<128x256xf32>,
    } else {
    }
    %c0 = arith.constant 0 : index
    %c0_1 = arith.constant 0 : index
    %3 = vector.load %arg7[%c0, %c0_1] : memref<128x256xf32, #tpu.memory_space<vmem>>, vector<128x256xf32>
    %c0_2 = arith.constant 0 : index
    %c0_3 = arith.constant 0 : index
    %4 = vector.load %arg3[%c0_2, %c0_3] : memref<128x128xbf16, #tpu.memory_space<vmem>>, vector<128x128xbf16>
    %c0_4 = arith.constant 0 : index
    %c0_5 = arith.constant 0 : index
    %5 = vector.load %arg4[%c0_4, %c0_5] : memref<128x256xbf16, #tpu.memory_space<vmem>>, vector<128x256xbf16>
    %cst = arith.constant dense<0.000000e+00> : vector<128x256xf32>
    %6 = tpu.matmul %4, %5, %cst {dimension_numbers = #tpu.dot_dimension_numbers<[1], [0], [0], [1], [0, 0, 1, 1], [], []>} : vector<128x128xbf16>, vector<128x256xbf16>, vector<128x256xf32> -> vector<128x256xf32>
    %7 = arith.addf %3, %6 : vector<128x256xf32>
    %c0_6 = arith.constant 0 : index
    %c0_7 = arith.constant 0 : index
    %8 = vector.load %arg7[%c0_6, %c0_7] : memref<128x256xf32, #tpu.memory_space<vmem>>, vector<128x256xf32>
    tpu.vector_store %arg7[%c0_6, %c0_7], %7 {strides = array<i32>} : memref<128x256xf32, #tpu.memory_space<vmem>>, vector<128x256xf32>,
    %c0_i32_8 = arith.constant 0 : i32
    %9 = arith.cmpi eq, %arg2, %c0_i32_8 : i32
    %10 = arith.extui %9 : i1 to i32
    %c0_i32_9 = arith.constant 0 : i32
    %11 = arith.cmpi ne, %10, %c0_i32_9 : i32
    scf.if %11 {
      %c0_10 = arith.constant 0 : index
      %c0_11 = arith.constant 0 : index
      %12 = vector.load %arg7[%c0_10, %c0_11] : memref<128x256xf32, #tpu.memory_space<vmem>>, vector<128x256xf32>
      %c0_12 = arith.constant 0 : index
      %c0_13 = arith.constant 0 : index
      %13 = vector.load %arg5[%c0_12, %c0_13] : memref<1x256xf32, #tpu.memory_space<vmem>>, vector<1x256xf32>
      %14 = vector.broadcast %13 : vector<1x256xf32> to vector<128x256xf32>
      %15 = arith.addf %12, %14 : vector<128x256xf32>
      %c0_14 = arith.constant 0 : index
      %c0_15 = arith.constant 0 : index
      %16 = vector.load %arg6[%c0_14, %c0_15] : memref<128x256xf32, #tpu.memory_space<vmem>>, vector<128x256xf32>
      tpu.vector_store %arg6[%c0_14, %c0_15], %15 {strides = array<i32>} : memref<128x256xf32, #tpu.memory_space<vmem>>, vector<128x256xf32>,
    } else {
    }
    return
  }
  func.func @transform_0(%arg0: i32, %arg1: i32, %arg2: i32) -> (i32, i32) {
    %c0_i32 = arith.constant 0 : i32
    return %arg0, %arg2 : i32, i32
  }
  func.func @transform_1(%arg0: i32, %arg1: i32, %arg2: i32) -> (i32, i32) {
    %c0_i32 = arith.constant 0 : i32
    return %arg2, %arg1 : i32, i32
  }
  func.func @transform_2(%arg0: i32, %arg1: i32, %arg2: i32) -> (i32, i32) {
    %c0_i32 = arith.constant 0 : i32
    %c0_i32_0 = arith.constant 0 : i32
    return %c0_i32, %arg1 : i32, i32
  }
  func.func @transform_3(%arg0: i32, %arg1: i32, %arg2: i32) -> (i32, i32) {
    %c0_i32 = arith.constant 0 : i32
    return %arg0, %arg1 : i32, i32
  }
}

module attributes {stable_mosaic.version = 11 : i64} {
  func.func @_lstm_recurrent_kernel(%arg0: i32, %arg1: memref<16x8x512xf32, #tpu.memory_space<vmem>>, %arg2: memref<128x512xbf16, #tpu.memory_space<vmem>>, %arg3: memref<8x128xf32, #tpu.memory_space<vmem>>, %arg4: memref<8x128xf32, #tpu.memory_space<vmem>>, %arg5: memref<16x8x128xbf16, #tpu.memory_space<vmem>>, %arg6: memref<8x128xf32, #tpu.memory_space<vmem>>, %arg7: memref<8x128xf32, #tpu.memory_space<vmem>>, %arg8: memref<8x128xf32, #tpu.memory_space<vmem>>, %arg9: memref<8x128xf32, #tpu.memory_space<vmem>>) attributes {dimension_semantics = [#tpu.dimension_semantics<arbitrary>], iteration_bounds = array<i64: 1>, scalar_prefetch = 0 : i64, scratch_operands = 2 : i64, tpu.core_type = #tpu.core_type<tc>, window_params = [{transform_indices = @transform_0, window_bounds = array<i64: 16, 8, 512>}, {pipeline_mode = #tpu.pipeline_mode<synchronous>, transform_indices = @transform_1, window_bounds = array<i64: 128, 512>}, {pipeline_mode = #tpu.pipeline_mode<synchronous>, transform_indices = @transform_2, window_bounds = array<i64: 8, 128>}, {pipeline_mode = #tpu.pipeline_mode<synchronous>, transform_indices = @transform_3, window_bounds = array<i64: 8, 128>}, {transform_indices = @transform_4, window_bounds = array<i64: 16, 8, 128>}, {pipeline_mode = #tpu.pipeline_mode<synchronous>, transform_indices = @transform_5, window_bounds = array<i64: 8, 128>}, {pipeline_mode = #tpu.pipeline_mode<synchronous>, transform_indices = @transform_6, window_bounds = array<i64: 8, 128>}]} {
    %c0_i32 = arith.constant 0 : i32
    %0 = arith.cmpi eq, %arg0, %c0_i32 : i32
    %1 = arith.extui %0 : i1 to i32
    %c0_i32_0 = arith.constant 0 : i32
    %2 = arith.cmpi ne, %1, %c0_i32_0 : i32
    scf.if %2 {
      %c0_140 = arith.constant 0 : index
      %c0_141 = arith.constant 0 : index
      %587 = vector.load %arg3[%c0_140, %c0_141] : memref<8x128xf32, #tpu.memory_space<vmem>>, vector<8x128xf32>
      %c0_142 = arith.constant 0 : index
      %c0_143 = arith.constant 0 : index
      %588 = vector.load %arg8[%c0_142, %c0_143] : memref<8x128xf32, #tpu.memory_space<vmem>>, vector<8x128xf32>
      tpu.vector_store %arg8[%c0_142, %c0_143], %587 {strides = array<i32>} : memref<8x128xf32, #tpu.memory_space<vmem>>, vector<8x128xf32>,
      %c0_144 = arith.constant 0 : index
      %c0_145 = arith.constant 0 : index
      %589 = vector.load %arg4[%c0_144, %c0_145] : memref<8x128xf32, #tpu.memory_space<vmem>>, vector<8x128xf32>
      %c0_146 = arith.constant 0 : index
      %c0_147 = arith.constant 0 : index
      %590 = vector.load %arg9[%c0_146, %c0_147] : memref<8x128xf32, #tpu.memory_space<vmem>>, vector<8x128xf32>
      tpu.vector_store %arg9[%c0_146, %c0_147], %589 {strides = array<i32>} : memref<8x128xf32, #tpu.memory_space<vmem>>, vector<8x128xf32>,
    } else {
    }
    %c0 = arith.constant 0 : index
    %c0_1 = arith.constant 0 : index
    %3 = vector.load %arg2[%c0, %c0_1] : memref<128x512xbf16, #tpu.memory_space<vmem>>, vector<128x512xbf16>
    %c0_2 = arith.constant 0 : index
    %c0_3 = arith.constant 0 : index
    %4 = vector.load %arg8[%c0_2, %c0_3] : memref<8x128xf32, #tpu.memory_space<vmem>>, vector<8x128xf32>
    %c0_4 = arith.constant 0 : index
    %c0_5 = arith.constant 0 : index
    %5 = vector.load %arg9[%c0_4, %c0_5] : memref<8x128xf32, #tpu.memory_space<vmem>>, vector<8x128xf32>
    %c0_i32_6 = arith.constant 0 : i32
    %6 = arith.index_cast %c0_i32_6 : i32 to index
    %c0_7 = arith.constant 0 : index
    %c0_8 = arith.constant 0 : index
    %7 = vector.load %arg1[%6, %c0_7, %c0_8] : memref<16x8x512xf32, #tpu.memory_space<vmem>>, vector<1x8x512xf32>
    %8 = vector.shape_cast %7 : vector<1x8x512xf32> to vector<8x512xf32>
    %9 = arith.truncf %4 : vector<8x128xf32> to vector<8x128xbf16>
    %cst = arith.constant dense<0.000000e+00> : vector<8x512xf32>
    %10 = tpu.matmul %9, %3, %cst {dimension_numbers = #tpu.dot_dimension_numbers<[1], [0], [0], [1], [0, 0, 1, 1], [], []>} : vector<8x128xbf16>, vector<128x512xbf16>, vector<8x512xf32> -> vector<8x512xf32>
    %11 = arith.addf %8, %10 : vector<8x512xf32>
    %12 = vector.extract_strided_slice %11 {offsets = [0, 0], sizes = [8, 128], strides = [1, 1]} : vector<8x512xf32> to vector<8x128xf32>
    %13 = arith.negf %12 : vector<8x128xf32>
    %14 = math.exp %13 : vector<8x128xf32>
    %cst_9 = arith.constant 1.000000e+00 : f32
    %15 = vector.broadcast %cst_9 : f32 to vector<8x128xf32>
    %16 = arith.addf %15, %14 : vector<8x128xf32>
    %17 = arith.divf %15, %16 : vector<8x128xf32>
    %18 = vector.extract_strided_slice %11 {offsets = [0, 128], sizes = [8, 128], strides = [1, 1]} : vector<8x512xf32> to vector<8x128xf32>
    %19 = arith.negf %18 : vector<8x128xf32>
    %20 = math.exp %19 : vector<8x128xf32>
    %cst_10 = arith.constant 1.000000e+00 : f32
    %21 = vector.broadcast %cst_10 : f32 to vector<8x128xf32>
    %22 = arith.addf %21, %20 : vector<8x128xf32>
    %23 = arith.divf %21, %22 : vector<8x128xf32>
    %24 = vector.extract_strided_slice %11 {offsets = [0, 256], sizes = [8, 128], strides = [1, 1]} : vector<8x512xf32> to vector<8x128xf32>
    %25 = math.tanh %24 : vector<8x128xf32>
    %26 = vector.extract_strided_slice %11 {offsets = [0, 384], sizes = [8, 128], strides = [1, 1]} : vector<8x512xf32> to vector<8x128xf32>
    %27 = arith.negf %26 : vector<8x128xf32>
    %28 = math.exp %27 : vector<8x128xf32>
    %cst_11 = arith.constant 1.000000e+00 : f32
    %29 = vector.broadcast %cst_11 : f32 to vector<8x128xf32>
    %30 = arith.addf %29, %28 : vector<8x128xf32>
    %31 = arith.divf %29, %30 : vector<8x128xf32>
    %32 = arith.mulf %23, %5 : vector<8x128xf32>
    %33 = arith.mulf %17, %25 : vector<8x128xf32>
    %34 = arith.addf %32, %33 : vector<8x128xf32>
    %35 = math.tanh %34 : vector<8x128xf32>
    %36 = arith.mulf %31, %35 : vector<8x128xf32>
    %37 = arith.truncf %36 : vector<8x128xf32> to vector<8x128xbf16>
    %38 = arith.index_cast %c0_i32_6 : i32 to index
    %c0_12 = arith.constant 0 : index
    %c0_13 = arith.constant 0 : index
    %39 = vector.load %arg5[%38, %c0_12, %c0_13] : memref<16x8x128xbf16, #tpu.memory_space<vmem>>, vector<1x8x128xbf16>
    %40 = vector.shape_cast %39 : vector<1x8x128xbf16> to vector<8x128xbf16>
    %41 = vector.shape_cast %37 : vector<8x128xbf16> to vector<1x8x128xbf16>
    tpu.vector_store %arg5[%38, %c0_12, %c0_13], %41 {strides = array<i32>} : memref<16x8x128xbf16, #tpu.memory_space<vmem>>, vector<1x8x128xbf16>,
    %c1_i32 = arith.constant 1 : i32
    %42 = arith.index_cast %c1_i32 : i32 to index
    %c0_14 = arith.constant 0 : index
    %c0_15 = arith.constant 0 : index
    %43 = vector.load %arg1[%42, %c0_14, %c0_15] : memref<16x8x512xf32, #tpu.memory_space<vmem>>, vector<1x8x512xf32>
    %44 = vector.shape_cast %43 : vector<1x8x512xf32> to vector<8x512xf32>
    %45 = arith.truncf %36 : vector<8x128xf32> to vector<8x128xbf16>
    %cst_16 = arith.constant dense<0.000000e+00> : vector<8x512xf32>
    %46 = tpu.matmul %45, %3, %cst_16 {dimension_numbers = #tpu.dot_dimension_numbers<[1], [0], [0], [1], [0, 0, 1, 1], [], []>} : vector<8x128xbf16>, vector<128x512xbf16>, vector<8x512xf32> -> vector<8x512xf32>
    %47 = arith.addf %44, %46 : vector<8x512xf32>
    %48 = vector.extract_strided_slice %47 {offsets = [0, 0], sizes = [8, 128], strides = [1, 1]} : vector<8x512xf32> to vector<8x128xf32>
    %49 = arith.negf %48 : vector<8x128xf32>
    %50 = math.exp %49 : vector<8x128xf32>
    %cst_17 = arith.constant 1.000000e+00 : f32
    %51 = vector.broadcast %cst_17 : f32 to vector<8x128xf32>
    %52 = arith.addf %51, %50 : vector<8x128xf32>
    %53 = arith.divf %51, %52 : vector<8x128xf32>
    %54 = vector.extract_strided_slice %47 {offsets = [0, 128], sizes = [8, 128], strides = [1, 1]} : vector<8x512xf32> to vector<8x128xf32>
    %55 = arith.negf %54 : vector<8x128xf32>
    %56 = math.exp %55 : vector<8x128xf32>
    %cst_18 = arith.constant 1.000000e+00 : f32
    %57 = vector.broadcast %cst_18 : f32 to vector<8x128xf32>
    %58 = arith.addf %57, %56 : vector<8x128xf32>
    %59 = arith.divf %57, %58 : vector<8x128xf32>
    %60 = vector.extract_strided_slice %47 {offsets = [0, 256], sizes = [8, 128], strides = [1, 1]} : vector<8x512xf32> to vector<8x128xf32>
    %61 = math.tanh %60 : vector<8x128xf32>
    %62 = vector.extract_strided_slice %47 {offsets = [0, 384], sizes = [8, 128], strides = [1, 1]} : vector<8x512xf32> to vector<8x128xf32>
    %63 = arith.negf %62 : vector<8x128xf32>
    %64 = math.exp %63 : vector<8x128xf32>
    %cst_19 = arith.constant 1.000000e+00 : f32
    %65 = vector.broadcast %cst_19 : f32 to vector<8x128xf32>
    %66 = arith.addf %65, %64 : vector<8x128xf32>
    %67 = arith.divf %65, %66 : vector<8x128xf32>
    %68 = arith.mulf %59, %34 : vector<8x128xf32>
    %69 = arith.mulf %53, %61 : vector<8x128xf32>
    %70 = arith.addf %68, %69 : vector<8x128xf32>
    %71 = math.tanh %70 : vector<8x128xf32>
    %72 = arith.mulf %67, %71 : vector<8x128xf32>
    %73 = arith.truncf %72 : vector<8x128xf32> to vector<8x128xbf16>
    %74 = arith.index_cast %c1_i32 : i32 to index
    %c0_20 = arith.constant 0 : index
    %c0_21 = arith.constant 0 : index
    %75 = vector.load %arg5[%74, %c0_20, %c0_21] : memref<16x8x128xbf16, #tpu.memory_space<vmem>>, vector<1x8x128xbf16>
    %76 = vector.shape_cast %75 : vector<1x8x128xbf16> to vector<8x128xbf16>
    %77 = vector.shape_cast %73 : vector<8x128xbf16> to vector<1x8x128xbf16>
    tpu.vector_store %arg5[%74, %c0_20, %c0_21], %77 {strides = array<i32>} : memref<16x8x128xbf16, #tpu.memory_space<vmem>>, vector<1x8x128xbf16>,
    %c2_i32 = arith.constant 2 : i32
    %78 = arith.index_cast %c2_i32 : i32 to index
    %c0_22 = arith.constant 0 : index
    %c0_23 = arith.constant 0 : index
    %79 = vector.load %arg1[%78, %c0_22, %c0_23] : memref<16x8x512xf32, #tpu.memory_space<vmem>>, vector<1x8x512xf32>
    %80 = vector.shape_cast %79 : vector<1x8x512xf32> to vector<8x512xf32>
    %81 = arith.truncf %72 : vector<8x128xf32> to vector<8x128xbf16>
    %cst_24 = arith.constant dense<0.000000e+00> : vector<8x512xf32>
    %82 = tpu.matmul %81, %3, %cst_24 {dimension_numbers = #tpu.dot_dimension_numbers<[1], [0], [0], [1], [0, 0, 1, 1], [], []>} : vector<8x128xbf16>, vector<128x512xbf16>, vector<8x512xf32> -> vector<8x512xf32>
    %83 = arith.addf %80, %82 : vector<8x512xf32>
    %84 = vector.extract_strided_slice %83 {offsets = [0, 0], sizes = [8, 128], strides = [1, 1]} : vector<8x512xf32> to vector<8x128xf32>
    %85 = arith.negf %84 : vector<8x128xf32>
    %86 = math.exp %85 : vector<8x128xf32>
    %cst_25 = arith.constant 1.000000e+00 : f32
    %87 = vector.broadcast %cst_25 : f32 to vector<8x128xf32>
    %88 = arith.addf %87, %86 : vector<8x128xf32>
    %89 = arith.divf %87, %88 : vector<8x128xf32>
    %90 = vector.extract_strided_slice %83 {offsets = [0, 128], sizes = [8, 128], strides = [1, 1]} : vector<8x512xf32> to vector<8x128xf32>
    %91 = arith.negf %90 : vector<8x128xf32>
    %92 = math.exp %91 : vector<8x128xf32>
    %cst_26 = arith.constant 1.000000e+00 : f32
    %93 = vector.broadcast %cst_26 : f32 to vector<8x128xf32>
    %94 = arith.addf %93, %92 : vector<8x128xf32>
    %95 = arith.divf %93, %94 : vector<8x128xf32>
    %96 = vector.extract_strided_slice %83 {offsets = [0, 256], sizes = [8, 128], strides = [1, 1]} : vector<8x512xf32> to vector<8x128xf32>
    %97 = math.tanh %96 : vector<8x128xf32>
    %98 = vector.extract_strided_slice %83 {offsets = [0, 384], sizes = [8, 128], strides = [1, 1]} : vector<8x512xf32> to vector<8x128xf32>
    %99 = arith.negf %98 : vector<8x128xf32>
    %100 = math.exp %99 : vector<8x128xf32>
    %cst_27 = arith.constant 1.000000e+00 : f32
    %101 = vector.broadcast %cst_27 : f32 to vector<8x128xf32>
    %102 = arith.addf %101, %100 : vector<8x128xf32>
    %103 = arith.divf %101, %102 : vector<8x128xf32>
    %104 = arith.mulf %95, %70 : vector<8x128xf32>
    %105 = arith.mulf %89, %97 : vector<8x128xf32>
    %106 = arith.addf %104, %105 : vector<8x128xf32>
    %107 = math.tanh %106 : vector<8x128xf32>
    %108 = arith.mulf %103, %107 : vector<8x128xf32>
    %109 = arith.truncf %108 : vector<8x128xf32> to vector<8x128xbf16>
    %110 = arith.index_cast %c2_i32 : i32 to index
    %c0_28 = arith.constant 0 : index
    %c0_29 = arith.constant 0 : index
    %111 = vector.load %arg5[%110, %c0_28, %c0_29] : memref<16x8x128xbf16, #tpu.memory_space<vmem>>, vector<1x8x128xbf16>
    %112 = vector.shape_cast %111 : vector<1x8x128xbf16> to vector<8x128xbf16>
    %113 = vector.shape_cast %109 : vector<8x128xbf16> to vector<1x8x128xbf16>
    tpu.vector_store %arg5[%110, %c0_28, %c0_29], %113 {strides = array<i32>} : memref<16x8x128xbf16, #tpu.memory_space<vmem>>, vector<1x8x128xbf16>,
    %c3_i32 = arith.constant 3 : i32
    %114 = arith.index_cast %c3_i32 : i32 to index
    %c0_30 = arith.constant 0 : index
    %c0_31 = arith.constant 0 : index
    %115 = vector.load %arg1[%114, %c0_30, %c0_31] : memref<16x8x512xf32, #tpu.memory_space<vmem>>, vector<1x8x512xf32>
    %116 = vector.shape_cast %115 : vector<1x8x512xf32> to vector<8x512xf32>
    %117 = arith.truncf %108 : vector<8x128xf32> to vector<8x128xbf16>
    %cst_32 = arith.constant dense<0.000000e+00> : vector<8x512xf32>
    %118 = tpu.matmul %117, %3, %cst_32 {dimension_numbers = #tpu.dot_dimension_numbers<[1], [0], [0], [1], [0, 0, 1, 1], [], []>} : vector<8x128xbf16>, vector<128x512xbf16>, vector<8x512xf32> -> vector<8x512xf32>
    %119 = arith.addf %116, %118 : vector<8x512xf32>
    %120 = vector.extract_strided_slice %119 {offsets = [0, 0], sizes = [8, 128], strides = [1, 1]} : vector<8x512xf32> to vector<8x128xf32>
    %121 = arith.negf %120 : vector<8x128xf32>
    %122 = math.exp %121 : vector<8x128xf32>
    %cst_33 = arith.constant 1.000000e+00 : f32
    %123 = vector.broadcast %cst_33 : f32 to vector<8x128xf32>
    %124 = arith.addf %123, %122 : vector<8x128xf32>
    %125 = arith.divf %123, %124 : vector<8x128xf32>
    %126 = vector.extract_strided_slice %119 {offsets = [0, 128], sizes = [8, 128], strides = [1, 1]} : vector<8x512xf32> to vector<8x128xf32>
    %127 = arith.negf %126 : vector<8x128xf32>
    %128 = math.exp %127 : vector<8x128xf32>
    %cst_34 = arith.constant 1.000000e+00 : f32
    %129 = vector.broadcast %cst_34 : f32 to vector<8x128xf32>
    %130 = arith.addf %129, %128 : vector<8x128xf32>
    %131 = arith.divf %129, %130 : vector<8x128xf32>
    %132 = vector.extract_strided_slice %119 {offsets = [0, 256], sizes = [8, 128], strides = [1, 1]} : vector<8x512xf32> to vector<8x128xf32>
    %133 = math.tanh %132 : vector<8x128xf32>
    %134 = vector.extract_strided_slice %119 {offsets = [0, 384], sizes = [8, 128], strides = [1, 1]} : vector<8x512xf32> to vector<8x128xf32>
    %135 = arith.negf %134 : vector<8x128xf32>
    %136 = math.exp %135 : vector<8x128xf32>
    %cst_35 = arith.constant 1.000000e+00 : f32
    %137 = vector.broadcast %cst_35 : f32 to vector<8x128xf32>
    %138 = arith.addf %137, %136 : vector<8x128xf32>
    %139 = arith.divf %137, %138 : vector<8x128xf32>
    %140 = arith.mulf %131, %106 : vector<8x128xf32>
    %141 = arith.mulf %125, %133 : vector<8x128xf32>
    %142 = arith.addf %140, %141 : vector<8x128xf32>
    %143 = math.tanh %142 : vector<8x128xf32>
    %144 = arith.mulf %139, %143 : vector<8x128xf32>
    %145 = arith.truncf %144 : vector<8x128xf32> to vector<8x128xbf16>
    %146 = arith.index_cast %c3_i32 : i32 to index
    %c0_36 = arith.constant 0 : index
    %c0_37 = arith.constant 0 : index
    %147 = vector.load %arg5[%146, %c0_36, %c0_37] : memref<16x8x128xbf16, #tpu.memory_space<vmem>>, vector<1x8x128xbf16>
    %148 = vector.shape_cast %147 : vector<1x8x128xbf16> to vector<8x128xbf16>
    %149 = vector.shape_cast %145 : vector<8x128xbf16> to vector<1x8x128xbf16>
    tpu.vector_store %arg5[%146, %c0_36, %c0_37], %149 {strides = array<i32>} : memref<16x8x128xbf16, #tpu.memory_space<vmem>>, vector<1x8x128xbf16>,
    %c4_i32 = arith.constant 4 : i32
    %150 = arith.index_cast %c4_i32 : i32 to index
    %c0_38 = arith.constant 0 : index
    %c0_39 = arith.constant 0 : index
    %151 = vector.load %arg1[%150, %c0_38, %c0_39] : memref<16x8x512xf32, #tpu.memory_space<vmem>>, vector<1x8x512xf32>
    %152 = vector.shape_cast %151 : vector<1x8x512xf32> to vector<8x512xf32>
    %153 = arith.truncf %144 : vector<8x128xf32> to vector<8x128xbf16>
    %cst_40 = arith.constant dense<0.000000e+00> : vector<8x512xf32>
    %154 = tpu.matmul %153, %3, %cst_40 {dimension_numbers = #tpu.dot_dimension_numbers<[1], [0], [0], [1], [0, 0, 1, 1], [], []>} : vector<8x128xbf16>, vector<128x512xbf16>, vector<8x512xf32> -> vector<8x512xf32>
    %155 = arith.addf %152, %154 : vector<8x512xf32>
    %156 = vector.extract_strided_slice %155 {offsets = [0, 0], sizes = [8, 128], strides = [1, 1]} : vector<8x512xf32> to vector<8x128xf32>
    %157 = arith.negf %156 : vector<8x128xf32>
    %158 = math.exp %157 : vector<8x128xf32>
    %cst_41 = arith.constant 1.000000e+00 : f32
    %159 = vector.broadcast %cst_41 : f32 to vector<8x128xf32>
    %160 = arith.addf %159, %158 : vector<8x128xf32>
    %161 = arith.divf %159, %160 : vector<8x128xf32>
    %162 = vector.extract_strided_slice %155 {offsets = [0, 128], sizes = [8, 128], strides = [1, 1]} : vector<8x512xf32> to vector<8x128xf32>
    %163 = arith.negf %162 : vector<8x128xf32>
    %164 = math.exp %163 : vector<8x128xf32>
    %cst_42 = arith.constant 1.000000e+00 : f32
    %165 = vector.broadcast %cst_42 : f32 to vector<8x128xf32>
    %166 = arith.addf %165, %164 : vector<8x128xf32>
    %167 = arith.divf %165, %166 : vector<8x128xf32>
    %168 = vector.extract_strided_slice %155 {offsets = [0, 256], sizes = [8, 128], strides = [1, 1]} : vector<8x512xf32> to vector<8x128xf32>
    %169 = math.tanh %168 : vector<8x128xf32>
    %170 = vector.extract_strided_slice %155 {offsets = [0, 384], sizes = [8, 128], strides = [1, 1]} : vector<8x512xf32> to vector<8x128xf32>
    %171 = arith.negf %170 : vector<8x128xf32>
    %172 = math.exp %171 : vector<8x128xf32>
    %cst_43 = arith.constant 1.000000e+00 : f32
    %173 = vector.broadcast %cst_43 : f32 to vector<8x128xf32>
    %174 = arith.addf %173, %172 : vector<8x128xf32>
    %175 = arith.divf %173, %174 : vector<8x128xf32>
    %176 = arith.mulf %167, %142 : vector<8x128xf32>
    %177 = arith.mulf %161, %169 : vector<8x128xf32>
    %178 = arith.addf %176, %177 : vector<8x128xf32>
    %179 = math.tanh %178 : vector<8x128xf32>
    %180 = arith.mulf %175, %179 : vector<8x128xf32>
    %181 = arith.truncf %180 : vector<8x128xf32> to vector<8x128xbf16>
    %182 = arith.index_cast %c4_i32 : i32 to index
    %c0_44 = arith.constant 0 : index
    %c0_45 = arith.constant 0 : index
    %183 = vector.load %arg5[%182, %c0_44, %c0_45] : memref<16x8x128xbf16, #tpu.memory_space<vmem>>, vector<1x8x128xbf16>
    %184 = vector.shape_cast %183 : vector<1x8x128xbf16> to vector<8x128xbf16>
    %185 = vector.shape_cast %181 : vector<8x128xbf16> to vector<1x8x128xbf16>
    tpu.vector_store %arg5[%182, %c0_44, %c0_45], %185 {strides = array<i32>} : memref<16x8x128xbf16, #tpu.memory_space<vmem>>, vector<1x8x128xbf16>,
    %c5_i32 = arith.constant 5 : i32
    %186 = arith.index_cast %c5_i32 : i32 to index
    %c0_46 = arith.constant 0 : index
    %c0_47 = arith.constant 0 : index
    %187 = vector.load %arg1[%186, %c0_46, %c0_47] : memref<16x8x512xf32, #tpu.memory_space<vmem>>, vector<1x8x512xf32>
    %188 = vector.shape_cast %187 : vector<1x8x512xf32> to vector<8x512xf32>
    %189 = arith.truncf %180 : vector<8x128xf32> to vector<8x128xbf16>
    %cst_48 = arith.constant dense<0.000000e+00> : vector<8x512xf32>
    %190 = tpu.matmul %189, %3, %cst_48 {dimension_numbers = #tpu.dot_dimension_numbers<[1], [0], [0], [1], [0, 0, 1, 1], [], []>} : vector<8x128xbf16>, vector<128x512xbf16>, vector<8x512xf32> -> vector<8x512xf32>
    %191 = arith.addf %188, %190 : vector<8x512xf32>
    %192 = vector.extract_strided_slice %191 {offsets = [0, 0], sizes = [8, 128], strides = [1, 1]} : vector<8x512xf32> to vector<8x128xf32>
    %193 = arith.negf %192 : vector<8x128xf32>
    %194 = math.exp %193 : vector<8x128xf32>
    %cst_49 = arith.constant 1.000000e+00 : f32
    %195 = vector.broadcast %cst_49 : f32 to vector<8x128xf32>
    %196 = arith.addf %195, %194 : vector<8x128xf32>
    %197 = arith.divf %195, %196 : vector<8x128xf32>
    %198 = vector.extract_strided_slice %191 {offsets = [0, 128], sizes = [8, 128], strides = [1, 1]} : vector<8x512xf32> to vector<8x128xf32>
    %199 = arith.negf %198 : vector<8x128xf32>
    %200 = math.exp %199 : vector<8x128xf32>
    %cst_50 = arith.constant 1.000000e+00 : f32
    %201 = vector.broadcast %cst_50 : f32 to vector<8x128xf32>
    %202 = arith.addf %201, %200 : vector<8x128xf32>
    %203 = arith.divf %201, %202 : vector<8x128xf32>
    %204 = vector.extract_strided_slice %191 {offsets = [0, 256], sizes = [8, 128], strides = [1, 1]} : vector<8x512xf32> to vector<8x128xf32>
    %205 = math.tanh %204 : vector<8x128xf32>
    %206 = vector.extract_strided_slice %191 {offsets = [0, 384], sizes = [8, 128], strides = [1, 1]} : vector<8x512xf32> to vector<8x128xf32>
    %207 = arith.negf %206 : vector<8x128xf32>
    %208 = math.exp %207 : vector<8x128xf32>
    %cst_51 = arith.constant 1.000000e+00 : f32
    %209 = vector.broadcast %cst_51 : f32 to vector<8x128xf32>
    %210 = arith.addf %209, %208 : vector<8x128xf32>
    %211 = arith.divf %209, %210 : vector<8x128xf32>
    %212 = arith.mulf %203, %178 : vector<8x128xf32>
    %213 = arith.mulf %197, %205 : vector<8x128xf32>
    %214 = arith.addf %212, %213 : vector<8x128xf32>
    %215 = math.tanh %214 : vector<8x128xf32>
    %216 = arith.mulf %211, %215 : vector<8x128xf32>
    %217 = arith.truncf %216 : vector<8x128xf32> to vector<8x128xbf16>
    %218 = arith.index_cast %c5_i32 : i32 to index
    %c0_52 = arith.constant 0 : index
    %c0_53 = arith.constant 0 : index
    %219 = vector.load %arg5[%218, %c0_52, %c0_53] : memref<16x8x128xbf16, #tpu.memory_space<vmem>>, vector<1x8x128xbf16>
    %220 = vector.shape_cast %219 : vector<1x8x128xbf16> to vector<8x128xbf16>
    %221 = vector.shape_cast %217 : vector<8x128xbf16> to vector<1x8x128xbf16>
    tpu.vector_store %arg5[%218, %c0_52, %c0_53], %221 {strides = array<i32>} : memref<16x8x128xbf16, #tpu.memory_space<vmem>>, vector<1x8x128xbf16>,
    %c6_i32 = arith.constant 6 : i32
    %222 = arith.index_cast %c6_i32 : i32 to index
    %c0_54 = arith.constant 0 : index
    %c0_55 = arith.constant 0 : index
    %223 = vector.load %arg1[%222, %c0_54, %c0_55] : memref<16x8x512xf32, #tpu.memory_space<vmem>>, vector<1x8x512xf32>
    %224 = vector.shape_cast %223 : vector<1x8x512xf32> to vector<8x512xf32>
    %225 = arith.truncf %216 : vector<8x128xf32> to vector<8x128xbf16>
    %cst_56 = arith.constant dense<0.000000e+00> : vector<8x512xf32>
    %226 = tpu.matmul %225, %3, %cst_56 {dimension_numbers = #tpu.dot_dimension_numbers<[1], [0], [0], [1], [0, 0, 1, 1], [], []>} : vector<8x128xbf16>, vector<128x512xbf16>, vector<8x512xf32> -> vector<8x512xf32>
    %227 = arith.addf %224, %226 : vector<8x512xf32>
    %228 = vector.extract_strided_slice %227 {offsets = [0, 0], sizes = [8, 128], strides = [1, 1]} : vector<8x512xf32> to vector<8x128xf32>
    %229 = arith.negf %228 : vector<8x128xf32>
    %230 = math.exp %229 : vector<8x128xf32>
    %cst_57 = arith.constant 1.000000e+00 : f32
    %231 = vector.broadcast %cst_57 : f32 to vector<8x128xf32>
    %232 = arith.addf %231, %230 : vector<8x128xf32>
    %233 = arith.divf %231, %232 : vector<8x128xf32>
    %234 = vector.extract_strided_slice %227 {offsets = [0, 128], sizes = [8, 128], strides = [1, 1]} : vector<8x512xf32> to vector<8x128xf32>
    %235 = arith.negf %234 : vector<8x128xf32>
    %236 = math.exp %235 : vector<8x128xf32>
    %cst_58 = arith.constant 1.000000e+00 : f32
    %237 = vector.broadcast %cst_58 : f32 to vector<8x128xf32>
    %238 = arith.addf %237, %236 : vector<8x128xf32>
    %239 = arith.divf %237, %238 : vector<8x128xf32>
    %240 = vector.extract_strided_slice %227 {offsets = [0, 256], sizes = [8, 128], strides = [1, 1]} : vector<8x512xf32> to vector<8x128xf32>
    %241 = math.tanh %240 : vector<8x128xf32>
    %242 = vector.extract_strided_slice %227 {offsets = [0, 384], sizes = [8, 128], strides = [1, 1]} : vector<8x512xf32> to vector<8x128xf32>
    %243 = arith.negf %242 : vector<8x128xf32>
    %244 = math.exp %243 : vector<8x128xf32>
    %cst_59 = arith.constant 1.000000e+00 : f32
    %245 = vector.broadcast %cst_59 : f32 to vector<8x128xf32>
    %246 = arith.addf %245, %244 : vector<8x128xf32>
    %247 = arith.divf %245, %246 : vector<8x128xf32>
    %248 = arith.mulf %239, %214 : vector<8x128xf32>
    %249 = arith.mulf %233, %241 : vector<8x128xf32>
    %250 = arith.addf %248, %249 : vector<8x128xf32>
    %251 = math.tanh %250 : vector<8x128xf32>
    %252 = arith.mulf %247, %251 : vector<8x128xf32>
    %253 = arith.truncf %252 : vector<8x128xf32> to vector<8x128xbf16>
    %254 = arith.index_cast %c6_i32 : i32 to index
    %c0_60 = arith.constant 0 : index
    %c0_61 = arith.constant 0 : index
    %255 = vector.load %arg5[%254, %c0_60, %c0_61] : memref<16x8x128xbf16, #tpu.memory_space<vmem>>, vector<1x8x128xbf16>
    %256 = vector.shape_cast %255 : vector<1x8x128xbf16> to vector<8x128xbf16>
    %257 = vector.shape_cast %253 : vector<8x128xbf16> to vector<1x8x128xbf16>
    tpu.vector_store %arg5[%254, %c0_60, %c0_61], %257 {strides = array<i32>} : memref<16x8x128xbf16, #tpu.memory_space<vmem>>, vector<1x8x128xbf16>,
    %c7_i32 = arith.constant 7 : i32
    %258 = arith.index_cast %c7_i32 : i32 to index
    %c0_62 = arith.constant 0 : index
    %c0_63 = arith.constant 0 : index
    %259 = vector.load %arg1[%258, %c0_62, %c0_63] : memref<16x8x512xf32, #tpu.memory_space<vmem>>, vector<1x8x512xf32>
    %260 = vector.shape_cast %259 : vector<1x8x512xf32> to vector<8x512xf32>
    %261 = arith.truncf %252 : vector<8x128xf32> to vector<8x128xbf16>
    %cst_64 = arith.constant dense<0.000000e+00> : vector<8x512xf32>
    %262 = tpu.matmul %261, %3, %cst_64 {dimension_numbers = #tpu.dot_dimension_numbers<[1], [0], [0], [1], [0, 0, 1, 1], [], []>} : vector<8x128xbf16>, vector<128x512xbf16>, vector<8x512xf32> -> vector<8x512xf32>
    %263 = arith.addf %260, %262 : vector<8x512xf32>
    %264 = vector.extract_strided_slice %263 {offsets = [0, 0], sizes = [8, 128], strides = [1, 1]} : vector<8x512xf32> to vector<8x128xf32>
    %265 = arith.negf %264 : vector<8x128xf32>
    %266 = math.exp %265 : vector<8x128xf32>
    %cst_65 = arith.constant 1.000000e+00 : f32
    %267 = vector.broadcast %cst_65 : f32 to vector<8x128xf32>
    %268 = arith.addf %267, %266 : vector<8x128xf32>
    %269 = arith.divf %267, %268 : vector<8x128xf32>
    %270 = vector.extract_strided_slice %263 {offsets = [0, 128], sizes = [8, 128], strides = [1, 1]} : vector<8x512xf32> to vector<8x128xf32>
    %271 = arith.negf %270 : vector<8x128xf32>
    %272 = math.exp %271 : vector<8x128xf32>
    %cst_66 = arith.constant 1.000000e+00 : f32
    %273 = vector.broadcast %cst_66 : f32 to vector<8x128xf32>
    %274 = arith.addf %273, %272 : vector<8x128xf32>
    %275 = arith.divf %273, %274 : vector<8x128xf32>
    %276 = vector.extract_strided_slice %263 {offsets = [0, 256], sizes = [8, 128], strides = [1, 1]} : vector<8x512xf32> to vector<8x128xf32>
    %277 = math.tanh %276 : vector<8x128xf32>
    %278 = vector.extract_strided_slice %263 {offsets = [0, 384], sizes = [8, 128], strides = [1, 1]} : vector<8x512xf32> to vector<8x128xf32>
    %279 = arith.negf %278 : vector<8x128xf32>
    %280 = math.exp %279 : vector<8x128xf32>
    %cst_67 = arith.constant 1.000000e+00 : f32
    %281 = vector.broadcast %cst_67 : f32 to vector<8x128xf32>
    %282 = arith.addf %281, %280 : vector<8x128xf32>
    %283 = arith.divf %281, %282 : vector<8x128xf32>
    %284 = arith.mulf %275, %250 : vector<8x128xf32>
    %285 = arith.mulf %269, %277 : vector<8x128xf32>
    %286 = arith.addf %284, %285 : vector<8x128xf32>
    %287 = math.tanh %286 : vector<8x128xf32>
    %288 = arith.mulf %283, %287 : vector<8x128xf32>
    %289 = arith.truncf %288 : vector<8x128xf32> to vector<8x128xbf16>
    %290 = arith.index_cast %c7_i32 : i32 to index
    %c0_68 = arith.constant 0 : index
    %c0_69 = arith.constant 0 : index
    %291 = vector.load %arg5[%290, %c0_68, %c0_69] : memref<16x8x128xbf16, #tpu.memory_space<vmem>>, vector<1x8x128xbf16>
    %292 = vector.shape_cast %291 : vector<1x8x128xbf16> to vector<8x128xbf16>
    %293 = vector.shape_cast %289 : vector<8x128xbf16> to vector<1x8x128xbf16>
    tpu.vector_store %arg5[%290, %c0_68, %c0_69], %293 {strides = array<i32>} : memref<16x8x128xbf16, #tpu.memory_space<vmem>>, vector<1x8x128xbf16>,
    %c8_i32 = arith.constant 8 : i32
    %294 = arith.index_cast %c8_i32 : i32 to index
    %c0_70 = arith.constant 0 : index
    %c0_71 = arith.constant 0 : index
    %295 = vector.load %arg1[%294, %c0_70, %c0_71] : memref<16x8x512xf32, #tpu.memory_space<vmem>>, vector<1x8x512xf32>
    %296 = vector.shape_cast %295 : vector<1x8x512xf32> to vector<8x512xf32>
    %297 = arith.truncf %288 : vector<8x128xf32> to vector<8x128xbf16>
    %cst_72 = arith.constant dense<0.000000e+00> : vector<8x512xf32>
    %298 = tpu.matmul %297, %3, %cst_72 {dimension_numbers = #tpu.dot_dimension_numbers<[1], [0], [0], [1], [0, 0, 1, 1], [], []>} : vector<8x128xbf16>, vector<128x512xbf16>, vector<8x512xf32> -> vector<8x512xf32>
    %299 = arith.addf %296, %298 : vector<8x512xf32>
    %300 = vector.extract_strided_slice %299 {offsets = [0, 0], sizes = [8, 128], strides = [1, 1]} : vector<8x512xf32> to vector<8x128xf32>
    %301 = arith.negf %300 : vector<8x128xf32>
    %302 = math.exp %301 : vector<8x128xf32>
    %cst_73 = arith.constant 1.000000e+00 : f32
    %303 = vector.broadcast %cst_73 : f32 to vector<8x128xf32>
    %304 = arith.addf %303, %302 : vector<8x128xf32>
    %305 = arith.divf %303, %304 : vector<8x128xf32>
    %306 = vector.extract_strided_slice %299 {offsets = [0, 128], sizes = [8, 128], strides = [1, 1]} : vector<8x512xf32> to vector<8x128xf32>
    %307 = arith.negf %306 : vector<8x128xf32>
    %308 = math.exp %307 : vector<8x128xf32>
    %cst_74 = arith.constant 1.000000e+00 : f32
    %309 = vector.broadcast %cst_74 : f32 to vector<8x128xf32>
    %310 = arith.addf %309, %308 : vector<8x128xf32>
    %311 = arith.divf %309, %310 : vector<8x128xf32>
    %312 = vector.extract_strided_slice %299 {offsets = [0, 256], sizes = [8, 128], strides = [1, 1]} : vector<8x512xf32> to vector<8x128xf32>
    %313 = math.tanh %312 : vector<8x128xf32>
    %314 = vector.extract_strided_slice %299 {offsets = [0, 384], sizes = [8, 128], strides = [1, 1]} : vector<8x512xf32> to vector<8x128xf32>
    %315 = arith.negf %314 : vector<8x128xf32>
    %316 = math.exp %315 : vector<8x128xf32>
    %cst_75 = arith.constant 1.000000e+00 : f32
    %317 = vector.broadcast %cst_75 : f32 to vector<8x128xf32>
    %318 = arith.addf %317, %316 : vector<8x128xf32>
    %319 = arith.divf %317, %318 : vector<8x128xf32>
    %320 = arith.mulf %311, %286 : vector<8x128xf32>
    %321 = arith.mulf %305, %313 : vector<8x128xf32>
    %322 = arith.addf %320, %321 : vector<8x128xf32>
    %323 = math.tanh %322 : vector<8x128xf32>
    %324 = arith.mulf %319, %323 : vector<8x128xf32>
    %325 = arith.truncf %324 : vector<8x128xf32> to vector<8x128xbf16>
    %326 = arith.index_cast %c8_i32 : i32 to index
    %c0_76 = arith.constant 0 : index
    %c0_77 = arith.constant 0 : index
    %327 = vector.load %arg5[%326, %c0_76, %c0_77] : memref<16x8x128xbf16, #tpu.memory_space<vmem>>, vector<1x8x128xbf16>
    %328 = vector.shape_cast %327 : vector<1x8x128xbf16> to vector<8x128xbf16>
    %329 = vector.shape_cast %325 : vector<8x128xbf16> to vector<1x8x128xbf16>
    tpu.vector_store %arg5[%326, %c0_76, %c0_77], %329 {strides = array<i32>} : memref<16x8x128xbf16, #tpu.memory_space<vmem>>, vector<1x8x128xbf16>,
    %c9_i32 = arith.constant 9 : i32
    %330 = arith.index_cast %c9_i32 : i32 to index
    %c0_78 = arith.constant 0 : index
    %c0_79 = arith.constant 0 : index
    %331 = vector.load %arg1[%330, %c0_78, %c0_79] : memref<16x8x512xf32, #tpu.memory_space<vmem>>, vector<1x8x512xf32>
    %332 = vector.shape_cast %331 : vector<1x8x512xf32> to vector<8x512xf32>
    %333 = arith.truncf %324 : vector<8x128xf32> to vector<8x128xbf16>
    %cst_80 = arith.constant dense<0.000000e+00> : vector<8x512xf32>
    %334 = tpu.matmul %333, %3, %cst_80 {dimension_numbers = #tpu.dot_dimension_numbers<[1], [0], [0], [1], [0, 0, 1, 1], [], []>} : vector<8x128xbf16>, vector<128x512xbf16>, vector<8x512xf32> -> vector<8x512xf32>
    %335 = arith.addf %332, %334 : vector<8x512xf32>
    %336 = vector.extract_strided_slice %335 {offsets = [0, 0], sizes = [8, 128], strides = [1, 1]} : vector<8x512xf32> to vector<8x128xf32>
    %337 = arith.negf %336 : vector<8x128xf32>
    %338 = math.exp %337 : vector<8x128xf32>
    %cst_81 = arith.constant 1.000000e+00 : f32
    %339 = vector.broadcast %cst_81 : f32 to vector<8x128xf32>
    %340 = arith.addf %339, %338 : vector<8x128xf32>
    %341 = arith.divf %339, %340 : vector<8x128xf32>
    %342 = vector.extract_strided_slice %335 {offsets = [0, 128], sizes = [8, 128], strides = [1, 1]} : vector<8x512xf32> to vector<8x128xf32>
    %343 = arith.negf %342 : vector<8x128xf32>
    %344 = math.exp %343 : vector<8x128xf32>
    %cst_82 = arith.constant 1.000000e+00 : f32
    %345 = vector.broadcast %cst_82 : f32 to vector<8x128xf32>
    %346 = arith.addf %345, %344 : vector<8x128xf32>
    %347 = arith.divf %345, %346 : vector<8x128xf32>
    %348 = vector.extract_strided_slice %335 {offsets = [0, 256], sizes = [8, 128], strides = [1, 1]} : vector<8x512xf32> to vector<8x128xf32>
    %349 = math.tanh %348 : vector<8x128xf32>
    %350 = vector.extract_strided_slice %335 {offsets = [0, 384], sizes = [8, 128], strides = [1, 1]} : vector<8x512xf32> to vector<8x128xf32>
    %351 = arith.negf %350 : vector<8x128xf32>
    %352 = math.exp %351 : vector<8x128xf32>
    %cst_83 = arith.constant 1.000000e+00 : f32
    %353 = vector.broadcast %cst_83 : f32 to vector<8x128xf32>
    %354 = arith.addf %353, %352 : vector<8x128xf32>
    %355 = arith.divf %353, %354 : vector<8x128xf32>
    %356 = arith.mulf %347, %322 : vector<8x128xf32>
    %357 = arith.mulf %341, %349 : vector<8x128xf32>
    %358 = arith.addf %356, %357 : vector<8x128xf32>
    %359 = math.tanh %358 : vector<8x128xf32>
    %360 = arith.mulf %355, %359 : vector<8x128xf32>
    %361 = arith.truncf %360 : vector<8x128xf32> to vector<8x128xbf16>
    %362 = arith.index_cast %c9_i32 : i32 to index
    %c0_84 = arith.constant 0 : index
    %c0_85 = arith.constant 0 : index
    %363 = vector.load %arg5[%362, %c0_84, %c0_85] : memref<16x8x128xbf16, #tpu.memory_space<vmem>>, vector<1x8x128xbf16>
    %364 = vector.shape_cast %363 : vector<1x8x128xbf16> to vector<8x128xbf16>
    %365 = vector.shape_cast %361 : vector<8x128xbf16> to vector<1x8x128xbf16>
    tpu.vector_store %arg5[%362, %c0_84, %c0_85], %365 {strides = array<i32>} : memref<16x8x128xbf16, #tpu.memory_space<vmem>>, vector<1x8x128xbf16>,
    %c10_i32 = arith.constant 10 : i32
    %366 = arith.index_cast %c10_i32 : i32 to index
    %c0_86 = arith.constant 0 : index
    %c0_87 = arith.constant 0 : index
    %367 = vector.load %arg1[%366, %c0_86, %c0_87] : memref<16x8x512xf32, #tpu.memory_space<vmem>>, vector<1x8x512xf32>
    %368 = vector.shape_cast %367 : vector<1x8x512xf32> to vector<8x512xf32>
    %369 = arith.truncf %360 : vector<8x128xf32> to vector<8x128xbf16>
    %cst_88 = arith.constant dense<0.000000e+00> : vector<8x512xf32>
    %370 = tpu.matmul %369, %3, %cst_88 {dimension_numbers = #tpu.dot_dimension_numbers<[1], [0], [0], [1], [0, 0, 1, 1], [], []>} : vector<8x128xbf16>, vector<128x512xbf16>, vector<8x512xf32> -> vector<8x512xf32>
    %371 = arith.addf %368, %370 : vector<8x512xf32>
    %372 = vector.extract_strided_slice %371 {offsets = [0, 0], sizes = [8, 128], strides = [1, 1]} : vector<8x512xf32> to vector<8x128xf32>
    %373 = arith.negf %372 : vector<8x128xf32>
    %374 = math.exp %373 : vector<8x128xf32>
    %cst_89 = arith.constant 1.000000e+00 : f32
    %375 = vector.broadcast %cst_89 : f32 to vector<8x128xf32>
    %376 = arith.addf %375, %374 : vector<8x128xf32>
    %377 = arith.divf %375, %376 : vector<8x128xf32>
    %378 = vector.extract_strided_slice %371 {offsets = [0, 128], sizes = [8, 128], strides = [1, 1]} : vector<8x512xf32> to vector<8x128xf32>
    %379 = arith.negf %378 : vector<8x128xf32>
    %380 = math.exp %379 : vector<8x128xf32>
    %cst_90 = arith.constant 1.000000e+00 : f32
    %381 = vector.broadcast %cst_90 : f32 to vector<8x128xf32>
    %382 = arith.addf %381, %380 : vector<8x128xf32>
    %383 = arith.divf %381, %382 : vector<8x128xf32>
    %384 = vector.extract_strided_slice %371 {offsets = [0, 256], sizes = [8, 128], strides = [1, 1]} : vector<8x512xf32> to vector<8x128xf32>
    %385 = math.tanh %384 : vector<8x128xf32>
    %386 = vector.extract_strided_slice %371 {offsets = [0, 384], sizes = [8, 128], strides = [1, 1]} : vector<8x512xf32> to vector<8x128xf32>
    %387 = arith.negf %386 : vector<8x128xf32>
    %388 = math.exp %387 : vector<8x128xf32>
    %cst_91 = arith.constant 1.000000e+00 : f32
    %389 = vector.broadcast %cst_91 : f32 to vector<8x128xf32>
    %390 = arith.addf %389, %388 : vector<8x128xf32>
    %391 = arith.divf %389, %390 : vector<8x128xf32>
    %392 = arith.mulf %383, %358 : vector<8x128xf32>
    %393 = arith.mulf %377, %385 : vector<8x128xf32>
    %394 = arith.addf %392, %393 : vector<8x128xf32>
    %395 = math.tanh %394 : vector<8x128xf32>
    %396 = arith.mulf %391, %395 : vector<8x128xf32>
    %397 = arith.truncf %396 : vector<8x128xf32> to vector<8x128xbf16>
    %398 = arith.index_cast %c10_i32 : i32 to index
    %c0_92 = arith.constant 0 : index
    %c0_93 = arith.constant 0 : index
    %399 = vector.load %arg5[%398, %c0_92, %c0_93] : memref<16x8x128xbf16, #tpu.memory_space<vmem>>, vector<1x8x128xbf16>
    %400 = vector.shape_cast %399 : vector<1x8x128xbf16> to vector<8x128xbf16>
    %401 = vector.shape_cast %397 : vector<8x128xbf16> to vector<1x8x128xbf16>
    tpu.vector_store %arg5[%398, %c0_92, %c0_93], %401 {strides = array<i32>} : memref<16x8x128xbf16, #tpu.memory_space<vmem>>, vector<1x8x128xbf16>,
    %c11_i32 = arith.constant 11 : i32
    %402 = arith.index_cast %c11_i32 : i32 to index
    %c0_94 = arith.constant 0 : index
    %c0_95 = arith.constant 0 : index
    %403 = vector.load %arg1[%402, %c0_94, %c0_95] : memref<16x8x512xf32, #tpu.memory_space<vmem>>, vector<1x8x512xf32>
    %404 = vector.shape_cast %403 : vector<1x8x512xf32> to vector<8x512xf32>
    %405 = arith.truncf %396 : vector<8x128xf32> to vector<8x128xbf16>
    %cst_96 = arith.constant dense<0.000000e+00> : vector<8x512xf32>
    %406 = tpu.matmul %405, %3, %cst_96 {dimension_numbers = #tpu.dot_dimension_numbers<[1], [0], [0], [1], [0, 0, 1, 1], [], []>} : vector<8x128xbf16>, vector<128x512xbf16>, vector<8x512xf32> -> vector<8x512xf32>
    %407 = arith.addf %404, %406 : vector<8x512xf32>
    %408 = vector.extract_strided_slice %407 {offsets = [0, 0], sizes = [8, 128], strides = [1, 1]} : vector<8x512xf32> to vector<8x128xf32>
    %409 = arith.negf %408 : vector<8x128xf32>
    %410 = math.exp %409 : vector<8x128xf32>
    %cst_97 = arith.constant 1.000000e+00 : f32
    %411 = vector.broadcast %cst_97 : f32 to vector<8x128xf32>
    %412 = arith.addf %411, %410 : vector<8x128xf32>
    %413 = arith.divf %411, %412 : vector<8x128xf32>
    %414 = vector.extract_strided_slice %407 {offsets = [0, 128], sizes = [8, 128], strides = [1, 1]} : vector<8x512xf32> to vector<8x128xf32>
    %415 = arith.negf %414 : vector<8x128xf32>
    %416 = math.exp %415 : vector<8x128xf32>
    %cst_98 = arith.constant 1.000000e+00 : f32
    %417 = vector.broadcast %cst_98 : f32 to vector<8x128xf32>
    %418 = arith.addf %417, %416 : vector<8x128xf32>
    %419 = arith.divf %417, %418 : vector<8x128xf32>
    %420 = vector.extract_strided_slice %407 {offsets = [0, 256], sizes = [8, 128], strides = [1, 1]} : vector<8x512xf32> to vector<8x128xf32>
    %421 = math.tanh %420 : vector<8x128xf32>
    %422 = vector.extract_strided_slice %407 {offsets = [0, 384], sizes = [8, 128], strides = [1, 1]} : vector<8x512xf32> to vector<8x128xf32>
    %423 = arith.negf %422 : vector<8x128xf32>
    %424 = math.exp %423 : vector<8x128xf32>
    %cst_99 = arith.constant 1.000000e+00 : f32
    %425 = vector.broadcast %cst_99 : f32 to vector<8x128xf32>
    %426 = arith.addf %425, %424 : vector<8x128xf32>
    %427 = arith.divf %425, %426 : vector<8x128xf32>
    %428 = arith.mulf %419, %394 : vector<8x128xf32>
    %429 = arith.mulf %413, %421 : vector<8x128xf32>
    %430 = arith.addf %428, %429 : vector<8x128xf32>
    %431 = math.tanh %430 : vector<8x128xf32>
    %432 = arith.mulf %427, %431 : vector<8x128xf32>
    %433 = arith.truncf %432 : vector<8x128xf32> to vector<8x128xbf16>
    %434 = arith.index_cast %c11_i32 : i32 to index
    %c0_100 = arith.constant 0 : index
    %c0_101 = arith.constant 0 : index
    %435 = vector.load %arg5[%434, %c0_100, %c0_101] : memref<16x8x128xbf16, #tpu.memory_space<vmem>>, vector<1x8x128xbf16>
    %436 = vector.shape_cast %435 : vector<1x8x128xbf16> to vector<8x128xbf16>
    %437 = vector.shape_cast %433 : vector<8x128xbf16> to vector<1x8x128xbf16>
    tpu.vector_store %arg5[%434, %c0_100, %c0_101], %437 {strides = array<i32>} : memref<16x8x128xbf16, #tpu.memory_space<vmem>>, vector<1x8x128xbf16>,
    %c12_i32 = arith.constant 12 : i32
    %438 = arith.index_cast %c12_i32 : i32 to index
    %c0_102 = arith.constant 0 : index
    %c0_103 = arith.constant 0 : index
    %439 = vector.load %arg1[%438, %c0_102, %c0_103] : memref<16x8x512xf32, #tpu.memory_space<vmem>>, vector<1x8x512xf32>
    %440 = vector.shape_cast %439 : vector<1x8x512xf32> to vector<8x512xf32>
    %441 = arith.truncf %432 : vector<8x128xf32> to vector<8x128xbf16>
    %cst_104 = arith.constant dense<0.000000e+00> : vector<8x512xf32>
    %442 = tpu.matmul %441, %3, %cst_104 {dimension_numbers = #tpu.dot_dimension_numbers<[1], [0], [0], [1], [0, 0, 1, 1], [], []>} : vector<8x128xbf16>, vector<128x512xbf16>, vector<8x512xf32> -> vector<8x512xf32>
    %443 = arith.addf %440, %442 : vector<8x512xf32>
    %444 = vector.extract_strided_slice %443 {offsets = [0, 0], sizes = [8, 128], strides = [1, 1]} : vector<8x512xf32> to vector<8x128xf32>
    %445 = arith.negf %444 : vector<8x128xf32>
    %446 = math.exp %445 : vector<8x128xf32>
    %cst_105 = arith.constant 1.000000e+00 : f32
    %447 = vector.broadcast %cst_105 : f32 to vector<8x128xf32>
    %448 = arith.addf %447, %446 : vector<8x128xf32>
    %449 = arith.divf %447, %448 : vector<8x128xf32>
    %450 = vector.extract_strided_slice %443 {offsets = [0, 128], sizes = [8, 128], strides = [1, 1]} : vector<8x512xf32> to vector<8x128xf32>
    %451 = arith.negf %450 : vector<8x128xf32>
    %452 = math.exp %451 : vector<8x128xf32>
    %cst_106 = arith.constant 1.000000e+00 : f32
    %453 = vector.broadcast %cst_106 : f32 to vector<8x128xf32>
    %454 = arith.addf %453, %452 : vector<8x128xf32>
    %455 = arith.divf %453, %454 : vector<8x128xf32>
    %456 = vector.extract_strided_slice %443 {offsets = [0, 256], sizes = [8, 128], strides = [1, 1]} : vector<8x512xf32> to vector<8x128xf32>
    %457 = math.tanh %456 : vector<8x128xf32>
    %458 = vector.extract_strided_slice %443 {offsets = [0, 384], sizes = [8, 128], strides = [1, 1]} : vector<8x512xf32> to vector<8x128xf32>
    %459 = arith.negf %458 : vector<8x128xf32>
    %460 = math.exp %459 : vector<8x128xf32>
    %cst_107 = arith.constant 1.000000e+00 : f32
    %461 = vector.broadcast %cst_107 : f32 to vector<8x128xf32>
    %462 = arith.addf %461, %460 : vector<8x128xf32>
    %463 = arith.divf %461, %462 : vector<8x128xf32>
    %464 = arith.mulf %455, %430 : vector<8x128xf32>
    %465 = arith.mulf %449, %457 : vector<8x128xf32>
    %466 = arith.addf %464, %465 : vector<8x128xf32>
    %467 = math.tanh %466 : vector<8x128xf32>
    %468 = arith.mulf %463, %467 : vector<8x128xf32>
    %469 = arith.truncf %468 : vector<8x128xf32> to vector<8x128xbf16>
    %470 = arith.index_cast %c12_i32 : i32 to index
    %c0_108 = arith.constant 0 : index
    %c0_109 = arith.constant 0 : index
    %471 = vector.load %arg5[%470, %c0_108, %c0_109] : memref<16x8x128xbf16, #tpu.memory_space<vmem>>, vector<1x8x128xbf16>
    %472 = vector.shape_cast %471 : vector<1x8x128xbf16> to vector<8x128xbf16>
    %473 = vector.shape_cast %469 : vector<8x128xbf16> to vector<1x8x128xbf16>
    tpu.vector_store %arg5[%470, %c0_108, %c0_109], %473 {strides = array<i32>} : memref<16x8x128xbf16, #tpu.memory_space<vmem>>, vector<1x8x128xbf16>,
    %c13_i32 = arith.constant 13 : i32
    %474 = arith.index_cast %c13_i32 : i32 to index
    %c0_110 = arith.constant 0 : index
    %c0_111 = arith.constant 0 : index
    %475 = vector.load %arg1[%474, %c0_110, %c0_111] : memref<16x8x512xf32, #tpu.memory_space<vmem>>, vector<1x8x512xf32>
    %476 = vector.shape_cast %475 : vector<1x8x512xf32> to vector<8x512xf32>
    %477 = arith.truncf %468 : vector<8x128xf32> to vector<8x128xbf16>
    %cst_112 = arith.constant dense<0.000000e+00> : vector<8x512xf32>
    %478 = tpu.matmul %477, %3, %cst_112 {dimension_numbers = #tpu.dot_dimension_numbers<[1], [0], [0], [1], [0, 0, 1, 1], [], []>} : vector<8x128xbf16>, vector<128x512xbf16>, vector<8x512xf32> -> vector<8x512xf32>
    %479 = arith.addf %476, %478 : vector<8x512xf32>
    %480 = vector.extract_strided_slice %479 {offsets = [0, 0], sizes = [8, 128], strides = [1, 1]} : vector<8x512xf32> to vector<8x128xf32>
    %481 = arith.negf %480 : vector<8x128xf32>
    %482 = math.exp %481 : vector<8x128xf32>
    %cst_113 = arith.constant 1.000000e+00 : f32
    %483 = vector.broadcast %cst_113 : f32 to vector<8x128xf32>
    %484 = arith.addf %483, %482 : vector<8x128xf32>
    %485 = arith.divf %483, %484 : vector<8x128xf32>
    %486 = vector.extract_strided_slice %479 {offsets = [0, 128], sizes = [8, 128], strides = [1, 1]} : vector<8x512xf32> to vector<8x128xf32>
    %487 = arith.negf %486 : vector<8x128xf32>
    %488 = math.exp %487 : vector<8x128xf32>
    %cst_114 = arith.constant 1.000000e+00 : f32
    %489 = vector.broadcast %cst_114 : f32 to vector<8x128xf32>
    %490 = arith.addf %489, %488 : vector<8x128xf32>
    %491 = arith.divf %489, %490 : vector<8x128xf32>
    %492 = vector.extract_strided_slice %479 {offsets = [0, 256], sizes = [8, 128], strides = [1, 1]} : vector<8x512xf32> to vector<8x128xf32>
    %493 = math.tanh %492 : vector<8x128xf32>
    %494 = vector.extract_strided_slice %479 {offsets = [0, 384], sizes = [8, 128], strides = [1, 1]} : vector<8x512xf32> to vector<8x128xf32>
    %495 = arith.negf %494 : vector<8x128xf32>
    %496 = math.exp %495 : vector<8x128xf32>
    %cst_115 = arith.constant 1.000000e+00 : f32
    %497 = vector.broadcast %cst_115 : f32 to vector<8x128xf32>
    %498 = arith.addf %497, %496 : vector<8x128xf32>
    %499 = arith.divf %497, %498 : vector<8x128xf32>
    %500 = arith.mulf %491, %466 : vector<8x128xf32>
    %501 = arith.mulf %485, %493 : vector<8x128xf32>
    %502 = arith.addf %500, %501 : vector<8x128xf32>
    %503 = math.tanh %502 : vector<8x128xf32>
    %504 = arith.mulf %499, %503 : vector<8x128xf32>
    %505 = arith.truncf %504 : vector<8x128xf32> to vector<8x128xbf16>
    %506 = arith.index_cast %c13_i32 : i32 to index
    %c0_116 = arith.constant 0 : index
    %c0_117 = arith.constant 0 : index
    %507 = vector.load %arg5[%506, %c0_116, %c0_117] : memref<16x8x128xbf16, #tpu.memory_space<vmem>>, vector<1x8x128xbf16>
    %508 = vector.shape_cast %507 : vector<1x8x128xbf16> to vector<8x128xbf16>
    %509 = vector.shape_cast %505 : vector<8x128xbf16> to vector<1x8x128xbf16>
    tpu.vector_store %arg5[%506, %c0_116, %c0_117], %509 {strides = array<i32>} : memref<16x8x128xbf16, #tpu.memory_space<vmem>>, vector<1x8x128xbf16>,
    %c14_i32 = arith.constant 14 : i32
    %510 = arith.index_cast %c14_i32 : i32 to index
    %c0_118 = arith.constant 0 : index
    %c0_119 = arith.constant 0 : index
    %511 = vector.load %arg1[%510, %c0_118, %c0_119] : memref<16x8x512xf32, #tpu.memory_space<vmem>>, vector<1x8x512xf32>
    %512 = vector.shape_cast %511 : vector<1x8x512xf32> to vector<8x512xf32>
    %513 = arith.truncf %504 : vector<8x128xf32> to vector<8x128xbf16>
    %cst_120 = arith.constant dense<0.000000e+00> : vector<8x512xf32>
    %514 = tpu.matmul %513, %3, %cst_120 {dimension_numbers = #tpu.dot_dimension_numbers<[1], [0], [0], [1], [0, 0, 1, 1], [], []>} : vector<8x128xbf16>, vector<128x512xbf16>, vector<8x512xf32> -> vector<8x512xf32>
    %515 = arith.addf %512, %514 : vector<8x512xf32>
    %516 = vector.extract_strided_slice %515 {offsets = [0, 0], sizes = [8, 128], strides = [1, 1]} : vector<8x512xf32> to vector<8x128xf32>
    %517 = arith.negf %516 : vector<8x128xf32>
    %518 = math.exp %517 : vector<8x128xf32>
    %cst_121 = arith.constant 1.000000e+00 : f32
    %519 = vector.broadcast %cst_121 : f32 to vector<8x128xf32>
    %520 = arith.addf %519, %518 : vector<8x128xf32>
    %521 = arith.divf %519, %520 : vector<8x128xf32>
    %522 = vector.extract_strided_slice %515 {offsets = [0, 128], sizes = [8, 128], strides = [1, 1]} : vector<8x512xf32> to vector<8x128xf32>
    %523 = arith.negf %522 : vector<8x128xf32>
    %524 = math.exp %523 : vector<8x128xf32>
    %cst_122 = arith.constant 1.000000e+00 : f32
    %525 = vector.broadcast %cst_122 : f32 to vector<8x128xf32>
    %526 = arith.addf %525, %524 : vector<8x128xf32>
    %527 = arith.divf %525, %526 : vector<8x128xf32>
    %528 = vector.extract_strided_slice %515 {offsets = [0, 256], sizes = [8, 128], strides = [1, 1]} : vector<8x512xf32> to vector<8x128xf32>
    %529 = math.tanh %528 : vector<8x128xf32>
    %530 = vector.extract_strided_slice %515 {offsets = [0, 384], sizes = [8, 128], strides = [1, 1]} : vector<8x512xf32> to vector<8x128xf32>
    %531 = arith.negf %530 : vector<8x128xf32>
    %532 = math.exp %531 : vector<8x128xf32>
    %cst_123 = arith.constant 1.000000e+00 : f32
    %533 = vector.broadcast %cst_123 : f32 to vector<8x128xf32>
    %534 = arith.addf %533, %532 : vector<8x128xf32>
    %535 = arith.divf %533, %534 : vector<8x128xf32>
    %536 = arith.mulf %527, %502 : vector<8x128xf32>
    %537 = arith.mulf %521, %529 : vector<8x128xf32>
    %538 = arith.addf %536, %537 : vector<8x128xf32>
    %539 = math.tanh %538 : vector<8x128xf32>
    %540 = arith.mulf %535, %539 : vector<8x128xf32>
    %541 = arith.truncf %540 : vector<8x128xf32> to vector<8x128xbf16>
    %542 = arith.index_cast %c14_i32 : i32 to index
    %c0_124 = arith.constant 0 : index
    %c0_125 = arith.constant 0 : index
    %543 = vector.load %arg5[%542, %c0_124, %c0_125] : memref<16x8x128xbf16, #tpu.memory_space<vmem>>, vector<1x8x128xbf16>
    %544 = vector.shape_cast %543 : vector<1x8x128xbf16> to vector<8x128xbf16>
    %545 = vector.shape_cast %541 : vector<8x128xbf16> to vector<1x8x128xbf16>
    tpu.vector_store %arg5[%542, %c0_124, %c0_125], %545 {strides = array<i32>} : memref<16x8x128xbf16, #tpu.memory_space<vmem>>, vector<1x8x128xbf16>,
    %c15_i32 = arith.constant 15 : i32
    %546 = arith.index_cast %c15_i32 : i32 to index
    %c0_126 = arith.constant 0 : index
    %c0_127 = arith.constant 0 : index
    %547 = vector.load %arg1[%546, %c0_126, %c0_127] : memref<16x8x512xf32, #tpu.memory_space<vmem>>, vector<1x8x512xf32>
    %548 = vector.shape_cast %547 : vector<1x8x512xf32> to vector<8x512xf32>
    %549 = arith.truncf %540 : vector<8x128xf32> to vector<8x128xbf16>
    %cst_128 = arith.constant dense<0.000000e+00> : vector<8x512xf32>
    %550 = tpu.matmul %549, %3, %cst_128 {dimension_numbers = #tpu.dot_dimension_numbers<[1], [0], [0], [1], [0, 0, 1, 1], [], []>} : vector<8x128xbf16>, vector<128x512xbf16>, vector<8x512xf32> -> vector<8x512xf32>
    %551 = arith.addf %548, %550 : vector<8x512xf32>
    %552 = vector.extract_strided_slice %551 {offsets = [0, 0], sizes = [8, 128], strides = [1, 1]} : vector<8x512xf32> to vector<8x128xf32>
    %553 = arith.negf %552 : vector<8x128xf32>
    %554 = math.exp %553 : vector<8x128xf32>
    %cst_129 = arith.constant 1.000000e+00 : f32
    %555 = vector.broadcast %cst_129 : f32 to vector<8x128xf32>
    %556 = arith.addf %555, %554 : vector<8x128xf32>
    %557 = arith.divf %555, %556 : vector<8x128xf32>
    %558 = vector.extract_strided_slice %551 {offsets = [0, 128], sizes = [8, 128], strides = [1, 1]} : vector<8x512xf32> to vector<8x128xf32>
    %559 = arith.negf %558 : vector<8x128xf32>
    %560 = math.exp %559 : vector<8x128xf32>
    %cst_130 = arith.constant 1.000000e+00 : f32
    %561 = vector.broadcast %cst_130 : f32 to vector<8x128xf32>
    %562 = arith.addf %561, %560 : vector<8x128xf32>
    %563 = arith.divf %561, %562 : vector<8x128xf32>
    %564 = vector.extract_strided_slice %551 {offsets = [0, 256], sizes = [8, 128], strides = [1, 1]} : vector<8x512xf32> to vector<8x128xf32>
    %565 = math.tanh %564 : vector<8x128xf32>
    %566 = vector.extract_strided_slice %551 {offsets = [0, 384], sizes = [8, 128], strides = [1, 1]} : vector<8x512xf32> to vector<8x128xf32>
    %567 = arith.negf %566 : vector<8x128xf32>
    %568 = math.exp %567 : vector<8x128xf32>
    %cst_131 = arith.constant 1.000000e+00 : f32
    %569 = vector.broadcast %cst_131 : f32 to vector<8x128xf32>
    %570 = arith.addf %569, %568 : vector<8x128xf32>
    %571 = arith.divf %569, %570 : vector<8x128xf32>
    %572 = arith.mulf %563, %538 : vector<8x128xf32>
    %573 = arith.mulf %557, %565 : vector<8x128xf32>
    %574 = arith.addf %572, %573 : vector<8x128xf32>
    %575 = math.tanh %574 : vector<8x128xf32>
    %576 = arith.mulf %571, %575 : vector<8x128xf32>
    %577 = arith.truncf %576 : vector<8x128xf32> to vector<8x128xbf16>
    %578 = arith.index_cast %c15_i32 : i32 to index
    %c0_132 = arith.constant 0 : index
    %c0_133 = arith.constant 0 : index
    %579 = vector.load %arg5[%578, %c0_132, %c0_133] : memref<16x8x128xbf16, #tpu.memory_space<vmem>>, vector<1x8x128xbf16>
    %580 = vector.shape_cast %579 : vector<1x8x128xbf16> to vector<8x128xbf16>
    %581 = vector.shape_cast %577 : vector<8x128xbf16> to vector<1x8x128xbf16>
    tpu.vector_store %arg5[%578, %c0_132, %c0_133], %581 {strides = array<i32>} : memref<16x8x128xbf16, #tpu.memory_space<vmem>>, vector<1x8x128xbf16>,
    %c16_i32 = arith.constant 16 : i32
    %c0_134 = arith.constant 0 : index
    %c0_135 = arith.constant 0 : index
    %582 = vector.load %arg8[%c0_134, %c0_135] : memref<8x128xf32, #tpu.memory_space<vmem>>, vector<8x128xf32>
    tpu.vector_store %arg8[%c0_134, %c0_135], %576 {strides = array<i32>} : memref<8x128xf32, #tpu.memory_space<vmem>>, vector<8x128xf32>,
    %c0_136 = arith.constant 0 : index
    %c0_137 = arith.constant 0 : index
    %583 = vector.load %arg9[%c0_136, %c0_137] : memref<8x128xf32, #tpu.memory_space<vmem>>, vector<8x128xf32>
    tpu.vector_store %arg9[%c0_136, %c0_137], %574 {strides = array<i32>} : memref<8x128xf32, #tpu.memory_space<vmem>>, vector<8x128xf32>,
    %c0_i32_138 = arith.constant 0 : i32
    %584 = arith.cmpi eq, %arg0, %c0_i32_138 : i32
    %585 = arith.extui %584 : i1 to i32
    %c0_i32_139 = arith.constant 0 : i32
    %586 = arith.cmpi ne, %585, %c0_i32_139 : i32
    scf.if %586 {
      %c0_140 = arith.constant 0 : index
      %c0_141 = arith.constant 0 : index
      %587 = vector.load %arg6[%c0_140, %c0_141] : memref<8x128xf32, #tpu.memory_space<vmem>>, vector<8x128xf32>
      tpu.vector_store %arg6[%c0_140, %c0_141], %576 {strides = array<i32>} : memref<8x128xf32, #tpu.memory_space<vmem>>, vector<8x128xf32>,
      %c0_142 = arith.constant 0 : index
      %c0_143 = arith.constant 0 : index
      %588 = vector.load %arg7[%c0_142, %c0_143] : memref<8x128xf32, #tpu.memory_space<vmem>>, vector<8x128xf32>
      tpu.vector_store %arg7[%c0_142, %c0_143], %574 {strides = array<i32>} : memref<8x128xf32, #tpu.memory_space<vmem>>, vector<8x128xf32>,
    } else {
    }
    return
  }
  func.func @transform_0(%arg0: i32) -> (i32, i32, i32) {
    %c0_i32 = arith.constant 0 : i32
    %c0_i32_0 = arith.constant 0 : i32
    %c0_i32_1 = arith.constant 0 : i32
    return %arg0, %c0_i32, %c0_i32_0 : i32, i32, i32
  }
  func.func @transform_1(%arg0: i32) -> (i32, i32) {
    %c0_i32 = arith.constant 0 : i32
    %c0_i32_0 = arith.constant 0 : i32
    %c0_i32_1 = arith.constant 0 : i32
    return %c0_i32, %c0_i32_0 : i32, i32
  }
  func.func @transform_2(%arg0: i32) -> (i32, i32) {
    %c0_i32 = arith.constant 0 : i32
    %c0_i32_0 = arith.constant 0 : i32
    %c0_i32_1 = arith.constant 0 : i32
    return %c0_i32, %c0_i32_0 : i32, i32
  }
  func.func @transform_3(%arg0: i32) -> (i32, i32) {
    %c0_i32 = arith.constant 0 : i32
    %c0_i32_0 = arith.constant 0 : i32
    %c0_i32_1 = arith.constant 0 : i32
    return %c0_i32, %c0_i32_0 : i32, i32
  }
  func.func @transform_4(%arg0: i32) -> (i32, i32, i32) {
    %c0_i32 = arith.constant 0 : i32
    %c0_i32_0 = arith.constant 0 : i32
    %c0_i32_1 = arith.constant 0 : i32
    return %arg0, %c0_i32, %c0_i32_0 : i32, i32, i32
  }
  func.func @transform_5(%arg0: i32) -> (i32, i32) {
    %c0_i32 = arith.constant 0 : i32
    %c0_i32_0 = arith.constant 0 : i32
    %c0_i32_1 = arith.constant 0 : i32
    return %c0_i32, %c0_i32_0 : i32, i32
  }
  func.func @transform_6(%arg0: i32) -> (i32, i32) {
    %c0_i32 = arith.constant 0 : i32
    %c0_i32_0 = arith.constant 0 : i32
    %c0_i32_1 = arith.constant 0 : i32
    return %c0_i32, %c0_i32_0 : i32, i32
  }
}

module attributes {stable_mosaic.version = 11 : i64} {
  func.func @_lstm_recurrent_kernel(%arg0: i32, %arg1: memref<16x8x512xf32, #tpu.memory_space<vmem>>, %arg2: memref<128x512xbf16, #tpu.memory_space<vmem>>, %arg3: memref<8x128xf32, #tpu.memory_space<vmem>>, %arg4: memref<8x128xf32, #tpu.memory_space<vmem>>, %arg5: memref<16x8x128xbf16, #tpu.memory_space<vmem>>, %arg6: memref<8x128xf32, #tpu.memory_space<vmem>>, %arg7: memref<8x128xf32, #tpu.memory_space<vmem>>, %arg8: memref<8x128xf32, #tpu.memory_space<vmem>>, %arg9: memref<8x128xf32, #tpu.memory_space<vmem>>) attributes {dimension_semantics = [#tpu.dimension_semantics<arbitrary>], iteration_bounds = array<i64: 1>, scalar_prefetch = 0 : i64, scratch_operands = 2 : i64, tpu.core_type = #tpu.core_type<tc>, window_params = [{transform_indices = @transform_0, window_bounds = array<i64: 16, 8, 512>}, {pipeline_mode = #tpu.pipeline_mode<synchronous>, transform_indices = @transform_1, window_bounds = array<i64: 128, 512>}, {pipeline_mode = #tpu.pipeline_mode<synchronous>, transform_indices = @transform_2, window_bounds = array<i64: 8, 128>}, {pipeline_mode = #tpu.pipeline_mode<synchronous>, transform_indices = @transform_3, window_bounds = array<i64: 8, 128>}, {transform_indices = @transform_4, window_bounds = array<i64: 16, 8, 128>}, {pipeline_mode = #tpu.pipeline_mode<synchronous>, transform_indices = @transform_5, window_bounds = array<i64: 8, 128>}, {pipeline_mode = #tpu.pipeline_mode<synchronous>, transform_indices = @transform_6, window_bounds = array<i64: 8, 128>}]} {
    %c0_i32 = arith.constant 0 : i32
    %0 = arith.cmpi eq, %arg0, %c0_i32 : i32
    %1 = arith.extui %0 : i1 to i32
    %c0_i32_0 = arith.constant 0 : i32
    %2 = arith.cmpi ne, %1, %c0_i32_0 : i32
    scf.if %2 {
      %c0_140 = arith.constant 0 : index
      %c0_141 = arith.constant 0 : index
      %587 = vector.load %arg3[%c0_140, %c0_141] : memref<8x128xf32, #tpu.memory_space<vmem>>, vector<8x128xf32>
      %c0_142 = arith.constant 0 : index
      %c0_143 = arith.constant 0 : index
      %588 = vector.load %arg8[%c0_142, %c0_143] : memref<8x128xf32, #tpu.memory_space<vmem>>, vector<8x128xf32>
      tpu.vector_store %arg8[%c0_142, %c0_143], %587 {strides = array<i32>} : memref<8x128xf32, #tpu.memory_space<vmem>>, vector<8x128xf32>,
      %c0_144 = arith.constant 0 : index
      %c0_145 = arith.constant 0 : index
      %589 = vector.load %arg4[%c0_144, %c0_145] : memref<8x128xf32, #tpu.memory_space<vmem>>, vector<8x128xf32>
      %c0_146 = arith.constant 0 : index
      %c0_147 = arith.constant 0 : index
      %590 = vector.load %arg9[%c0_146, %c0_147] : memref<8x128xf32, #tpu.memory_space<vmem>>, vector<8x128xf32>
      tpu.vector_store %arg9[%c0_146, %c0_147], %589 {strides = array<i32>} : memref<8x128xf32, #tpu.memory_space<vmem>>, vector<8x128xf32>,
    } else {
    }
    %c0 = arith.constant 0 : index
    %c0_1 = arith.constant 0 : index
    %3 = vector.load %arg2[%c0, %c0_1] : memref<128x512xbf16, #tpu.memory_space<vmem>>, vector<128x512xbf16>
    %c0_2 = arith.constant 0 : index
    %c0_3 = arith.constant 0 : index
    %4 = vector.load %arg8[%c0_2, %c0_3] : memref<8x128xf32, #tpu.memory_space<vmem>>, vector<8x128xf32>
    %c0_4 = arith.constant 0 : index
    %c0_5 = arith.constant 0 : index
    %5 = vector.load %arg9[%c0_4, %c0_5] : memref<8x128xf32, #tpu.memory_space<vmem>>, vector<8x128xf32>
    %c0_i32_6 = arith.constant 0 : i32
    %6 = arith.index_cast %c0_i32_6 : i32 to index
    %c0_7 = arith.constant 0 : index
    %c0_8 = arith.constant 0 : index
    %7 = vector.load %arg1[%6, %c0_7, %c0_8] : memref<16x8x512xf32, #tpu.memory_space<vmem>>, vector<1x8x512xf32>
    %8 = vector.shape_cast %7 : vector<1x8x512xf32> to vector<8x512xf32>
    %9 = arith.truncf %4 : vector<8x128xf32> to vector<8x128xbf16>
    %cst = arith.constant dense<0.000000e+00> : vector<8x512xf32>
    %10 = tpu.matmul %9, %3, %cst {dimension_numbers = #tpu.dot_dimension_numbers<[1], [0], [0], [1], [0, 0, 1, 1], [], []>} : vector<8x128xbf16>, vector<128x512xbf16>, vector<8x512xf32> -> vector<8x512xf32>
    %11 = arith.addf %8, %10 : vector<8x512xf32>
    %12 = vector.extract_strided_slice %11 {offsets = [0, 0], sizes = [8, 128], strides = [1, 1]} : vector<8x512xf32> to vector<8x128xf32>
    %13 = arith.negf %12 : vector<8x128xf32>
    %14 = math.exp %13 : vector<8x128xf32>
    %cst_9 = arith.constant 1.000000e+00 : f32
    %15 = vector.broadcast %cst_9 : f32 to vector<8x128xf32>
    %16 = arith.addf %15, %14 : vector<8x128xf32>
    %17 = arith.divf %15, %16 : vector<8x128xf32>
    %18 = vector.extract_strided_slice %11 {offsets = [0, 128], sizes = [8, 128], strides = [1, 1]} : vector<8x512xf32> to vector<8x128xf32>
    %19 = arith.negf %18 : vector<8x128xf32>
    %20 = math.exp %19 : vector<8x128xf32>
    %cst_10 = arith.constant 1.000000e+00 : f32
    %21 = vector.broadcast %cst_10 : f32 to vector<8x128xf32>
    %22 = arith.addf %21, %20 : vector<8x128xf32>
    %23 = arith.divf %21, %22 : vector<8x128xf32>
    %24 = vector.extract_strided_slice %11 {offsets = [0, 256], sizes = [8, 128], strides = [1, 1]} : vector<8x512xf32> to vector<8x128xf32>
    %25 = math.tanh %24 : vector<8x128xf32>
    %26 = vector.extract_strided_slice %11 {offsets = [0, 384], sizes = [8, 128], strides = [1, 1]} : vector<8x512xf32> to vector<8x128xf32>
    %27 = arith.negf %26 : vector<8x128xf32>
    %28 = math.exp %27 : vector<8x128xf32>
    %cst_11 = arith.constant 1.000000e+00 : f32
    %29 = vector.broadcast %cst_11 : f32 to vector<8x128xf32>
    %30 = arith.addf %29, %28 : vector<8x128xf32>
    %31 = arith.divf %29, %30 : vector<8x128xf32>
    %32 = arith.mulf %23, %5 : vector<8x128xf32>
    %33 = arith.mulf %17, %25 : vector<8x128xf32>
    %34 = arith.addf %32, %33 : vector<8x128xf32>
    %35 = math.tanh %34 : vector<8x128xf32>
    %36 = arith.mulf %31, %35 : vector<8x128xf32>
    %37 = arith.truncf %36 : vector<8x128xf32> to vector<8x128xbf16>
    %38 = arith.index_cast %c0_i32_6 : i32 to index
    %c0_12 = arith.constant 0 : index
    %c0_13 = arith.constant 0 : index
    %39 = vector.load %arg5[%38, %c0_12, %c0_13] : memref<16x8x128xbf16, #tpu.memory_space<vmem>>, vector<1x8x128xbf16>
    %40 = vector.shape_cast %39 : vector<1x8x128xbf16> to vector<8x128xbf16>
    %41 = vector.shape_cast %37 : vector<8x128xbf16> to vector<1x8x128xbf16>
    tpu.vector_store %arg5[%38, %c0_12, %c0_13], %41 {strides = array<i32>} : memref<16x8x128xbf16, #tpu.memory_space<vmem>>, vector<1x8x128xbf16>,
    %c1_i32 = arith.constant 1 : i32
    %42 = arith.index_cast %c1_i32 : i32 to index
    %c0_14 = arith.constant 0 : index
    %c0_15 = arith.constant 0 : index
    %43 = vector.load %arg1[%42, %c0_14, %c0_15] : memref<16x8x512xf32, #tpu.memory_space<vmem>>, vector<1x8x512xf32>
    %44 = vector.shape_cast %43 : vector<1x8x512xf32> to vector<8x512xf32>
    %45 = arith.truncf %36 : vector<8x128xf32> to vector<8x128xbf16>
    %cst_16 = arith.constant dense<0.000000e+00> : vector<8x512xf32>
    %46 = tpu.matmul %45, %3, %cst_16 {dimension_numbers = #tpu.dot_dimension_numbers<[1], [0], [0], [1], [0, 0, 1, 1], [], []>} : vector<8x128xbf16>, vector<128x512xbf16>, vector<8x512xf32> -> vector<8x512xf32>
    %47 = arith.addf %44, %46 : vector<8x512xf32>
    %48 = vector.extract_strided_slice %47 {offsets = [0, 0], sizes = [8, 128], strides = [1, 1]} : vector<8x512xf32> to vector<8x128xf32>
    %49 = arith.negf %48 : vector<8x128xf32>
    %50 = math.exp %49 : vector<8x128xf32>
    %cst_17 = arith.constant 1.000000e+00 : f32
    %51 = vector.broadcast %cst_17 : f32 to vector<8x128xf32>
    %52 = arith.addf %51, %50 : vector<8x128xf32>
    %53 = arith.divf %51, %52 : vector<8x128xf32>
    %54 = vector.extract_strided_slice %47 {offsets = [0, 128], sizes = [8, 128], strides = [1, 1]} : vector<8x512xf32> to vector<8x128xf32>
    %55 = arith.negf %54 : vector<8x128xf32>
    %56 = math.exp %55 : vector<8x128xf32>
    %cst_18 = arith.constant 1.000000e+00 : f32
    %57 = vector.broadcast %cst_18 : f32 to vector<8x128xf32>
    %58 = arith.addf %57, %56 : vector<8x128xf32>
    %59 = arith.divf %57, %58 : vector<8x128xf32>
    %60 = vector.extract_strided_slice %47 {offsets = [0, 256], sizes = [8, 128], strides = [1, 1]} : vector<8x512xf32> to vector<8x128xf32>
    %61 = math.tanh %60 : vector<8x128xf32>
    %62 = vector.extract_strided_slice %47 {offsets = [0, 384], sizes = [8, 128], strides = [1, 1]} : vector<8x512xf32> to vector<8x128xf32>
    %63 = arith.negf %62 : vector<8x128xf32>
    %64 = math.exp %63 : vector<8x128xf32>
    %cst_19 = arith.constant 1.000000e+00 : f32
    %65 = vector.broadcast %cst_19 : f32 to vector<8x128xf32>
    %66 = arith.addf %65, %64 : vector<8x128xf32>
    %67 = arith.divf %65, %66 : vector<8x128xf32>
    %68 = arith.mulf %59, %34 : vector<8x128xf32>
    %69 = arith.mulf %53, %61 : vector<8x128xf32>
    %70 = arith.addf %68, %69 : vector<8x128xf32>
    %71 = math.tanh %70 : vector<8x128xf32>
    %72 = arith.mulf %67, %71 : vector<8x128xf32>
    %73 = arith.truncf %72 : vector<8x128xf32> to vector<8x128xbf16>
    %74 = arith.index_cast %c1_i32 : i32 to index
    %c0_20 = arith.constant 0 : index
    %c0_21 = arith.constant 0 : index
    %75 = vector.load %arg5[%74, %c0_20, %c0_21] : memref<16x8x128xbf16, #tpu.memory_space<vmem>>, vector<1x8x128xbf16>
    %76 = vector.shape_cast %75 : vector<1x8x128xbf16> to vector<8x128xbf16>
    %77 = vector.shape_cast %73 : vector<8x128xbf16> to vector<1x8x128xbf16>
    tpu.vector_store %arg5[%74, %c0_20, %c0_21], %77 {strides = array<i32>} : memref<16x8x128xbf16, #tpu.memory_space<vmem>>, vector<1x8x128xbf16>,
    %c2_i32 = arith.constant 2 : i32
    %78 = arith.index_cast %c2_i32 : i32 to index
    %c0_22 = arith.constant 0 : index
    %c0_23 = arith.constant 0 : index
    %79 = vector.load %arg1[%78, %c0_22, %c0_23] : memref<16x8x512xf32, #tpu.memory_space<vmem>>, vector<1x8x512xf32>
    %80 = vector.shape_cast %79 : vector<1x8x512xf32> to vector<8x512xf32>
    %81 = arith.truncf %72 : vector<8x128xf32> to vector<8x128xbf16>
    %cst_24 = arith.constant dense<0.000000e+00> : vector<8x512xf32>
    %82 = tpu.matmul %81, %3, %cst_24 {dimension_numbers = #tpu.dot_dimension_numbers<[1], [0], [0], [1], [0, 0, 1, 1], [], []>} : vector<8x128xbf16>, vector<128x512xbf16>, vector<8x512xf32> -> vector<8x512xf32>
    %83 = arith.addf %80, %82 : vector<8x512xf32>
    %84 = vector.extract_strided_slice %83 {offsets = [0, 0], sizes = [8, 128], strides = [1, 1]} : vector<8x512xf32> to vector<8x128xf32>
    %85 = arith.negf %84 : vector<8x128xf32>
    %86 = math.exp %85 : vector<8x128xf32>
    %cst_25 = arith.constant 1.000000e+00 : f32
    %87 = vector.broadcast %cst_25 : f32 to vector<8x128xf32>
    %88 = arith.addf %87, %86 : vector<8x128xf32>
    %89 = arith.divf %87, %88 : vector<8x128xf32>
    %90 = vector.extract_strided_slice %83 {offsets = [0, 128], sizes = [8, 128], strides = [1, 1]} : vector<8x512xf32> to vector<8x128xf32>
    %91 = arith.negf %90 : vector<8x128xf32>
    %92 = math.exp %91 : vector<8x128xf32>
    %cst_26 = arith.constant 1.000000e+00 : f32
    %93 = vector.broadcast %cst_26 : f32 to vector<8x128xf32>
    %94 = arith.addf %93, %92 : vector<8x128xf32>
    %95 = arith.divf %93, %94 : vector<8x128xf32>
    %96 = vector.extract_strided_slice %83 {offsets = [0, 256], sizes = [8, 128], strides = [1, 1]} : vector<8x512xf32> to vector<8x128xf32>
    %97 = math.tanh %96 : vector<8x128xf32>
    %98 = vector.extract_strided_slice %83 {offsets = [0, 384], sizes = [8, 128], strides = [1, 1]} : vector<8x512xf32> to vector<8x128xf32>
    %99 = arith.negf %98 : vector<8x128xf32>
    %100 = math.exp %99 : vector<8x128xf32>
    %cst_27 = arith.constant 1.000000e+00 : f32
    %101 = vector.broadcast %cst_27 : f32 to vector<8x128xf32>
    %102 = arith.addf %101, %100 : vector<8x128xf32>
    %103 = arith.divf %101, %102 : vector<8x128xf32>
    %104 = arith.mulf %95, %70 : vector<8x128xf32>
    %105 = arith.mulf %89, %97 : vector<8x128xf32>
    %106 = arith.addf %104, %105 : vector<8x128xf32>
    %107 = math.tanh %106 : vector<8x128xf32>
    %108 = arith.mulf %103, %107 : vector<8x128xf32>
    %109 = arith.truncf %108 : vector<8x128xf32> to vector<8x128xbf16>
    %110 = arith.index_cast %c2_i32 : i32 to index
    %c0_28 = arith.constant 0 : index
    %c0_29 = arith.constant 0 : index
    %111 = vector.load %arg5[%110, %c0_28, %c0_29] : memref<16x8x128xbf16, #tpu.memory_space<vmem>>, vector<1x8x128xbf16>
    %112 = vector.shape_cast %111 : vector<1x8x128xbf16> to vector<8x128xbf16>
    %113 = vector.shape_cast %109 : vector<8x128xbf16> to vector<1x8x128xbf16>
    tpu.vector_store %arg5[%110, %c0_28, %c0_29], %113 {strides = array<i32>} : memref<16x8x128xbf16, #tpu.memory_space<vmem>>, vector<1x8x128xbf16>,
    %c3_i32 = arith.constant 3 : i32
    %114 = arith.index_cast %c3_i32 : i32 to index
    %c0_30 = arith.constant 0 : index
    %c0_31 = arith.constant 0 : index
    %115 = vector.load %arg1[%114, %c0_30, %c0_31] : memref<16x8x512xf32, #tpu.memory_space<vmem>>, vector<1x8x512xf32>
    %116 = vector.shape_cast %115 : vector<1x8x512xf32> to vector<8x512xf32>
    %117 = arith.truncf %108 : vector<8x128xf32> to vector<8x128xbf16>
    %cst_32 = arith.constant dense<0.000000e+00> : vector<8x512xf32>
    %118 = tpu.matmul %117, %3, %cst_32 {dimension_numbers = #tpu.dot_dimension_numbers<[1], [0], [0], [1], [0, 0, 1, 1], [], []>} : vector<8x128xbf16>, vector<128x512xbf16>, vector<8x512xf32> -> vector<8x512xf32>
    %119 = arith.addf %116, %118 : vector<8x512xf32>
    %120 = vector.extract_strided_slice %119 {offsets = [0, 0], sizes = [8, 128], strides = [1, 1]} : vector<8x512xf32> to vector<8x128xf32>
    %121 = arith.negf %120 : vector<8x128xf32>
    %122 = math.exp %121 : vector<8x128xf32>
    %cst_33 = arith.constant 1.000000e+00 : f32
    %123 = vector.broadcast %cst_33 : f32 to vector<8x128xf32>
    %124 = arith.addf %123, %122 : vector<8x128xf32>
    %125 = arith.divf %123, %124 : vector<8x128xf32>
    %126 = vector.extract_strided_slice %119 {offsets = [0, 128], sizes = [8, 128], strides = [1, 1]} : vector<8x512xf32> to vector<8x128xf32>
    %127 = arith.negf %126 : vector<8x128xf32>
    %128 = math.exp %127 : vector<8x128xf32>
    %cst_34 = arith.constant 1.000000e+00 : f32
    %129 = vector.broadcast %cst_34 : f32 to vector<8x128xf32>
    %130 = arith.addf %129, %128 : vector<8x128xf32>
    %131 = arith.divf %129, %130 : vector<8x128xf32>
    %132 = vector.extract_strided_slice %119 {offsets = [0, 256], sizes = [8, 128], strides = [1, 1]} : vector<8x512xf32> to vector<8x128xf32>
    %133 = math.tanh %132 : vector<8x128xf32>
    %134 = vector.extract_strided_slice %119 {offsets = [0, 384], sizes = [8, 128], strides = [1, 1]} : vector<8x512xf32> to vector<8x128xf32>
    %135 = arith.negf %134 : vector<8x128xf32>
    %136 = math.exp %135 : vector<8x128xf32>
    %cst_35 = arith.constant 1.000000e+00 : f32
    %137 = vector.broadcast %cst_35 : f32 to vector<8x128xf32>
    %138 = arith.addf %137, %136 : vector<8x128xf32>
    %139 = arith.divf %137, %138 : vector<8x128xf32>
    %140 = arith.mulf %131, %106 : vector<8x128xf32>
    %141 = arith.mulf %125, %133 : vector<8x128xf32>
    %142 = arith.addf %140, %141 : vector<8x128xf32>
    %143 = math.tanh %142 : vector<8x128xf32>
    %144 = arith.mulf %139, %143 : vector<8x128xf32>
    %145 = arith.truncf %144 : vector<8x128xf32> to vector<8x128xbf16>
    %146 = arith.index_cast %c3_i32 : i32 to index
    %c0_36 = arith.constant 0 : index
    %c0_37 = arith.constant 0 : index
    %147 = vector.load %arg5[%146, %c0_36, %c0_37] : memref<16x8x128xbf16, #tpu.memory_space<vmem>>, vector<1x8x128xbf16>
    %148 = vector.shape_cast %147 : vector<1x8x128xbf16> to vector<8x128xbf16>
    %149 = vector.shape_cast %145 : vector<8x128xbf16> to vector<1x8x128xbf16>
    tpu.vector_store %arg5[%146, %c0_36, %c0_37], %149 {strides = array<i32>} : memref<16x8x128xbf16, #tpu.memory_space<vmem>>, vector<1x8x128xbf16>,
    %c4_i32 = arith.constant 4 : i32
    %150 = arith.index_cast %c4_i32 : i32 to index
    %c0_38 = arith.constant 0 : index
    %c0_39 = arith.constant 0 : index
    %151 = vector.load %arg1[%150, %c0_38, %c0_39] : memref<16x8x512xf32, #tpu.memory_space<vmem>>, vector<1x8x512xf32>
    %152 = vector.shape_cast %151 : vector<1x8x512xf32> to vector<8x512xf32>
    %153 = arith.truncf %144 : vector<8x128xf32> to vector<8x128xbf16>
    %cst_40 = arith.constant dense<0.000000e+00> : vector<8x512xf32>
    %154 = tpu.matmul %153, %3, %cst_40 {dimension_numbers = #tpu.dot_dimension_numbers<[1], [0], [0], [1], [0, 0, 1, 1], [], []>} : vector<8x128xbf16>, vector<128x512xbf16>, vector<8x512xf32> -> vector<8x512xf32>
    %155 = arith.addf %152, %154 : vector<8x512xf32>
    %156 = vector.extract_strided_slice %155 {offsets = [0, 0], sizes = [8, 128], strides = [1, 1]} : vector<8x512xf32> to vector<8x128xf32>
    %157 = arith.negf %156 : vector<8x128xf32>
    %158 = math.exp %157 : vector<8x128xf32>
    %cst_41 = arith.constant 1.000000e+00 : f32
    %159 = vector.broadcast %cst_41 : f32 to vector<8x128xf32>
    %160 = arith.addf %159, %158 : vector<8x128xf32>
    %161 = arith.divf %159, %160 : vector<8x128xf32>
    %162 = vector.extract_strided_slice %155 {offsets = [0, 128], sizes = [8, 128], strides = [1, 1]} : vector<8x512xf32> to vector<8x128xf32>
    %163 = arith.negf %162 : vector<8x128xf32>
    %164 = math.exp %163 : vector<8x128xf32>
    %cst_42 = arith.constant 1.000000e+00 : f32
    %165 = vector.broadcast %cst_42 : f32 to vector<8x128xf32>
    %166 = arith.addf %165, %164 : vector<8x128xf32>
    %167 = arith.divf %165, %166 : vector<8x128xf32>
    %168 = vector.extract_strided_slice %155 {offsets = [0, 256], sizes = [8, 128], strides = [1, 1]} : vector<8x512xf32> to vector<8x128xf32>
    %169 = math.tanh %168 : vector<8x128xf32>
    %170 = vector.extract_strided_slice %155 {offsets = [0, 384], sizes = [8, 128], strides = [1, 1]} : vector<8x512xf32> to vector<8x128xf32>
    %171 = arith.negf %170 : vector<8x128xf32>
    %172 = math.exp %171 : vector<8x128xf32>
    %cst_43 = arith.constant 1.000000e+00 : f32
    %173 = vector.broadcast %cst_43 : f32 to vector<8x128xf32>
    %174 = arith.addf %173, %172 : vector<8x128xf32>
    %175 = arith.divf %173, %174 : vector<8x128xf32>
    %176 = arith.mulf %167, %142 : vector<8x128xf32>
    %177 = arith.mulf %161, %169 : vector<8x128xf32>
    %178 = arith.addf %176, %177 : vector<8x128xf32>
    %179 = math.tanh %178 : vector<8x128xf32>
    %180 = arith.mulf %175, %179 : vector<8x128xf32>
    %181 = arith.truncf %180 : vector<8x128xf32> to vector<8x128xbf16>
    %182 = arith.index_cast %c4_i32 : i32 to index
    %c0_44 = arith.constant 0 : index
    %c0_45 = arith.constant 0 : index
    %183 = vector.load %arg5[%182, %c0_44, %c0_45] : memref<16x8x128xbf16, #tpu.memory_space<vmem>>, vector<1x8x128xbf16>
    %184 = vector.shape_cast %183 : vector<1x8x128xbf16> to vector<8x128xbf16>
    %185 = vector.shape_cast %181 : vector<8x128xbf16> to vector<1x8x128xbf16>
    tpu.vector_store %arg5[%182, %c0_44, %c0_45], %185 {strides = array<i32>} : memref<16x8x128xbf16, #tpu.memory_space<vmem>>, vector<1x8x128xbf16>,
    %c5_i32 = arith.constant 5 : i32
    %186 = arith.index_cast %c5_i32 : i32 to index
    %c0_46 = arith.constant 0 : index
    %c0_47 = arith.constant 0 : index
    %187 = vector.load %arg1[%186, %c0_46, %c0_47] : memref<16x8x512xf32, #tpu.memory_space<vmem>>, vector<1x8x512xf32>
    %188 = vector.shape_cast %187 : vector<1x8x512xf32> to vector<8x512xf32>
    %189 = arith.truncf %180 : vector<8x128xf32> to vector<8x128xbf16>
    %cst_48 = arith.constant dense<0.000000e+00> : vector<8x512xf32>
    %190 = tpu.matmul %189, %3, %cst_48 {dimension_numbers = #tpu.dot_dimension_numbers<[1], [0], [0], [1], [0, 0, 1, 1], [], []>} : vector<8x128xbf16>, vector<128x512xbf16>, vector<8x512xf32> -> vector<8x512xf32>
    %191 = arith.addf %188, %190 : vector<8x512xf32>
    %192 = vector.extract_strided_slice %191 {offsets = [0, 0], sizes = [8, 128], strides = [1, 1]} : vector<8x512xf32> to vector<8x128xf32>
    %193 = arith.negf %192 : vector<8x128xf32>
    %194 = math.exp %193 : vector<8x128xf32>
    %cst_49 = arith.constant 1.000000e+00 : f32
    %195 = vector.broadcast %cst_49 : f32 to vector<8x128xf32>
    %196 = arith.addf %195, %194 : vector<8x128xf32>
    %197 = arith.divf %195, %196 : vector<8x128xf32>
    %198 = vector.extract_strided_slice %191 {offsets = [0, 128], sizes = [8, 128], strides = [1, 1]} : vector<8x512xf32> to vector<8x128xf32>
    %199 = arith.negf %198 : vector<8x128xf32>
    %200 = math.exp %199 : vector<8x128xf32>
    %cst_50 = arith.constant 1.000000e+00 : f32
    %201 = vector.broadcast %cst_50 : f32 to vector<8x128xf32>
    %202 = arith.addf %201, %200 : vector<8x128xf32>
    %203 = arith.divf %201, %202 : vector<8x128xf32>
    %204 = vector.extract_strided_slice %191 {offsets = [0, 256], sizes = [8, 128], strides = [1, 1]} : vector<8x512xf32> to vector<8x128xf32>
    %205 = math.tanh %204 : vector<8x128xf32>
    %206 = vector.extract_strided_slice %191 {offsets = [0, 384], sizes = [8, 128], strides = [1, 1]} : vector<8x512xf32> to vector<8x128xf32>
    %207 = arith.negf %206 : vector<8x128xf32>
    %208 = math.exp %207 : vector<8x128xf32>
    %cst_51 = arith.constant 1.000000e+00 : f32
    %209 = vector.broadcast %cst_51 : f32 to vector<8x128xf32>
    %210 = arith.addf %209, %208 : vector<8x128xf32>
    %211 = arith.divf %209, %210 : vector<8x128xf32>
    %212 = arith.mulf %203, %178 : vector<8x128xf32>
    %213 = arith.mulf %197, %205 : vector<8x128xf32>
    %214 = arith.addf %212, %213 : vector<8x128xf32>
    %215 = math.tanh %214 : vector<8x128xf32>
    %216 = arith.mulf %211, %215 : vector<8x128xf32>
    %217 = arith.truncf %216 : vector<8x128xf32> to vector<8x128xbf16>
    %218 = arith.index_cast %c5_i32 : i32 to index
    %c0_52 = arith.constant 0 : index
    %c0_53 = arith.constant 0 : index
    %219 = vector.load %arg5[%218, %c0_52, %c0_53] : memref<16x8x128xbf16, #tpu.memory_space<vmem>>, vector<1x8x128xbf16>
    %220 = vector.shape_cast %219 : vector<1x8x128xbf16> to vector<8x128xbf16>
    %221 = vector.shape_cast %217 : vector<8x128xbf16> to vector<1x8x128xbf16>
    tpu.vector_store %arg5[%218, %c0_52, %c0_53], %221 {strides = array<i32>} : memref<16x8x128xbf16, #tpu.memory_space<vmem>>, vector<1x8x128xbf16>,
    %c6_i32 = arith.constant 6 : i32
    %222 = arith.index_cast %c6_i32 : i32 to index
    %c0_54 = arith.constant 0 : index
    %c0_55 = arith.constant 0 : index
    %223 = vector.load %arg1[%222, %c0_54, %c0_55] : memref<16x8x512xf32, #tpu.memory_space<vmem>>, vector<1x8x512xf32>
    %224 = vector.shape_cast %223 : vector<1x8x512xf32> to vector<8x512xf32>
    %225 = arith.truncf %216 : vector<8x128xf32> to vector<8x128xbf16>
    %cst_56 = arith.constant dense<0.000000e+00> : vector<8x512xf32>
    %226 = tpu.matmul %225, %3, %cst_56 {dimension_numbers = #tpu.dot_dimension_numbers<[1], [0], [0], [1], [0, 0, 1, 1], [], []>} : vector<8x128xbf16>, vector<128x512xbf16>, vector<8x512xf32> -> vector<8x512xf32>
    %227 = arith.addf %224, %226 : vector<8x512xf32>
    %228 = vector.extract_strided_slice %227 {offsets = [0, 0], sizes = [8, 128], strides = [1, 1]} : vector<8x512xf32> to vector<8x128xf32>
    %229 = arith.negf %228 : vector<8x128xf32>
    %230 = math.exp %229 : vector<8x128xf32>
    %cst_57 = arith.constant 1.000000e+00 : f32
    %231 = vector.broadcast %cst_57 : f32 to vector<8x128xf32>
    %232 = arith.addf %231, %230 : vector<8x128xf32>
    %233 = arith.divf %231, %232 : vector<8x128xf32>
    %234 = vector.extract_strided_slice %227 {offsets = [0, 128], sizes = [8, 128], strides = [1, 1]} : vector<8x512xf32> to vector<8x128xf32>
    %235 = arith.negf %234 : vector<8x128xf32>
    %236 = math.exp %235 : vector<8x128xf32>
    %cst_58 = arith.constant 1.000000e+00 : f32
    %237 = vector.broadcast %cst_58 : f32 to vector<8x128xf32>
    %238 = arith.addf %237, %236 : vector<8x128xf32>
    %239 = arith.divf %237, %238 : vector<8x128xf32>
    %240 = vector.extract_strided_slice %227 {offsets = [0, 256], sizes = [8, 128], strides = [1, 1]} : vector<8x512xf32> to vector<8x128xf32>
    %241 = math.tanh %240 : vector<8x128xf32>
    %242 = vector.extract_strided_slice %227 {offsets = [0, 384], sizes = [8, 128], strides = [1, 1]} : vector<8x512xf32> to vector<8x128xf32>
    %243 = arith.negf %242 : vector<8x128xf32>
    %244 = math.exp %243 : vector<8x128xf32>
    %cst_59 = arith.constant 1.000000e+00 : f32
    %245 = vector.broadcast %cst_59 : f32 to vector<8x128xf32>
    %246 = arith.addf %245, %244 : vector<8x128xf32>
    %247 = arith.divf %245, %246 : vector<8x128xf32>
    %248 = arith.mulf %239, %214 : vector<8x128xf32>
    %249 = arith.mulf %233, %241 : vector<8x128xf32>
    %250 = arith.addf %248, %249 : vector<8x128xf32>
    %251 = math.tanh %250 : vector<8x128xf32>
    %252 = arith.mulf %247, %251 : vector<8x128xf32>
    %253 = arith.truncf %252 : vector<8x128xf32> to vector<8x128xbf16>
    %254 = arith.index_cast %c6_i32 : i32 to index
    %c0_60 = arith.constant 0 : index
    %c0_61 = arith.constant 0 : index
    %255 = vector.load %arg5[%254, %c0_60, %c0_61] : memref<16x8x128xbf16, #tpu.memory_space<vmem>>, vector<1x8x128xbf16>
    %256 = vector.shape_cast %255 : vector<1x8x128xbf16> to vector<8x128xbf16>
    %257 = vector.shape_cast %253 : vector<8x128xbf16> to vector<1x8x128xbf16>
    tpu.vector_store %arg5[%254, %c0_60, %c0_61], %257 {strides = array<i32>} : memref<16x8x128xbf16, #tpu.memory_space<vmem>>, vector<1x8x128xbf16>,
    %c7_i32 = arith.constant 7 : i32
    %258 = arith.index_cast %c7_i32 : i32 to index
    %c0_62 = arith.constant 0 : index
    %c0_63 = arith.constant 0 : index
    %259 = vector.load %arg1[%258, %c0_62, %c0_63] : memref<16x8x512xf32, #tpu.memory_space<vmem>>, vector<1x8x512xf32>
    %260 = vector.shape_cast %259 : vector<1x8x512xf32> to vector<8x512xf32>
    %261 = arith.truncf %252 : vector<8x128xf32> to vector<8x128xbf16>
    %cst_64 = arith.constant dense<0.000000e+00> : vector<8x512xf32>
    %262 = tpu.matmul %261, %3, %cst_64 {dimension_numbers = #tpu.dot_dimension_numbers<[1], [0], [0], [1], [0, 0, 1, 1], [], []>} : vector<8x128xbf16>, vector<128x512xbf16>, vector<8x512xf32> -> vector<8x512xf32>
    %263 = arith.addf %260, %262 : vector<8x512xf32>
    %264 = vector.extract_strided_slice %263 {offsets = [0, 0], sizes = [8, 128], strides = [1, 1]} : vector<8x512xf32> to vector<8x128xf32>
    %265 = arith.negf %264 : vector<8x128xf32>
    %266 = math.exp %265 : vector<8x128xf32>
    %cst_65 = arith.constant 1.000000e+00 : f32
    %267 = vector.broadcast %cst_65 : f32 to vector<8x128xf32>
    %268 = arith.addf %267, %266 : vector<8x128xf32>
    %269 = arith.divf %267, %268 : vector<8x128xf32>
    %270 = vector.extract_strided_slice %263 {offsets = [0, 128], sizes = [8, 128], strides = [1, 1]} : vector<8x512xf32> to vector<8x128xf32>
    %271 = arith.negf %270 : vector<8x128xf32>
    %272 = math.exp %271 : vector<8x128xf32>
    %cst_66 = arith.constant 1.000000e+00 : f32
    %273 = vector.broadcast %cst_66 : f32 to vector<8x128xf32>
    %274 = arith.addf %273, %272 : vector<8x128xf32>
    %275 = arith.divf %273, %274 : vector<8x128xf32>
    %276 = vector.extract_strided_slice %263 {offsets = [0, 256], sizes = [8, 128], strides = [1, 1]} : vector<8x512xf32> to vector<8x128xf32>
    %277 = math.tanh %276 : vector<8x128xf32>
    %278 = vector.extract_strided_slice %263 {offsets = [0, 384], sizes = [8, 128], strides = [1, 1]} : vector<8x512xf32> to vector<8x128xf32>
    %279 = arith.negf %278 : vector<8x128xf32>
    %280 = math.exp %279 : vector<8x128xf32>
    %cst_67 = arith.constant 1.000000e+00 : f32
    %281 = vector.broadcast %cst_67 : f32 to vector<8x128xf32>
    %282 = arith.addf %281, %280 : vector<8x128xf32>
    %283 = arith.divf %281, %282 : vector<8x128xf32>
    %284 = arith.mulf %275, %250 : vector<8x128xf32>
    %285 = arith.mulf %269, %277 : vector<8x128xf32>
    %286 = arith.addf %284, %285 : vector<8x128xf32>
    %287 = math.tanh %286 : vector<8x128xf32>
    %288 = arith.mulf %283, %287 : vector<8x128xf32>
    %289 = arith.truncf %288 : vector<8x128xf32> to vector<8x128xbf16>
    %290 = arith.index_cast %c7_i32 : i32 to index
    %c0_68 = arith.constant 0 : index
    %c0_69 = arith.constant 0 : index
    %291 = vector.load %arg5[%290, %c0_68, %c0_69] : memref<16x8x128xbf16, #tpu.memory_space<vmem>>, vector<1x8x128xbf16>
    %292 = vector.shape_cast %291 : vector<1x8x128xbf16> to vector<8x128xbf16>
    %293 = vector.shape_cast %289 : vector<8x128xbf16> to vector<1x8x128xbf16>
    tpu.vector_store %arg5[%290, %c0_68, %c0_69], %293 {strides = array<i32>} : memref<16x8x128xbf16, #tpu.memory_space<vmem>>, vector<1x8x128xbf16>,
    %c8_i32 = arith.constant 8 : i32
    %294 = arith.index_cast %c8_i32 : i32 to index
    %c0_70 = arith.constant 0 : index
    %c0_71 = arith.constant 0 : index
    %295 = vector.load %arg1[%294, %c0_70, %c0_71] : memref<16x8x512xf32, #tpu.memory_space<vmem>>, vector<1x8x512xf32>
    %296 = vector.shape_cast %295 : vector<1x8x512xf32> to vector<8x512xf32>
    %297 = arith.truncf %288 : vector<8x128xf32> to vector<8x128xbf16>
    %cst_72 = arith.constant dense<0.000000e+00> : vector<8x512xf32>
    %298 = tpu.matmul %297, %3, %cst_72 {dimension_numbers = #tpu.dot_dimension_numbers<[1], [0], [0], [1], [0, 0, 1, 1], [], []>} : vector<8x128xbf16>, vector<128x512xbf16>, vector<8x512xf32> -> vector<8x512xf32>
    %299 = arith.addf %296, %298 : vector<8x512xf32>
    %300 = vector.extract_strided_slice %299 {offsets = [0, 0], sizes = [8, 128], strides = [1, 1]} : vector<8x512xf32> to vector<8x128xf32>
    %301 = arith.negf %300 : vector<8x128xf32>
    %302 = math.exp %301 : vector<8x128xf32>
    %cst_73 = arith.constant 1.000000e+00 : f32
    %303 = vector.broadcast %cst_73 : f32 to vector<8x128xf32>
    %304 = arith.addf %303, %302 : vector<8x128xf32>
    %305 = arith.divf %303, %304 : vector<8x128xf32>
    %306 = vector.extract_strided_slice %299 {offsets = [0, 128], sizes = [8, 128], strides = [1, 1]} : vector<8x512xf32> to vector<8x128xf32>
    %307 = arith.negf %306 : vector<8x128xf32>
    %308 = math.exp %307 : vector<8x128xf32>
    %cst_74 = arith.constant 1.000000e+00 : f32
    %309 = vector.broadcast %cst_74 : f32 to vector<8x128xf32>
    %310 = arith.addf %309, %308 : vector<8x128xf32>
    %311 = arith.divf %309, %310 : vector<8x128xf32>
    %312 = vector.extract_strided_slice %299 {offsets = [0, 256], sizes = [8, 128], strides = [1, 1]} : vector<8x512xf32> to vector<8x128xf32>
    %313 = math.tanh %312 : vector<8x128xf32>
    %314 = vector.extract_strided_slice %299 {offsets = [0, 384], sizes = [8, 128], strides = [1, 1]} : vector<8x512xf32> to vector<8x128xf32>
    %315 = arith.negf %314 : vector<8x128xf32>
    %316 = math.exp %315 : vector<8x128xf32>
    %cst_75 = arith.constant 1.000000e+00 : f32
    %317 = vector.broadcast %cst_75 : f32 to vector<8x128xf32>
    %318 = arith.addf %317, %316 : vector<8x128xf32>
    %319 = arith.divf %317, %318 : vector<8x128xf32>
    %320 = arith.mulf %311, %286 : vector<8x128xf32>
    %321 = arith.mulf %305, %313 : vector<8x128xf32>
    %322 = arith.addf %320, %321 : vector<8x128xf32>
    %323 = math.tanh %322 : vector<8x128xf32>
    %324 = arith.mulf %319, %323 : vector<8x128xf32>
    %325 = arith.truncf %324 : vector<8x128xf32> to vector<8x128xbf16>
    %326 = arith.index_cast %c8_i32 : i32 to index
    %c0_76 = arith.constant 0 : index
    %c0_77 = arith.constant 0 : index
    %327 = vector.load %arg5[%326, %c0_76, %c0_77] : memref<16x8x128xbf16, #tpu.memory_space<vmem>>, vector<1x8x128xbf16>
    %328 = vector.shape_cast %327 : vector<1x8x128xbf16> to vector<8x128xbf16>
    %329 = vector.shape_cast %325 : vector<8x128xbf16> to vector<1x8x128xbf16>
    tpu.vector_store %arg5[%326, %c0_76, %c0_77], %329 {strides = array<i32>} : memref<16x8x128xbf16, #tpu.memory_space<vmem>>, vector<1x8x128xbf16>,
    %c9_i32 = arith.constant 9 : i32
    %330 = arith.index_cast %c9_i32 : i32 to index
    %c0_78 = arith.constant 0 : index
    %c0_79 = arith.constant 0 : index
    %331 = vector.load %arg1[%330, %c0_78, %c0_79] : memref<16x8x512xf32, #tpu.memory_space<vmem>>, vector<1x8x512xf32>
    %332 = vector.shape_cast %331 : vector<1x8x512xf32> to vector<8x512xf32>
    %333 = arith.truncf %324 : vector<8x128xf32> to vector<8x128xbf16>
    %cst_80 = arith.constant dense<0.000000e+00> : vector<8x512xf32>
    %334 = tpu.matmul %333, %3, %cst_80 {dimension_numbers = #tpu.dot_dimension_numbers<[1], [0], [0], [1], [0, 0, 1, 1], [], []>} : vector<8x128xbf16>, vector<128x512xbf16>, vector<8x512xf32> -> vector<8x512xf32>
    %335 = arith.addf %332, %334 : vector<8x512xf32>
    %336 = vector.extract_strided_slice %335 {offsets = [0, 0], sizes = [8, 128], strides = [1, 1]} : vector<8x512xf32> to vector<8x128xf32>
    %337 = arith.negf %336 : vector<8x128xf32>
    %338 = math.exp %337 : vector<8x128xf32>
    %cst_81 = arith.constant 1.000000e+00 : f32
    %339 = vector.broadcast %cst_81 : f32 to vector<8x128xf32>
    %340 = arith.addf %339, %338 : vector<8x128xf32>
    %341 = arith.divf %339, %340 : vector<8x128xf32>
    %342 = vector.extract_strided_slice %335 {offsets = [0, 128], sizes = [8, 128], strides = [1, 1]} : vector<8x512xf32> to vector<8x128xf32>
    %343 = arith.negf %342 : vector<8x128xf32>
    %344 = math.exp %343 : vector<8x128xf32>
    %cst_82 = arith.constant 1.000000e+00 : f32
    %345 = vector.broadcast %cst_82 : f32 to vector<8x128xf32>
    %346 = arith.addf %345, %344 : vector<8x128xf32>
    %347 = arith.divf %345, %346 : vector<8x128xf32>
    %348 = vector.extract_strided_slice %335 {offsets = [0, 256], sizes = [8, 128], strides = [1, 1]} : vector<8x512xf32> to vector<8x128xf32>
    %349 = math.tanh %348 : vector<8x128xf32>
    %350 = vector.extract_strided_slice %335 {offsets = [0, 384], sizes = [8, 128], strides = [1, 1]} : vector<8x512xf32> to vector<8x128xf32>
    %351 = arith.negf %350 : vector<8x128xf32>
    %352 = math.exp %351 : vector<8x128xf32>
    %cst_83 = arith.constant 1.000000e+00 : f32
    %353 = vector.broadcast %cst_83 : f32 to vector<8x128xf32>
    %354 = arith.addf %353, %352 : vector<8x128xf32>
    %355 = arith.divf %353, %354 : vector<8x128xf32>
    %356 = arith.mulf %347, %322 : vector<8x128xf32>
    %357 = arith.mulf %341, %349 : vector<8x128xf32>
    %358 = arith.addf %356, %357 : vector<8x128xf32>
    %359 = math.tanh %358 : vector<8x128xf32>
    %360 = arith.mulf %355, %359 : vector<8x128xf32>
    %361 = arith.truncf %360 : vector<8x128xf32> to vector<8x128xbf16>
    %362 = arith.index_cast %c9_i32 : i32 to index
    %c0_84 = arith.constant 0 : index
    %c0_85 = arith.constant 0 : index
    %363 = vector.load %arg5[%362, %c0_84, %c0_85] : memref<16x8x128xbf16, #tpu.memory_space<vmem>>, vector<1x8x128xbf16>
    %364 = vector.shape_cast %363 : vector<1x8x128xbf16> to vector<8x128xbf16>
    %365 = vector.shape_cast %361 : vector<8x128xbf16> to vector<1x8x128xbf16>
    tpu.vector_store %arg5[%362, %c0_84, %c0_85], %365 {strides = array<i32>} : memref<16x8x128xbf16, #tpu.memory_space<vmem>>, vector<1x8x128xbf16>,
    %c10_i32 = arith.constant 10 : i32
    %366 = arith.index_cast %c10_i32 : i32 to index
    %c0_86 = arith.constant 0 : index
    %c0_87 = arith.constant 0 : index
    %367 = vector.load %arg1[%366, %c0_86, %c0_87] : memref<16x8x512xf32, #tpu.memory_space<vmem>>, vector<1x8x512xf32>
    %368 = vector.shape_cast %367 : vector<1x8x512xf32> to vector<8x512xf32>
    %369 = arith.truncf %360 : vector<8x128xf32> to vector<8x128xbf16>
    %cst_88 = arith.constant dense<0.000000e+00> : vector<8x512xf32>
    %370 = tpu.matmul %369, %3, %cst_88 {dimension_numbers = #tpu.dot_dimension_numbers<[1], [0], [0], [1], [0, 0, 1, 1], [], []>} : vector<8x128xbf16>, vector<128x512xbf16>, vector<8x512xf32> -> vector<8x512xf32>
    %371 = arith.addf %368, %370 : vector<8x512xf32>
    %372 = vector.extract_strided_slice %371 {offsets = [0, 0], sizes = [8, 128], strides = [1, 1]} : vector<8x512xf32> to vector<8x128xf32>
    %373 = arith.negf %372 : vector<8x128xf32>
    %374 = math.exp %373 : vector<8x128xf32>
    %cst_89 = arith.constant 1.000000e+00 : f32
    %375 = vector.broadcast %cst_89 : f32 to vector<8x128xf32>
    %376 = arith.addf %375, %374 : vector<8x128xf32>
    %377 = arith.divf %375, %376 : vector<8x128xf32>
    %378 = vector.extract_strided_slice %371 {offsets = [0, 128], sizes = [8, 128], strides = [1, 1]} : vector<8x512xf32> to vector<8x128xf32>
    %379 = arith.negf %378 : vector<8x128xf32>
    %380 = math.exp %379 : vector<8x128xf32>
    %cst_90 = arith.constant 1.000000e+00 : f32
    %381 = vector.broadcast %cst_90 : f32 to vector<8x128xf32>
    %382 = arith.addf %381, %380 : vector<8x128xf32>
    %383 = arith.divf %381, %382 : vector<8x128xf32>
    %384 = vector.extract_strided_slice %371 {offsets = [0, 256], sizes = [8, 128], strides = [1, 1]} : vector<8x512xf32> to vector<8x128xf32>
    %385 = math.tanh %384 : vector<8x128xf32>
    %386 = vector.extract_strided_slice %371 {offsets = [0, 384], sizes = [8, 128], strides = [1, 1]} : vector<8x512xf32> to vector<8x128xf32>
    %387 = arith.negf %386 : vector<8x128xf32>
    %388 = math.exp %387 : vector<8x128xf32>
    %cst_91 = arith.constant 1.000000e+00 : f32
    %389 = vector.broadcast %cst_91 : f32 to vector<8x128xf32>
    %390 = arith.addf %389, %388 : vector<8x128xf32>
    %391 = arith.divf %389, %390 : vector<8x128xf32>
    %392 = arith.mulf %383, %358 : vector<8x128xf32>
    %393 = arith.mulf %377, %385 : vector<8x128xf32>
    %394 = arith.addf %392, %393 : vector<8x128xf32>
    %395 = math.tanh %394 : vector<8x128xf32>
    %396 = arith.mulf %391, %395 : vector<8x128xf32>
    %397 = arith.truncf %396 : vector<8x128xf32> to vector<8x128xbf16>
    %398 = arith.index_cast %c10_i32 : i32 to index
    %c0_92 = arith.constant 0 : index
    %c0_93 = arith.constant 0 : index
    %399 = vector.load %arg5[%398, %c0_92, %c0_93] : memref<16x8x128xbf16, #tpu.memory_space<vmem>>, vector<1x8x128xbf16>
    %400 = vector.shape_cast %399 : vector<1x8x128xbf16> to vector<8x128xbf16>
    %401 = vector.shape_cast %397 : vector<8x128xbf16> to vector<1x8x128xbf16>
    tpu.vector_store %arg5[%398, %c0_92, %c0_93], %401 {strides = array<i32>} : memref<16x8x128xbf16, #tpu.memory_space<vmem>>, vector<1x8x128xbf16>,
    %c11_i32 = arith.constant 11 : i32
    %402 = arith.index_cast %c11_i32 : i32 to index
    %c0_94 = arith.constant 0 : index
    %c0_95 = arith.constant 0 : index
    %403 = vector.load %arg1[%402, %c0_94, %c0_95] : memref<16x8x512xf32, #tpu.memory_space<vmem>>, vector<1x8x512xf32>
    %404 = vector.shape_cast %403 : vector<1x8x512xf32> to vector<8x512xf32>
    %405 = arith.truncf %396 : vector<8x128xf32> to vector<8x128xbf16>
    %cst_96 = arith.constant dense<0.000000e+00> : vector<8x512xf32>
    %406 = tpu.matmul %405, %3, %cst_96 {dimension_numbers = #tpu.dot_dimension_numbers<[1], [0], [0], [1], [0, 0, 1, 1], [], []>} : vector<8x128xbf16>, vector<128x512xbf16>, vector<8x512xf32> -> vector<8x512xf32>
    %407 = arith.addf %404, %406 : vector<8x512xf32>
    %408 = vector.extract_strided_slice %407 {offsets = [0, 0], sizes = [8, 128], strides = [1, 1]} : vector<8x512xf32> to vector<8x128xf32>
    %409 = arith.negf %408 : vector<8x128xf32>
    %410 = math.exp %409 : vector<8x128xf32>
    %cst_97 = arith.constant 1.000000e+00 : f32
    %411 = vector.broadcast %cst_97 : f32 to vector<8x128xf32>
    %412 = arith.addf %411, %410 : vector<8x128xf32>
    %413 = arith.divf %411, %412 : vector<8x128xf32>
    %414 = vector.extract_strided_slice %407 {offsets = [0, 128], sizes = [8, 128], strides = [1, 1]} : vector<8x512xf32> to vector<8x128xf32>
    %415 = arith.negf %414 : vector<8x128xf32>
    %416 = math.exp %415 : vector<8x128xf32>
    %cst_98 = arith.constant 1.000000e+00 : f32
    %417 = vector.broadcast %cst_98 : f32 to vector<8x128xf32>
    %418 = arith.addf %417, %416 : vector<8x128xf32>
    %419 = arith.divf %417, %418 : vector<8x128xf32>
    %420 = vector.extract_strided_slice %407 {offsets = [0, 256], sizes = [8, 128], strides = [1, 1]} : vector<8x512xf32> to vector<8x128xf32>
    %421 = math.tanh %420 : vector<8x128xf32>
    %422 = vector.extract_strided_slice %407 {offsets = [0, 384], sizes = [8, 128], strides = [1, 1]} : vector<8x512xf32> to vector<8x128xf32>
    %423 = arith.negf %422 : vector<8x128xf32>
    %424 = math.exp %423 : vector<8x128xf32>
    %cst_99 = arith.constant 1.000000e+00 : f32
    %425 = vector.broadcast %cst_99 : f32 to vector<8x128xf32>
    %426 = arith.addf %425, %424 : vector<8x128xf32>
    %427 = arith.divf %425, %426 : vector<8x128xf32>
    %428 = arith.mulf %419, %394 : vector<8x128xf32>
    %429 = arith.mulf %413, %421 : vector<8x128xf32>
    %430 = arith.addf %428, %429 : vector<8x128xf32>
    %431 = math.tanh %430 : vector<8x128xf32>
    %432 = arith.mulf %427, %431 : vector<8x128xf32>
    %433 = arith.truncf %432 : vector<8x128xf32> to vector<8x128xbf16>
    %434 = arith.index_cast %c11_i32 : i32 to index
    %c0_100 = arith.constant 0 : index
    %c0_101 = arith.constant 0 : index
    %435 = vector.load %arg5[%434, %c0_100, %c0_101] : memref<16x8x128xbf16, #tpu.memory_space<vmem>>, vector<1x8x128xbf16>
    %436 = vector.shape_cast %435 : vector<1x8x128xbf16> to vector<8x128xbf16>
    %437 = vector.shape_cast %433 : vector<8x128xbf16> to vector<1x8x128xbf16>
    tpu.vector_store %arg5[%434, %c0_100, %c0_101], %437 {strides = array<i32>} : memref<16x8x128xbf16, #tpu.memory_space<vmem>>, vector<1x8x128xbf16>,
    %c12_i32 = arith.constant 12 : i32
    %438 = arith.index_cast %c12_i32 : i32 to index
    %c0_102 = arith.constant 0 : index
    %c0_103 = arith.constant 0 : index
    %439 = vector.load %arg1[%438, %c0_102, %c0_103] : memref<16x8x512xf32, #tpu.memory_space<vmem>>, vector<1x8x512xf32>
    %440 = vector.shape_cast %439 : vector<1x8x512xf32> to vector<8x512xf32>
    %441 = arith.truncf %432 : vector<8x128xf32> to vector<8x128xbf16>
    %cst_104 = arith.constant dense<0.000000e+00> : vector<8x512xf32>
    %442 = tpu.matmul %441, %3, %cst_104 {dimension_numbers = #tpu.dot_dimension_numbers<[1], [0], [0], [1], [0, 0, 1, 1], [], []>} : vector<8x128xbf16>, vector<128x512xbf16>, vector<8x512xf32> -> vector<8x512xf32>
    %443 = arith.addf %440, %442 : vector<8x512xf32>
    %444 = vector.extract_strided_slice %443 {offsets = [0, 0], sizes = [8, 128], strides = [1, 1]} : vector<8x512xf32> to vector<8x128xf32>
    %445 = arith.negf %444 : vector<8x128xf32>
    %446 = math.exp %445 : vector<8x128xf32>
    %cst_105 = arith.constant 1.000000e+00 : f32
    %447 = vector.broadcast %cst_105 : f32 to vector<8x128xf32>
    %448 = arith.addf %447, %446 : vector<8x128xf32>
    %449 = arith.divf %447, %448 : vector<8x128xf32>
    %450 = vector.extract_strided_slice %443 {offsets = [0, 128], sizes = [8, 128], strides = [1, 1]} : vector<8x512xf32> to vector<8x128xf32>
    %451 = arith.negf %450 : vector<8x128xf32>
    %452 = math.exp %451 : vector<8x128xf32>
    %cst_106 = arith.constant 1.000000e+00 : f32
    %453 = vector.broadcast %cst_106 : f32 to vector<8x128xf32>
    %454 = arith.addf %453, %452 : vector<8x128xf32>
    %455 = arith.divf %453, %454 : vector<8x128xf32>
    %456 = vector.extract_strided_slice %443 {offsets = [0, 256], sizes = [8, 128], strides = [1, 1]} : vector<8x512xf32> to vector<8x128xf32>
    %457 = math.tanh %456 : vector<8x128xf32>
    %458 = vector.extract_strided_slice %443 {offsets = [0, 384], sizes = [8, 128], strides = [1, 1]} : vector<8x512xf32> to vector<8x128xf32>
    %459 = arith.negf %458 : vector<8x128xf32>
    %460 = math.exp %459 : vector<8x128xf32>
    %cst_107 = arith.constant 1.000000e+00 : f32
    %461 = vector.broadcast %cst_107 : f32 to vector<8x128xf32>
    %462 = arith.addf %461, %460 : vector<8x128xf32>
    %463 = arith.divf %461, %462 : vector<8x128xf32>
    %464 = arith.mulf %455, %430 : vector<8x128xf32>
    %465 = arith.mulf %449, %457 : vector<8x128xf32>
    %466 = arith.addf %464, %465 : vector<8x128xf32>
    %467 = math.tanh %466 : vector<8x128xf32>
    %468 = arith.mulf %463, %467 : vector<8x128xf32>
    %469 = arith.truncf %468 : vector<8x128xf32> to vector<8x128xbf16>
    %470 = arith.index_cast %c12_i32 : i32 to index
    %c0_108 = arith.constant 0 : index
    %c0_109 = arith.constant 0 : index
    %471 = vector.load %arg5[%470, %c0_108, %c0_109] : memref<16x8x128xbf16, #tpu.memory_space<vmem>>, vector<1x8x128xbf16>
    %472 = vector.shape_cast %471 : vector<1x8x128xbf16> to vector<8x128xbf16>
    %473 = vector.shape_cast %469 : vector<8x128xbf16> to vector<1x8x128xbf16>
    tpu.vector_store %arg5[%470, %c0_108, %c0_109], %473 {strides = array<i32>} : memref<16x8x128xbf16, #tpu.memory_space<vmem>>, vector<1x8x128xbf16>,
    %c13_i32 = arith.constant 13 : i32
    %474 = arith.index_cast %c13_i32 : i32 to index
    %c0_110 = arith.constant 0 : index
    %c0_111 = arith.constant 0 : index
    %475 = vector.load %arg1[%474, %c0_110, %c0_111] : memref<16x8x512xf32, #tpu.memory_space<vmem>>, vector<1x8x512xf32>
    %476 = vector.shape_cast %475 : vector<1x8x512xf32> to vector<8x512xf32>
    %477 = arith.truncf %468 : vector<8x128xf32> to vector<8x128xbf16>
    %cst_112 = arith.constant dense<0.000000e+00> : vector<8x512xf32>
    %478 = tpu.matmul %477, %3, %cst_112 {dimension_numbers = #tpu.dot_dimension_numbers<[1], [0], [0], [1], [0, 0, 1, 1], [], []>} : vector<8x128xbf16>, vector<128x512xbf16>, vector<8x512xf32> -> vector<8x512xf32>
    %479 = arith.addf %476, %478 : vector<8x512xf32>
    %480 = vector.extract_strided_slice %479 {offsets = [0, 0], sizes = [8, 128], strides = [1, 1]} : vector<8x512xf32> to vector<8x128xf32>
    %481 = arith.negf %480 : vector<8x128xf32>
    %482 = math.exp %481 : vector<8x128xf32>
    %cst_113 = arith.constant 1.000000e+00 : f32
    %483 = vector.broadcast %cst_113 : f32 to vector<8x128xf32>
    %484 = arith.addf %483, %482 : vector<8x128xf32>
    %485 = arith.divf %483, %484 : vector<8x128xf32>
    %486 = vector.extract_strided_slice %479 {offsets = [0, 128], sizes = [8, 128], strides = [1, 1]} : vector<8x512xf32> to vector<8x128xf32>
    %487 = arith.negf %486 : vector<8x128xf32>
    %488 = math.exp %487 : vector<8x128xf32>
    %cst_114 = arith.constant 1.000000e+00 : f32
    %489 = vector.broadcast %cst_114 : f32 to vector<8x128xf32>
    %490 = arith.addf %489, %488 : vector<8x128xf32>
    %491 = arith.divf %489, %490 : vector<8x128xf32>
    %492 = vector.extract_strided_slice %479 {offsets = [0, 256], sizes = [8, 128], strides = [1, 1]} : vector<8x512xf32> to vector<8x128xf32>
    %493 = math.tanh %492 : vector<8x128xf32>
    %494 = vector.extract_strided_slice %479 {offsets = [0, 384], sizes = [8, 128], strides = [1, 1]} : vector<8x512xf32> to vector<8x128xf32>
    %495 = arith.negf %494 : vector<8x128xf32>
    %496 = math.exp %495 : vector<8x128xf32>
    %cst_115 = arith.constant 1.000000e+00 : f32
    %497 = vector.broadcast %cst_115 : f32 to vector<8x128xf32>
    %498 = arith.addf %497, %496 : vector<8x128xf32>
    %499 = arith.divf %497, %498 : vector<8x128xf32>
    %500 = arith.mulf %491, %466 : vector<8x128xf32>
    %501 = arith.mulf %485, %493 : vector<8x128xf32>
    %502 = arith.addf %500, %501 : vector<8x128xf32>
    %503 = math.tanh %502 : vector<8x128xf32>
    %504 = arith.mulf %499, %503 : vector<8x128xf32>
    %505 = arith.truncf %504 : vector<8x128xf32> to vector<8x128xbf16>
    %506 = arith.index_cast %c13_i32 : i32 to index
    %c0_116 = arith.constant 0 : index
    %c0_117 = arith.constant 0 : index
    %507 = vector.load %arg5[%506, %c0_116, %c0_117] : memref<16x8x128xbf16, #tpu.memory_space<vmem>>, vector<1x8x128xbf16>
    %508 = vector.shape_cast %507 : vector<1x8x128xbf16> to vector<8x128xbf16>
    %509 = vector.shape_cast %505 : vector<8x128xbf16> to vector<1x8x128xbf16>
    tpu.vector_store %arg5[%506, %c0_116, %c0_117], %509 {strides = array<i32>} : memref<16x8x128xbf16, #tpu.memory_space<vmem>>, vector<1x8x128xbf16>,
    %c14_i32 = arith.constant 14 : i32
    %510 = arith.index_cast %c14_i32 : i32 to index
    %c0_118 = arith.constant 0 : index
    %c0_119 = arith.constant 0 : index
    %511 = vector.load %arg1[%510, %c0_118, %c0_119] : memref<16x8x512xf32, #tpu.memory_space<vmem>>, vector<1x8x512xf32>
    %512 = vector.shape_cast %511 : vector<1x8x512xf32> to vector<8x512xf32>
    %513 = arith.truncf %504 : vector<8x128xf32> to vector<8x128xbf16>
    %cst_120 = arith.constant dense<0.000000e+00> : vector<8x512xf32>
    %514 = tpu.matmul %513, %3, %cst_120 {dimension_numbers = #tpu.dot_dimension_numbers<[1], [0], [0], [1], [0, 0, 1, 1], [], []>} : vector<8x128xbf16>, vector<128x512xbf16>, vector<8x512xf32> -> vector<8x512xf32>
    %515 = arith.addf %512, %514 : vector<8x512xf32>
    %516 = vector.extract_strided_slice %515 {offsets = [0, 0], sizes = [8, 128], strides = [1, 1]} : vector<8x512xf32> to vector<8x128xf32>
    %517 = arith.negf %516 : vector<8x128xf32>
    %518 = math.exp %517 : vector<8x128xf32>
    %cst_121 = arith.constant 1.000000e+00 : f32
    %519 = vector.broadcast %cst_121 : f32 to vector<8x128xf32>
    %520 = arith.addf %519, %518 : vector<8x128xf32>
    %521 = arith.divf %519, %520 : vector<8x128xf32>
    %522 = vector.extract_strided_slice %515 {offsets = [0, 128], sizes = [8, 128], strides = [1, 1]} : vector<8x512xf32> to vector<8x128xf32>
    %523 = arith.negf %522 : vector<8x128xf32>
    %524 = math.exp %523 : vector<8x128xf32>
    %cst_122 = arith.constant 1.000000e+00 : f32
    %525 = vector.broadcast %cst_122 : f32 to vector<8x128xf32>
    %526 = arith.addf %525, %524 : vector<8x128xf32>
    %527 = arith.divf %525, %526 : vector<8x128xf32>
    %528 = vector.extract_strided_slice %515 {offsets = [0, 256], sizes = [8, 128], strides = [1, 1]} : vector<8x512xf32> to vector<8x128xf32>
    %529 = math.tanh %528 : vector<8x128xf32>
    %530 = vector.extract_strided_slice %515 {offsets = [0, 384], sizes = [8, 128], strides = [1, 1]} : vector<8x512xf32> to vector<8x128xf32>
    %531 = arith.negf %530 : vector<8x128xf32>
    %532 = math.exp %531 : vector<8x128xf32>
    %cst_123 = arith.constant 1.000000e+00 : f32
    %533 = vector.broadcast %cst_123 : f32 to vector<8x128xf32>
    %534 = arith.addf %533, %532 : vector<8x128xf32>
    %535 = arith.divf %533, %534 : vector<8x128xf32>
    %536 = arith.mulf %527, %502 : vector<8x128xf32>
    %537 = arith.mulf %521, %529 : vector<8x128xf32>
    %538 = arith.addf %536, %537 : vector<8x128xf32>
    %539 = math.tanh %538 : vector<8x128xf32>
    %540 = arith.mulf %535, %539 : vector<8x128xf32>
    %541 = arith.truncf %540 : vector<8x128xf32> to vector<8x128xbf16>
    %542 = arith.index_cast %c14_i32 : i32 to index
    %c0_124 = arith.constant 0 : index
    %c0_125 = arith.constant 0 : index
    %543 = vector.load %arg5[%542, %c0_124, %c0_125] : memref<16x8x128xbf16, #tpu.memory_space<vmem>>, vector<1x8x128xbf16>
    %544 = vector.shape_cast %543 : vector<1x8x128xbf16> to vector<8x128xbf16>
    %545 = vector.shape_cast %541 : vector<8x128xbf16> to vector<1x8x128xbf16>
    tpu.vector_store %arg5[%542, %c0_124, %c0_125], %545 {strides = array<i32>} : memref<16x8x128xbf16, #tpu.memory_space<vmem>>, vector<1x8x128xbf16>,
    %c15_i32 = arith.constant 15 : i32
    %546 = arith.index_cast %c15_i32 : i32 to index
    %c0_126 = arith.constant 0 : index
    %c0_127 = arith.constant 0 : index
    %547 = vector.load %arg1[%546, %c0_126, %c0_127] : memref<16x8x512xf32, #tpu.memory_space<vmem>>, vector<1x8x512xf32>
    %548 = vector.shape_cast %547 : vector<1x8x512xf32> to vector<8x512xf32>
    %549 = arith.truncf %540 : vector<8x128xf32> to vector<8x128xbf16>
    %cst_128 = arith.constant dense<0.000000e+00> : vector<8x512xf32>
    %550 = tpu.matmul %549, %3, %cst_128 {dimension_numbers = #tpu.dot_dimension_numbers<[1], [0], [0], [1], [0, 0, 1, 1], [], []>} : vector<8x128xbf16>, vector<128x512xbf16>, vector<8x512xf32> -> vector<8x512xf32>
    %551 = arith.addf %548, %550 : vector<8x512xf32>
    %552 = vector.extract_strided_slice %551 {offsets = [0, 0], sizes = [8, 128], strides = [1, 1]} : vector<8x512xf32> to vector<8x128xf32>
    %553 = arith.negf %552 : vector<8x128xf32>
    %554 = math.exp %553 : vector<8x128xf32>
    %cst_129 = arith.constant 1.000000e+00 : f32
    %555 = vector.broadcast %cst_129 : f32 to vector<8x128xf32>
    %556 = arith.addf %555, %554 : vector<8x128xf32>
    %557 = arith.divf %555, %556 : vector<8x128xf32>
    %558 = vector.extract_strided_slice %551 {offsets = [0, 128], sizes = [8, 128], strides = [1, 1]} : vector<8x512xf32> to vector<8x128xf32>
    %559 = arith.negf %558 : vector<8x128xf32>
    %560 = math.exp %559 : vector<8x128xf32>
    %cst_130 = arith.constant 1.000000e+00 : f32
    %561 = vector.broadcast %cst_130 : f32 to vector<8x128xf32>
    %562 = arith.addf %561, %560 : vector<8x128xf32>
    %563 = arith.divf %561, %562 : vector<8x128xf32>
    %564 = vector.extract_strided_slice %551 {offsets = [0, 256], sizes = [8, 128], strides = [1, 1]} : vector<8x512xf32> to vector<8x128xf32>
    %565 = math.tanh %564 : vector<8x128xf32>
    %566 = vector.extract_strided_slice %551 {offsets = [0, 384], sizes = [8, 128], strides = [1, 1]} : vector<8x512xf32> to vector<8x128xf32>
    %567 = arith.negf %566 : vector<8x128xf32>
    %568 = math.exp %567 : vector<8x128xf32>
    %cst_131 = arith.constant 1.000000e+00 : f32
    %569 = vector.broadcast %cst_131 : f32 to vector<8x128xf32>
    %570 = arith.addf %569, %568 : vector<8x128xf32>
    %571 = arith.divf %569, %570 : vector<8x128xf32>
    %572 = arith.mulf %563, %538 : vector<8x128xf32>
    %573 = arith.mulf %557, %565 : vector<8x128xf32>
    %574 = arith.addf %572, %573 : vector<8x128xf32>
    %575 = math.tanh %574 : vector<8x128xf32>
    %576 = arith.mulf %571, %575 : vector<8x128xf32>
    %577 = arith.truncf %576 : vector<8x128xf32> to vector<8x128xbf16>
    %578 = arith.index_cast %c15_i32 : i32 to index
    %c0_132 = arith.constant 0 : index
    %c0_133 = arith.constant 0 : index
    %579 = vector.load %arg5[%578, %c0_132, %c0_133] : memref<16x8x128xbf16, #tpu.memory_space<vmem>>, vector<1x8x128xbf16>
    %580 = vector.shape_cast %579 : vector<1x8x128xbf16> to vector<8x128xbf16>
    %581 = vector.shape_cast %577 : vector<8x128xbf16> to vector<1x8x128xbf16>
    tpu.vector_store %arg5[%578, %c0_132, %c0_133], %581 {strides = array<i32>} : memref<16x8x128xbf16, #tpu.memory_space<vmem>>, vector<1x8x128xbf16>,
    %c16_i32 = arith.constant 16 : i32
    %c0_134 = arith.constant 0 : index
    %c0_135 = arith.constant 0 : index
    %582 = vector.load %arg8[%c0_134, %c0_135] : memref<8x128xf32, #tpu.memory_space<vmem>>, vector<8x128xf32>
    tpu.vector_store %arg8[%c0_134, %c0_135], %576 {strides = array<i32>} : memref<8x128xf32, #tpu.memory_space<vmem>>, vector<8x128xf32>,
    %c0_136 = arith.constant 0 : index
    %c0_137 = arith.constant 0 : index
    %583 = vector.load %arg9[%c0_136, %c0_137] : memref<8x128xf32, #tpu.memory_space<vmem>>, vector<8x128xf32>
    tpu.vector_store %arg9[%c0_136, %c0_137], %574 {strides = array<i32>} : memref<8x128xf32, #tpu.memory_space<vmem>>, vector<8x128xf32>,
    %c0_i32_138 = arith.constant 0 : i32
    %584 = arith.cmpi eq, %arg0, %c0_i32_138 : i32
    %585 = arith.extui %584 : i1 to i32
    %c0_i32_139 = arith.constant 0 : i32
    %586 = arith.cmpi ne, %585, %c0_i32_139 : i32
    scf.if %586 {
      %c0_140 = arith.constant 0 : index
      %c0_141 = arith.constant 0 : index
      %587 = vector.load %arg6[%c0_140, %c0_141] : memref<8x128xf32, #tpu.memory_space<vmem>>, vector<8x128xf32>
      tpu.vector_store %arg6[%c0_140, %c0_141], %576 {strides = array<i32>} : memref<8x128xf32, #tpu.memory_space<vmem>>, vector<8x128xf32>,
      %c0_142 = arith.constant 0 : index
      %c0_143 = arith.constant 0 : index
      %588 = vector.load %arg7[%c0_142, %c0_143] : memref<8x128xf32, #tpu.memory_space<vmem>>, vector<8x128xf32>
      tpu.vector_store %arg7[%c0_142, %c0_143], %574 {strides = array<i32>} : memref<8x128xf32, #tpu.memory_space<vmem>>, vector<8x128xf32>,
    } else {
    }
    return
  }
  func.func @transform_0(%arg0: i32) -> (i32, i32, i32) {
    %c0_i32 = arith.constant 0 : i32
    %c0_i32_0 = arith.constant 0 : i32
    %c0_i32_1 = arith.constant 0 : i32
    return %arg0, %c0_i32, %c0_i32_0 : i32, i32, i32
  }
  func.func @transform_1(%arg0: i32) -> (i32, i32) {
    %c0_i32 = arith.constant 0 : i32
    %c0_i32_0 = arith.constant 0 : i32
    %c0_i32_1 = arith.constant 0 : i32
    return %c0_i32, %c0_i32_0 : i32, i32
  }
  func.func @transform_2(%arg0: i32) -> (i32, i32) {
    %c0_i32 = arith.constant 0 : i32
    %c0_i32_0 = arith.constant 0 : i32
    %c0_i32_1 = arith.constant 0 : i32
    return %c0_i32, %c0_i32_0 : i32, i32
  }
  func.func @transform_3(%arg0: i32) -> (i32, i32) {
    %c0_i32 = arith.constant 0 : i32
    %c0_i32_0 = arith.constant 0 : i32
    %c0_i32_1 = arith.constant 0 : i32
    return %c0_i32, %c0_i32_0 : i32, i32
  }
  func.func @transform_4(%arg0: i32) -> (i32, i32, i32) {
    %c0_i32 = arith.constant 0 : i32
    %c0_i32_0 = arith.constant 0 : i32
    %c0_i32_1 = arith.constant 0 : i32
    return %arg0, %c0_i32, %c0_i32_0 : i32, i32, i32
  }
  func.func @transform_5(%arg0: i32) -> (i32, i32) {
    %c0_i32 = arith.constant 0 : i32
    %c0_i32_0 = arith.constant 0 : i32
    %c0_i32_1 = arith.constant 0 : i32
    return %c0_i32, %c0_i32_0 : i32, i32
  }
  func.func @transform_6(%arg0: i32) -> (i32, i32) {
    %c0_i32 = arith.constant 0 : i32
    %c0_i32_0 = arith.constant 0 : i32
    %c0_i32_1 = arith.constant 0 : i32
    return %c0_i32, %c0_i32_0 : i32, i32
  }
}

module attributes {stable_mosaic.version = 11 : i64} {
  func.func @_matmul_bias_kernel(%arg0: i32, %arg1: i32, %arg2: i32, %arg3: memref<128x128xbf16, #tpu.memory_space<vmem>>, %arg4: memref<128x256xbf16, #tpu.memory_space<vmem>>, %arg5: memref<1x256xf32, #tpu.memory_space<vmem>>, %arg6: memref<128x256xf32, #tpu.memory_space<vmem>>, %arg7: memref<128x256xf32, #tpu.memory_space<vmem>>) attributes {dimension_semantics = [#tpu.dimension_semantics<parallel>, #tpu.dimension_semantics<parallel>, #tpu.dimension_semantics<arbitrary>], iteration_bounds = array<i64: 1, 1, 1>, scalar_prefetch = 0 : i64, scratch_operands = 1 : i64, tpu.core_type = #tpu.core_type<tc>, window_params = [{transform_indices = @transform_0, window_bounds = array<i64: 128, 128>}, {transform_indices = @transform_1, window_bounds = array<i64: 128, 256>}, {transform_indices = @transform_2, window_bounds = array<i64: 1, 256>}, {transform_indices = @transform_3, window_bounds = array<i64: 128, 256>}]} {
    %c0_i32 = arith.constant 0 : i32
    %0 = arith.cmpi eq, %arg2, %c0_i32 : i32
    %1 = arith.extui %0 : i1 to i32
    %c0_i32_0 = arith.constant 0 : i32
    %2 = arith.cmpi ne, %1, %c0_i32_0 : i32
    scf.if %2 {
      %cst_10 = arith.constant 0.000000e+00 : f32
      %12 = vector.broadcast %cst_10 : f32 to vector<128x256xf32>
      %c0_11 = arith.constant 0 : index
      %c0_12 = arith.constant 0 : index
      %13 = vector.load %arg7[%c0_11, %c0_12] : memref<128x256xf32, #tpu.memory_space<vmem>>, vector<128x256xf32>
      tpu.vector_store %arg7[%c0_11, %c0_12], %12 {strides = array<i32>} : memref<128x256xf32, #tpu.memory_space<vmem>>, vector<128x256xf32>,
    } else {
    }
    %c0 = arith.constant 0 : index
    %c0_1 = arith.constant 0 : index
    %3 = vector.load %arg7[%c0, %c0_1] : memref<128x256xf32, #tpu.memory_space<vmem>>, vector<128x256xf32>
    %c0_2 = arith.constant 0 : index
    %c0_3 = arith.constant 0 : index
    %4 = vector.load %arg3[%c0_2, %c0_3] : memref<128x128xbf16, #tpu.memory_space<vmem>>, vector<128x128xbf16>
    %c0_4 = arith.constant 0 : index
    %c0_5 = arith.constant 0 : index
    %5 = vector.load %arg4[%c0_4, %c0_5] : memref<128x256xbf16, #tpu.memory_space<vmem>>, vector<128x256xbf16>
    %cst = arith.constant dense<0.000000e+00> : vector<128x256xf32>
    %6 = tpu.matmul %4, %5, %cst {dimension_numbers = #tpu.dot_dimension_numbers<[1], [0], [0], [1], [0, 0, 1, 1], [], []>} : vector<128x128xbf16>, vector<128x256xbf16>, vector<128x256xf32> -> vector<128x256xf32>
    %7 = arith.addf %3, %6 : vector<128x256xf32>
    %c0_6 = arith.constant 0 : index
    %c0_7 = arith.constant 0 : index
    %8 = vector.load %arg7[%c0_6, %c0_7] : memref<128x256xf32, #tpu.memory_space<vmem>>, vector<128x256xf32>
    tpu.vector_store %arg7[%c0_6, %c0_7], %7 {strides = array<i32>} : memref<128x256xf32, #tpu.memory_space<vmem>>, vector<128x256xf32>,
    %c0_i32_8 = arith.constant 0 : i32
    %9 = arith.cmpi eq, %arg2, %c0_i32_8 : i32
    %10 = arith.extui %9 : i1 to i32
    %c0_i32_9 = arith.constant 0 : i32
    %11 = arith.cmpi ne, %10, %c0_i32_9 : i32
    scf.if %11 {
      %c0_10 = arith.constant 0 : index
      %c0_11 = arith.constant 0 : index
      %12 = vector.load %arg7[%c0_10, %c0_11] : memref<128x256xf32, #tpu.memory_space<vmem>>, vector<128x256xf32>
      %c0_12 = arith.constant 0 : index
      %c0_13 = arith.constant 0 : index
      %13 = vector.load %arg5[%c0_12, %c0_13] : memref<1x256xf32, #tpu.memory_space<vmem>>, vector<1x256xf32>
      %14 = vector.broadcast %13 : vector<1x256xf32> to vector<128x256xf32>
      %15 = arith.addf %12, %14 : vector<128x256xf32>
      %c0_14 = arith.constant 0 : index
      %c0_15 = arith.constant 0 : index
      %16 = vector.load %arg6[%c0_14, %c0_15] : memref<128x256xf32, #tpu.memory_space<vmem>>, vector<128x256xf32>
      tpu.vector_store %arg6[%c0_14, %c0_15], %15 {strides = array<i32>} : memref<128x256xf32, #tpu.memory_space<vmem>>, vector<128x256xf32>,
    } else {
    }
    return
  }
  func.func @transform_0(%arg0: i32, %arg1: i32, %arg2: i32) -> (i32, i32) {
    %c0_i32 = arith.constant 0 : i32
    return %arg0, %arg2 : i32, i32
  }
  func.func @transform_1(%arg0: i32, %arg1: i32, %arg2: i32) -> (i32, i32) {
    %c0_i32 = arith.constant 0 : i32
    return %arg2, %arg1 : i32, i32
  }
  func.func @transform_2(%arg0: i32, %arg1: i32, %arg2: i32) -> (i32, i32) {
    %c0_i32 = arith.constant 0 : i32
    %c0_i32_0 = arith.constant 0 : i32
    return %c0_i32, %arg1 : i32, i32
  }
  func.func @transform_3(%arg0: i32, %arg1: i32, %arg2: i32) -> (i32, i32) {
    %c0_i32 = arith.constant 0 : i32
    return %arg0, %arg1 : i32, i32
  }
}

</mosaic_0001>

<llo_original>
// kernel: lstm_model_forward.5
$region0: #{lstm_model_forward.5}
  #allocation0 [shape = 'u32[]', space=smem, size = 0x4, offset = 0x4, fixed_abs, tag = 'smem constant byte address 0x4 - core index']
  #allocation1 [shape = 'u32[72,128]{1,0:T(1,128)}', space=vmem, size = 0x9000, scoped, tag = 'internal scratch']
  #allocation2 [shape = 'f32[128,256]{1,0:T(8,128)}', space=vmem, size = 0x20000, scoped, tag = 'scratch operand']
  %s0 = inlined_call_operand.vmem [shape: bf16[128,128], index: 0, kind: input, shape index: {}]
  %s1 = inlined_call_operand.vmem [shape: bf16[128,512], index: 1, kind: input, shape index: {}]
  %s2 = inlined_call_operand.vmem [shape: f32[1,512], index: 2, kind: input, shape index: {}]
  %s3 = inlined_call_operand.vmem [shape: f32[128,512], index: 3, kind: output, shape index: {}]
  %s4 = sld [smem:[#allocation0]]
  $region110: #{lstm_model_forward.5} parent=0
    _
  %s6 = ssub.s32 1, %s4
  %s7 = scalar_select 0, %s6, %s4
  $region1: #{lstm_model_forward.5} parent=0
    #allocation3 [shape = 'u8[131072]{0}', space=vmem, size = 0x20000, scoped, tag = 'input window, operand 1']
    #allocation4 [shape = 'u8[262144]{0}', space=vmem, size = 0x40000, scoped, tag = 'output window, operand 0']
    loop: start=0, step=1, limit=4
    $region2: #{lstm_model_forward.5} parent=1 // loop_pre_header
      _
    $region3: #{lstm_model_forward.5} parent=1 // loop_header
      %s9 = sphi 0, %s13
      %p10 = scmp.ge.s32.totalorder %s9, 4
      %s16 = sphi 0, %s35
      %s17 = sphi 0, %s31
      %s18 = sphi 0, %s27
      %s19 = sphi 0, %s16
      %s20 = sphi 0, %s17
      %s21 = sphi 0, %s18
      %s22 = sphi 0, %s19
      %s23 = sphi 0, %s20
      %s24 = sphi 0, %s21
      %s40 = sphi 0, %s42
      %s43 = sphi 0, %s40
      %s44 = sphi 0, %s43
      %s60 = sphi 0, %s44
      %s68 = sphi 0, %s70
      %s71 = sphi 0, %s68
      %s72 = sphi 0, %s71
      %s88 = sphi 0, %s72
      %s94 = sphi 0, %s96
      %s97 = sphi 0, %s94
      %s98 = sphi 0, %s97
      %s114 = sphi 0, %s98
      %s122 = sphi 0, %s124
      %s125 = sphi 0, %s122
      %s126 = sphi 0, %s125
      %s142 = sphi 0, %s126
    $region4: #{lstm_model_forward.5} parent=1 // loop_header_branch
      %12 = sbr.rel (%p10) target = $region8
    $region5: #{lstm_model_forward.5} parent=1 // loop_body
      %s14 = ssub.s32 %s9, 1
      %s15 = ssub.s32 %s9, 2
      %s25 = sadd.s32 1, %s18
      %p26 = scmp.ge.s32.totalorder %s25, 1
      %s27 = scalar_select %p26, 0, %s25
      %s28 = sadd.s32 1, %s17
      %s29 = scalar_select %p26, %s28, %s17
      %p30 = scmp.ge.s32.totalorder %s29, 2
      %s31 = scalar_select %p30, 0, %s29
      %s32 = sadd.s32 1, %s16
      %s33 = scalar_select %p30, %s32, %s16
      %p34 = scmp.ge.s32.totalorder %s33, 1
      %s35 = scalar_select %p34, 0, %s33
      %s36 = ssub.s32 %s16, %s35
      %s37 = ssub.s32 %s18, %s27
      %s38 = sor.u32 %s36, %s37
      %p39 = scmp.eq.s32.totalorder %s38, 0
      %s41 = sadd.s32 %s40, 1
      %s42 = scalar_select %p39, %s40, %s41
      %p45 = pneg %p39
      %p46 = scmp.eq.s32.totalorder %s9, 1
      %p47 = por %p45, %p46
      %p48 = scmp.ne.s32.totalorder %s40, %s43
      %p49 = scmp.eq.s32.totalorder %s9, 0
      %p50 = por %p48, %p49
      %p51 = scmp.ne.s32.totalorder %s40, %s43
      %p52 = scmp.eq.s32.totalorder %s14, 1
      %p53 = por %p51, %p52
      %p54 = scmp.ne.s32.totalorder %s43, %s44
      %p55 = scmp.eq.s32.totalorder %s14, 0
      %p56 = por %p54, %p55
      %p57 = scmp.ne.s32.totalorder %s43, %s44
      %p58 = scmp.eq.s32.totalorder %s15, 1
      %p59 = por %p57, %p58
      %p61 = scmp.ne.s32.totalorder %s44, %s60
      %p62 = scmp.eq.s32.totalorder %s15, 0
      %p63 = por %p61, %p62
      %s64 = ssub.s32 %s18, %s27
      %s65 = ssub.s32 %s17, %s31
      %s66 = sor.u32 %s64, %s65
      %p67 = scmp.eq.s32.totalorder %s66, 0
      %s69 = sadd.s32 %s68, 1
      %s70 = scalar_select %p67, %s68, %s69
      %p73 = pneg %p67
      %p74 = scmp.eq.s32.totalorder %s9, 1
      %p75 = por %p73, %p74
      %p76 = scmp.ne.s32.totalorder %s68, %s71
      %p77 = scmp.eq.s32.totalorder %s9, 0
      %p78 = por %p76, %p77
      %p79 = scmp.ne.s32.totalorder %s68, %s71
      %p80 = scmp.eq.s32.totalorder %s14, 1
      %p81 = por %p79, %p80
      %p82 = scmp.ne.s32.totalorder %s71, %s72
      %p83 = scmp.eq.s32.totalorder %s14, 0
      %p84 = por %p82, %p83
      %p85 = scmp.ne.s32.totalorder %s71, %s72
      %p86 = scmp.eq.s32.totalorder %s15, 1
      %p87 = por %p85, %p86
      %p89 = scmp.ne.s32.totalorder %s72, %s88
      %p90 = scmp.eq.s32.totalorder %s15, 0
      %p91 = por %p89, %p90
      %s92 = ssub.s32 %s17, %s31
      %p93 = scmp.eq.s32.totalorder %s92, 0
      %s95 = sadd.s32 %s94, 1
      %s96 = scalar_select %p93, %s94, %s95
      %p99 = pneg %p93
      %p100 = scmp.eq.s32.totalorder %s9, 1
      %p101 = por %p99, %p100
      %p102 = scmp.ne.s32.totalorder %s94, %s97
      %p103 = scmp.eq.s32.totalorder %s9, 0
      %p104 = por %p102, %p103
      %p105 = scmp.ne.s32.totalorder %s94, %s97
      %p106 = scmp.eq.s32.totalorder %s14, 1
      %p107 = por %p105, %p106
      %p108 = scmp.ne.s32.totalorder %s97, %s98
      %p109 = scmp.eq.s32.totalorder %s14, 0
      %p110 = por %p108, %p109
      %p111 = scmp.ne.s32.totalorder %s97, %s98
      %p112 = scmp.eq.s32.totalorder %s15, 1
      %p113 = por %p111, %p112
      %p115 = scmp.ne.s32.totalorder %s98, %s114
      %p116 = scmp.eq.s32.totalorder %s15, 0
      %p117 = por %p115, %p116
      %s118 = ssub.s32 %s16, %s35
      %s119 = ssub.s32 %s17, %s31
      %s120 = sor.u32 %s118, %s119
      %p121 = scmp.eq.s32.totalorder %s120, 0
      %s123 = sadd.s32 %s122, 1
      %s124 = scalar_select %p121, %s122, %s123
      %p127 = pneg %p121
      %p128 = scmp.eq.s32.totalorder %s9, 1
      %p129 = por %p127, %p128
      %p130 = scmp.ne.s32.totalorder %s122, %s125
      %p131 = scmp.eq.s32.totalorder %s9, 0
      %p132 = por %p130, %p131
      %p133 = scmp.ne.s32.totalorder %s122, %s125
      %p134 = scmp.eq.s32.totalorder %s14, 1
      %p135 = por %p133, %p134
      %p136 = scmp.ne.s32.totalorder %s125, %s126
      %p137 = scmp.eq.s32.totalorder %s14, 0
      %p138 = por %p136, %p137
      %p139 = scmp.ne.s32.totalorder %s125, %s126
      %p140 = scmp.eq.s32.totalorder %s15, 1
      %p141 = por %p139, %p140
      %p143 = scmp.ne.s32.totalorder %s126, %s142
      %p144 = scmp.eq.s32.totalorder %s15, 0
      %p145 = por %p143, %p144
      %p146 = scmp.le.s32.totalorder 1, %s9
      %p147 = scmp.lt.s32.totalorder %s9, 3
      %p148 = pnand %p146, %p147
      %p149 = pneg %p148
      // Predicated region
      $region9: #{lstm_model_forward.5} parent=5 // pred_check
        _
      $region10: #{lstm_model_forward.5} parent=5 // pred_check_branch
        %151 = sbr.rel (%p148) target = $region12
      $region11: #{lstm_model_forward.5} parent=5 // pred_region
        %s152 = ssub.s32 %s9, 1
        // Predicated region
        $region13: #{lstm_model_forward.5} parent=11 // pred_check
          %p153 = pneg %p56
        $region14: #{lstm_model_forward.5} parent=11 // pred_check_branch
          %155 = sbr.rel (%p153) target = $region16
        $region15: #{lstm_model_forward.5} parent=11 // pred_region
          %s156 = smul.u32 16, %s19
          %p157 = scmp.lt.s32.totalorder %s156, 15
          %s158 = scalar_select %p157, %s156, 15
          %p159 = scmp.lt.s32.totalorder %s21, 0
          %s160 = scalar_select %p159, %s21, 0
          %s161 = sadd.s32 %s160, %s158
          %s162 = smul.addr %s161, 4
          %s163 = scalar_lea.vmem %s0, %s162
          %s164 = smul.u32 16, %s19
        $region16: #{lstm_model_forward.5} parent=11 // pred_fallthru
          _
      $region12: #{lstm_model_forward.5} parent=5 // pred_fallthru
        _
      %p165 = scmp.lt.s32.totalorder %s9, 2
      // Predicated region
      $region17: #{lstm_model_forward.5} parent=5 // pred_check
        %p166 = pneg %p165
      $region18: #{lstm_model_forward.5} parent=5 // pred_check_branch
        %168 = sbr.rel (%p166) target = $region20
      $region19: #{lstm_model_forward.5} parent=5 // pred_region
        // Predicated region
        $region21: #{lstm_model_forward.5} parent=19 // pred_check
          %p169 = pneg %p78
        $region22: #{lstm_model_forward.5} parent=19 // pred_check_branch
          %171 = sbr.rel (%p169) target = $region24
        $region23: #{lstm_model_forward.5} parent=19 // pred_region
          %s172 = sand.u32 %s68, 1
          %s173 = sand.u32 %s68, 1
          %s174 = smul.addr %s173, 128
          %s175 = scalar_lea.vmem [#allocation3], %s174
          %s176 = smul.u32 16, %s18
          %s177 = smul.u32 2, %s17
          %s178 = smul.addr %s176, 4
          %s179 = sadd.s32 %s177, %s178
          %s180 = smul.addr %s179, 4
          %s181 = scalar_lea.vmem %s1, %s180
          // Predicated region
          $region25: #{lstm_model_forward.5} parent=23 // pred_check
            _
          $region26: #{lstm_model_forward.5} parent=23 // pred_check_branch
            %183 = sbr.rel (0) target = $region28
          $region27: #{lstm_model_forward.5} parent=23 // pred_region
            // Predicated region
            $region29: #{lstm_model_forward.5} parent=27 // pred_check
              _
            $region30: #{lstm_model_forward.5} parent=27 // pred_check_branch
              %185 = sbr.rel (0) target = $region32
            $region31: #{lstm_model_forward.5} parent=27 // pred_region
              // Predicated region
              $region44: #{lstm_model_forward.5} parent=31 // pred_check
                _
              $region45: #{lstm_model_forward.5} parent=31 // pred_check_branch
                %231 = sbr.rel (0) target = $region47
              $region46: #{lstm_model_forward.5} parent=31 // pred_region
                loop: start=0, step=1, limit=1
                $region48: #{lstm_model_forward.5} parent=46 // loop_pre_header
                  _
                $region49: #{lstm_model_forward.5} parent=46 // loop_header
                  %s233 = sphi 0, %s237
                  %p234 = scmp.ge.s32.totalorder %s233, 1
                  %s238 = sphi %s181, %s181
                  %s239 = sphi %s175, %s175
                $region50: #{lstm_model_forward.5} parent=46 // loop_header_branch
                  %236 = sbr.rel (%p234) target = $region54
                $region51: #{lstm_model_forward.5} parent=46 // loop_body
                  %v240 = vld [vmem:[%s238] sm:$0xff]
                  %241 = vst [vmem:[%s239] sm:$0xff] %v240
                  %v242 = vld [vmem:[%s238 + $0x10] sm:$0xff]
                  %243 = vst [vmem:[%s239 + $0x8] sm:$0xff] %v242
                  %v244 = vld [vmem:[%s238 + $0x20] sm:$0xff]
                  %245 = vst [vmem:[%s239 + $0x10] sm:$0xff] %v244
                  %v246 = vld [vmem:[%s238 + $0x30] sm:$0xff]
                  %247 = vst [vmem:[%s239 + $0x18] sm:$0xff] %v246
                  %v248 = vld [vmem:[%s238 + $0x40] sm:$0xff]
                  %249 = vst [vmem:[%s239 + $0x20] sm:$0xff] %v248
                  %v250 = vld [vmem:[%s238 + $0x50] sm:$0xff]
                  %251 = vst [vmem:[%s239 + $0x28] sm:$0xff] %v250
                  %v252 = vld [vmem:[%s238 + $0x60] sm:$0xff]
                  %253 = vst [vmem:[%s239 + $0x30] sm:$0xff] %v252
                  %v254 = vld [vmem:[%s238 + $0x70] sm:$0xff]
                  %255 = vst [vmem:[%s239 + $0x38] sm:$0xff] %v254
                  %v256 = vld [vmem:[%s238 + $0x80] sm:$0xff]
                  %257 = vst [vmem:[%s239 + $0x40] sm:$0xff] %v256
                  %v258 = vld [vmem:[%s238 + $0x90] sm:$0xff]
                  %259 = vst [vmem:[%s239 + $0x48] sm:$0xff] %v258
                  %v260 = vld [vmem:[%s238 + $0xa0] sm:$0xff]
                  %261 = vst [vmem:[%s239 + $0x50] sm:$0xff] %v260
                  %v262 = vld [vmem:[%s238 + $0xb0] sm:$0xff]
                  %263 = vst [vmem:[%s239 + $0x58] sm:$0xff] %v262
                  %v264 = vld [vmem:[%s238 + $0xc0] sm:$0xff]
                  %265 = vst [vmem:[%s239 + $0x60] sm:$0xff] %v264
                  %v266 = vld [vmem:[%s238 + $0xd0] sm:$0xff]
                  %267 = vst [vmem:[%s239 + $0x68] sm:$0xff] %v266
                  %v268 = vld [vmem:[%s238 + $0xe0] sm:$0xff]
                  %269 = vst [vmem:[%s239 + $0x70] sm:$0xff] %v268
                  %v270 = vld [vmem:[%s238 + $0xf0] sm:$0xff]
                  %271 = vst [vmem:[%s239 + $0x78] sm:$0xff] %v270
                $region52: #{lstm_model_forward.5} parent=46 // loop_footer
                  %s237 = sadd.s32 1, %s233
                $region53: #{lstm_model_forward.5} parent=46 // loop_footer_branch
                  %232 = sbr.rel target = $region49
                $region54: #{lstm_model_forward.5} parent=46 // loop_exit
                  _
              $region47: #{lstm_model_forward.5} parent=31 // pred_fallthru
                _
              // Predicated region
              $region55: #{lstm_model_forward.5} parent=31 // pred_check
                _
              $region56: #{lstm_model_forward.5} parent=31 // pred_check_branch
                %273 = sbr.rel target = $region58
              $region57: #{lstm_model_forward.5} parent=31 // pred_region
                _
              $region58: #{lstm_model_forward.5} parent=31 // pred_fallthru
                _
            $region32: #{lstm_model_forward.5} parent=27 // pred_fallthru
              _
            // Predicated region
            $region33: #{lstm_model_forward.5} parent=27 // pred_check
              _
            $region34: #{lstm_model_forward.5} parent=27 // pred_check_branch
              %187 = sbr.rel target = $region36
            $region35: #{lstm_model_forward.5} parent=27 // pred_region
              %s189 = ssub.s32 256, 1
              loop: start=0, step=1, limit=1
              $region37: #{lstm_model_forward.5} parent=35 // loop_pre_header
                _
              $region38: #{lstm_model_forward.5} parent=35 // loop_header
                %s191 = sphi 0, %s195
                %p192 = scmp.ge.s32.totalorder %s191, 1
                %s196 = sphi %s181, %s181
                %s197 = sphi %s175, %s175
              $region39: #{lstm_model_forward.5} parent=35 // loop_header_branch
                %194 = sbr.rel (%p192) target = $region43
              $region40: #{lstm_model_forward.5} parent=35 // loop_body
                %v198 = vld [vmem:[%s196] sm:%s189]
                %199 = vst [vmem:[%s197] sm:%s189] %v198
                %v200 = vld [vmem:[%s196 + $0x10] sm:%s189]
                %201 = vst [vmem:[%s197 + $0x8] sm:%s189] %v200
                %v202 = vld [vmem:[%s196 + $0x20] sm:%s189]
                %203 = vst [vmem:[%s197 + $0x10] sm:%s189] %v202
                %v204 = vld [vmem:[%s196 + $0x30] sm:%s189]
                %205 = vst [vmem:[%s197 + $0x18] sm:%s189] %v204
                %v206 = vld [vmem:[%s196 + $0x40] sm:%s189]
                %207 = vst [vmem:[%s197 + $0x20] sm:%s189] %v206
                %v208 = vld [vmem:[%s196 + $0x50] sm:%s189]
                %209 = vst [vmem:[%s197 + $0x28] sm:%s189] %v208
                %v210 = vld [vmem:[%s196 + $0x60] sm:%s189]
                %211 = vst [vmem:[%s197 + $0x30] sm:%s189] %v210
                %v212 = vld [vmem:[%s196 + $0x70] sm:%s189]
                %213 = vst [vmem:[%s197 + $0x38] sm:%s189] %v212
                %v214 = vld [vmem:[%s196 + $0x80] sm:%s189]
                %215 = vst [vmem:[%s197 + $0x40] sm:%s189] %v214
                %v216 = vld [vmem:[%s196 + $0x90] sm:%s189]
                %217 = vst [vmem:[%s197 + $0x48] sm:%s189] %v216
                %v218 = vld [vmem:[%s196 + $0xa0] sm:%s189]
                %219 = vst [vmem:[%s197 + $0x50] sm:%s189] %v218
                %v220 = vld [vmem:[%s196 + $0xb0] sm:%s189]
                %221 = vst [vmem:[%s197 + $0x58] sm:%s189] %v220
                %v222 = vld [vmem:[%s196 + $0xc0] sm:%s189]
                %223 = vst [vmem:[%s197 + $0x60] sm:%s189] %v222
                %v224 = vld [vmem:[%s196 + $0xd0] sm:%s189]
                %225 = vst [vmem:[%s197 + $0x68] sm:%s189] %v224
                %v226 = vld [vmem:[%s196 + $0xe0] sm:%s189]
                %227 = vst [vmem:[%s197 + $0x70] sm:%s189] %v226
                %v228 = vld [vmem:[%s196 + $0xf0] sm:%s189]
                %229 = vst [vmem:[%s197 + $0x78] sm:%s189] %v228
              $region41: #{lstm_model_forward.5} parent=35 // loop_footer
                %s195 = sadd.s32 1, %s191
              $region42: #{lstm_model_forward.5} parent=35 // loop_footer_branch
                %190 = sbr.rel target = $region38
              $region43: #{lstm_model_forward.5} parent=35 // loop_exit
                _
            $region36: #{lstm_model_forward.5} parent=27 // pred_fallthru
              _
          $region28: #{lstm_model_forward.5} parent=23 // pred_fallthru
            _
          %274 = vnop
        $region24: #{lstm_model_forward.5} parent=19 // pred_fallthru
          _
        // Predicated region
        $region59: #{lstm_model_forward.5} parent=19 // pred_check
          %p275 = pneg %p104
        $region60: #{lstm_model_forward.5} parent=19 // pred_check_branch
          %277 = sbr.rel (%p275) target = $region62
        $region61: #{lstm_model_forward.5} parent=19 // pred_region
          %s278 = smul.u32 2, %s17
          %p279 = scmp.lt.s32.totalorder %s278, 3
          %s280 = scalar_select %p279, %s278, 3
          %s281 = scalar_lea.vmem %s2, %s280
          %s282 = smul.u32 2, %s17
        $region62: #{lstm_model_forward.5} parent=19 // pred_fallthru
          _
      $region20: #{lstm_model_forward.5} parent=5 // pred_fallthru
        _
      %p283 = scmp.le.s32.totalorder 1, %s9
      %p284 = scmp.lt.s32.totalorder %s9, 3
      %p285 = pnand %p283, %p284
      %p286 = pneg %p285
      // Predicated region
      $region63: #{lstm_model_forward.5} parent=5 // pred_check
        _
      $region64: #{lstm_model_forward.5} parent=5 // pred_check_branch
        %288 = sbr.rel (%p285) target = $region66
      $region65: #{lstm_model_forward.5} parent=5 // pred_region
        %s289 = ssub.s32 %s9, 1
        %s290 = sand.u32 %s71, 1
        %s291 = sand.u32 %s71, 1
        %s292 = smul.addr %s291, 128
        %s293 = scalar_lea.vmem [#allocation3], %s292
        // Predicated region
        $region67: #{lstm_model_forward.5} parent=65 // pred_check
          %p294 = pneg %p84
        $region68: #{lstm_model_forward.5} parent=65 // pred_check_branch
          %296 = sbr.rel (%p294) target = $region70
        $region69: #{lstm_model_forward.5} parent=65 // pred_region
          _
        $region70: #{lstm_model_forward.5} parent=65 // pred_fallthru
          _
        %s297 = smul.u32 16, %s19
        %p298 = scmp.lt.s32.totalorder %s297, 15
        %s299 = scalar_select %p298, %s297, 15
        %p300 = scmp.lt.s32.totalorder %s21, 0
        %s301 = scalar_select %p300, %s21, 0
        %s302 = sadd.s32 %s301, %s299
        %s303 = smul.addr %s302, 4
        %s304 = scalar_lea.vmem %s0, %s303
        %p305 = pneg %p56
        %p306 = pneg %p53
        %s307 = sand.u32 %s71, 1
        %s308 = sand.u32 %s71, 1
        %s309 = smul.addr %s308, 128
        %s310 = scalar_lea.vmem [#allocation3], %s309
        %p311 = pneg %p84
        %p312 = pneg %p81
        %s313 = smul.u32 2, %s20
        %p314 = scmp.lt.s32.totalorder %s313, 3
        %s315 = scalar_select %p314, %s313, 3
        %s316 = scalar_lea.vmem %s2, %s315
        %p317 = pneg %p110
        %p318 = pneg %p107
        %p319 = pneg %p138
        %p320 = pneg %p135
        %s321 = sand.u32 %s125, 1
        %s322 = sand.u32 %s125, 1
        %s323 = smul.addr %s322, 256
        %s324 = scalar_lea.vmem [#allocation4], %s323
        %s325 = smul.u32 16, %s19
        %p326 = scmp.lt.s32.totalorder %s325, 15
        %s327 = scalar_select %p326, %s325, 15
        %p328 = scmp.lt.s32.totalorder %s21, 0
        %s329 = scalar_select %p328, %s21, 0
        %s330 = sadd.s32 %s329, %s327
        %s331 = smul.addr %s330, 4
        %s332 = scalar_lea.vmem %s0, %s331
        %s333 = smul.u32 16, %s19
        %s334 = smul.u32 16, %s21
        %s335 = smul.u32 2, %s20
        %s336 = smul.u32 2, %s20
        %p337 = scmp.lt.s32.totalorder %s336, 3
        %s338 = scalar_select %p337, %s336, 3
        %s339 = scalar_lea.vmem %s2, %s338
        %s340 = smul.u32 2, %s20
        %s341 = smul.u32 16, %s19
        %s342 = smul.u32 2, %s20
        %p343 = scmp.eq.s32.totalorder %s21, 0
        // Predicated region
        $region71: #{lstm_model_forward.5} parent=65 // pred_check
          %p344 = pneg %p343
        $region72: #{lstm_model_forward.5} parent=65 // pred_check_branch
          %346 = sbr.rel (%p344) target = $region74
        $region73: #{lstm_model_forward.5} parent=65 // pred_region
          %347 = vst [vmem:[#allocation2] sm:$0xff] 0.0
          %348 = vst [vmem:[#allocation2 + $0x8] sm:$0xff] 0.0
          %349 = vst [vmem:[#allocation2 + $0x10] sm:$0xff] 0.0
          %350 = vst [vmem:[#allocation2 + $0x18] sm:$0xff] 0.0
          %351 = vst [vmem:[#allocation2 + $0x20] sm:$0xff] 0.0
          %352 = vst [vmem:[#allocation2 + $0x28] sm:$0xff] 0.0
          %353 = vst [vmem:[#allocation2 + $0x30] sm:$0xff] 0.0
          %354 = vst [vmem:[#allocation2 + $0x38] sm:$0xff] 0.0
          %355 = vst [vmem:[#allocation2 + $0x40] sm:$0xff] 0.0
          %356 = vst [vmem:[#allocation2 + $0x48] sm:$0xff] 0.0
          %357 = vst [vmem:[#allocation2 + $0x50] sm:$0xff] 0.0
          %358 = vst [vmem:[#allocation2 + $0x58] sm:$0xff] 0.0
          %359 = vst [vmem:[#allocation2 + $0x60] sm:$0xff] 0.0
          %360 = vst [vmem:[#allocation2 + $0x68] sm:$0xff] 0.0
          %361 = vst [vmem:[#allocation2 + $0x70] sm:$0xff] 0.0
          %362 = vst [vmem:[#allocation2 + $0x78] sm:$0xff] 0.0
          %363 = vst [vmem:[#allocation2 + $0x80] sm:$0xff] 0.0
          %364 = vst [vmem:[#allocation2 + $0x88] sm:$0xff] 0.0
          %365 = vst [vmem:[#allocation2 + $0x90] sm:$0xff] 0.0
          %366 = vst [vmem:[#allocation2 + $0x98] sm:$0xff] 0.0
          %367 = vst [vmem:[#allocation2 + $0xa0] sm:$0xff] 0.0
          %368 = vst [vmem:[#allocation2 + $0xa8] sm:$0xff] 0.0
          %369 = vst [vmem:[#allocation2 + $0xb0] sm:$0xff] 0.0
          %370 = vst [vmem:[#allocation2 + $0xb8] sm:$0xff] 0.0
          %371 = vst [vmem:[#allocation2 + $0xc0] sm:$0xff] 0.0
          %372 = vst [vmem:[#allocation2 + $0xc8] sm:$0xff] 0.0
          %373 = vst [vmem:[#allocation2 + $0xd0] sm:$0xff] 0.0
          %374 = vst [vmem:[#allocation2 + $0xd8] sm:$0xff] 0.0
          %375 = vst [vmem:[#allocation2 + $0xe0] sm:$0xff] 0.0
          %376 = vst [vmem:[#allocation2 + $0xe8] sm:$0xff] 0.0
          %377 = vst [vmem:[#allocation2 + $0xf0] sm:$0xff] 0.0
          %378 = vst [vmem:[#allocation2 + $0xf8] sm:$0xff] 0.0
        $region74: #{lstm_model_forward.5} parent=65 // pred_fallthru
          _
        %v379 = vld [vmem:[#allocation2] sm:$0xff]
        %v380 = vld [vmem:[#allocation2 + $0x8] sm:$0xff]
        %v381 = vld [vmem:[#allocation2 + $0x10] sm:$0xff]
        %v382 = vld [vmem:[#allocation2 + $0x18] sm:$0xff]
        %v383 = vld [vmem:[#allocation2 + $0x20] sm:$0xff]
        %v384 = vld [vmem:[#allocation2 + $0x28] sm:$0xff]
        %v385 = vld [vmem:[#allocation2 + $0x30] sm:$0xff]
        %v386 = vld [vmem:[#allocation2 + $0x38] sm:$0xff]
        %v387 = vld [vmem:[#allocation2 + $0x40] sm:$0xff]
        %v388 = vld [vmem:[#allocation2 + $0x48] sm:$0xff]
        %v389 = vld [vmem:[#allocation2 + $0x50] sm:$0xff]
        %v390 = vld [vmem:[#allocation2 + $0x58] sm:$0xff]
        %v391 = vld [vmem:[#allocation2 + $0x60] sm:$0xff]
        %v392 = vld [vmem:[#allocation2 + $0x68] sm:$0xff]
        %v393 = vld [vmem:[#allocation2 + $0x70] sm:$0xff]
        %v394 = vld [vmem:[#allocation2 + $0x78] sm:$0xff]
        %v395 = vld [vmem:[#allocation2 + $0x80] sm:$0xff]
        %v396 = vld [vmem:[#allocation2 + $0x88] sm:$0xff]
        %v397 = vld [vmem:[#allocation2 + $0x90] sm:$0xff]
        %v398 = vld [vmem:[#allocation2 + $0x98] sm:$0xff]
        %v399 = vld [vmem:[#allocation2 + $0xa0] sm:$0xff]
        %v400 = vld [vmem:[#allocation2 + $0xa8] sm:$0xff]
        %v401 = vld [vmem:[#allocation2 + $0xb0] sm:$0xff]
        %v402 = vld [vmem:[#allocation2 + $0xb8] sm:$0xff]
        %v403 = vld [vmem:[#allocation2 + $0xc0] sm:$0xff]
        %v404 = vld [vmem:[#allocation2 + $0xc8] sm:$0xff]
        %v405 = vld [vmem:[#allocation2 + $0xd0] sm:$0xff]
        %v406 = vld [vmem:[#allocation2 + $0xd8] sm:$0xff]
        %v407 = vld [vmem:[#allocation2 + $0xe0] sm:$0xff]
        %v408 = vld [vmem:[#allocation2 + $0xe8] sm:$0xff]
        %v409 = vld [vmem:[#allocation2 + $0xf0] sm:$0xff]
        %v410 = vld [vmem:[#allocation2 + $0xf8] sm:$0xff]
        %v411 = vld [vmem:[%s332] sm:$0xf]
        %v412 = vld [vmem:[%s332 + $0x4] sm:$0xf]
        %v413 = vld [vmem:[%s332 + $0x8] sm:$0xf]
        %v414 = vld [vmem:[%s332 + $0xc] sm:$0xf]
        %v415 = vld [vmem:[%s332 + $0x10] sm:$0xf]
        %v416 = vld [vmem:[%s332 + $0x14] sm:$0xf]
        %v417 = vld [vmem:[%s332 + $0x18] sm:$0xf]
        %v418 = vld [vmem:[%s332 + $0x1c] sm:$0xf]
        %v419 = vld [vmem:[%s332 + $0x20] sm:$0xf]
        %v420 = vld [vmem:[%s332 + $0x24] sm:$0xf]
        %v421 = vld [vmem:[%s332 + $0x28] sm:$0xf]
        %v422 = vld [vmem:[%s332 + $0x2c] sm:$0xf]
        %v423 = vld [vmem:[%s332 + $0x30] sm:$0xf]
        %v424 = vld [vmem:[%s332 + $0x34] sm:$0xf]
        %v425 = vld [vmem:[%s332 + $0x38] sm:$0xf]
        %v426 = vld [vmem:[%s332 + $0x3c] sm:$0xf]
        %v427 = vld [vmem:[%s293] sm:$0xff]
        %v428 = vld [vmem:[%s293 + $0x8] sm:$0xff]
        %v429 = vld [vmem:[%s293 + $0x10] sm:$0xff]
        %v430 = vld [vmem:[%s293 + $0x18] sm:$0xff]
        %v431 = vld [vmem:[%s293 + $0x20] sm:$0xff]
        %v432 = vld [vmem:[%s293 + $0x28] sm:$0xff]
        %v433 = vld [vmem:[%s293 + $0x30] sm:$0xff]
        %v434 = vld [vmem:[%s293 + $0x38] sm:$0xff]
        %v435 = vld [vmem:[%s293 + $0x40] sm:$0xff]
        %v436 = vld [vmem:[%s293 + $0x48] sm:$0xff]
        %v437 = vld [vmem:[%s293 + $0x50] sm:$0xff]
        %v438 = vld [vmem:[%s293 + $0x58] sm:$0xff]
        %v439 = vld [vmem:[%s293 + $0x60] sm:$0xff]
        %v440 = vld [vmem:[%s293 + $0x68] sm:$0xff]
        %v441 = vld [vmem:[%s293 + $0x70] sm:$0xff]
        %v442 = vld [vmem:[%s293 + $0x78] sm:$0xff]
        %v459 = vunpack.c.l.b16 %v411
        %v460 = vunpack.c.l.b16 %v412
        %v461 = vunpack.c.l.b16 %v413
        %v462 = vunpack.c.l.b16 %v414
        %v463 = vunpack.c.l.b16 %v415
        %v464 = vunpack.c.l.b16 %v416
        %v465 = vunpack.c.l.b16 %v417
        %v466 = vunpack.c.l.b16 %v418
        %v467 = vunpack.c.l.b16 %v419
        %v468 = vunpack.c.l.b16 %v420
        %v469 = vunpack.c.l.b16 %v421
        %v470 = vunpack.c.l.b16 %v422
        %v471 = vunpack.c.l.b16 %v423
        %v472 = vunpack.c.l.b16 %v424
        %v473 = vunpack.c.l.b16 %v425
        %v474 = vunpack.c.l.b16 %v426
        %v475 = vpack.c.b16 %v460, %v459
        %v476 = vpack.c.b16 %v462, %v461
        %v477 = vpack.c.b16 %v464, %v463
        %v478 = vpack.c.b16 %v466, %v465
        %v479 = vpack.c.b16 %v468, %v467
        %v480 = vpack.c.b16 %v470, %v469
        %v481 = vpack.c.b16 %v472, %v471
        %v482 = vpack.c.b16 %v474, %v473
        %v507 = vunpack.c.l.b16 %v427
        %v508 = vunpack.c.h.b16 %v427
        %v509 = vunpack.c.l.b16 %v428
        %v510 = vunpack.c.h.b16 %v428
        %v511 = vunpack.c.l.b16 %v429
        %v512 = vunpack.c.h.b16 %v429
        %v513 = vunpack.c.l.b16 %v430
        %v514 = vunpack.c.h.b16 %v430
        %v515 = vunpack.c.l.b16 %v431
        %v516 = vunpack.c.h.b16 %v431
        %v517 = vunpack.c.l.b16 %v432
        %v518 = vunpack.c.h.b16 %v432
        %v519 = vunpack.c.l.b16 %v433
        %v520 = vunpack.c.h.b16 %v433
        %v521 = vunpack.c.l.b16 %v434
        %v522 = vunpack.c.h.b16 %v434
        %v523 = vunpack.c.l.b16 %v435
        %v524 = vunpack.c.h.b16 %v435
        %v525 = vunpack.c.l.b16 %v436
        %v526 = vunpack.c.h.b16 %v436
        %v527 = vunpack.c.l.b16 %v437
        %v528 = vunpack.c.h.b16 %v437
        %v529 = vunpack.c.l.b16 %v438
        %v530 = vunpack.c.h.b16 %v438
        %v531 = vunpack.c.l.b16 %v439
        %v532 = vunpack.c.h.b16 %v439
        %v533 = vunpack.c.l.b16 %v440
        %v534 = vunpack.c.h.b16 %v440
        %v535 = vunpack.c.l.b16 %v441
        %v536 = vunpack.c.h.b16 %v441
        %v537 = vunpack.c.l.b16 %v442
        %v538 = vunpack.c.h.b16 %v442
        %v539 = vpack.c.b16 %v509, %v507
        %v540 = vpack.c.b16 %v510, %v508
        %v541 = vpack.c.b16 %v513, %v511
        %v542 = vpack.c.b16 %v514, %v512
        %v543 = vpack.c.b16 %v517, %v515
        %v544 = vpack.c.b16 %v518, %v516
        %v545 = vpack.c.b16 %v521, %v519
        %v546 = vpack.c.b16 %v522, %v520
        %v547 = vpack.c.b16 %v525, %v523
        %v548 = vpack.c.b16 %v526, %v524
        %v549 = vpack.c.b16 %v529, %v527
        %v550 = vpack.c.b16 %v530, %v528
        %v551 = vpack.c.b16 %v533, %v531
        %v552 = vpack.c.b16 %v534, %v532
        %v553 = vpack.c.b16 %v537, %v535
        %v554 = vpack.c.b16 %v538, %v536
        %571 = vmatpush.bf16.msra.mxu0 %v553
        %572 = vmatpush.bf16.msra.mxu0 %v551
        %573 = vmatpush.bf16.msra.mxu0 %v549
        %574 = vmatpush.bf16.msra.mxu0 %v547
        %575 = vmatpush.bf16.msra.mxu0 %v545
        %576 = vmatpush.bf16.msra.mxu0 %v543
        %577 = vmatpush.bf16.msra.mxu0 %v541
        %578 = vmatpush.bf16.msra.mxu0 %v539
        %579 = vmatmul.bf16.gmra.mxu0 %v475
        %v580 = vpop.f32.mrf.mxu0
        %v581 = vadd.f32 0.0, %v580
        %v582 = vpop.f32.mrf.mxu0
        %v583 = vadd.f32 0.0, %v582
        %584 = vmatmul.bf16.gmra.mxu0 %v476
        %v585 = vpop.f32.mrf.mxu0
        %v586 = vadd.f32 0.0, %v585
        %v587 = vpop.f32.mrf.mxu0
        %v588 = vadd.f32 0.0, %v587
        %589 = vmatmul.bf16.gmra.mxu0 %v477
        %v590 = vpop.f32.mrf.mxu0
        %v591 = vadd.f32 0.0, %v590
        %v592 = vpop.f32.mrf.mxu0
        %v593 = vadd.f32 0.0, %v592
        %594 = vmatmul.bf16.gmra.mxu0 %v478
        %v595 = vpop.f32.mrf.mxu0
        %v596 = vadd.f32 0.0, %v595
        %v597 = vpop.f32.mrf.mxu0
        %v598 = vadd.f32 0.0, %v597
        %599 = vmatmul.bf16.gmra.mxu0 %v479
        %v600 = vpop.f32.mrf.mxu0
        %v601 = vadd.f32 0.0, %v600
        %v602 = vpop.f32.mrf.mxu0
        %v603 = vadd.f32 0.0, %v602
        %604 = vmatmul.bf16.gmra.mxu0 %v480
        %v605 = vpop.f32.mrf.mxu0
        %v606 = vadd.f32 0.0, %v605
        %v607 = vpop.f32.mrf.mxu0
        %v608 = vadd.f32 0.0, %v607
        %609 = vmatmul.bf16.gmra.mxu0 %v481
        %v610 = vpop.f32.mrf.mxu0
        %v611 = vadd.f32 0.0, %v610
        %v612 = vpop.f32.mrf.mxu0
        %v613 = vadd.f32 0.0, %v612
        %614 = vmatmul.bf16.gmra.mxu0 %v482
        %v615 = vpop.f32.mrf.mxu0
        %v616 = vadd.f32 0.0, %v615
        %v617 = vpop.f32.mrf.mxu0
        %v618 = vadd.f32 0.0, %v617
        %619 = vdwg.mxu0
        %620 = vmatpush.bf16.msra.mxu0 %v554
        %621 = vmatpush.bf16.msra.mxu0 %v552
        %622 = vmatpush.bf16.msra.mxu0 %v550
        %623 = vmatpush.bf16.msra.mxu0 %v548
        %624 = vmatpush.bf16.msra.mxu0 %v546
        %625 = vmatpush.bf16.msra.mxu0 %v544
        %626 = vmatpush.bf16.msra.mxu0 %v542
        %627 = vmatpush.bf16.msra.mxu0 %v540
        %628 = vmatmul.bf16.gmra.mxu0 %v475
        %v629 = vpop.f32.mrf.mxu0
        %v630 = vadd.f32 0.0, %v629
        %v631 = vpop.f32.mrf.mxu0
        %v632 = vadd.f32 0.0, %v631
        %633 = vmatmul.bf16.gmra.mxu0 %v476
        %v634 = vpop.f32.mrf.mxu0
        %v635 = vadd.f32 0.0, %v634
        %v636 = vpop.f32.mrf.mxu0
        %v637 = vadd.f32 0.0, %v636
        %638 = vmatmul.bf16.gmra.mxu0 %v477
        %v639 = vpop.f32.mrf.mxu0
        %v640 = vadd.f32 0.0, %v639
        %v641 = vpop.f32.mrf.mxu0
        %v642 = vadd.f32 0.0, %v641
        %643 = vmatmul.bf16.gmra.mxu0 %v478
        %v644 = vpop.f32.mrf.mxu0
        %v645 = vadd.f32 0.0, %v644
        %v646 = vpop.f32.mrf.mxu0
        %v647 = vadd.f32 0.0, %v646
        %648 = vmatmul.bf16.gmra.mxu0 %v479
        %v649 = vpop.f32.mrf.mxu0
        %v650 = vadd.f32 0.0, %v649
        %v651 = vpop.f32.mrf.mxu0
        %v652 = vadd.f32 0.0, %v651
        %653 = vmatmul.bf16.gmra.mxu0 %v480
        %v654 = vpop.f32.mrf.mxu0
        %v655 = vadd.f32 0.0, %v654
        %v656 = vpop.f32.mrf.mxu0
        %v657 = vadd.f32 0.0, %v656
        %658 = vmatmul.bf16.gmra.mxu0 %v481
        %v659 = vpop.f32.mrf.mxu0
        %v660 = vadd.f32 0.0, %v659
        %v661 = vpop.f32.mrf.mxu0
        %v662 = vadd.f32 0.0, %v661
        %663 = vmatmul.bf16.gmra.mxu0 %v482
        %v664 = vpop.f32.mrf.mxu0
        %v665 = vadd.f32 0.0, %v664
        %v666 = vpop.f32.mrf.mxu0
        %v667 = vadd.f32 0.0, %v666
        %668 = vdwg.mxu0
        %v669 = vadd.f32 %v379, %v581
        %v670 = vadd.f32 %v380, %v630
        %v671 = vadd.f32 %v381, %v583
        %v672 = vadd.f32 %v382, %v632
        %v673 = vadd.f32 %v383, %v586
        %v674 = vadd.f32 %v384, %v635
        %v675 = vadd.f32 %v385, %v588
        %v676 = vadd.f32 %v386, %v637
        %v677 = vadd.f32 %v387, %v591
        %v678 = vadd.f32 %v388, %v640
        %v679 = vadd.f32 %v389, %v593
        %v680 = vadd.f32 %v390, %v642
        %v681 = vadd.f32 %v391, %v596
        %v682 = vadd.f32 %v392, %v645
        %v683 = vadd.f32 %v393, %v598
        %v684 = vadd.f32 %v394, %v647
        %v685 = vadd.f32 %v395, %v601
        %v686 = vadd.f32 %v396, %v650
        %v687 = vadd.f32 %v397, %v603
        %v688 = vadd.f32 %v398, %v652
        %v689 = vadd.f32 %v399, %v606
        %v690 = vadd.f32 %v400, %v655
        %v691 = vadd.f32 %v401, %v608
        %v692 = vadd.f32 %v402, %v657
        %v693 = vadd.f32 %v403, %v611
        %v694 = vadd.f32 %v404, %v660
        %v695 = vadd.f32 %v405, %v613
        %v696 = vadd.f32 %v406, %v662
        %v697 = vadd.f32 %v407, %v616
        %v698 = vadd.f32 %v408, %v665
        %v699 = vadd.f32 %v409, %v618
        %v700 = vadd.f32 %v410, %v667
        %701 = vst [vmem:[#allocation2] sm:$0xff] %v669
        %702 = vst [vmem:[#allocation2 + $0x8] sm:$0xff] %v670
        %703 = vst [vmem:[#allocation2 + $0x10] sm:$0xff] %v671
        %704 = vst [vmem:[#allocation2 + $0x18] sm:$0xff] %v672
        %705 = vst [vmem:[#allocation2 + $0x20] sm:$0xff] %v673
        %706 = vst [vmem:[#allocation2 + $0x28] sm:$0xff] %v674
        %707 = vst [vmem:[#allocation2 + $0x30] sm:$0xff] %v675
        %708 = vst [vmem:[#allocation2 + $0x38] sm:$0xff] %v676
        %709 = vst [vmem:[#allocation2 + $0x40] sm:$0xff] %v677
        %710 = vst [vmem:[#allocation2 + $0x48] sm:$0xff] %v678
        %711 = vst [vmem:[#allocation2 + $0x50] sm:$0xff] %v679
        %712 = vst [vmem:[#allocation2 + $0x58] sm:$0xff] %v680
        %713 = vst [vmem:[#allocation2 + $0x60] sm:$0xff] %v681
        %714 = vst [vmem:[#allocation2 + $0x68] sm:$0xff] %v682
        %715 = vst [vmem:[#allocation2 + $0x70] sm:$0xff] %v683
        %716 = vst [vmem:[#allocation2 + $0x78] sm:$0xff] %v684
        %717 = vst [vmem:[#allocation2 + $0x80] sm:$0xff] %v685
        %718 = vst [vmem:[#allocation2 + $0x88] sm:$0xff] %v686
        %719 = vst [vmem:[#allocation2 + $0x90] sm:$0xff] %v687
        %720 = vst [vmem:[#allocation2 + $0x98] sm:$0xff] %v688
        %721 = vst [vmem:[#allocation2 + $0xa0] sm:$0xff] %v689
        %722 = vst [vmem:[#allocation2 + $0xa8] sm:$0xff] %v690
        %723 = vst [vmem:[#allocation2 + $0xb0] sm:$0xff] %v691
        %724 = vst [vmem:[#allocation2 + $0xb8] sm:$0xff] %v692
        %725 = vst [vmem:[#allocation2 + $0xc0] sm:$0xff] %v693
        %726 = vst [vmem:[#allocation2 + $0xc8] sm:$0xff] %v694
        %727 = vst [vmem:[#allocation2 + $0xd0] sm:$0xff] %v695
        %728 = vst [vmem:[#allocation2 + $0xd8] sm:$0xff] %v696
        %729 = vst [vmem:[#allocation2 + $0xe0] sm:$0xff] %v697
        %730 = vst [vmem:[#allocation2 + $0xe8] sm:$0xff] %v698
        %731 = vst [vmem:[#allocation2 + $0xf0] sm:$0xff] %v699
        %732 = vst [vmem:[#allocation2 + $0xf8] sm:$0xff] %v700
        // Predicated region
        $region75: #{lstm_model_forward.5} parent=65 // pred_check
          %p733 = pneg %p343
        $region76: #{lstm_model_forward.5} parent=65 // pred_check_branch
          %735 = sbr.rel (%p733) target = $region78
        $region77: #{lstm_model_forward.5} parent=65 // pred_region
          %v736 = vld [vmem:[#allocation2] sm:$0xff]
          %v737 = vld [vmem:[#allocation2 + $0x8] sm:$0xff]
          %v738 = vld [vmem:[#allocation2 + $0x10] sm:$0xff]
          %v739 = vld [vmem:[#allocation2 + $0x18] sm:$0xff]
          %v740 = vld [vmem:[#allocation2 + $0x20] sm:$0xff]
          %v741 = vld [vmem:[#allocation2 + $0x28] sm:$0xff]
          %v742 = vld [vmem:[#allocation2 + $0x30] sm:$0xff]
          %v743 = vld [vmem:[#allocation2 + $0x38] sm:$0xff]
          %v744 = vld [vmem:[#allocation2 + $0x40] sm:$0xff]
          %v745 = vld [vmem:[#allocation2 + $0x48] sm:$0xff]
          %v746 = vld [vmem:[#allocation2 + $0x50] sm:$0xff]
          %v747 = vld [vmem:[#allocation2 + $0x58] sm:$0xff]
          %v748 = vld [vmem:[#allocation2 + $0x60] sm:$0xff]
          %v749 = vld [vmem:[#allocation2 + $0x68] sm:$0xff]
          %v750 = vld [vmem:[#allocation2 + $0x70] sm:$0xff]
          %v751 = vld [vmem:[#allocation2 + $0x78] sm:$0xff]
          %v752 = vld [vmem:[#allocation2 + $0x80] sm:$0xff]
          %v753 = vld [vmem:[#allocation2 + $0x88] sm:$0xff]
          %v754 = vld [vmem:[#allocation2 + $0x90] sm:$0xff]
          %v755 = vld [vmem:[#allocation2 + $0x98] sm:$0xff]
          %v756 = vld [vmem:[#allocation2 + $0xa0] sm:$0xff]
          %v757 = vld [vmem:[#allocation2 + $0xa8] sm:$0xff]
          %v758 = vld [vmem:[#allocation2 + $0xb0] sm:$0xff]
          %v759 = vld [vmem:[#allocation2 + $0xb8] sm:$0xff]
          %v760 = vld [vmem:[#allocation2 + $0xc0] sm:$0xff]
          %v761 = vld [vmem:[#allocation2 + $0xc8] sm:$0xff]
          %v762 = vld [vmem:[#allocation2 + $0xd0] sm:$0xff]
          %v763 = vld [vmem:[#allocation2 + $0xd8] sm:$0xff]
          %v764 = vld [vmem:[#allocation2 + $0xe0] sm:$0xff]
          %v765 = vld [vmem:[#allocation2 + $0xe8] sm:$0xff]
          %v766 = vld [vmem:[#allocation2 + $0xf0] sm:$0xff]
          %v767 = vld [vmem:[#allocation2 + $0xf8] sm:$0xff]
          %v768 = vld [vmem:[%s339] sm:$0x3]
          %v770 = vperm.slane %v768, 0
          %v771 = vperm.slane %v768, 1
          %v774 = vadd.f32 %v736, %v770
          %v775 = vadd.f32 %v737, %v771
          %v776 = vadd.f32 %v738, %v770
          %v777 = vadd.f32 %v739, %v771
          %v778 = vadd.f32 %v740, %v770
          %v779 = vadd.f32 %v741, %v771
          %v780 = vadd.f32 %v742, %v770
          %v781 = vadd.f32 %v743, %v771
          %v782 = vadd.f32 %v744, %v770
          %v783 = vadd.f32 %v745, %v771
          %v784 = vadd.f32 %v746, %v770
          %v785 = vadd.f32 %v747, %v771
          %v786 = vadd.f32 %v748, %v770
          %v787 = vadd.f32 %v749, %v771
          %v788 = vadd.f32 %v750, %v770
          %v789 = vadd.f32 %v751, %v771
          %v790 = vadd.f32 %v752, %v770
          %v791 = vadd.f32 %v753, %v771
          %v792 = vadd.f32 %v754, %v770
          %v793 = vadd.f32 %v755, %v771
          %v794 = vadd.f32 %v756, %v770
          %v795 = vadd.f32 %v757, %v771
          %v796 = vadd.f32 %v758, %v770
          %v797 = vadd.f32 %v759, %v771
          %v798 = vadd.f32 %v760, %v770
          %v799 = vadd.f32 %v761, %v771
          %v800 = vadd.f32 %v762, %v770
          %v801 = vadd.f32 %v763, %v771
          %v802 = vadd.f32 %v764, %v770
          %v803 = vadd.f32 %v765, %v771
          %v804 = vadd.f32 %v766, %v770
          %v805 = vadd.f32 %v767, %v771
          %806 = vst [vmem:[%s324] sm:$0xff] %v774
          %807 = vst [vmem:[%s324 + $0x8] sm:$0xff] %v775
          %808 = vst [vmem:[%s324 + $0x10] sm:$0xff] %v776
          %809 = vst [vmem:[%s324 + $0x18] sm:$0xff] %v777
          %810 = vst [vmem:[%s324 + $0x20] sm:$0xff] %v778
          %811 = vst [vmem:[%s324 + $0x28] sm:$0xff] %v779
          %812 = vst [vmem:[%s324 + $0x30] sm:$0xff] %v780
          %813 = vst [vmem:[%s324 + $0x38] sm:$0xff] %v781
          %814 = vst [vmem:[%s324 + $0x40] sm:$0xff] %v782
          %815 = vst [vmem:[%s324 + $0x48] sm:$0xff] %v783
          %816 = vst [vmem:[%s324 + $0x50] sm:$0xff] %v784
          %817 = vst [vmem:[%s324 + $0x58] sm:$0xff] %v785
          %818 = vst [vmem:[%s324 + $0x60] sm:$0xff] %v786
          %819 = vst [vmem:[%s324 + $0x68] sm:$0xff] %v787
          %820 = vst [vmem:[%s324 + $0x70] sm:$0xff] %v788
          %821 = vst [vmem:[%s324 + $0x78] sm:$0xff] %v789
          %822 = vst [vmem:[%s324 + $0x80] sm:$0xff] %v790
          %823 = vst [vmem:[%s324 + $0x88] sm:$0xff] %v791
          %824 = vst [vmem:[%s324 + $0x90] sm:$0xff] %v792
          %825 = vst [vmem:[%s324 + $0x98] sm:$0xff] %v793
          %826 = vst [vmem:[%s324 + $0xa0] sm:$0xff] %v794
          %827 = vst [vmem:[%s324 + $0xa8] sm:$0xff] %v795
          %828 = vst [vmem:[%s324 + $0xb0] sm:$0xff] %v796
          %829 = vst [vmem:[%s324 + $0xb8] sm:$0xff] %v797
          %830 = vst [vmem:[%s324 + $0xc0] sm:$0xff] %v798
          %831 = vst [vmem:[%s324 + $0xc8] sm:$0xff] %v799
          %832 = vst [vmem:[%s324 + $0xd0] sm:$0xff] %v800
          %833 = vst [vmem:[%s324 + $0xd8] sm:$0xff] %v801
          %834 = vst [vmem:[%s324 + $0xe0] sm:$0xff] %v802
          %835 = vst [vmem:[%s324 + $0xe8] sm:$0xff] %v803
          %836 = vst [vmem:[%s324 + $0xf0] sm:$0xff] %v804
          %837 = vst [vmem:[%s324 + $0xf8] sm:$0xff] %v805
        $region78: #{lstm_model_forward.5} parent=65 // pred_fallthru
          _
        %s838 = sand.u32 %s125, 1
        %s839 = sand.u32 %s125, 1
        %s840 = smul.addr %s839, 256
        %s841 = scalar_lea.vmem [#allocation4], %s840
        // Predicated region
        $region79: #{lstm_model_forward.5} parent=65 // pred_check
          %p842 = pneg %p135
        $region80: #{lstm_model_forward.5} parent=65 // pred_check_branch
          %844 = sbr.rel (%p842) target = $region82
        $region81: #{lstm_model_forward.5} parent=65 // pred_region
          %s845 = smul.u32 16, %s19
          %s846 = smul.u32 2, %s20
          %s847 = smul.addr %s845, 4
          %s848 = sadd.s32 %s846, %s847
          %s849 = smul.addr %s848, 8
          %s850 = scalar_lea.vmem %s3, %s849
          // Predicated region
          $region83: #{lstm_model_forward.5} parent=81 // pred_check
            _
          $region84: #{lstm_model_forward.5} parent=81 // pred_check_branch
            %852 = sbr.rel (0) target = $region86
          $region85: #{lstm_model_forward.5} parent=81 // pred_region
            // Predicated region
            $region87: #{lstm_model_forward.5} parent=85 // pred_check
              _
            $region88: #{lstm_model_forward.5} parent=85 // pred_check_branch
              %854 = sbr.rel (0) target = $region90
            $region89: #{lstm_model_forward.5} parent=85 // pred_region
              loop: start=0, step=1, limit=1
              $region91: #{lstm_model_forward.5} parent=89 // loop_pre_header
                _
              $region92: #{lstm_model_forward.5} parent=89 // loop_header
                %s856 = sphi 0, %s860
                %p857 = scmp.ge.s32.totalorder %s856, 1
                %s861 = sphi %s841, %s841
                %s862 = sphi %s850, %s850
              $region93: #{lstm_model_forward.5} parent=89 // loop_header_branch
                %859 = sbr.rel (%p857) target = $region97
              $region94: #{lstm_model_forward.5} parent=89 // loop_body
                %v863 = vld [vmem:[%s861] sm:$0xff]
                %864 = vst [vmem:[%s862] sm:$0xff] %v863
                %v865 = vld [vmem:[%s861 + $0x8] sm:$0xff]
                %866 = vst [vmem:[%s862 + $0x8] sm:$0xff] %v865
                %v867 = vld [vmem:[%s861 + $0x10] sm:$0xff]
                %868 = vst [vmem:[%s862 + $0x20] sm:$0xff] %v867
                %v869 = vld [vmem:[%s861 + $0x18] sm:$0xff]
                %870 = vst [vmem:[%s862 + $0x28] sm:$0xff] %v869
                %v871 = vld [vmem:[%s861 + $0x20] sm:$0xff]
                %872 = vst [vmem:[%s862 + $0x40] sm:$0xff] %v871
                %v873 = vld [vmem:[%s861 + $0x28] sm:$0xff]
                %874 = vst [vmem:[%s862 + $0x48] sm:$0xff] %v873
                %v875 = vld [vmem:[%s861 + $0x30] sm:$0xff]
                %876 = vst [vmem:[%s862 + $0x60] sm:$0xff] %v875
                %v877 = vld [vmem:[%s861 + $0x38] sm:$0xff]
                %878 = vst [vmem:[%s862 + $0x68] sm:$0xff] %v877
                %v879 = vld [vmem:[%s861 + $0x40] sm:$0xff]
                %880 = vst [vmem:[%s862 + $0x80] sm:$0xff] %v879
                %v881 = vld [vmem:[%s861 + $0x48] sm:$0xff]
                %882 = vst [vmem:[%s862 + $0x88] sm:$0xff] %v881
                %v883 = vld [vmem:[%s861 + $0x50] sm:$0xff]
                %884 = vst [vmem:[%s862 + $0xa0] sm:$0xff] %v883
                %v885 = vld [vmem:[%s861 + $0x58] sm:$0xff]
                %886 = vst [vmem:[%s862 + $0xa8] sm:$0xff] %v885
                %v887 = vld [vmem:[%s861 + $0x60] sm:$0xff]
                %888 = vst [vmem:[%s862 + $0xc0] sm:$0xff] %v887
                %v889 = vld [vmem:[%s861 + $0x68] sm:$0xff]
                %890 = vst [vmem:[%s862 + $0xc8] sm:$0xff] %v889
                %v891 = vld [vmem:[%s861 + $0x70] sm:$0xff]
                %892 = vst [vmem:[%s862 + $0xe0] sm:$0xff] %v891
                %v893 = vld [vmem:[%s861 + $0x78] sm:$0xff]
                %894 = vst [vmem:[%s862 + $0xe8] sm:$0xff] %v893
                %v895 = vld [vmem:[%s861 + $0x80] sm:$0xff]
                %896 = vst [vmem:[%s862 + $0x100] sm:$0xff] %v895
                %v897 = vld [vmem:[%s861 + $0x88] sm:$0xff]
                %898 = vst [vmem:[%s862 + $0x108] sm:$0xff] %v897
                %v899 = vld [vmem:[%s861 + $0x90] sm:$0xff]
                %900 = vst [vmem:[%s862 + $0x120] sm:$0xff] %v899
                %v901 = vld [vmem:[%s861 + $0x98] sm:$0xff]
                %902 = vst [vmem:[%s862 + $0x128] sm:$0xff] %v901
                %v903 = vld [vmem:[%s861 + $0xa0] sm:$0xff]
                %904 = vst [vmem:[%s862 + $0x140] sm:$0xff] %v903
                %v905 = vld [vmem:[%s861 + $0xa8] sm:$0xff]
                %906 = vst [vmem:[%s862 + $0x148] sm:$0xff] %v905
                %v907 = vld [vmem:[%s861 + $0xb0] sm:$0xff]
                %908 = vst [vmem:[%s862 + $0x160] sm:$0xff] %v907
                %v909 = vld [vmem:[%s861 + $0xb8] sm:$0xff]
                %910 = vst [vmem:[%s862 + $0x168] sm:$0xff] %v909
                %v911 = vld [vmem:[%s861 + $0xc0] sm:$0xff]
                %912 = vst [vmem:[%s862 + $0x180] sm:$0xff] %v911
                %v913 = vld [vmem:[%s861 + $0xc8] sm:$0xff]
                %914 = vst [vmem:[%s862 + $0x188] sm:$0xff] %v913
                %v915 = vld [vmem:[%s861 + $0xd0] sm:$0xff]
                %916 = vst [vmem:[%s862 + $0x1a0] sm:$0xff] %v915
                %v917 = vld [vmem:[%s861 + $0xd8] sm:$0xff]
                %918 = vst [vmem:[%s862 + $0x1a8] sm:$0xff] %v917
                %v919 = vld [vmem:[%s861 + $0xe0] sm:$0xff]
                %920 = vst [vmem:[%s862 + $0x1c0] sm:$0xff] %v919
                %v921 = vld [vmem:[%s861 + $0xe8] sm:$0xff]
                %922 = vst [vmem:[%s862 + $0x1c8] sm:$0xff] %v921
                %v923 = vld [vmem:[%s861 + $0xf0] sm:$0xff]
                %924 = vst [vmem:[%s862 + $0x1e0] sm:$0xff] %v923
                %v925 = vld [vmem:[%s861 + $0xf8] sm:$0xff]
                %926 = vst [vmem:[%s862 + $0x1e8] sm:$0xff] %v925
              $region95: #{lstm_model_forward.5} parent=89 // loop_footer
                %s860 = sadd.s32 1, %s856
              $region96: #{lstm_model_forward.5} parent=89 // loop_footer_branch
                %855 = sbr.rel target = $region92
              $region97: #{lstm_model_forward.5} parent=89 // loop_exit
                _
            $region90: #{lstm_model_forward.5} parent=85 // pred_fallthru
              _
            // Predicated region
            $region98: #{lstm_model_forward.5} parent=85 // pred_check
              _
            $region99: #{lstm_model_forward.5} parent=85 // pred_check_branch
              %928 = sbr.rel target = $region101
            $region100: #{lstm_model_forward.5} parent=85 // pred_region
              _
            $region101: #{lstm_model_forward.5} parent=85 // pred_fallthru
              _
          $region86: #{lstm_model_forward.5} parent=81 // pred_fallthru
            _
          %929 = vnop
        $region82: #{lstm_model_forward.5} parent=65 // pred_fallthru
          _
      $region66: #{lstm_model_forward.5} parent=5 // pred_fallthru
        _
      %p930 = scmp.le.s32.totalorder 2, %s9
      // Predicated region
      $region102: #{lstm_model_forward.5} parent=5 // pred_check
        %p931 = pneg %p930
      $region103: #{lstm_model_forward.5} parent=5 // pred_check_branch
        %933 = sbr.rel (%p931) target = $region105
      $region104: #{lstm_model_forward.5} parent=5 // pred_region
        %s934 = ssub.s32 %s9, 2
        // Predicated region
        $region106: #{lstm_model_forward.5} parent=104 // pred_check
          %p935 = pneg %p141
        $region107: #{lstm_model_forward.5} parent=104 // pred_check_branch
          %937 = sbr.rel (%p935) target = $region109
        $region108: #{lstm_model_forward.5} parent=104 // pred_region
          %s938 = sand.u32 %s126, 1
          %s939 = sand.u32 %s126, 1
          %s940 = smul.addr %s939, 256
          %s941 = scalar_lea.vmem [#allocation4], %s940
        $region109: #{lstm_model_forward.5} parent=104 // pred_fallthru
          _
      $region105: #{lstm_model_forward.5} parent=5 // pred_fallthru
        _
    $region6: #{lstm_model_forward.5} parent=1 // loop_footer
      %s13 = sadd.s32 1, %s9
    $region7: #{lstm_model_forward.5} parent=1 // loop_footer_branch
      %8 = sbr.rel target = $region3
    $region8: #{lstm_model_forward.5} parent=1 // loop_exit
      _

// kernel: lstm_model_forward.9
$region0: #{lstm_model_forward.9}
  #allocation0 [shape = 'u32[]', space=smem, size = 0x4, offset = 0x4, fixed_abs, tag = 'smem constant byte address 0x4 - core index']
  #allocation1 [shape = 'u32[72,128]{1,0:T(1,128)}', space=vmem, size = 0x9000, scoped, tag = 'internal scratch']
  #allocation2 [shape = 'f32[128,256]{1,0:T(8,128)}', space=vmem, size = 0x20000, scoped, tag = 'scratch operand']
  %s0 = inlined_call_operand.vmem [shape: bf16[128,128], index: 0, kind: input, shape index: {}]
  %s1 = inlined_call_operand.vmem [shape: bf16[128,256], index: 1, kind: input, shape index: {}]
  %s2 = inlined_call_operand.vmem [shape: f32[1,256], index: 2, kind: input, shape index: {}]
  %s3 = inlined_call_operand.hbm [shape: f32[128,256], index: 3, kind: output, shape index: {}]
  %s4 = sld [smem:[#allocation0]]
  $region30: #{lstm_model_forward.9} parent=0
    _
  %s6 = ssub.s32 1, %s4
  %s7 = scalar_select 0, %s6, %s4
  $region1: #{lstm_model_forward.9} parent=0
    #allocation3 [shape = 'u8[131072]{0}', space=vmem, size = 0x20000, scoped, tag = 'output window, operand 0, single buffered']
    #allocation4 [shape = 's32[1]{0}', space=sflag, size = 0x4, scoped, tag = 'scoped memory for lstm_model_forward.9']
    %8 = vsyncpa [#allocation4], 0
    // Predicated region
    $region2: #{lstm_model_forward.9} parent=1 // pred_check
      _
    $region3: #{lstm_model_forward.9} parent=1 // pred_check_branch
      %10 = sbr.rel (0) target = $region5
    $region4: #{lstm_model_forward.9} parent=1 // pred_region
      _
    $region5: #{lstm_model_forward.9} parent=1 // pred_fallthru
      _
    // Predicated region
    $region6: #{lstm_model_forward.9} parent=1 // pred_check
      _
    $region7: #{lstm_model_forward.9} parent=1 // pred_check_branch
      %12 = sbr.rel (0) target = $region9
    $region8: #{lstm_model_forward.9} parent=1 // pred_region
      _
    $region9: #{lstm_model_forward.9} parent=1 // pred_fallthru
      _
    // Predicated region
    $region10: #{lstm_model_forward.9} parent=1 // pred_check
      _
    $region11: #{lstm_model_forward.9} parent=1 // pred_check_branch
      %14 = sbr.rel (0) target = $region13
    $region12: #{lstm_model_forward.9} parent=1 // pred_region
      _
    $region13: #{lstm_model_forward.9} parent=1 // pred_fallthru
      _
    %p15 = scmp.eq.s32.totalorder 0, 0
    // Predicated region
    $region14: #{lstm_model_forward.9} parent=1 // pred_check
      %p16 = pneg %p15
    $region15: #{lstm_model_forward.9} parent=1 // pred_check_branch
      %18 = sbr.rel (%p16) target = $region17
    $region16: #{lstm_model_forward.9} parent=1 // pred_region
      %19 = vst [vmem:[#allocation2] sm:$0xff] 0.0
      %20 = vst [vmem:[#allocation2 + $0x8] sm:$0xff] 0.0
      %21 = vst [vmem:[#allocation2 + $0x10] sm:$0xff] 0.0
      %22 = vst [vmem:[#allocation2 + $0x18] sm:$0xff] 0.0
      %23 = vst [vmem:[#allocation2 + $0x20] sm:$0xff] 0.0
      %24 = vst [vmem:[#allocation2 + $0x28] sm:$0xff] 0.0
      %25 = vst [vmem:[#allocation2 + $0x30] sm:$0xff] 0.0
      %26 = vst [vmem:[#allocation2 + $0x38] sm:$0xff] 0.0
      %27 = vst [vmem:[#allocation2 + $0x40] sm:$0xff] 0.0
      %28 = vst [vmem:[#allocation2 + $0x48] sm:$0xff] 0.0
      %29 = vst [vmem:[#allocation2 + $0x50] sm:$0xff] 0.0
      %30 = vst [vmem:[#allocation2 + $0x58] sm:$0xff] 0.0
      %31 = vst [vmem:[#allocation2 + $0x60] sm:$0xff] 0.0
      %32 = vst [vmem:[#allocation2 + $0x68] sm:$0xff] 0.0
      %33 = vst [vmem:[#allocation2 + $0x70] sm:$0xff] 0.0
      %34 = vst [vmem:[#allocation2 + $0x78] sm:$0xff] 0.0
      %35 = vst [vmem:[#allocation2 + $0x80] sm:$0xff] 0.0
      %36 = vst [vmem:[#allocation2 + $0x88] sm:$0xff] 0.0
      %37 = vst [vmem:[#allocation2 + $0x90] sm:$0xff] 0.0
      %38 = vst [vmem:[#allocation2 + $0x98] sm:$0xff] 0.0
      %39 = vst [vmem:[#allocation2 + $0xa0] sm:$0xff] 0.0
      %40 = vst [vmem:[#allocation2 + $0xa8] sm:$0xff] 0.0
      %41 = vst [vmem:[#allocation2 + $0xb0] sm:$0xff] 0.0
      %42 = vst [vmem:[#allocation2 + $0xb8] sm:$0xff] 0.0
      %43 = vst [vmem:[#allocation2 + $0xc0] sm:$0xff] 0.0
      %44 = vst [vmem:[#allocation2 + $0xc8] sm:$0xff] 0.0
      %45 = vst [vmem:[#allocation2 + $0xd0] sm:$0xff] 0.0
      %46 = vst [vmem:[#allocation2 + $0xd8] sm:$0xff] 0.0
      %47 = vst [vmem:[#allocation2 + $0xe0] sm:$0xff] 0.0
      %48 = vst [vmem:[#allocation2 + $0xe8] sm:$0xff] 0.0
      %49 = vst [vmem:[#allocation2 + $0xf0] sm:$0xff] 0.0
      %50 = vst [vmem:[#allocation2 + $0xf8] sm:$0xff] 0.0
    $region17: #{lstm_model_forward.9} parent=1 // pred_fallthru
      _
    %v51 = vld [vmem:[#allocation2] sm:$0xff]
    %v52 = vld [vmem:[#allocation2 + $0x8] sm:$0xff]
    %v53 = vld [vmem:[#allocation2 + $0x10] sm:$0xff]
    %v54 = vld [vmem:[#allocation2 + $0x18] sm:$0xff]
    %v55 = vld [vmem:[#allocation2 + $0x20] sm:$0xff]
    %v56 = vld [vmem:[#allocation2 + $0x28] sm:$0xff]
    %v57 = vld [vmem:[#allocation2 + $0x30] sm:$0xff]
    %v58 = vld [vmem:[#allocation2 + $0x38] sm:$0xff]
    %v59 = vld [vmem:[#allocation2 + $0x40] sm:$0xff]
    %v60 = vld [vmem:[#allocation2 + $0x48] sm:$0xff]
    %v61 = vld [vmem:[#allocation2 + $0x50] sm:$0xff]
    %v62 = vld [vmem:[#allocation2 + $0x58] sm:$0xff]
    %v63 = vld [vmem:[#allocation2 + $0x60] sm:$0xff]
    %v64 = vld [vmem:[#allocation2 + $0x68] sm:$0xff]
    %v65 = vld [vmem:[#allocation2 + $0x70] sm:$0xff]
    %v66 = vld [vmem:[#allocation2 + $0x78] sm:$0xff]
    %v67 = vld [vmem:[#allocation2 + $0x80] sm:$0xff]
    %v68 = vld [vmem:[#allocation2 + $0x88] sm:$0xff]
    %v69 = vld [vmem:[#allocation2 + $0x90] sm:$0xff]
    %v70 = vld [vmem:[#allocation2 + $0x98] sm:$0xff]
    %v71 = vld [vmem:[#allocation2 + $0xa0] sm:$0xff]
    %v72 = vld [vmem:[#allocation2 + $0xa8] sm:$0xff]
    %v73 = vld [vmem:[#allocation2 + $0xb0] sm:$0xff]
    %v74 = vld [vmem:[#allocation2 + $0xb8] sm:$0xff]
    %v75 = vld [vmem:[#allocation2 + $0xc0] sm:$0xff]
    %v76 = vld [vmem:[#allocation2 + $0xc8] sm:$0xff]
    %v77 = vld [vmem:[#allocation2 + $0xd0] sm:$0xff]
    %v78 = vld [vmem:[#allocation2 + $0xd8] sm:$0xff]
    %v79 = vld [vmem:[#allocation2 + $0xe0] sm:$0xff]
    %v80 = vld [vmem:[#allocation2 + $0xe8] sm:$0xff]
    %v81 = vld [vmem:[#allocation2 + $0xf0] sm:$0xff]
    %v82 = vld [vmem:[#allocation2 + $0xf8] sm:$0xff]
    %v83 = vld [vmem:[%s0] sm:$0xf]
    %v84 = vld [vmem:[%s0 + $0x4] sm:$0xf]
    %v85 = vld [vmem:[%s0 + $0x8] sm:$0xf]
    %v86 = vld [vmem:[%s0 + $0xc] sm:$0xf]
    %v87 = vld [vmem:[%s0 + $0x10] sm:$0xf]
    %v88 = vld [vmem:[%s0 + $0x14] sm:$0xf]
    %v89 = vld [vmem:[%s0 + $0x18] sm:$0xf]
    %v90 = vld [vmem:[%s0 + $0x1c] sm:$0xf]
    %v91 = vld [vmem:[%s0 + $0x20] sm:$0xf]
    %v92 = vld [vmem:[%s0 + $0x24] sm:$0xf]
    %v93 = vld [vmem:[%s0 + $0x28] sm:$0xf]
    %v94 = vld [vmem:[%s0 + $0x2c] sm:$0xf]
    %v95 = vld [vmem:[%s0 + $0x30] sm:$0xf]
    %v96 = vld [vmem:[%s0 + $0x34] sm:$0xf]
    %v97 = vld [vmem:[%s0 + $0x38] sm:$0xf]
    %v98 = vld [vmem:[%s0 + $0x3c] sm:$0xf]
    %v99 = vld [vmem:[%s1] sm:$0xff]
    %v100 = vld [vmem:[%s1 + $0x8] sm:$0xff]
    %v101 = vld [vmem:[%s1 + $0x10] sm:$0xff]
    %v102 = vld [vmem:[%s1 + $0x18] sm:$0xff]
    %v103 = vld [vmem:[%s1 + $0x20] sm:$0xff]
    %v104 = vld [vmem:[%s1 + $0x28] sm:$0xff]
    %v105 = vld [vmem:[%s1 + $0x30] sm:$0xff]
    %v106 = vld [vmem:[%s1 + $0x38] sm:$0xff]
    %v107 = vld [vmem:[%s1 + $0x40] sm:$0xff]
    %v108 = vld [vmem:[%s1 + $0x48] sm:$0xff]
    %v109 = vld [vmem:[%s1 + $0x50] sm:$0xff]
    %v110 = vld [vmem:[%s1 + $0x58] sm:$0xff]
    %v111 = vld [vmem:[%s1 + $0x60] sm:$0xff]
    %v112 = vld [vmem:[%s1 + $0x68] sm:$0xff]
    %v113 = vld [vmem:[%s1 + $0x70] sm:$0xff]
    %v114 = vld [vmem:[%s1 + $0x78] sm:$0xff]
    %v131 = vunpack.c.l.b16 %v83
    %v132 = vunpack.c.l.b16 %v84
    %v133 = vunpack.c.l.b16 %v85
    %v134 = vunpack.c.l.b16 %v86
    %v135 = vunpack.c.l.b16 %v87
    %v136 = vunpack.c.l.b16 %v88
    %v137 = vunpack.c.l.b16 %v89
    %v138 = vunpack.c.l.b16 %v90
    %v139 = vunpack.c.l.b16 %v91
    %v140 = vunpack.c.l.b16 %v92
    %v141 = vunpack.c.l.b16 %v93
    %v142 = vunpack.c.l.b16 %v94
    %v143 = vunpack.c.l.b16 %v95
    %v144 = vunpack.c.l.b16 %v96
    %v145 = vunpack.c.l.b16 %v97
    %v146 = vunpack.c.l.b16 %v98
    %v147 = vpack.c.b16 %v132, %v131
    %v148 = vpack.c.b16 %v134, %v133
    %v149 = vpack.c.b16 %v136, %v135
    %v150 = vpack.c.b16 %v138, %v137
    %v151 = vpack.c.b16 %v140, %v139
    %v152 = vpack.c.b16 %v142, %v141
    %v153 = vpack.c.b16 %v144, %v143
    %v154 = vpack.c.b16 %v146, %v145
    %v179 = vunpack.c.l.b16 %v99
    %v180 = vunpack.c.h.b16 %v99
    %v181 = vunpack.c.l.b16 %v100
    %v182 = vunpack.c.h.b16 %v100
    %v183 = vunpack.c.l.b16 %v101
    %v184 = vunpack.c.h.b16 %v101
    %v185 = vunpack.c.l.b16 %v102
    %v186 = vunpack.c.h.b16 %v102
    %v187 = vunpack.c.l.b16 %v103
    %v188 = vunpack.c.h.b16 %v103
    %v189 = vunpack.c.l.b16 %v104
    %v190 = vunpack.c.h.b16 %v104
    %v191 = vunpack.c.l.b16 %v105
    %v192 = vunpack.c.h.b16 %v105
    %v193 = vunpack.c.l.b16 %v106
    %v194 = vunpack.c.h.b16 %v106
    %v195 = vunpack.c.l.b16 %v107
    %v196 = vunpack.c.h.b16 %v107
    %v197 = vunpack.c.l.b16 %v108
    %v198 = vunpack.c.h.b16 %v108
    %v199 = vunpack.c.l.b16 %v109
    %v200 = vunpack.c.h.b16 %v109
    %v201 = vunpack.c.l.b16 %v110
    %v202 = vunpack.c.h.b16 %v110
    %v203 = vunpack.c.l.b16 %v111
    %v204 = vunpack.c.h.b16 %v111
    %v205 = vunpack.c.l.b16 %v112
    %v206 = vunpack.c.h.b16 %v112
    %v207 = vunpack.c.l.b16 %v113
    %v208 = vunpack.c.h.b16 %v113
    %v209 = vunpack.c.l.b16 %v114
    %v210 = vunpack.c.h.b16 %v114
    %v211 = vpack.c.b16 %v181, %v179
    %v212 = vpack.c.b16 %v182, %v180
    %v213 = vpack.c.b16 %v185, %v183
    %v214 = vpack.c.b16 %v186, %v184
    %v215 = vpack.c.b16 %v189, %v187
    %v216 = vpack.c.b16 %v190, %v188
    %v217 = vpack.c.b16 %v193, %v191
    %v218 = vpack.c.b16 %v194, %v192
    %v219 = vpack.c.b16 %v197, %v195
    %v220 = vpack.c.b16 %v198, %v196
    %v221 = vpack.c.b16 %v201, %v199
    %v222 = vpack.c.b16 %v202, %v200
    %v223 = vpack.c.b16 %v205, %v203
    %v224 = vpack.c.b16 %v206, %v204
    %v225 = vpack.c.b16 %v209, %v207
    %v226 = vpack.c.b16 %v210, %v208
    %243 = vmatpush.bf16.msra.mxu0 %v225
    %244 = vmatpush.bf16.msra.mxu0 %v223
    %245 = vmatpush.bf16.msra.mxu0 %v221
    %246 = vmatpush.bf16.msra.mxu0 %v219
    %247 = vmatpush.bf16.msra.mxu0 %v217
    %248 = vmatpush.bf16.msra.mxu0 %v215
    %249 = vmatpush.bf16.msra.mxu0 %v213
    %250 = vmatpush.bf16.msra.mxu0 %v211
    %251 = vmatmul.bf16.gmra.mxu0 %v147
    %v252 = vpop.f32.mrf.mxu0
    %v253 = vadd.f32 0.0, %v252
    %v254 = vpop.f32.mrf.mxu0
    %v255 = vadd.f32 0.0, %v254
    %256 = vmatmul.bf16.gmra.mxu0 %v148
    %v257 = vpop.f32.mrf.mxu0
    %v258 = vadd.f32 0.0, %v257
    %v259 = vpop.f32.mrf.mxu0
    %v260 = vadd.f32 0.0, %v259
    %261 = vmatmul.bf16.gmra.mxu0 %v149
    %v262 = vpop.f32.mrf.mxu0
    %v263 = vadd.f32 0.0, %v262
    %v264 = vpop.f32.mrf.mxu0
    %v265 = vadd.f32 0.0, %v264
    %266 = vmatmul.bf16.gmra.mxu0 %v150
    %v267 = vpop.f32.mrf.mxu0
    %v268 = vadd.f32 0.0, %v267
    %v269 = vpop.f32.mrf.mxu0
    %v270 = vadd.f32 0.0, %v269
    %271 = vmatmul.bf16.gmra.mxu0 %v151
    %v272 = vpop.f32.mrf.mxu0
    %v273 = vadd.f32 0.0, %v272
    %v274 = vpop.f32.mrf.mxu0
    %v275 = vadd.f32 0.0, %v274
    %276 = vmatmul.bf16.gmra.mxu0 %v152
    %v277 = vpop.f32.mrf.mxu0
    %v278 = vadd.f32 0.0, %v277
    %v279 = vpop.f32.mrf.mxu0
    %v280 = vadd.f32 0.0, %v279
    %281 = vmatmul.bf16.gmra.mxu0 %v153
    %v282 = vpop.f32.mrf.mxu0
    %v283 = vadd.f32 0.0, %v282
    %v284 = vpop.f32.mrf.mxu0
    %v285 = vadd.f32 0.0, %v284
    %286 = vmatmul.bf16.gmra.mxu0 %v154
    %v287 = vpop.f32.mrf.mxu0
    %v288 = vadd.f32 0.0, %v287
    %v289 = vpop.f32.mrf.mxu0
    %v290 = vadd.f32 0.0, %v289
    %291 = vdwg.mxu0
    %292 = vmatpush.bf16.msra.mxu0 %v226
    %293 = vmatpush.bf16.msra.mxu0 %v224
    %294 = vmatpush.bf16.msra.mxu0 %v222
    %295 = vmatpush.bf16.msra.mxu0 %v220
    %296 = vmatpush.bf16.msra.mxu0 %v218
    %297 = vmatpush.bf16.msra.mxu0 %v216
    %298 = vmatpush.bf16.msra.mxu0 %v214
    %299 = vmatpush.bf16.msra.mxu0 %v212
    %300 = vmatmul.bf16.gmra.mxu0 %v147
    %v301 = vpop.f32.mrf.mxu0
    %v302 = vadd.f32 0.0, %v301
    %v303 = vpop.f32.mrf.mxu0
    %v304 = vadd.f32 0.0, %v303
    %305 = vmatmul.bf16.gmra.mxu0 %v148
    %v306 = vpop.f32.mrf.mxu0
    %v307 = vadd.f32 0.0, %v306
    %v308 = vpop.f32.mrf.mxu0
    %v309 = vadd.f32 0.0, %v308
    %310 = vmatmul.bf16.gmra.mxu0 %v149
    %v311 = vpop.f32.mrf.mxu0
    %v312 = vadd.f32 0.0, %v311
    %v313 = vpop.f32.mrf.mxu0
    %v314 = vadd.f32 0.0, %v313
    %315 = vmatmul.bf16.gmra.mxu0 %v150
    %v316 = vpop.f32.mrf.mxu0
    %v317 = vadd.f32 0.0, %v316
    %v318 = vpop.f32.mrf.mxu0
    %v319 = vadd.f32 0.0, %v318
    %320 = vmatmul.bf16.gmra.mxu0 %v151
    %v321 = vpop.f32.mrf.mxu0
    %v322 = vadd.f32 0.0, %v321
    %v323 = vpop.f32.mrf.mxu0
    %v324 = vadd.f32 0.0, %v323
    %325 = vmatmul.bf16.gmra.mxu0 %v152
    %v326 = vpop.f32.mrf.mxu0
    %v327 = vadd.f32 0.0, %v326
    %v328 = vpop.f32.mrf.mxu0
    %v329 = vadd.f32 0.0, %v328
    %330 = vmatmul.bf16.gmra.mxu0 %v153
    %v331 = vpop.f32.mrf.mxu0
    %v332 = vadd.f32 0.0, %v331
    %v333 = vpop.f32.mrf.mxu0
    %v334 = vadd.f32 0.0, %v333
    %335 = vmatmul.bf16.gmra.mxu0 %v154
    %v336 = vpop.f32.mrf.mxu0
    %v337 = vadd.f32 0.0, %v336
    %v338 = vpop.f32.mrf.mxu0
    %v339 = vadd.f32 0.0, %v338
    %340 = vdwg.mxu0
    %v341 = vadd.f32 %v51, %v253
    %v342 = vadd.f32 %v52, %v302
    %v343 = vadd.f32 %v53, %v255
    %v344 = vadd.f32 %v54, %v304
    %v345 = vadd.f32 %v55, %v258
    %v346 = vadd.f32 %v56, %v307
    %v347 = vadd.f32 %v57, %v260
    %v348 = vadd.f32 %v58, %v309
    %v349 = vadd.f32 %v59, %v263
    %v350 = vadd.f32 %v60, %v312
    %v351 = vadd.f32 %v61, %v265
    %v352 = vadd.f32 %v62, %v314
    %v353 = vadd.f32 %v63, %v268
    %v354 = vadd.f32 %v64, %v317
    %v355 = vadd.f32 %v65, %v270
    %v356 = vadd.f32 %v66, %v319
    %v357 = vadd.f32 %v67, %v273
    %v358 = vadd.f32 %v68, %v322
    %v359 = vadd.f32 %v69, %v275
    %v360 = vadd.f32 %v70, %v324
    %v361 = vadd.f32 %v71, %v278
    %v362 = vadd.f32 %v72, %v327
    %v363 = vadd.f32 %v73, %v280
    %v364 = vadd.f32 %v74, %v329
    %v365 = vadd.f32 %v75, %v283
    %v366 = vadd.f32 %v76, %v332
    %v367 = vadd.f32 %v77, %v285
    %v368 = vadd.f32 %v78, %v334
    %v369 = vadd.f32 %v79, %v288
    %v370 = vadd.f32 %v80, %v337
    %v371 = vadd.f32 %v81, %v290
    %v372 = vadd.f32 %v82, %v339
    %373 = vst [vmem:[#allocation2] sm:$0xff] %v341
    %374 = vst [vmem:[#allocation2 + $0x8] sm:$0xff] %v342
    %375 = vst [vmem:[#allocation2 + $0x10] sm:$0xff] %v343
    %376 = vst [vmem:[#allocation2 + $0x18] sm:$0xff] %v344
    %377 = vst [vmem:[#allocation2 + $0x20] sm:$0xff] %v345
    %378 = vst [vmem:[#allocation2 + $0x28] sm:$0xff] %v346
    %379 = vst [vmem:[#allocation2 + $0x30] sm:$0xff] %v347
    %380 = vst [vmem:[#allocation2 + $0x38] sm:$0xff] %v348
    %381 = vst [vmem:[#allocation2 + $0x40] sm:$0xff] %v349
    %382 = vst [vmem:[#allocation2 + $0x48] sm:$0xff] %v350
    %383 = vst [vmem:[#allocation2 + $0x50] sm:$0xff] %v351
    %384 = vst [vmem:[#allocation2 + $0x58] sm:$0xff] %v352
    %385 = vst [vmem:[#allocation2 + $0x60] sm:$0xff] %v353
    %386 = vst [vmem:[#allocation2 + $0x68] sm:$0xff] %v354
    %387 = vst [vmem:[#allocation2 + $0x70] sm:$0xff] %v355
    %388 = vst [vmem:[#allocation2 + $0x78] sm:$0xff] %v356
    %389 = vst [vmem:[#allocation2 + $0x80] sm:$0xff] %v357
    %390 = vst [vmem:[#allocation2 + $0x88] sm:$0xff] %v358
    %391 = vst [vmem:[#allocation2 + $0x90] sm:$0xff] %v359
    %392 = vst [vmem:[#allocation2 + $0x98] sm:$0xff] %v360
    %393 = vst [vmem:[#allocation2 + $0xa0] sm:$0xff] %v361
    %394 = vst [vmem:[#allocation2 + $0xa8] sm:$0xff] %v362
    %395 = vst [vmem:[#allocation2 + $0xb0] sm:$0xff] %v363
    %396 = vst [vmem:[#allocation2 + $0xb8] sm:$0xff] %v364
    %397 = vst [vmem:[#allocation2 + $0xc0] sm:$0xff] %v365
    %398 = vst [vmem:[#allocation2 + $0xc8] sm:$0xff] %v366
    %399 = vst [vmem:[#allocation2 + $0xd0] sm:$0xff] %v367
    %400 = vst [vmem:[#allocation2 + $0xd8] sm:$0xff] %v368
    %401 = vst [vmem:[#allocation2 + $0xe0] sm:$0xff] %v369
    %402 = vst [vmem:[#allocation2 + $0xe8] sm:$0xff] %v370
    %403 = vst [vmem:[#allocation2 + $0xf0] sm:$0xff] %v371
    %404 = vst [vmem:[#allocation2 + $0xf8] sm:$0xff] %v372
    // Predicated region
    $region18: #{lstm_model_forward.9} parent=1 // pred_check
      %p405 = pneg %p15
    $region19: #{lstm_model_forward.9} parent=1 // pred_check_branch
      %407 = sbr.rel (%p405) target = $region21
    $region20: #{lstm_model_forward.9} parent=1 // pred_region
      %v408 = vld [vmem:[#allocation2] sm:$0xff]
      %v409 = vld [vmem:[#allocation2 + $0x8] sm:$0xff]
      %v410 = vld [vmem:[#allocation2 + $0x10] sm:$0xff]
      %v411 = vld [vmem:[#allocation2 + $0x18] sm:$0xff]
      %v412 = vld [vmem:[#allocation2 + $0x20] sm:$0xff]
      %v413 = vld [vmem:[#allocation2 + $0x28] sm:$0xff]
      %v414 = vld [vmem:[#allocation2 + $0x30] sm:$0xff]
      %v415 = vld [vmem:[#allocation2 + $0x38] sm:$0xff]
      %v416 = vld [vmem:[#allocation2 + $0x40] sm:$0xff]
      %v417 = vld [vmem:[#allocation2 + $0x48] sm:$0xff]
      %v418 = vld [vmem:[#allocation2 + $0x50] sm:$0xff]
      %v419 = vld [vmem:[#allocation2 + $0x58] sm:$0xff]
      %v420 = vld [vmem:[#allocation2 + $0x60] sm:$0xff]
      %v421 = vld [vmem:[#allocation2 + $0x68] sm:$0xff]
      %v422 = vld [vmem:[#allocation2 + $0x70] sm:$0xff]
      %v423 = vld [vmem:[#allocation2 + $0x78] sm:$0xff]
      %v424 = vld [vmem:[#allocation2 + $0x80] sm:$0xff]
      %v425 = vld [vmem:[#allocation2 + $0x88] sm:$0xff]
      %v426 = vld [vmem:[#allocation2 + $0x90] sm:$0xff]
      %v427 = vld [vmem:[#allocation2 + $0x98] sm:$0xff]
      %v428 = vld [vmem:[#allocation2 + $0xa0] sm:$0xff]
      %v429 = vld [vmem:[#allocation2 + $0xa8] sm:$0xff]
      %v430 = vld [vmem:[#allocation2 + $0xb0] sm:$0xff]
      %v431 = vld [vmem:[#allocation2 + $0xb8] sm:$0xff]
      %v432 = vld [vmem:[#allocation2 + $0xc0] sm:$0xff]
      %v433 = vld [vmem:[#allocation2 + $0xc8] sm:$0xff]
      %v434 = vld [vmem:[#allocation2 + $0xd0] sm:$0xff]
      %v435 = vld [vmem:[#allocation2 + $0xd8] sm:$0xff]
      %v436 = vld [vmem:[#allocation2 + $0xe0] sm:$0xff]
      %v437 = vld [vmem:[#allocation2 + $0xe8] sm:$0xff]
      %v438 = vld [vmem:[#allocation2 + $0xf0] sm:$0xff]
      %v439 = vld [vmem:[#allocation2 + $0xf8] sm:$0xff]
      %v440 = vld [vmem:[%s2] sm:$0x3]
      %v442 = vperm.slane %v440, 0
      %v443 = vperm.slane %v440, 1
      %v446 = vadd.f32 %v408, %v442
      %v447 = vadd.f32 %v409, %v443
      %v448 = vadd.f32 %v410, %v442
      %v449 = vadd.f32 %v411, %v443
      %v450 = vadd.f32 %v412, %v442
      %v451 = vadd.f32 %v413, %v443
      %v452 = vadd.f32 %v414, %v442
      %v453 = vadd.f32 %v415, %v443
      %v454 = vadd.f32 %v416, %v442
      %v455 = vadd.f32 %v417, %v443
      %v456 = vadd.f32 %v418, %v442
      %v457 = vadd.f32 %v419, %v443
      %v458 = vadd.f32 %v420, %v442
      %v459 = vadd.f32 %v421, %v443
      %v460 = vadd.f32 %v422, %v442
      %v461 = vadd.f32 %v423, %v443
      %v462 = vadd.f32 %v424, %v442
      %v463 = vadd.f32 %v425, %v443
      %v464 = vadd.f32 %v426, %v442
      %v465 = vadd.f32 %v427, %v443
      %v466 = vadd.f32 %v428, %v442
      %v467 = vadd.f32 %v429, %v443
      %v468 = vadd.f32 %v430, %v442
      %v469 = vadd.f32 %v431, %v443
      %v470 = vadd.f32 %v432, %v442
      %v471 = vadd.f32 %v433, %v443
      %v472 = vadd.f32 %v434, %v442
      %v473 = vadd.f32 %v435, %v443
      %v474 = vadd.f32 %v436, %v442
      %v475 = vadd.f32 %v437, %v443
      %v476 = vadd.f32 %v438, %v442
      %v477 = vadd.f32 %v439, %v443
      %478 = vst [vmem:[#allocation3] sm:$0xff] %v446
      %479 = vst [vmem:[#allocation3 + $0x8] sm:$0xff] %v447
      %480 = vst [vmem:[#allocation3 + $0x10] sm:$0xff] %v448
      %481 = vst [vmem:[#allocation3 + $0x18] sm:$0xff] %v449
      %482 = vst [vmem:[#allocation3 + $0x20] sm:$0xff] %v450
      %483 = vst [vmem:[#allocation3 + $0x28] sm:$0xff] %v451
      %484 = vst [vmem:[#allocation3 + $0x30] sm:$0xff] %v452
      %485 = vst [vmem:[#allocation3 + $0x38] sm:$0xff] %v453
      %486 = vst [vmem:[#allocation3 + $0x40] sm:$0xff] %v454
      %487 = vst [vmem:[#allocation3 + $0x48] sm:$0xff] %v455
      %488 = vst [vmem:[#allocation3 + $0x50] sm:$0xff] %v456
      %489 = vst [vmem:[#allocation3 + $0x58] sm:$0xff] %v457
      %490 = vst [vmem:[#allocation3 + $0x60] sm:$0xff] %v458
      %491 = vst [vmem:[#allocation3 + $0x68] sm:$0xff] %v459
      %492 = vst [vmem:[#allocation3 + $0x70] sm:$0xff] %v460
      %493 = vst [vmem:[#allocation3 + $0x78] sm:$0xff] %v461
      %494 = vst [vmem:[#allocation3 + $0x80] sm:$0xff] %v462
      %495 = vst [vmem:[#allocation3 + $0x88] sm:$0xff] %v463
      %496 = vst [vmem:[#allocation3 + $0x90] sm:$0xff] %v464
      %497 = vst [vmem:[#allocation3 + $0x98] sm:$0xff] %v465
      %498 = vst [vmem:[#allocation3 + $0xa0] sm:$0xff] %v466
      %499 = vst [vmem:[#allocation3 + $0xa8] sm:$0xff] %v467
      %500 = vst [vmem:[#allocation3 + $0xb0] sm:$0xff] %v468
      %501 = vst [vmem:[#allocation3 + $0xb8] sm:$0xff] %v469
      %502 = vst [vmem:[#allocation3 + $0xc0] sm:$0xff] %v470
      %503 = vst [vmem:[#allocation3 + $0xc8] sm:$0xff] %v471
      %504 = vst [vmem:[#allocation3 + $0xd0] sm:$0xff] %v472
      %505 = vst [vmem:[#allocation3 + $0xd8] sm:$0xff] %v473
      %506 = vst [vmem:[#allocation3 + $0xe0] sm:$0xff] %v474
      %507 = vst [vmem:[#allocation3 + $0xe8] sm:$0xff] %v475
      %508 = vst [vmem:[#allocation3 + $0xf0] sm:$0xff] %v476
      %509 = vst [vmem:[#allocation3 + $0xf8] sm:$0xff] %v477
    $region21: #{lstm_model_forward.9} parent=1 // pred_fallthru
      _
    // Predicated region
    $region22: #{lstm_model_forward.9} parent=1 // pred_check
      _
    $region23: #{lstm_model_forward.9} parent=1 // pred_check_branch
      %511 = sbr.rel (0) target = $region25
    $region24: #{lstm_model_forward.9} parent=1 // pred_region
      %513 = vsyncadd [#allocation4], 0
      %s514 = sshll.u32 [#allocation3], 4
      %s515 = int_to_ptr.vmem [resolvable:$true] %s514
      %s516 = sshll.u32 %s3, 4
      %s517 = int_to_ptr.hbm [resolvable:$true] %s516
      %522 = dma.vmem_to_hbm [thread:$0]  %s515, 4096, %s517, [#allocation4], 256, 256, 16
    $region25: #{lstm_model_forward.9} parent=1 // pred_fallthru
      _
    // Predicated region
    $region26: #{lstm_model_forward.9} parent=1 // pred_check
      _
    $region27: #{lstm_model_forward.9} parent=1 // pred_check_branch
      %524 = sbr.rel (0) target = $region29
    $region28: #{lstm_model_forward.9} parent=1 // pred_region
      %526 = dma.done [#allocation4], 4096
    $region29: #{lstm_model_forward.9} parent=1 // pred_fallthru
      _
    %527 = vsyncpa [#allocation4], 1

// kernel: lstm_model_forward.6
$region0: #{lstm_model_forward.6}
  #allocation0 [shape = 'u32[]', space=smem, size = 0x4, offset = 0x4, fixed_abs, tag = 'smem constant byte address 0x4 - core index']
  #allocation1 [shape = 'u32[72,128]{1,0:T(1,128)}', space=vmem, size = 0x9000, scoped, tag = 'internal scratch']
  #allocation2 [shape = 'f32[8,128]{1,0:T(8,128)}', space=vmem, size = 0x1000, scoped, tag = 'scratch operand']
  #allocation3 [shape = 'f32[8,128]{1,0:T(8,128)}', space=vmem, size = 0x1000, scoped, tag = 'scratch operand']
  %s0 = inlined_call_operand.vmem [shape: f32[16,8,512], index: 0, kind: input, shape index: {}]
  %s1 = inlined_call_operand.vmem [shape: bf16[128,512], index: 1, kind: input, shape index: {}]
  %s2 = inlined_call_operand.vmem [shape: f32[8,128], index: 2, kind: input, shape index: {}]
  %s3 = inlined_call_operand.vmem [shape: f32[8,128], index: 3, kind: input, shape index: {}]
  %s4 = inlined_call_operand.vmem [shape: bf16[16,8,128], index: 4, kind: output, shape index: {0}]
  %s5 = inlined_call_operand.vmem [shape: f32[8,128], index: 5, kind: output, shape index: {1}]
  %s6 = inlined_call_operand.vmem [shape: f32[8,128], index: 6, kind: output, shape index: {2}]
  %7 = xla_tuple %s4, %s5, %s6
  %s8 = sld [smem:[#allocation0]]
  $region50: #{lstm_model_forward.6} parent=0
    _
  %s10 = ssub.s32 1, %s8
  %s11 = scalar_select 0, %s10, %s8
  // Predicated region
  $region2: #{lstm_model_forward.6} parent=0 // pred_check
    _
  $region3: #{lstm_model_forward.6} parent=0 // pred_check_branch
    %13 = sbr.rel (0) target = $region5
  $region4: #{lstm_model_forward.6} parent=0 // pred_region
    _
  $region5: #{lstm_model_forward.6} parent=0 // pred_fallthru
    _
  // Predicated region
  $region6: #{lstm_model_forward.6} parent=0 // pred_check
    _
  $region7: #{lstm_model_forward.6} parent=0 // pred_check_branch
    %15 = sbr.rel (0) target = $region9
  $region8: #{lstm_model_forward.6} parent=0 // pred_region
    _
  $region9: #{lstm_model_forward.6} parent=0 // pred_fallthru
    _
  // Predicated region
  $region10: #{lstm_model_forward.6} parent=0 // pred_check
    _
  $region11: #{lstm_model_forward.6} parent=0 // pred_check_branch
    %17 = sbr.rel (0) target = $region13
  $region12: #{lstm_model_forward.6} parent=0 // pred_region
    _
  $region13: #{lstm_model_forward.6} parent=0 // pred_fallthru
    _
  // Predicated region
  $region14: #{lstm_model_forward.6} parent=0 // pred_check
    _
  $region15: #{lstm_model_forward.6} parent=0 // pred_check_branch
    %19 = sbr.rel (0) target = $region17
  $region16: #{lstm_model_forward.6} parent=0 // pred_region
    _
  $region17: #{lstm_model_forward.6} parent=0 // pred_fallthru
    _
  %p20 = scmp.eq.s32.totalorder 0, 0
  // Predicated region
  $region18: #{lstm_model_forward.6} parent=0 // pred_check
    %p21 = pneg %p20
  $region19: #{lstm_model_forward.6} parent=0 // pred_check_branch
    %23 = sbr.rel (%p21) target = $region21
  $region20: #{lstm_model_forward.6} parent=0 // pred_region
    %v24 = vld [vmem:[%s2] sm:$0xff]
    %25 = vst [vmem:[#allocation2] sm:$0xff] %v24
    %v26 = vld [vmem:[%s3] sm:$0xff]
    %27 = vst [vmem:[#allocation3] sm:$0xff] %v26
  $region21: #{lstm_model_forward.6} parent=0 // pred_fallthru
    _
  %v28 = vld [vmem:[%s1] sm:$0xff]
  %v29 = vld [vmem:[%s1 + $0x8] sm:$0xff]
  %v30 = vld [vmem:[%s1 + $0x10] sm:$0xff]
  %v31 = vld [vmem:[%s1 + $0x18] sm:$0xff]
  %v32 = vld [vmem:[%s1 + $0x20] sm:$0xff]
  %v33 = vld [vmem:[%s1 + $0x28] sm:$0xff]
  %v34 = vld [vmem:[%s1 + $0x30] sm:$0xff]
  %v35 = vld [vmem:[%s1 + $0x38] sm:$0xff]
  %v36 = vld [vmem:[%s1 + $0x40] sm:$0xff]
  %v37 = vld [vmem:[%s1 + $0x48] sm:$0xff]
  %v38 = vld [vmem:[%s1 + $0x50] sm:$0xff]
  %v39 = vld [vmem:[%s1 + $0x58] sm:$0xff]
  %v40 = vld [vmem:[%s1 + $0x60] sm:$0xff]
  %v41 = vld [vmem:[%s1 + $0x68] sm:$0xff]
  %v42 = vld [vmem:[%s1 + $0x70] sm:$0xff]
  %v43 = vld [vmem:[%s1 + $0x78] sm:$0xff]
  %v44 = vld [vmem:[%s1 + $0x80] sm:$0xff]
  %v45 = vld [vmem:[%s1 + $0x88] sm:$0xff]
  %v46 = vld [vmem:[%s1 + $0x90] sm:$0xff]
  %v47 = vld [vmem:[%s1 + $0x98] sm:$0xff]
  %v48 = vld [vmem:[%s1 + $0xa0] sm:$0xff]
  %v49 = vld [vmem:[%s1 + $0xa8] sm:$0xff]
  %v50 = vld [vmem:[%s1 + $0xb0] sm:$0xff]
  %v51 = vld [vmem:[%s1 + $0xb8] sm:$0xff]
  %v52 = vld [vmem:[%s1 + $0xc0] sm:$0xff]
  %v53 = vld [vmem:[%s1 + $0xc8] sm:$0xff]
  %v54 = vld [vmem:[%s1 + $0xd0] sm:$0xff]
  %v55 = vld [vmem:[%s1 + $0xd8] sm:$0xff]
  %v56 = vld [vmem:[%s1 + $0xe0] sm:$0xff]
  %v57 = vld [vmem:[%s1 + $0xe8] sm:$0xff]
  %v58 = vld [vmem:[%s1 + $0xf0] sm:$0xff]
  %v59 = vld [vmem:[%s1 + $0xf8] sm:$0xff]
  %v60 = vld [vmem:[#allocation2] sm:$0xff]
  %v61 = vld [vmem:[#allocation3] sm:$0xff]
  %v62 = vld [vmem:[%s0] sm:$0xff]
  %v63 = vld [vmem:[%s0 + $0x8] sm:$0xff]
  %v64 = vld [vmem:[%s0 + $0x10] sm:$0xff]
  %v65 = vld [vmem:[%s0 + $0x18] sm:$0xff]
  %v66 = vpack.c.bf16 %v60, %v60
  %v99 = vunpack.c.l.b16 %v28
  %v100 = vunpack.c.h.b16 %v28
  %v101 = vunpack.c.l.b16 %v29
  %v102 = vunpack.c.h.b16 %v29
  %v103 = vunpack.c.l.b16 %v30
  %v104 = vunpack.c.h.b16 %v30
  %v105 = vunpack.c.l.b16 %v31
  %v106 = vunpack.c.h.b16 %v31
  %v107 = vunpack.c.l.b16 %v32
  %v108 = vunpack.c.h.b16 %v32
  %v109 = vunpack.c.l.b16 %v33
  %v110 = vunpack.c.h.b16 %v33
  %v111 = vunpack.c.l.b16 %v34
  %v112 = vunpack.c.h.b16 %v34
  %v113 = vunpack.c.l.b16 %v35
  %v114 = vunpack.c.h.b16 %v35
  %v115 = vunpack.c.l.b16 %v36
  %v116 = vunpack.c.h.b16 %v36
  %v117 = vunpack.c.l.b16 %v37
  %v118 = vunpack.c.h.b16 %v37
  %v119 = vunpack.c.l.b16 %v38
  %v120 = vunpack.c.h.b16 %v38
  %v121 = vunpack.c.l.b16 %v39
  %v122 = vunpack.c.h.b16 %v39
  %v123 = vunpack.c.l.b16 %v40
  %v124 = vunpack.c.h.b16 %v40
  %v125 = vunpack.c.l.b16 %v41
  %v126 = vunpack.c.h.b16 %v41
  %v127 = vunpack.c.l.b16 %v42
  %v128 = vunpack.c.h.b16 %v42
  %v129 = vunpack.c.l.b16 %v43
  %v130 = vunpack.c.h.b16 %v43
  %v131 = vunpack.c.l.b16 %v44
  %v132 = vunpack.c.h.b16 %v44
  %v133 = vunpack.c.l.b16 %v45
  %v134 = vunpack.c.h.b16 %v45
  %v135 = vunpack.c.l.b16 %v46
  %v136 = vunpack.c.h.b16 %v46
  %v137 = vunpack.c.l.b16 %v47
  %v138 = vunpack.c.h.b16 %v47
  %v139 = vunpack.c.l.b16 %v48
  %v140 = vunpack.c.h.b16 %v48
  %v141 = vunpack.c.l.b16 %v49
  %v142 = vunpack.c.h.b16 %v49
  %v143 = vunpack.c.l.b16 %v50
  %v144 = vunpack.c.h.b16 %v50
  %v145 = vunpack.c.l.b16 %v51
  %v146 = vunpack.c.h.b16 %v51
  %v147 = vunpack.c.l.b16 %v52
  %v148 = vunpack.c.h.b16 %v52
  %v149 = vunpack.c.l.b16 %v53
  %v150 = vunpack.c.h.b16 %v53
  %v151 = vunpack.c.l.b16 %v54
  %v152 = vunpack.c.h.b16 %v54
  %v153 = vunpack.c.l.b16 %v55
  %v154 = vunpack.c.h.b16 %v55
  %v155 = vunpack.c.l.b16 %v56
  %v156 = vunpack.c.h.b16 %v56
  %v157 = vunpack.c.l.b16 %v57
  %v158 = vunpack.c.h.b16 %v57
  %v159 = vunpack.c.l.b16 %v58
  %v160 = vunpack.c.h.b16 %v58
  %v161 = vunpack.c.l.b16 %v59
  %v162 = vunpack.c.h.b16 %v59
  %v163 = vpack.c.b16 %v103, %v99
  %v164 = vpack.c.b16 %v104, %v100
  %v165 = vpack.c.b16 %v105, %v101
  %v166 = vpack.c.b16 %v106, %v102
  %v167 = vpack.c.b16 %v111, %v107
  %v168 = vpack.c.b16 %v112, %v108
  %v169 = vpack.c.b16 %v113, %v109
  %v170 = vpack.c.b16 %v114, %v110
  %v171 = vpack.c.b16 %v119, %v115
  %v172 = vpack.c.b16 %v120, %v116
  %v173 = vpack.c.b16 %v121, %v117
  %v174 = vpack.c.b16 %v122, %v118
  %v175 = vpack.c.b16 %v127, %v123
  %v176 = vpack.c.b16 %v128, %v124
  %v177 = vpack.c.b16 %v129, %v125
  %v178 = vpack.c.b16 %v130, %v126
  %v179 = vpack.c.b16 %v135, %v131
  %v180 = vpack.c.b16 %v136, %v132
  %v181 = vpack.c.b16 %v137, %v133
  %v182 = vpack.c.b16 %v138, %v134
  %v183 = vpack.c.b16 %v143, %v139
  %v184 = vpack.c.b16 %v144, %v140
  %v185 = vpack.c.b16 %v145, %v141
  %v186 = vpack.c.b16 %v146, %v142
  %v187 = vpack.c.b16 %v151, %v147
  %v188 = vpack.c.b16 %v152, %v148
  %v189 = vpack.c.b16 %v153, %v149
  %v190 = vpack.c.b16 %v154, %v150
  %v191 = vpack.c.b16 %v159, %v155
  %v192 = vpack.c.b16 %v160, %v156
  %v193 = vpack.c.b16 %v161, %v157
  %v194 = vpack.c.b16 %v162, %v158
  %227 = vmatpush.bf16.msra.mxu0 %v191
  %228 = vmatpush.bf16.msra.mxu0 %v187
  %229 = vmatpush.bf16.msra.mxu0 %v183
  %230 = vmatpush.bf16.msra.mxu0 %v179
  %231 = vmatpush.bf16.msra.mxu0 %v175
  %232 = vmatpush.bf16.msra.mxu0 %v171
  %233 = vmatpush.bf16.msra.mxu0 %v167
  %234 = vmatpush.bf16.msra.mxu0 %v163
  %235 = vmatmul.bf16.gmra.mxu0 %v66
  %v236 = vpop.f32.mrf.mxu0
  %v237 = vadd.f32 0.0, %v236
  %v238 = vpop.f32.mrf.mxu0
  %239 = vdwg.mxu0
  %240 = vmatpush.bf16.msra.mxu0 %v192
  %241 = vmatpush.bf16.msra.mxu0 %v188
  %242 = vmatpush.bf16.msra.mxu0 %v184
  %243 = vmatpush.bf16.msra.mxu0 %v180
  %244 = vmatpush.bf16.msra.mxu0 %v176
  %245 = vmatpush.bf16.msra.mxu0 %v172
  %246 = vmatpush.bf16.msra.mxu0 %v168
  %247 = vmatpush.bf16.msra.mxu0 %v164
  %248 = vmatmul.bf16.gmra.mxu0 %v66
  %v249 = vpop.f32.mrf.mxu0
  %v250 = vadd.f32 0.0, %v249
  %v251 = vpop.f32.mrf.mxu0
  %252 = vdwg.mxu0
  %253 = vmatpush.bf16.msra.mxu0 %v193
  %254 = vmatpush.bf16.msra.mxu0 %v189
  %255 = vmatpush.bf16.msra.mxu0 %v185
  %256 = vmatpush.bf16.msra.mxu0 %v181
  %257 = vmatpush.bf16.msra.mxu0 %v177
  %258 = vmatpush.bf16.msra.mxu0 %v173
  %259 = vmatpush.bf16.msra.mxu0 %v169
  %260 = vmatpush.bf16.msra.mxu0 %v165
  %261 = vmatmul.bf16.gmra.mxu0 %v66
  %v262 = vpop.f32.mrf.mxu0
  %v263 = vadd.f32 0.0, %v262
  %v264 = vpop.f32.mrf.mxu0
  %265 = vdwg.mxu0
  %266 = vmatpush.bf16.msra.mxu0 %v194
  %267 = vmatpush.bf16.msra.mxu0 %v190
  %268 = vmatpush.bf16.msra.mxu0 %v186
  %269 = vmatpush.bf16.msra.mxu0 %v182
  %270 = vmatpush.bf16.msra.mxu0 %v178
  %271 = vmatpush.bf16.msra.mxu0 %v174
  %272 = vmatpush.bf16.msra.mxu0 %v170
  %273 = vmatpush.bf16.msra.mxu0 %v166
  %274 = vmatmul.bf16.gmra.mxu0 %v66
  %v275 = vpop.f32.mrf.mxu0
  %v276 = vadd.f32 0.0, %v275
  %v277 = vpop.f32.mrf.mxu0
  %278 = vdwg.mxu0
  %v279 = vadd.f32 %v62, %v237
  %v280 = vadd.f32 %v63, %v250
  %v281 = vadd.f32 %v64, %v263
  %v282 = vadd.f32 %v65, %v276
  %v283 = vxor.u32 %v279, 2147483648
  %v284 = vmul.f32 %v283, 1.442695
  %v285 = vpow.pop %v284
  %v286 = vadd.f32 %v285, 1.0
  %v287 = vrcp.pop %v286
  %v288 = vmul.f32 %v286, %v287
  %v289 = vsub.f32 1.0, %v288
  %v290 = vmul.f32 %v287, %v289
  %v291 = vadd.f32 %v287, %v290
  %vm292 = vweird.f32 %v286
  %vm293 = vweird.f32 %v287
  %vm294 = vmor %vm292, %vm293
  %v295 = vsel %vm294, %v287, %v291
  %v296 = vand.u32 2147483647, %v286
  %vm297 = vcmp.eq.f32.partialorder %v296, 8.507059e+37
  %v298 = vand.u32 %v286, 2147483648
  %v299 = vor.u32 1.1754944e-38, %v298
  %v300 = vsel %vm297, %v299, %v295
  %v301 = vmul.f32 1.0, %v300
  %v302 = vxor.u32 %v280, 2147483648
  %v303 = vmul.f32 %v302, 1.442695
  %v304 = vpow.pop %v303
  %v305 = vadd.f32 %v304, 1.0
  %v306 = vrcp.pop %v305
  %v307 = vmul.f32 %v305, %v306
  %v308 = vsub.f32 1.0, %v307
  %v309 = vmul.f32 %v306, %v308
  %v310 = vadd.f32 %v306, %v309
  %vm311 = vweird.f32 %v305
  %vm312 = vweird.f32 %v306
  %vm313 = vmor %vm311, %vm312
  %v314 = vsel %vm313, %v306, %v310
  %v315 = vand.u32 2147483647, %v305
  %vm316 = vcmp.eq.f32.partialorder %v315, 8.507059e+37
  %v317 = vand.u32 %v305, 2147483648
  %v318 = vor.u32 1.1754944e-38, %v317
  %v319 = vsel %vm316, %v318, %v314
  %v320 = vmul.f32 1.0, %v319
  %v321 = vtanh.pop %v281
  %v322 = vxor.u32 %v282, 2147483648
  %v323 = vmul.f32 %v322, 1.442695
  %v324 = vpow.pop %v323
  %v325 = vadd.f32 %v324, 1.0
  %v326 = vrcp.pop %v325
  %v327 = vmul.f32 %v325, %v326
  %v328 = vsub.f32 1.0, %v327
  %v329 = vmul.f32 %v326, %v328
  %v330 = vadd.f32 %v326, %v329
  %vm331 = vweird.f32 %v325
  %vm332 = vweird.f32 %v326
  %vm333 = vmor %vm331, %vm332
  %v334 = vsel %vm333, %v326, %v330
  %v335 = vand.u32 2147483647, %v325
  %vm336 = vcmp.eq.f32.partialorder %v335, 8.507059e+37
  %v337 = vand.u32 %v325, 2147483648
  %v338 = vor.u32 1.1754944e-38, %v337
  %v339 = vsel %vm336, %v338, %v334
  %v340 = vmul.f32 1.0, %v339
  %v341 = vmul.f32 %v320, %v61
  %v342 = vmul.f32 %v301, %v321
  %v343 = vadd.f32 %v341, %v342
  %v344 = vtanh.pop %v343
  %v345 = vmul.f32 %v340, %v344
  %v346 = vpack.c.bf16 %v345, %v345
  %347 = vst [vmem:[%s4] sm:$0xf] %v346
  %s348 = scalar_lea.vmem %s0, 32
  %v349 = vld [vmem:[%s348] sm:$0xff]
  %v350 = vld [vmem:[%s348 + $0x8] sm:$0xff]
  %v351 = vld [vmem:[%s348 + $0x10] sm:$0xff]
  %v352 = vld [vmem:[%s348 + $0x18] sm:$0xff]
  %353 = vmatpush.bf16.msra.mxu0 %v191
  %354 = vmatpush.bf16.msra.mxu0 %v187
  %355 = vmatpush.bf16.msra.mxu0 %v183
  %356 = vmatpush.bf16.msra.mxu0 %v179
  %357 = vmatpush.bf16.msra.mxu0 %v175
  %358 = vmatpush.bf16.msra.mxu0 %v171
  %359 = vmatpush.bf16.msra.mxu0 %v167
  %360 = vmatpush.bf16.msra.mxu0 %v163
  %361 = vmatmul.bf16.gmra.mxu0 %v346
  %v362 = vpop.f32.mrf.mxu0
  %v363 = vadd.f32 0.0, %v362
  %v364 = vpop.f32.mrf.mxu0
  %365 = vdwg.mxu0
  %366 = vmatpush.bf16.msra.mxu0 %v192
  %367 = vmatpush.bf16.msra.mxu0 %v188
  %368 = vmatpush.bf16.msra.mxu0 %v184
  %369 = vmatpush.bf16.msra.mxu0 %v180
  %370 = vmatpush.bf16.msra.mxu0 %v176
  %371 = vmatpush.bf16.msra.mxu0 %v172
  %372 = vmatpush.bf16.msra.mxu0 %v168
  %373 = vmatpush.bf16.msra.mxu0 %v164
  %374 = vmatmul.bf16.gmra.mxu0 %v346
  %v375 = vpop.f32.mrf.mxu0
  %v376 = vadd.f32 0.0, %v375
  %v377 = vpop.f32.mrf.mxu0
  %378 = vdwg.mxu0
  %379 = vmatpush.bf16.msra.mxu0 %v193
  %380 = vmatpush.bf16.msra.mxu0 %v189
  %381 = vmatpush.bf16.msra.mxu0 %v185
  %382 = vmatpush.bf16.msra.mxu0 %v181
  %383 = vmatpush.bf16.msra.mxu0 %v177
  %384 = vmatpush.bf16.msra.mxu0 %v173
  %385 = vmatpush.bf16.msra.mxu0 %v169
  %386 = vmatpush.bf16.msra.mxu0 %v165
  %387 = vmatmul.bf16.gmra.mxu0 %v346
  %v388 = vpop.f32.mrf.mxu0
  %v389 = vadd.f32 0.0, %v388
  %v390 = vpop.f32.mrf.mxu0
  %391 = vdwg.mxu0
  %392 = vmatpush.bf16.msra.mxu0 %v194
  %393 = vmatpush.bf16.msra.mxu0 %v190
  %394 = vmatpush.bf16.msra.mxu0 %v186
  %395 = vmatpush.bf16.msra.mxu0 %v182
  %396 = vmatpush.bf16.msra.mxu0 %v178
  %397 = vmatpush.bf16.msra.mxu0 %v174
  %398 = vmatpush.bf16.msra.mxu0 %v170
  %399 = vmatpush.bf16.msra.mxu0 %v166
  %400 = vmatmul.bf16.gmra.mxu0 %v346
  %v401 = vpop.f32.mrf.mxu0
  %v402 = vadd.f32 0.0, %v401
  %v403 = vpop.f32.mrf.mxu0
  %404 = vdwg.mxu0
  %v405 = vadd.f32 %v349, %v363
  %v406 = vadd.f32 %v350, %v376
  %v407 = vadd.f32 %v351, %v389
  %v408 = vadd.f32 %v352, %v402
  %v409 = vxor.u32 %v405, 2147483648
  %v410 = vmul.f32 %v409, 1.442695
  %v411 = vpow.pop %v410
  %v412 = vadd.f32 %v411, 1.0
  %v413 = vrcp.pop %v412
  %v414 = vmul.f32 %v412, %v413
  %v415 = vsub.f32 1.0, %v414
  %v416 = vmul.f32 %v413, %v415
  %v417 = vadd.f32 %v413, %v416
  %vm418 = vweird.f32 %v412
  %vm419 = vweird.f32 %v413
  %vm420 = vmor %vm418, %vm419
  %v421 = vsel %vm420, %v413, %v417
  %v422 = vand.u32 2147483647, %v412
  %vm423 = vcmp.eq.f32.partialorder %v422, 8.507059e+37
  %v424 = vand.u32 %v412, 2147483648
  %v425 = vor.u32 1.1754944e-38, %v424
  %v426 = vsel %vm423, %v425, %v421
  %v427 = vmul.f32 1.0, %v426
  %v428 = vxor.u32 %v406, 2147483648
  %v429 = vmul.f32 %v428, 1.442695
  %v430 = vpow.pop %v429
  %v431 = vadd.f32 %v430, 1.0
  %v432 = vrcp.pop %v431
  %v433 = vmul.f32 %v431, %v432
  %v434 = vsub.f32 1.0, %v433
  %v435 = vmul.f32 %v432, %v434
  %v436 = vadd.f32 %v432, %v435
  %vm437 = vweird.f32 %v431
  %vm438 = vweird.f32 %v432
  %vm439 = vmor %vm437, %vm438
  %v440 = vsel %vm439, %v432, %v436
  %v441 = vand.u32 2147483647, %v431
  %vm442 = vcmp.eq.f32.partialorder %v441, 8.507059e+37
  %v443 = vand.u32 %v431, 2147483648
  %v444 = vor.u32 1.1754944e-38, %v443
  %v445 = vsel %vm442, %v444, %v440
  %v446 = vmul.f32 1.0, %v445
  %v447 = vtanh.pop %v407
  %v448 = vxor.u32 %v408, 2147483648
  %v449 = vmul.f32 %v448, 1.442695
  %v450 = vpow.pop %v449
  %v451 = vadd.f32 %v450, 1.0
  %v452 = vrcp.pop %v451
  %v453 = vmul.f32 %v451, %v452
  %v454 = vsub.f32 1.0, %v453
  %v455 = vmul.f32 %v452, %v454
  %v456 = vadd.f32 %v452, %v455
  %vm457 = vweird.f32 %v451
  %vm458 = vweird.f32 %v452
  %vm459 = vmor %vm457, %vm458
  %v460 = vsel %vm459, %v452, %v456
  %v461 = vand.u32 2147483647, %v451
  %vm462 = vcmp.eq.f32.partialorder %v461, 8.507059e+37
  %v463 = vand.u32 %v451, 2147483648
  %v464 = vor.u32 1.1754944e-38, %v463
  %v465 = vsel %vm462, %v464, %v460
  %v466 = vmul.f32 1.0, %v465
  %v467 = vmul.f32 %v446, %v343
  %v468 = vmul.f32 %v427, %v447
  %v469 = vadd.f32 %v467, %v468
  %v470 = vtanh.pop %v469
  %v471 = vmul.f32 %v466, %v470
  %v472 = vpack.c.bf16 %v471, %v471
  %s473 = scalar_lea.vmem %s4, 4
  %474 = vst [vmem:[%s473] sm:$0xf] %v472
  %s475 = scalar_lea.vmem %s0, 64
  %v476 = vld [vmem:[%s475] sm:$0xff]
  %v477 = vld [vmem:[%s475 + $0x8] sm:$0xff]
  %v478 = vld [vmem:[%s475 + $0x10] sm:$0xff]
  %v479 = vld [vmem:[%s475 + $0x18] sm:$0xff]
  %480 = vmatpush.bf16.msra.mxu0 %v191
  %481 = vmatpush.bf16.msra.mxu0 %v187
  %482 = vmatpush.bf16.msra.mxu0 %v183
  %483 = vmatpush.bf16.msra.mxu0 %v179
  %484 = vmatpush.bf16.msra.mxu0 %v175
  %485 = vmatpush.bf16.msra.mxu0 %v171
  %486 = vmatpush.bf16.msra.mxu0 %v167
  %487 = vmatpush.bf16.msra.mxu0 %v163
  %488 = vmatmul.bf16.gmra.mxu0 %v472
  %v489 = vpop.f32.mrf.mxu0
  %v490 = vadd.f32 0.0, %v489
  %v491 = vpop.f32.mrf.mxu0
  %492 = vdwg.mxu0
  %493 = vmatpush.bf16.msra.mxu0 %v192
  %494 = vmatpush.bf16.msra.mxu0 %v188
  %495 = vmatpush.bf16.msra.mxu0 %v184
  %496 = vmatpush.bf16.msra.mxu0 %v180
  %497 = vmatpush.bf16.msra.mxu0 %v176
  %498 = vmatpush.bf16.msra.mxu0 %v172
  %499 = vmatpush.bf16.msra.mxu0 %v168
  %500 = vmatpush.bf16.msra.mxu0 %v164
  %501 = vmatmul.bf16.gmra.mxu0 %v472
  %v502 = vpop.f32.mrf.mxu0
  %v503 = vadd.f32 0.0, %v502
  %v504 = vpop.f32.mrf.mxu0
  %505 = vdwg.mxu0
  %506 = vmatpush.bf16.msra.mxu0 %v193
  %507 = vmatpush.bf16.msra.mxu0 %v189
  %508 = vmatpush.bf16.msra.mxu0 %v185
  %509 = vmatpush.bf16.msra.mxu0 %v181
  %510 = vmatpush.bf16.msra.mxu0 %v177
  %511 = vmatpush.bf16.msra.mxu0 %v173
  %512 = vmatpush.bf16.msra.mxu0 %v169
  %513 = vmatpush.bf16.msra.mxu0 %v165
  %514 = vmatmul.bf16.gmra.mxu0 %v472
  %v515 = vpop.f32.mrf.mxu0
  %v516 = vadd.f32 0.0, %v515
  %v517 = vpop.f32.mrf.mxu0
  %518 = vdwg.mxu0
  %519 = vmatpush.bf16.msra.mxu0 %v194
  %520 = vmatpush.bf16.msra.mxu0 %v190
  %521 = vmatpush.bf16.msra.mxu0 %v186
  %522 = vmatpush.bf16.msra.mxu0 %v182
  %523 = vmatpush.bf16.msra.mxu0 %v178
  %524 = vmatpush.bf16.msra.mxu0 %v174
  %525 = vmatpush.bf16.msra.mxu0 %v170
  %526 = vmatpush.bf16.msra.mxu0 %v166
  %527 = vmatmul.bf16.gmra.mxu0 %v472
  %v528 = vpop.f32.mrf.mxu0
  %v529 = vadd.f32 0.0, %v528
  %v530 = vpop.f32.mrf.mxu0
  %531 = vdwg.mxu0
  %v532 = vadd.f32 %v476, %v490
  %v533 = vadd.f32 %v477, %v503
  %v534 = vadd.f32 %v478, %v516
  %v535 = vadd.f32 %v479, %v529
  %v536 = vxor.u32 %v532, 2147483648
  %v537 = vmul.f32 %v536, 1.442695
  %v538 = vpow.pop %v537
  %v539 = vadd.f32 %v538, 1.0
  %v540 = vrcp.pop %v539
  %v541 = vmul.f32 %v539, %v540
  %v542 = vsub.f32 1.0, %v541
  %v543 = vmul.f32 %v540, %v542
  %v544 = vadd.f32 %v540, %v543
  %vm545 = vweird.f32 %v539
  %vm546 = vweird.f32 %v540
  %vm547 = vmor %vm545, %vm546
  %v548 = vsel %vm547, %v540, %v544
  %v549 = vand.u32 2147483647, %v539
  %vm550 = vcmp.eq.f32.partialorder %v549, 8.507059e+37
  %v551 = vand.u32 %v539, 2147483648
  %v552 = vor.u32 1.1754944e-38, %v551
  %v553 = vsel %vm550, %v552, %v548
  %v554 = vmul.f32 1.0, %v553
  %v555 = vxor.u32 %v533, 2147483648
  %v556 = vmul.f32 %v555, 1.442695
  %v557 = vpow.pop %v556
  %v558 = vadd.f32 %v557, 1.0
  %v559 = vrcp.pop %v558
  %v560 = vmul.f32 %v558, %v559
  %v561 = vsub.f32 1.0, %v560
  %v562 = vmul.f32 %v559, %v561
  %v563 = vadd.f32 %v559, %v562
  %vm564 = vweird.f32 %v558
  %vm565 = vweird.f32 %v559
  %vm566 = vmor %vm564, %vm565
  %v567 = vsel %vm566, %v559, %v563
  %v568 = vand.u32 2147483647, %v558
  %vm569 = vcmp.eq.f32.partialorder %v568, 8.507059e+37
  %v570 = vand.u32 %v558, 2147483648
  %v571 = vor.u32 1.1754944e-38, %v570
  %v572 = vsel %vm569, %v571, %v567
  %v573 = vmul.f32 1.0, %v572
  %v574 = vtanh.pop %v534
  %v575 = vxor.u32 %v535, 2147483648
  %v576 = vmul.f32 %v575, 1.442695
  %v577 = vpow.pop %v576
  %v578 = vadd.f32 %v577, 1.0
  %v579 = vrcp.pop %v578
  %v580 = vmul.f32 %v578, %v579
  %v581 = vsub.f32 1.0, %v580
  %v582 = vmul.f32 %v579, %v581
  %v583 = vadd.f32 %v579, %v582
  %vm584 = vweird.f32 %v578
  %vm585 = vweird.f32 %v579
  %vm586 = vmor %vm584, %vm585
  %v587 = vsel %vm586, %v579, %v583
  %v588 = vand.u32 2147483647, %v578
  %vm589 = vcmp.eq.f32.partialorder %v588, 8.507059e+37
  %v590 = vand.u32 %v578, 2147483648
  %v591 = vor.u32 1.1754944e-38, %v590
  %v592 = vsel %vm589, %v591, %v587
  %v593 = vmul.f32 1.0, %v592
  %v594 = vmul.f32 %v573, %v469
  %v595 = vmul.f32 %v554, %v574
  %v596 = vadd.f32 %v594, %v595
  %v597 = vtanh.pop %v596
  %v598 = vmul.f32 %v593, %v597
  %v599 = vpack.c.bf16 %v598, %v598
  %s600 = scalar_lea.vmem %s4, 8
  %601 = vst [vmem:[%s600] sm:$0xf] %v599
  %s602 = scalar_lea.vmem %s0, 96
  %v603 = vld [vmem:[%s602] sm:$0xff]
  %v604 = vld [vmem:[%s602 + $0x8] sm:$0xff]
  %v605 = vld [vmem:[%s602 + $0x10] sm:$0xff]
  %v606 = vld [vmem:[%s602 + $0x18] sm:$0xff]
  %607 = vmatpush.bf16.msra.mxu0 %v191
  %608 = vmatpush.bf16.msra.mxu0 %v187
  %609 = vmatpush.bf16.msra.mxu0 %v183
  %610 = vmatpush.bf16.msra.mxu0 %v179
  %611 = vmatpush.bf16.msra.mxu0 %v175
  %612 = vmatpush.bf16.msra.mxu0 %v171
  %613 = vmatpush.bf16.msra.mxu0 %v167
  %614 = vmatpush.bf16.msra.mxu0 %v163
  %615 = vmatmul.bf16.gmra.mxu0 %v599
  %v616 = vpop.f32.mrf.mxu0
  %v617 = vadd.f32 0.0, %v616
  %v618 = vpop.f32.mrf.mxu0
  %619 = vdwg.mxu0
  %620 = vmatpush.bf16.msra.mxu0 %v192
  %621 = vmatpush.bf16.msra.mxu0 %v188
  %622 = vmatpush.bf16.msra.mxu0 %v184
  %623 = vmatpush.bf16.msra.mxu0 %v180
  %624 = vmatpush.bf16.msra.mxu0 %v176
  %625 = vmatpush.bf16.msra.mxu0 %v172
  %626 = vmatpush.bf16.msra.mxu0 %v168
  %627 = vmatpush.bf16.msra.mxu0 %v164
  %628 = vmatmul.bf16.gmra.mxu0 %v599
  %v629 = vpop.f32.mrf.mxu0
  %v630 = vadd.f32 0.0, %v629
  %v631 = vpop.f32.mrf.mxu0
  %632 = vdwg.mxu0
  %633 = vmatpush.bf16.msra.mxu0 %v193
  %634 = vmatpush.bf16.msra.mxu0 %v189
  %635 = vmatpush.bf16.msra.mxu0 %v185
  %636 = vmatpush.bf16.msra.mxu0 %v181
  %637 = vmatpush.bf16.msra.mxu0 %v177
  %638 = vmatpush.bf16.msra.mxu0 %v173
  %639 = vmatpush.bf16.msra.mxu0 %v169
  %640 = vmatpush.bf16.msra.mxu0 %v165
  %641 = vmatmul.bf16.gmra.mxu0 %v599
  %v642 = vpop.f32.mrf.mxu0
  %v643 = vadd.f32 0.0, %v642
  %v644 = vpop.f32.mrf.mxu0
  %645 = vdwg.mxu0
  %646 = vmatpush.bf16.msra.mxu0 %v194
  %647 = vmatpush.bf16.msra.mxu0 %v190
  %648 = vmatpush.bf16.msra.mxu0 %v186
  %649 = vmatpush.bf16.msra.mxu0 %v182
  %650 = vmatpush.bf16.msra.mxu0 %v178
  %651 = vmatpush.bf16.msra.mxu0 %v174
  %652 = vmatpush.bf16.msra.mxu0 %v170
  %653 = vmatpush.bf16.msra.mxu0 %v166
  %654 = vmatmul.bf16.gmra.mxu0 %v599
  %v655 = vpop.f32.mrf.mxu0
  %v656 = vadd.f32 0.0, %v655
  %v657 = vpop.f32.mrf.mxu0
  %658 = vdwg.mxu0
  %v659 = vadd.f32 %v603, %v617
  %v660 = vadd.f32 %v604, %v630
  %v661 = vadd.f32 %v605, %v643
  %v662 = vadd.f32 %v606, %v656
  %v663 = vxor.u32 %v659, 2147483648
  %v664 = vmul.f32 %v663, 1.442695
  %v665 = vpow.pop %v664
  %v666 = vadd.f32 %v665, 1.0
  %v667 = vrcp.pop %v666
  %v668 = vmul.f32 %v666, %v667
  %v669 = vsub.f32 1.0, %v668
  %v670 = vmul.f32 %v667, %v669
  %v671 = vadd.f32 %v667, %v670
  %vm672 = vweird.f32 %v666
  %vm673 = vweird.f32 %v667
  %vm674 = vmor %vm672, %vm673
  %v675 = vsel %vm674, %v667, %v671
  %v676 = vand.u32 2147483647, %v666
  %vm677 = vcmp.eq.f32.partialorder %v676, 8.507059e+37
  %v678 = vand.u32 %v666, 2147483648
  %v679 = vor.u32 1.1754944e-38, %v678
  %v680 = vsel %vm677, %v679, %v675
  %v681 = vmul.f32 1.0, %v680
  %v682 = vxor.u32 %v660, 2147483648
  %v683 = vmul.f32 %v682, 1.442695
  %v684 = vpow.pop %v683
  %v685 = vadd.f32 %v684, 1.0
  %v686 = vrcp.pop %v685
  %v687 = vmul.f32 %v685, %v686
  %v688 = vsub.f32 1.0, %v687
  %v689 = vmul.f32 %v686, %v688
  %v690 = vadd.f32 %v686, %v689
  %vm691 = vweird.f32 %v685
  %vm692 = vweird.f32 %v686
  %vm693 = vmor %vm691, %vm692
  %v694 = vsel %vm693, %v686, %v690
  %v695 = vand.u32 2147483647, %v685
  %vm696 = vcmp.eq.f32.partialorder %v695, 8.507059e+37
  %v697 = vand.u32 %v685, 2147483648
  %v698 = vor.u32 1.1754944e-38, %v697
  %v699 = vsel %vm696, %v698, %v694
  %v700 = vmul.f32 1.0, %v699
  %v701 = vtanh.pop %v661
  %v702 = vxor.u32 %v662, 2147483648
  %v703 = vmul.f32 %v702, 1.442695
  %v704 = vpow.pop %v703
  %v705 = vadd.f32 %v704, 1.0
  %v706 = vrcp.pop %v705
  %v707 = vmul.f32 %v705, %v706
  %v708 = vsub.f32 1.0, %v707
  %v709 = vmul.f32 %v706, %v708
  %v710 = vadd.f32 %v706, %v709
  %vm711 = vweird.f32 %v705
  %vm712 = vweird.f32 %v706
  %vm713 = vmor %vm711, %vm712
  %v714 = vsel %vm713, %v706, %v710
  %v715 = vand.u32 2147483647, %v705
  %vm716 = vcmp.eq.f32.partialorder %v715, 8.507059e+37
  %v717 = vand.u32 %v705, 2147483648
  %v718 = vor.u32 1.1754944e-38, %v717
  %v719 = vsel %vm716, %v718, %v714
  %v720 = vmul.f32 1.0, %v719
  %v721 = vmul.f32 %v700, %v596
  %v722 = vmul.f32 %v681, %v701
  %v723 = vadd.f32 %v721, %v722
  %v724 = vtanh.pop %v723
  %v725 = vmul.f32 %v720, %v724
  %v726 = vpack.c.bf16 %v725, %v725
  %s727 = scalar_lea.vmem %s4, 12
  %728 = vst [vmem:[%s727] sm:$0xf] %v726
  %s729 = scalar_lea.vmem %s0, 128
  %v730 = vld [vmem:[%s729] sm:$0xff]
  %v731 = vld [vmem:[%s729 + $0x8] sm:$0xff]
  %v732 = vld [vmem:[%s729 + $0x10] sm:$0xff]
  %v733 = vld [vmem:[%s729 + $0x18] sm:$0xff]
  %734 = vmatpush.bf16.msra.mxu0 %v191
  %735 = vmatpush.bf16.msra.mxu0 %v187
  %736 = vmatpush.bf16.msra.mxu0 %v183
  %737 = vmatpush.bf16.msra.mxu0 %v179
  %738 = vmatpush.bf16.msra.mxu0 %v175
  %739 = vmatpush.bf16.msra.mxu0 %v171
  %740 = vmatpush.bf16.msra.mxu0 %v167
  %741 = vmatpush.bf16.msra.mxu0 %v163
  %742 = vmatmul.bf16.gmra.mxu0 %v726
  %v743 = vpop.f32.mrf.mxu0
  %v744 = vadd.f32 0.0, %v743
  %v745 = vpop.f32.mrf.mxu0
  %746 = vdwg.mxu0
  %747 = vmatpush.bf16.msra.mxu0 %v192
  %748 = vmatpush.bf16.msra.mxu0 %v188
  %749 = vmatpush.bf16.msra.mxu0 %v184
  %750 = vmatpush.bf16.msra.mxu0 %v180
  %751 = vmatpush.bf16.msra.mxu0 %v176
  %752 = vmatpush.bf16.msra.mxu0 %v172
  %753 = vmatpush.bf16.msra.mxu0 %v168
  %754 = vmatpush.bf16.msra.mxu0 %v164
  %755 = vmatmul.bf16.gmra.mxu0 %v726
  %v756 = vpop.f32.mrf.mxu0
  %v757 = vadd.f32 0.0, %v756
  %v758 = vpop.f32.mrf.mxu0
  %759 = vdwg.mxu0
  %760 = vmatpush.bf16.msra.mxu0 %v193
  %761 = vmatpush.bf16.msra.mxu0 %v189
  %762 = vmatpush.bf16.msra.mxu0 %v185
  %763 = vmatpush.bf16.msra.mxu0 %v181
  %764 = vmatpush.bf16.msra.mxu0 %v177
  %765 = vmatpush.bf16.msra.mxu0 %v173
  %766 = vmatpush.bf16.msra.mxu0 %v169
  %767 = vmatpush.bf16.msra.mxu0 %v165
  %768 = vmatmul.bf16.gmra.mxu0 %v726
  %v769 = vpop.f32.mrf.mxu0
  %v770 = vadd.f32 0.0, %v769
  %v771 = vpop.f32.mrf.mxu0
  %772 = vdwg.mxu0
  %773 = vmatpush.bf16.msra.mxu0 %v194
  %774 = vmatpush.bf16.msra.mxu0 %v190
  %775 = vmatpush.bf16.msra.mxu0 %v186
  %776 = vmatpush.bf16.msra.mxu0 %v182
  %777 = vmatpush.bf16.msra.mxu0 %v178
  %778 = vmatpush.bf16.msra.mxu0 %v174
  %779 = vmatpush.bf16.msra.mxu0 %v170
  %780 = vmatpush.bf16.msra.mxu0 %v166
  %781 = vmatmul.bf16.gmra.mxu0 %v726
  %v782 = vpop.f32.mrf.mxu0
  %v783 = vadd.f32 0.0, %v782
  %v784 = vpop.f32.mrf.mxu0
  %785 = vdwg.mxu0
  %v786 = vadd.f32 %v730, %v744
  %v787 = vadd.f32 %v731, %v757
  %v788 = vadd.f32 %v732, %v770
  %v789 = vadd.f32 %v733, %v783
  %v790 = vxor.u32 %v786, 2147483648
  %v791 = vmul.f32 %v790, 1.442695
  %v792 = vpow.pop %v791
  %v793 = vadd.f32 %v792, 1.0
  %v794 = vrcp.pop %v793
  %v795 = vmul.f32 %v793, %v794
  %v796 = vsub.f32 1.0, %v795
  %v797 = vmul.f32 %v794, %v796
  %v798 = vadd.f32 %v794, %v797
  %vm799 = vweird.f32 %v793
  %vm800 = vweird.f32 %v794
  %vm801 = vmor %vm799, %vm800
  %v802 = vsel %vm801, %v794, %v798
  %v803 = vand.u32 2147483647, %v793
  %vm804 = vcmp.eq.f32.partialorder %v803, 8.507059e+37
  %v805 = vand.u32 %v793, 2147483648
  %v806 = vor.u32 1.1754944e-38, %v805
  %v807 = vsel %vm804, %v806, %v802
  %v808 = vmul.f32 1.0, %v807
  %v809 = vxor.u32 %v787, 2147483648
  %v810 = vmul.f32 %v809, 1.442695
  %v811 = vpow.pop %v810
  %v812 = vadd.f32 %v811, 1.0
  %v813 = vrcp.pop %v812
  %v814 = vmul.f32 %v812, %v813
  %v815 = vsub.f32 1.0, %v814
  %v816 = vmul.f32 %v813, %v815
  %v817 = vadd.f32 %v813, %v816
  %vm818 = vweird.f32 %v812
  %vm819 = vweird.f32 %v813
  %vm820 = vmor %vm818, %vm819
  %v821 = vsel %vm820, %v813, %v817
  %v822 = vand.u32 2147483647, %v812
  %vm823 = vcmp.eq.f32.partialorder %v822, 8.507059e+37
  %v824 = vand.u32 %v812, 2147483648
  %v825 = vor.u32 1.1754944e-38, %v824
  %v826 = vsel %vm823, %v825, %v821
  %v827 = vmul.f32 1.0, %v826
  %v828 = vtanh.pop %v788
  %v829 = vxor.u32 %v789, 2147483648
  %v830 = vmul.f32 %v829, 1.442695
  %v831 = vpow.pop %v830
  %v832 = vadd.f32 %v831, 1.0
  %v833 = vrcp.pop %v832
  %v834 = vmul.f32 %v832, %v833
  %v835 = vsub.f32 1.0, %v834
  %v836 = vmul.f32 %v833, %v835
  %v837 = vadd.f32 %v833, %v836
  %vm838 = vweird.f32 %v832
  %vm839 = vweird.f32 %v833
  %vm840 = vmor %vm838, %vm839
  %v841 = vsel %vm840, %v833, %v837
  %v842 = vand.u32 2147483647, %v832
  %vm843 = vcmp.eq.f32.partialorder %v842, 8.507059e+37
  %v844 = vand.u32 %v832, 2147483648
  %v845 = vor.u32 1.1754944e-38, %v844
  %v846 = vsel %vm843, %v845, %v841
  %v847 = vmul.f32 1.0, %v846
  %v848 = vmul.f32 %v827, %v723
  %v849 = vmul.f32 %v808, %v828
  %v850 = vadd.f32 %v848, %v849
  %v851 = vtanh.pop %v850
  %v852 = vmul.f32 %v847, %v851
  %v853 = vpack.c.bf16 %v852, %v852
  %s854 = scalar_lea.vmem %s4, 16
  %855 = vst [vmem:[%s854] sm:$0xf] %v853
  %s856 = scalar_lea.vmem %s0, 160
  %v857 = vld [vmem:[%s856] sm:$0xff]
  %v858 = vld [vmem:[%s856 + $0x8] sm:$0xff]
  %v859 = vld [vmem:[%s856 + $0x10] sm:$0xff]
  %v860 = vld [vmem:[%s856 + $0x18] sm:$0xff]
  %861 = vmatpush.bf16.msra.mxu0 %v191
  %862 = vmatpush.bf16.msra.mxu0 %v187
  %863 = vmatpush.bf16.msra.mxu0 %v183
  %864 = vmatpush.bf16.msra.mxu0 %v179
  %865 = vmatpush.bf16.msra.mxu0 %v175
  %866 = vmatpush.bf16.msra.mxu0 %v171
  %867 = vmatpush.bf16.msra.mxu0 %v167
  %868 = vmatpush.bf16.msra.mxu0 %v163
  %869 = vmatmul.bf16.gmra.mxu0 %v853
  %v870 = vpop.f32.mrf.mxu0
  %v871 = vadd.f32 0.0, %v870
  %v872 = vpop.f32.mrf.mxu0
  %873 = vdwg.mxu0
  %874 = vmatpush.bf16.msra.mxu0 %v192
  %875 = vmatpush.bf16.msra.mxu0 %v188
  %876 = vmatpush.bf16.msra.mxu0 %v184
  %877 = vmatpush.bf16.msra.mxu0 %v180
  %878 = vmatpush.bf16.msra.mxu0 %v176
  %879 = vmatpush.bf16.msra.mxu0 %v172
  %880 = vmatpush.bf16.msra.mxu0 %v168
  %881 = vmatpush.bf16.msra.mxu0 %v164
  %882 = vmatmul.bf16.gmra.mxu0 %v853
  %v883 = vpop.f32.mrf.mxu0
  %v884 = vadd.f32 0.0, %v883
  %v885 = vpop.f32.mrf.mxu0
  %886 = vdwg.mxu0
  %887 = vmatpush.bf16.msra.mxu0 %v193
  %888 = vmatpush.bf16.msra.mxu0 %v189
  %889 = vmatpush.bf16.msra.mxu0 %v185
  %890 = vmatpush.bf16.msra.mxu0 %v181
  %891 = vmatpush.bf16.msra.mxu0 %v177
  %892 = vmatpush.bf16.msra.mxu0 %v173
  %893 = vmatpush.bf16.msra.mxu0 %v169
  %894 = vmatpush.bf16.msra.mxu0 %v165
  %895 = vmatmul.bf16.gmra.mxu0 %v853
  %v896 = vpop.f32.mrf.mxu0
  %v897 = vadd.f32 0.0, %v896
  %v898 = vpop.f32.mrf.mxu0
  %899 = vdwg.mxu0
  %900 = vmatpush.bf16.msra.mxu0 %v194
  %901 = vmatpush.bf16.msra.mxu0 %v190
  %902 = vmatpush.bf16.msra.mxu0 %v186
  %903 = vmatpush.bf16.msra.mxu0 %v182
  %904 = vmatpush.bf16.msra.mxu0 %v178
  %905 = vmatpush.bf16.msra.mxu0 %v174
  %906 = vmatpush.bf16.msra.mxu0 %v170
  %907 = vmatpush.bf16.msra.mxu0 %v166
  %908 = vmatmul.bf16.gmra.mxu0 %v853
  %v909 = vpop.f32.mrf.mxu0
  %v910 = vadd.f32 0.0, %v909
  %v911 = vpop.f32.mrf.mxu0
  %912 = vdwg.mxu0
  %v913 = vadd.f32 %v857, %v871
  %v914 = vadd.f32 %v858, %v884
  %v915 = vadd.f32 %v859, %v897
  %v916 = vadd.f32 %v860, %v910
  %v917 = vxor.u32 %v913, 2147483648
  %v918 = vmul.f32 %v917, 1.442695
  %v919 = vpow.pop %v918
  %v920 = vadd.f32 %v919, 1.0
  %v921 = vrcp.pop %v920
  %v922 = vmul.f32 %v920, %v921
  %v923 = vsub.f32 1.0, %v922
  %v924 = vmul.f32 %v921, %v923
  %v925 = vadd.f32 %v921, %v924
  %vm926 = vweird.f32 %v920
  %vm927 = vweird.f32 %v921
  %vm928 = vmor %vm926, %vm927
  %v929 = vsel %vm928, %v921, %v925
  %v930 = vand.u32 2147483647, %v920
  %vm931 = vcmp.eq.f32.partialorder %v930, 8.507059e+37
  %v932 = vand.u32 %v920, 2147483648
  %v933 = vor.u32 1.1754944e-38, %v932
  %v934 = vsel %vm931, %v933, %v929
  %v935 = vmul.f32 1.0, %v934
  %v936 = vxor.u32 %v914, 2147483648
  %v937 = vmul.f32 %v936, 1.442695
  %v938 = vpow.pop %v937
  %v939 = vadd.f32 %v938, 1.0
  %v940 = vrcp.pop %v939
  %v941 = vmul.f32 %v939, %v940
  %v942 = vsub.f32 1.0, %v941
  %v943 = vmul.f32 %v940, %v942
  %v944 = vadd.f32 %v940, %v943
  %vm945 = vweird.f32 %v939
  %vm946 = vweird.f32 %v940
  %vm947 = vmor %vm945, %vm946
  %v948 = vsel %vm947, %v940, %v944
  %v949 = vand.u32 2147483647, %v939
  %vm950 = vcmp.eq.f32.partialorder %v949, 8.507059e+37
  %v951 = vand.u32 %v939, 2147483648
  %v952 = vor.u32 1.1754944e-38, %v951
  %v953 = vsel %vm950, %v952, %v948
  %v954 = vmul.f32 1.0, %v953
  %v955 = vtanh.pop %v915
  %v956 = vxor.u32 %v916, 2147483648
  %v957 = vmul.f32 %v956, 1.442695
  %v958 = vpow.pop %v957
  %v959 = vadd.f32 %v958, 1.0
  %v960 = vrcp.pop %v959
  %v961 = vmul.f32 %v959, %v960
  %v962 = vsub.f32 1.0, %v961
  %v963 = vmul.f32 %v960, %v962
  %v964 = vadd.f32 %v960, %v963
  %vm965 = vweird.f32 %v959
  %vm966 = vweird.f32 %v960
  %vm967 = vmor %vm965, %vm966
  %v968 = vsel %vm967, %v960, %v964
  %v969 = vand.u32 2147483647, %v959
  %vm970 = vcmp.eq.f32.partialorder %v969, 8.507059e+37
  %v971 = vand.u32 %v959, 2147483648
  %v972 = vor.u32 1.1754944e-38, %v971
  %v973 = vsel %vm970, %v972, %v968
  %v974 = vmul.f32 1.0, %v973
  %v975 = vmul.f32 %v954, %v850
  %v976 = vmul.f32 %v935, %v955
  %v977 = vadd.f32 %v975, %v976
  %v978 = vtanh.pop %v977
  %v979 = vmul.f32 %v974, %v978
  %v980 = vpack.c.bf16 %v979, %v979
  %s981 = scalar_lea.vmem %s4, 20
  %982 = vst [vmem:[%s981] sm:$0xf] %v980
  %s983 = scalar_lea.vmem %s0, 192
  %v984 = vld [vmem:[%s983] sm:$0xff]
  %v985 = vld [vmem:[%s983 + $0x8] sm:$0xff]
  %v986 = vld [vmem:[%s983 + $0x10] sm:$0xff]
  %v987 = vld [vmem:[%s983 + $0x18] sm:$0xff]
  %988 = vmatpush.bf16.msra.mxu0 %v191
  %989 = vmatpush.bf16.msra.mxu0 %v187
  %990 = vmatpush.bf16.msra.mxu0 %v183
  %991 = vmatpush.bf16.msra.mxu0 %v179
  %992 = vmatpush.bf16.msra.mxu0 %v175
  %993 = vmatpush.bf16.msra.mxu0 %v171
  %994 = vmatpush.bf16.msra.mxu0 %v167
  %995 = vmatpush.bf16.msra.mxu0 %v163
  %996 = vmatmul.bf16.gmra.mxu0 %v980
  %v997 = vpop.f32.mrf.mxu0
  %v998 = vadd.f32 0.0, %v997
  %v999 = vpop.f32.mrf.mxu0
  %1000 = vdwg.mxu0
  %1001 = vmatpush.bf16.msra.mxu0 %v192
  %1002 = vmatpush.bf16.msra.mxu0 %v188
  %1003 = vmatpush.bf16.msra.mxu0 %v184
  %1004 = vmatpush.bf16.msra.mxu0 %v180
  %1005 = vmatpush.bf16.msra.mxu0 %v176
  %1006 = vmatpush.bf16.msra.mxu0 %v172
  %1007 = vmatpush.bf16.msra.mxu0 %v168
  %1008 = vmatpush.bf16.msra.mxu0 %v164
  %1009 = vmatmul.bf16.gmra.mxu0 %v980
  %v1010 = vpop.f32.mrf.mxu0
  %v1011 = vadd.f32 0.0, %v1010
  %v1012 = vpop.f32.mrf.mxu0
  %1013 = vdwg.mxu0
  %1014 = vmatpush.bf16.msra.mxu0 %v193
  %1015 = vmatpush.bf16.msra.mxu0 %v189
  %1016 = vmatpush.bf16.msra.mxu0 %v185
  %1017 = vmatpush.bf16.msra.mxu0 %v181
  %1018 = vmatpush.bf16.msra.mxu0 %v177
  %1019 = vmatpush.bf16.msra.mxu0 %v173
  %1020 = vmatpush.bf16.msra.mxu0 %v169
  %1021 = vmatpush.bf16.msra.mxu0 %v165
  %1022 = vmatmul.bf16.gmra.mxu0 %v980
  %v1023 = vpop.f32.mrf.mxu0
  %v1024 = vadd.f32 0.0, %v1023
  %v1025 = vpop.f32.mrf.mxu0
  %1026 = vdwg.mxu0
  %1027 = vmatpush.bf16.msra.mxu0 %v194
  %1028 = vmatpush.bf16.msra.mxu0 %v190
  %1029 = vmatpush.bf16.msra.mxu0 %v186
  %1030 = vmatpush.bf16.msra.mxu0 %v182
  %1031 = vmatpush.bf16.msra.mxu0 %v178
  %1032 = vmatpush.bf16.msra.mxu0 %v174
  %1033 = vmatpush.bf16.msra.mxu0 %v170
  %1034 = vmatpush.bf16.msra.mxu0 %v166
  %1035 = vmatmul.bf16.gmra.mxu0 %v980
  %v1036 = vpop.f32.mrf.mxu0
  %v1037 = vadd.f32 0.0, %v1036
  %v1038 = vpop.f32.mrf.mxu0
  %1039 = vdwg.mxu0
  %v1040 = vadd.f32 %v984, %v998
  %v1041 = vadd.f32 %v985, %v1011
  %v1042 = vadd.f32 %v986, %v1024
  %v1043 = vadd.f32 %v987, %v1037
  %v1044 = vxor.u32 %v1040, 2147483648
  %v1045 = vmul.f32 %v1044, 1.442695
  %v1046 = vpow.pop %v1045
  %v1047 = vadd.f32 %v1046, 1.0
  %v1048 = vrcp.pop %v1047
  %v1049 = vmul.f32 %v1047, %v1048
  %v1050 = vsub.f32 1.0, %v1049
  %v1051 = vmul.f32 %v1048, %v1050
  %v1052 = vadd.f32 %v1048, %v1051
  %vm1053 = vweird.f32 %v1047
  %vm1054 = vweird.f32 %v1048
  %vm1055 = vmor %vm1053, %vm1054
  %v1056 = vsel %vm1055, %v1048, %v1052
  %v1057 = vand.u32 2147483647, %v1047
  %vm1058 = vcmp.eq.f32.partialorder %v1057, 8.507059e+37
  %v1059 = vand.u32 %v1047, 2147483648
  %v1060 = vor.u32 1.1754944e-38, %v1059
  %v1061 = vsel %vm1058, %v1060, %v1056
  %v1062 = vmul.f32 1.0, %v1061
  %v1063 = vxor.u32 %v1041, 2147483648
  %v1064 = vmul.f32 %v1063, 1.442695
  %v1065 = vpow.pop %v1064
  %v1066 = vadd.f32 %v1065, 1.0
  %v1067 = vrcp.pop %v1066
  %v1068 = vmul.f32 %v1066, %v1067
  %v1069 = vsub.f32 1.0, %v1068
  %v1070 = vmul.f32 %v1067, %v1069
  %v1071 = vadd.f32 %v1067, %v1070
  %vm1072 = vweird.f32 %v1066
  %vm1073 = vweird.f32 %v1067
  %vm1074 = vmor %vm1072, %vm1073
  %v1075 = vsel %vm1074, %v1067, %v1071
  %v1076 = vand.u32 2147483647, %v1066
  %vm1077 = vcmp.eq.f32.partialorder %v1076, 8.507059e+37
  %v1078 = vand.u32 %v1066, 2147483648
  %v1079 = vor.u32 1.1754944e-38, %v1078
  %v1080 = vsel %vm1077, %v1079, %v1075
  %v1081 = vmul.f32 1.0, %v1080
  %v1082 = vtanh.pop %v1042
  %v1083 = vxor.u32 %v1043, 2147483648
  %v1084 = vmul.f32 %v1083, 1.442695
  %v1085 = vpow.pop %v1084
  %v1086 = vadd.f32 %v1085, 1.0
  %v1087 = vrcp.pop %v1086
  %v1088 = vmul.f32 %v1086, %v1087
  %v1089 = vsub.f32 1.0, %v1088
  %v1090 = vmul.f32 %v1087, %v1089
  %v1091 = vadd.f32 %v1087, %v1090
  %vm1092 = vweird.f32 %v1086
  %vm1093 = vweird.f32 %v1087
  %vm1094 = vmor %vm1092, %vm1093
  %v1095 = vsel %vm1094, %v1087, %v1091
  %v1096 = vand.u32 2147483647, %v1086
  %vm1097 = vcmp.eq.f32.partialorder %v1096, 8.507059e+37
  %v1098 = vand.u32 %v1086, 2147483648
  %v1099 = vor.u32 1.1754944e-38, %v1098
  %v1100 = vsel %vm1097, %v1099, %v1095
  %v1101 = vmul.f32 1.0, %v1100
  %v1102 = vmul.f32 %v1081, %v977
  %v1103 = vmul.f32 %v1062, %v1082
  %v1104 = vadd.f32 %v1102, %v1103
  %v1105 = vtanh.pop %v1104
  %v1106 = vmul.f32 %v1101, %v1105
  %v1107 = vpack.c.bf16 %v1106, %v1106
  %s1108 = scalar_lea.vmem %s4, 24
  %1109 = vst [vmem:[%s1108] sm:$0xf] %v1107
  %s1110 = scalar_lea.vmem %s0, 224
  %v1111 = vld [vmem:[%s1110] sm:$0xff]
  %v1112 = vld [vmem:[%s1110 + $0x8] sm:$0xff]
  %v1113 = vld [vmem:[%s1110 + $0x10] sm:$0xff]
  %v1114 = vld [vmem:[%s1110 + $0x18] sm:$0xff]
  %1115 = vmatpush.bf16.msra.mxu0 %v191
  %1116 = vmatpush.bf16.msra.mxu0 %v187
  %1117 = vmatpush.bf16.msra.mxu0 %v183
  %1118 = vmatpush.bf16.msra.mxu0 %v179
  %1119 = vmatpush.bf16.msra.mxu0 %v175
  %1120 = vmatpush.bf16.msra.mxu0 %v171
  %1121 = vmatpush.bf16.msra.mxu0 %v167
  %1122 = vmatpush.bf16.msra.mxu0 %v163
  %1123 = vmatmul.bf16.gmra.mxu0 %v1107
  %v1124 = vpop.f32.mrf.mxu0
  %v1125 = vadd.f32 0.0, %v1124
  %v1126 = vpop.f32.mrf.mxu0
  %1127 = vdwg.mxu0
  %1128 = vmatpush.bf16.msra.mxu0 %v192
  %1129 = vmatpush.bf16.msra.mxu0 %v188
  %1130 = vmatpush.bf16.msra.mxu0 %v184
  %1131 = vmatpush.bf16.msra.mxu0 %v180
  %1132 = vmatpush.bf16.msra.mxu0 %v176
  %1133 = vmatpush.bf16.msra.mxu0 %v172
  %1134 = vmatpush.bf16.msra.mxu0 %v168
  %1135 = vmatpush.bf16.msra.mxu0 %v164
  %1136 = vmatmul.bf16.gmra.mxu0 %v1107
  %v1137 = vpop.f32.mrf.mxu0
  %v1138 = vadd.f32 0.0, %v1137
  %v1139 = vpop.f32.mrf.mxu0
  %1140 = vdwg.mxu0
  %1141 = vmatpush.bf16.msra.mxu0 %v193
  %1142 = vmatpush.bf16.msra.mxu0 %v189
  %1143 = vmatpush.bf16.msra.mxu0 %v185
  %1144 = vmatpush.bf16.msra.mxu0 %v181
  %1145 = vmatpush.bf16.msra.mxu0 %v177
  %1146 = vmatpush.bf16.msra.mxu0 %v173
  %1147 = vmatpush.bf16.msra.mxu0 %v169
  %1148 = vmatpush.bf16.msra.mxu0 %v165
  %1149 = vmatmul.bf16.gmra.mxu0 %v1107
  %v1150 = vpop.f32.mrf.mxu0
  %v1151 = vadd.f32 0.0, %v1150
  %v1152 = vpop.f32.mrf.mxu0
  %1153 = vdwg.mxu0
  %1154 = vmatpush.bf16.msra.mxu0 %v194
  %1155 = vmatpush.bf16.msra.mxu0 %v190
  %1156 = vmatpush.bf16.msra.mxu0 %v186
  %1157 = vmatpush.bf16.msra.mxu0 %v182
  %1158 = vmatpush.bf16.msra.mxu0 %v178
  %1159 = vmatpush.bf16.msra.mxu0 %v174
  %1160 = vmatpush.bf16.msra.mxu0 %v170
  %1161 = vmatpush.bf16.msra.mxu0 %v166
  %1162 = vmatmul.bf16.gmra.mxu0 %v1107
  %v1163 = vpop.f32.mrf.mxu0
  %v1164 = vadd.f32 0.0, %v1163
  %v1165 = vpop.f32.mrf.mxu0
  %1166 = vdwg.mxu0
  %v1167 = vadd.f32 %v1111, %v1125
  %v1168 = vadd.f32 %v1112, %v1138
  %v1169 = vadd.f32 %v1113, %v1151
  %v1170 = vadd.f32 %v1114, %v1164
  %v1171 = vxor.u32 %v1167, 2147483648
  %v1172 = vmul.f32 %v1171, 1.442695
  %v1173 = vpow.pop %v1172
  %v1174 = vadd.f32 %v1173, 1.0
  %v1175 = vrcp.pop %v1174
  %v1176 = vmul.f32 %v1174, %v1175
  %v1177 = vsub.f32 1.0, %v1176
  %v1178 = vmul.f32 %v1175, %v1177
  %v1179 = vadd.f32 %v1175, %v1178
  %vm1180 = vweird.f32 %v1174
  %vm1181 = vweird.f32 %v1175
  %vm1182 = vmor %vm1180, %vm1181
  %v1183 = vsel %vm1182, %v1175, %v1179
  %v1184 = vand.u32 2147483647, %v1174
  %vm1185 = vcmp.eq.f32.partialorder %v1184, 8.507059e+37
  %v1186 = vand.u32 %v1174, 2147483648
  %v1187 = vor.u32 1.1754944e-38, %v1186
  %v1188 = vsel %vm1185, %v1187, %v1183
  %v1189 = vmul.f32 1.0, %v1188
  %v1190 = vxor.u32 %v1168, 2147483648
  %v1191 = vmul.f32 %v1190, 1.442695
  %v1192 = vpow.pop %v1191
  %v1193 = vadd.f32 %v1192, 1.0
  %v1194 = vrcp.pop %v1193
  %v1195 = vmul.f32 %v1193, %v1194
  %v1196 = vsub.f32 1.0, %v1195
  %v1197 = vmul.f32 %v1194, %v1196
  %v1198 = vadd.f32 %v1194, %v1197
  %vm1199 = vweird.f32 %v1193
  %vm1200 = vweird.f32 %v1194
  %vm1201 = vmor %vm1199, %vm1200
  %v1202 = vsel %vm1201, %v1194, %v1198
  %v1203 = vand.u32 2147483647, %v1193
  %vm1204 = vcmp.eq.f32.partialorder %v1203, 8.507059e+37
  %v1205 = vand.u32 %v1193, 2147483648
  %v1206 = vor.u32 1.1754944e-38, %v1205
  %v1207 = vsel %vm1204, %v1206, %v1202
  %v1208 = vmul.f32 1.0, %v1207
  %v1209 = vtanh.pop %v1169
  %v1210 = vxor.u32 %v1170, 2147483648
  %v1211 = vmul.f32 %v1210, 1.442695
  %v1212 = vpow.pop %v1211
  %v1213 = vadd.f32 %v1212, 1.0
  %v1214 = vrcp.pop %v1213
  %v1215 = vmul.f32 %v1213, %v1214
  %v1216 = vsub.f32 1.0, %v1215
  %v1217 = vmul.f32 %v1214, %v1216
  %v1218 = vadd.f32 %v1214, %v1217
  %vm1219 = vweird.f32 %v1213
  %vm1220 = vweird.f32 %v1214
  %vm1221 = vmor %vm1219, %vm1220
  %v1222 = vsel %vm1221, %v1214, %v1218
  %v1223 = vand.u32 2147483647, %v1213
  %vm1224 = vcmp.eq.f32.partialorder %v1223, 8.507059e+37
  %v1225 = vand.u32 %v1213, 2147483648
  %v1226 = vor.u32 1.1754944e-38, %v1225
  %v1227 = vsel %vm1224, %v1226, %v1222
  %v1228 = vmul.f32 1.0, %v1227
  %v1229 = vmul.f32 %v1208, %v1104
  %v1230 = vmul.f32 %v1189, %v1209
  %v1231 = vadd.f32 %v1229, %v1230
  %v1232 = vtanh.pop %v1231
  %v1233 = vmul.f32 %v1228, %v1232
  %v1234 = vpack.c.bf16 %v1233, %v1233
  %s1235 = scalar_lea.vmem %s4, 28
  %1236 = vst [vmem:[%s1235] sm:$0xf] %v1234
  %s1237 = scalar_lea.vmem %s0, 256
  %v1238 = vld [vmem:[%s1237] sm:$0xff]
  %v1239 = vld [vmem:[%s1237 + $0x8] sm:$0xff]
  %v1240 = vld [vmem:[%s1237 + $0x10] sm:$0xff]
  %v1241 = vld [vmem:[%s1237 + $0x18] sm:$0xff]
  %1242 = vmatpush.bf16.msra.mxu0 %v191
  %1243 = vmatpush.bf16.msra.mxu0 %v187
  %1244 = vmatpush.bf16.msra.mxu0 %v183
  %1245 = vmatpush.bf16.msra.mxu0 %v179
  %1246 = vmatpush.bf16.msra.mxu0 %v175
  %1247 = vmatpush.bf16.msra.mxu0 %v171
  %1248 = vmatpush.bf16.msra.mxu0 %v167
  %1249 = vmatpush.bf16.msra.mxu0 %v163
  %1250 = vmatmul.bf16.gmra.mxu0 %v1234
  %v1251 = vpop.f32.mrf.mxu0
  %v1252 = vadd.f32 0.0, %v1251
  %v1253 = vpop.f32.mrf.mxu0
  %1254 = vdwg.mxu0
  %1255 = vmatpush.bf16.msra.mxu0 %v192
  %1256 = vmatpush.bf16.msra.mxu0 %v188
  %1257 = vmatpush.bf16.msra.mxu0 %v184
  %1258 = vmatpush.bf16.msra.mxu0 %v180
  %1259 = vmatpush.bf16.msra.mxu0 %v176
  %1260 = vmatpush.bf16.msra.mxu0 %v172
  %1261 = vmatpush.bf16.msra.mxu0 %v168
  %1262 = vmatpush.bf16.msra.mxu0 %v164
  %1263 = vmatmul.bf16.gmra.mxu0 %v1234
  %v1264 = vpop.f32.mrf.mxu0
  %v1265 = vadd.f32 0.0, %v1264
  %v1266 = vpop.f32.mrf.mxu0
  %1267 = vdwg.mxu0
  %1268 = vmatpush.bf16.msra.mxu0 %v193
  %1269 = vmatpush.bf16.msra.mxu0 %v189
  %1270 = vmatpush.bf16.msra.mxu0 %v185
  %1271 = vmatpush.bf16.msra.mxu0 %v181
  %1272 = vmatpush.bf16.msra.mxu0 %v177
  %1273 = vmatpush.bf16.msra.mxu0 %v173
  %1274 = vmatpush.bf16.msra.mxu0 %v169
  %1275 = vmatpush.bf16.msra.mxu0 %v165
  %1276 = vmatmul.bf16.gmra.mxu0 %v1234
  %v1277 = vpop.f32.mrf.mxu0
  %v1278 = vadd.f32 0.0, %v1277
  %v1279 = vpop.f32.mrf.mxu0
  %1280 = vdwg.mxu0
  %1281 = vmatpush.bf16.msra.mxu0 %v194
  %1282 = vmatpush.bf16.msra.mxu0 %v190
  %1283 = vmatpush.bf16.msra.mxu0 %v186
  %1284 = vmatpush.bf16.msra.mxu0 %v182
  %1285 = vmatpush.bf16.msra.mxu0 %v178
  %1286 = vmatpush.bf16.msra.mxu0 %v174
  %1287 = vmatpush.bf16.msra.mxu0 %v170
  %1288 = vmatpush.bf16.msra.mxu0 %v166
  %1289 = vmatmul.bf16.gmra.mxu0 %v1234
  %v1290 = vpop.f32.mrf.mxu0
  %v1291 = vadd.f32 0.0, %v1290
  %v1292 = vpop.f32.mrf.mxu0
  %1293 = vdwg.mxu0
  %v1294 = vadd.f32 %v1238, %v1252
  %v1295 = vadd.f32 %v1239, %v1265
  %v1296 = vadd.f32 %v1240, %v1278
  %v1297 = vadd.f32 %v1241, %v1291
  %v1298 = vxor.u32 %v1294, 2147483648
  %v1299 = vmul.f32 %v1298, 1.442695
  %v1300 = vpow.pop %v1299
  %v1301 = vadd.f32 %v1300, 1.0
  %v1302 = vrcp.pop %v1301
  %v1303 = vmul.f32 %v1301, %v1302
  %v1304 = vsub.f32 1.0, %v1303
  %v1305 = vmul.f32 %v1302, %v1304
  %v1306 = vadd.f32 %v1302, %v1305
  %vm1307 = vweird.f32 %v1301
  %vm1308 = vweird.f32 %v1302
  %vm1309 = vmor %vm1307, %vm1308
  %v1310 = vsel %vm1309, %v1302, %v1306
  %v1311 = vand.u32 2147483647, %v1301
  %vm1312 = vcmp.eq.f32.partialorder %v1311, 8.507059e+37
  %v1313 = vand.u32 %v1301, 2147483648
  %v1314 = vor.u32 1.1754944e-38, %v1313
  %v1315 = vsel %vm1312, %v1314, %v1310
  %v1316 = vmul.f32 1.0, %v1315
  %v1317 = vxor.u32 %v1295, 2147483648
  %v1318 = vmul.f32 %v1317, 1.442695
  %v1319 = vpow.pop %v1318
  %v1320 = vadd.f32 %v1319, 1.0
  %v1321 = vrcp.pop %v1320
  %v1322 = vmul.f32 %v1320, %v1321
  %v1323 = vsub.f32 1.0, %v1322
  %v1324 = vmul.f32 %v1321, %v1323
  %v1325 = vadd.f32 %v1321, %v1324
  %vm1326 = vweird.f32 %v1320
  %vm1327 = vweird.f32 %v1321
  %vm1328 = vmor %vm1326, %vm1327
  %v1329 = vsel %vm1328, %v1321, %v1325
  %v1330 = vand.u32 2147483647, %v1320
  %vm1331 = vcmp.eq.f32.partialorder %v1330, 8.507059e+37
  %v1332 = vand.u32 %v1320, 2147483648
  %v1333 = vor.u32 1.1754944e-38, %v1332
  %v1334 = vsel %vm1331, %v1333, %v1329
  %v1335 = vmul.f32 1.0, %v1334
  %v1336 = vtanh.pop %v1296
  %v1337 = vxor.u32 %v1297, 2147483648
  %v1338 = vmul.f32 %v1337, 1.442695
  %v1339 = vpow.pop %v1338
  %v1340 = vadd.f32 %v1339, 1.0
  %v1341 = vrcp.pop %v1340
  %v1342 = vmul.f32 %v1340, %v1341
  %v1343 = vsub.f32 1.0, %v1342
  %v1344 = vmul.f32 %v1341, %v1343
  %v1345 = vadd.f32 %v1341, %v1344
  %vm1346 = vweird.f32 %v1340
  %vm1347 = vweird.f32 %v1341
  %vm1348 = vmor %vm1346, %vm1347
  %v1349 = vsel %vm1348, %v1341, %v1345
  %v1350 = vand.u32 2147483647, %v1340
  %vm1351 = vcmp.eq.f32.partialorder %v1350, 8.507059e+37
  %v1352 = vand.u32 %v1340, 2147483648
  %v1353 = vor.u32 1.1754944e-38, %v1352
  %v1354 = vsel %vm1351, %v1353, %v1349
  %v1355 = vmul.f32 1.0, %v1354
  %v1356 = vmul.f32 %v1335, %v1231
  %v1357 = vmul.f32 %v1316, %v1336
  %v1358 = vadd.f32 %v1356, %v1357
  %v1359 = vtanh.pop %v1358
  %v1360 = vmul.f32 %v1355, %v1359
  %v1361 = vpack.c.bf16 %v1360, %v1360
  %s1362 = scalar_lea.vmem %s4, 32
  %1363 = vst [vmem:[%s1362] sm:$0xf] %v1361
  %s1364 = scalar_lea.vmem %s0, 288
  %v1365 = vld [vmem:[%s1364] sm:$0xff]
  %v1366 = vld [vmem:[%s1364 + $0x8] sm:$0xff]
  %v1367 = vld [vmem:[%s1364 + $0x10] sm:$0xff]
  %v1368 = vld [vmem:[%s1364 + $0x18] sm:$0xff]
  %1369 = vmatpush.bf16.msra.mxu0 %v191
  %1370 = vmatpush.bf16.msra.mxu0 %v187
  %1371 = vmatpush.bf16.msra.mxu0 %v183
  %1372 = vmatpush.bf16.msra.mxu0 %v179
  %1373 = vmatpush.bf16.msra.mxu0 %v175
  %1374 = vmatpush.bf16.msra.mxu0 %v171
  %1375 = vmatpush.bf16.msra.mxu0 %v167
  %1376 = vmatpush.bf16.msra.mxu0 %v163
  %1377 = vmatmul.bf16.gmra.mxu0 %v1361
  %v1378 = vpop.f32.mrf.mxu0
  %v1379 = vadd.f32 0.0, %v1378
  %v1380 = vpop.f32.mrf.mxu0
  %1381 = vdwg.mxu0
  %1382 = vmatpush.bf16.msra.mxu0 %v192
  %1383 = vmatpush.bf16.msra.mxu0 %v188
  %1384 = vmatpush.bf16.msra.mxu0 %v184
  %1385 = vmatpush.bf16.msra.mxu0 %v180
  %1386 = vmatpush.bf16.msra.mxu0 %v176
  %1387 = vmatpush.bf16.msra.mxu0 %v172
  %1388 = vmatpush.bf16.msra.mxu0 %v168
  %1389 = vmatpush.bf16.msra.mxu0 %v164
  %1390 = vmatmul.bf16.gmra.mxu0 %v1361
  %v1391 = vpop.f32.mrf.mxu0
  %v1392 = vadd.f32 0.0, %v1391
  %v1393 = vpop.f32.mrf.mxu0
  %1394 = vdwg.mxu0
  %1395 = vmatpush.bf16.msra.mxu0 %v193
  %1396 = vmatpush.bf16.msra.mxu0 %v189
  %1397 = vmatpush.bf16.msra.mxu0 %v185
  %1398 = vmatpush.bf16.msra.mxu0 %v181
  %1399 = vmatpush.bf16.msra.mxu0 %v177
  %1400 = vmatpush.bf16.msra.mxu0 %v173
  %1401 = vmatpush.bf16.msra.mxu0 %v169
  %1402 = vmatpush.bf16.msra.mxu0 %v165
  %1403 = vmatmul.bf16.gmra.mxu0 %v1361
  %v1404 = vpop.f32.mrf.mxu0
  %v1405 = vadd.f32 0.0, %v1404
  %v1406 = vpop.f32.mrf.mxu0
  %1407 = vdwg.mxu0
  %1408 = vmatpush.bf16.msra.mxu0 %v194
  %1409 = vmatpush.bf16.msra.mxu0 %v190
  %1410 = vmatpush.bf16.msra.mxu0 %v186
  %1411 = vmatpush.bf16.msra.mxu0 %v182
  %1412 = vmatpush.bf16.msra.mxu0 %v178
  %1413 = vmatpush.bf16.msra.mxu0 %v174
  %1414 = vmatpush.bf16.msra.mxu0 %v170
  %1415 = vmatpush.bf16.msra.mxu0 %v166
  %1416 = vmatmul.bf16.gmra.mxu0 %v1361
  %v1417 = vpop.f32.mrf.mxu0
  %v1418 = vadd.f32 0.0, %v1417
  %v1419 = vpop.f32.mrf.mxu0
  %1420 = vdwg.mxu0
  %v1421 = vadd.f32 %v1365, %v1379
  %v1422 = vadd.f32 %v1366, %v1392
  %v1423 = vadd.f32 %v1367, %v1405
  %v1424 = vadd.f32 %v1368, %v1418
  %v1425 = vxor.u32 %v1421, 2147483648
  %v1426 = vmul.f32 %v1425, 1.442695
  %v1427 = vpow.pop %v1426
  %v1428 = vadd.f32 %v1427, 1.0
  %v1429 = vrcp.pop %v1428
  %v1430 = vmul.f32 %v1428, %v1429
  %v1431 = vsub.f32 1.0, %v1430
  %v1432 = vmul.f32 %v1429, %v1431
  %v1433 = vadd.f32 %v1429, %v1432
  %vm1434 = vweird.f32 %v1428
  %vm1435 = vweird.f32 %v1429
  %vm1436 = vmor %vm1434, %vm1435
  %v1437 = vsel %vm1436, %v1429, %v1433
  %v1438 = vand.u32 2147483647, %v1428
  %vm1439 = vcmp.eq.f32.partialorder %v1438, 8.507059e+37
  %v1440 = vand.u32 %v1428, 2147483648
  %v1441 = vor.u32 1.1754944e-38, %v1440
  %v1442 = vsel %vm1439, %v1441, %v1437
  %v1443 = vmul.f32 1.0, %v1442
  %v1444 = vxor.u32 %v1422, 2147483648
  %v1445 = vmul.f32 %v1444, 1.442695
  %v1446 = vpow.pop %v1445
  %v1447 = vadd.f32 %v1446, 1.0
  %v1448 = vrcp.pop %v1447
  %v1449 = vmul.f32 %v1447, %v1448
  %v1450 = vsub.f32 1.0, %v1449
  %v1451 = vmul.f32 %v1448, %v1450
  %v1452 = vadd.f32 %v1448, %v1451
  %vm1453 = vweird.f32 %v1447
  %vm1454 = vweird.f32 %v1448
  %vm1455 = vmor %vm1453, %vm1454
  %v1456 = vsel %vm1455, %v1448, %v1452
  %v1457 = vand.u32 2147483647, %v1447
  %vm1458 = vcmp.eq.f32.partialorder %v1457, 8.507059e+37
  %v1459 = vand.u32 %v1447, 2147483648
  %v1460 = vor.u32 1.1754944e-38, %v1459
  %v1461 = vsel %vm1458, %v1460, %v1456
  %v1462 = vmul.f32 1.0, %v1461
  %v1463 = vtanh.pop %v1423
  %v1464 = vxor.u32 %v1424, 2147483648
  %v1465 = vmul.f32 %v1464, 1.442695
  %v1466 = vpow.pop %v1465
  %v1467 = vadd.f32 %v1466, 1.0
  %v1468 = vrcp.pop %v1467
  %v1469 = vmul.f32 %v1467, %v1468
  %v1470 = vsub.f32 1.0, %v1469
  %v1471 = vmul.f32 %v1468, %v1470
  %v1472 = vadd.f32 %v1468, %v1471
  %vm1473 = vweird.f32 %v1467
  %vm1474 = vweird.f32 %v1468
  %vm1475 = vmor %vm1473, %vm1474
  %v1476 = vsel %vm1475, %v1468, %v1472
  %v1477 = vand.u32 2147483647, %v1467
  %vm1478 = vcmp.eq.f32.partialorder %v1477, 8.507059e+37
  %v1479 = vand.u32 %v1467, 2147483648
  %v1480 = vor.u32 1.1754944e-38, %v1479
  %v1481 = vsel %vm1478, %v1480, %v1476
  %v1482 = vmul.f32 1.0, %v1481
  %v1483 = vmul.f32 %v1462, %v1358
  %v1484 = vmul.f32 %v1443, %v1463
  %v1485 = vadd.f32 %v1483, %v1484
  %v1486 = vtanh.pop %v1485
  %v1487 = vmul.f32 %v1482, %v1486
  %v1488 = vpack.c.bf16 %v1487, %v1487
  %s1489 = scalar_lea.vmem %s4, 36
  %1490 = vst [vmem:[%s1489] sm:$0xf] %v1488
  %s1491 = scalar_lea.vmem %s0, 320
  %v1492 = vld [vmem:[%s1491] sm:$0xff]
  %v1493 = vld [vmem:[%s1491 + $0x8] sm:$0xff]
  %v1494 = vld [vmem:[%s1491 + $0x10] sm:$0xff]
  %v1495 = vld [vmem:[%s1491 + $0x18] sm:$0xff]
  %1496 = vmatpush.bf16.msra.mxu0 %v191
  %1497 = vmatpush.bf16.msra.mxu0 %v187
  %1498 = vmatpush.bf16.msra.mxu0 %v183
  %1499 = vmatpush.bf16.msra.mxu0 %v179
  %1500 = vmatpush.bf16.msra.mxu0 %v175
  %1501 = vmatpush.bf16.msra.mxu0 %v171
  %1502 = vmatpush.bf16.msra.mxu0 %v167
  %1503 = vmatpush.bf16.msra.mxu0 %v163
  %1504 = vmatmul.bf16.gmra.mxu0 %v1488
  %v1505 = vpop.f32.mrf.mxu0
  %v1506 = vadd.f32 0.0, %v1505
  %v1507 = vpop.f32.mrf.mxu0
  %1508 = vdwg.mxu0
  %1509 = vmatpush.bf16.msra.mxu0 %v192
  %1510 = vmatpush.bf16.msra.mxu0 %v188
  %1511 = vmatpush.bf16.msra.mxu0 %v184
  %1512 = vmatpush.bf16.msra.mxu0 %v180
  %1513 = vmatpush.bf16.msra.mxu0 %v176
  %1514 = vmatpush.bf16.msra.mxu0 %v172
  %1515 = vmatpush.bf16.msra.mxu0 %v168
  %1516 = vmatpush.bf16.msra.mxu0 %v164
  %1517 = vmatmul.bf16.gmra.mxu0 %v1488
  %v1518 = vpop.f32.mrf.mxu0
  %v1519 = vadd.f32 0.0, %v1518
  %v1520 = vpop.f32.mrf.mxu0
  %1521 = vdwg.mxu0
  %1522 = vmatpush.bf16.msra.mxu0 %v193
  %1523 = vmatpush.bf16.msra.mxu0 %v189
  %1524 = vmatpush.bf16.msra.mxu0 %v185
  %1525 = vmatpush.bf16.msra.mxu0 %v181
  %1526 = vmatpush.bf16.msra.mxu0 %v177
  %1527 = vmatpush.bf16.msra.mxu0 %v173
  %1528 = vmatpush.bf16.msra.mxu0 %v169
  %1529 = vmatpush.bf16.msra.mxu0 %v165
  %1530 = vmatmul.bf16.gmra.mxu0 %v1488
  %v1531 = vpop.f32.mrf.mxu0
  %v1532 = vadd.f32 0.0, %v1531
  %v1533 = vpop.f32.mrf.mxu0
  %1534 = vdwg.mxu0
  %1535 = vmatpush.bf16.msra.mxu0 %v194
  %1536 = vmatpush.bf16.msra.mxu0 %v190
  %1537 = vmatpush.bf16.msra.mxu0 %v186
  %1538 = vmatpush.bf16.msra.mxu0 %v182
  %1539 = vmatpush.bf16.msra.mxu0 %v178
  %1540 = vmatpush.bf16.msra.mxu0 %v174
  %1541 = vmatpush.bf16.msra.mxu0 %v170
  %1542 = vmatpush.bf16.msra.mxu0 %v166
  %1543 = vmatmul.bf16.gmra.mxu0 %v1488
  %v1544 = vpop.f32.mrf.mxu0
  %v1545 = vadd.f32 0.0, %v1544
  %v1546 = vpop.f32.mrf.mxu0
  %1547 = vdwg.mxu0
  %v1548 = vadd.f32 %v1492, %v1506
  %v1549 = vadd.f32 %v1493, %v1519
  %v1550 = vadd.f32 %v1494, %v1532
  %v1551 = vadd.f32 %v1495, %v1545
  %v1552 = vxor.u32 %v1548, 2147483648
  %v1553 = vmul.f32 %v1552, 1.442695
  %v1554 = vpow.pop %v1553
  %v1555 = vadd.f32 %v1554, 1.0
  %v1556 = vrcp.pop %v1555
  %v1557 = vmul.f32 %v1555, %v1556
  %v1558 = vsub.f32 1.0, %v1557
  %v1559 = vmul.f32 %v1556, %v1558
  %v1560 = vadd.f32 %v1556, %v1559
  %vm1561 = vweird.f32 %v1555
  %vm1562 = vweird.f32 %v1556
  %vm1563 = vmor %vm1561, %vm1562
  %v1564 = vsel %vm1563, %v1556, %v1560
  %v1565 = vand.u32 2147483647, %v1555
  %vm1566 = vcmp.eq.f32.partialorder %v1565, 8.507059e+37
  %v1567 = vand.u32 %v1555, 2147483648
  %v1568 = vor.u32 1.1754944e-38, %v1567
  %v1569 = vsel %vm1566, %v1568, %v1564
  %v1570 = vmul.f32 1.0, %v1569
  %v1571 = vxor.u32 %v1549, 2147483648
  %v1572 = vmul.f32 %v1571, 1.442695
  %v1573 = vpow.pop %v1572
  %v1574 = vadd.f32 %v1573, 1.0
  %v1575 = vrcp.pop %v1574
  %v1576 = vmul.f32 %v1574, %v1575
  %v1577 = vsub.f32 1.0, %v1576
  %v1578 = vmul.f32 %v1575, %v1577
  %v1579 = vadd.f32 %v1575, %v1578
  %vm1580 = vweird.f32 %v1574
  %vm1581 = vweird.f32 %v1575
  %vm1582 = vmor %vm1580, %vm1581
  %v1583 = vsel %vm1582, %v1575, %v1579
  %v1584 = vand.u32 2147483647, %v1574
  %vm1585 = vcmp.eq.f32.partialorder %v1584, 8.507059e+37
  %v1586 = vand.u32 %v1574, 2147483648
  %v1587 = vor.u32 1.1754944e-38, %v1586
  %v1588 = vsel %vm1585, %v1587, %v1583
  %v1589 = vmul.f32 1.0, %v1588
  %v1590 = vtanh.pop %v1550
  %v1591 = vxor.u32 %v1551, 2147483648
  %v1592 = vmul.f32 %v1591, 1.442695
  %v1593 = vpow.pop %v1592
  %v1594 = vadd.f32 %v1593, 1.0
  %v1595 = vrcp.pop %v1594
  %v1596 = vmul.f32 %v1594, %v1595
  %v1597 = vsub.f32 1.0, %v1596
  %v1598 = vmul.f32 %v1595, %v1597
  %v1599 = vadd.f32 %v1595, %v1598
  %vm1600 = vweird.f32 %v1594
  %vm1601 = vweird.f32 %v1595
  %vm1602 = vmor %vm1600, %vm1601
  %v1603 = vsel %vm1602, %v1595, %v1599
  %v1604 = vand.u32 2147483647, %v1594
  %vm1605 = vcmp.eq.f32.partialorder %v1604, 8.507059e+37
  %v1606 = vand.u32 %v1594, 2147483648
  %v1607 = vor.u32 1.1754944e-38, %v1606
  %v1608 = vsel %vm1605, %v1607, %v1603
  %v1609 = vmul.f32 1.0, %v1608
  %v1610 = vmul.f32 %v1589, %v1485
  %v1611 = vmul.f32 %v1570, %v1590
  %v1612 = vadd.f32 %v1610, %v1611
  %v1613 = vtanh.pop %v1612
  %v1614 = vmul.f32 %v1609, %v1613
  %v1615 = vpack.c.bf16 %v1614, %v1614
  %s1616 = scalar_lea.vmem %s4, 40
  %1617 = vst [vmem:[%s1616] sm:$0xf] %v1615
  %s1618 = scalar_lea.vmem %s0, 352
  %v1619 = vld [vmem:[%s1618] sm:$0xff]
  %v1620 = vld [vmem:[%s1618 + $0x8] sm:$0xff]
  %v1621 = vld [vmem:[%s1618 + $0x10] sm:$0xff]
  %v1622 = vld [vmem:[%s1618 + $0x18] sm:$0xff]
  %1623 = vmatpush.bf16.msra.mxu0 %v191
  %1624 = vmatpush.bf16.msra.mxu0 %v187
  %1625 = vmatpush.bf16.msra.mxu0 %v183
  %1626 = vmatpush.bf16.msra.mxu0 %v179
  %1627 = vmatpush.bf16.msra.mxu0 %v175
  %1628 = vmatpush.bf16.msra.mxu0 %v171
  %1629 = vmatpush.bf16.msra.mxu0 %v167
  %1630 = vmatpush.bf16.msra.mxu0 %v163
  %1631 = vmatmul.bf16.gmra.mxu0 %v1615
  %v1632 = vpop.f32.mrf.mxu0
  %v1633 = vadd.f32 0.0, %v1632
  %v1634 = vpop.f32.mrf.mxu0
  %1635 = vdwg.mxu0
  %1636 = vmatpush.bf16.msra.mxu0 %v192
  %1637 = vmatpush.bf16.msra.mxu0 %v188
  %1638 = vmatpush.bf16.msra.mxu0 %v184
  %1639 = vmatpush.bf16.msra.mxu0 %v180
  %1640 = vmatpush.bf16.msra.mxu0 %v176
  %1641 = vmatpush.bf16.msra.mxu0 %v172
  %1642 = vmatpush.bf16.msra.mxu0 %v168
  %1643 = vmatpush.bf16.msra.mxu0 %v164
  %1644 = vmatmul.bf16.gmra.mxu0 %v1615
  %v1645 = vpop.f32.mrf.mxu0
  %v1646 = vadd.f32 0.0, %v1645
  %v1647 = vpop.f32.mrf.mxu0
  %1648 = vdwg.mxu0
  %1649 = vmatpush.bf16.msra.mxu0 %v193
  %1650 = vmatpush.bf16.msra.mxu0 %v189
  %1651 = vmatpush.bf16.msra.mxu0 %v185
  %1652 = vmatpush.bf16.msra.mxu0 %v181
  %1653 = vmatpush.bf16.msra.mxu0 %v177
  %1654 = vmatpush.bf16.msra.mxu0 %v173
  %1655 = vmatpush.bf16.msra.mxu0 %v169
  %1656 = vmatpush.bf16.msra.mxu0 %v165
  %1657 = vmatmul.bf16.gmra.mxu0 %v1615
  %v1658 = vpop.f32.mrf.mxu0
  %v1659 = vadd.f32 0.0, %v1658
  %v1660 = vpop.f32.mrf.mxu0
  %1661 = vdwg.mxu0
  %1662 = vmatpush.bf16.msra.mxu0 %v194
  %1663 = vmatpush.bf16.msra.mxu0 %v190
  %1664 = vmatpush.bf16.msra.mxu0 %v186
  %1665 = vmatpush.bf16.msra.mxu0 %v182
  %1666 = vmatpush.bf16.msra.mxu0 %v178
  %1667 = vmatpush.bf16.msra.mxu0 %v174
  %1668 = vmatpush.bf16.msra.mxu0 %v170
  %1669 = vmatpush.bf16.msra.mxu0 %v166
  %1670 = vmatmul.bf16.gmra.mxu0 %v1615
  %v1671 = vpop.f32.mrf.mxu0
  %v1672 = vadd.f32 0.0, %v1671
  %v1673 = vpop.f32.mrf.mxu0
  %1674 = vdwg.mxu0
  %v1675 = vadd.f32 %v1619, %v1633
  %v1676 = vadd.f32 %v1620, %v1646
  %v1677 = vadd.f32 %v1621, %v1659
  %v1678 = vadd.f32 %v1622, %v1672
  %v1679 = vxor.u32 %v1675, 2147483648
  %v1680 = vmul.f32 %v1679, 1.442695
  %v1681 = vpow.pop %v1680
  %v1682 = vadd.f32 %v1681, 1.0
  %v1683 = vrcp.pop %v1682
  %v1684 = vmul.f32 %v1682, %v1683
  %v1685 = vsub.f32 1.0, %v1684
  %v1686 = vmul.f32 %v1683, %v1685
  %v1687 = vadd.f32 %v1683, %v1686
  %vm1688 = vweird.f32 %v1682
  %vm1689 = vweird.f32 %v1683
  %vm1690 = vmor %vm1688, %vm1689
  %v1691 = vsel %vm1690, %v1683, %v1687
  %v1692 = vand.u32 2147483647, %v1682
  %vm1693 = vcmp.eq.f32.partialorder %v1692, 8.507059e+37
  %v1694 = vand.u32 %v1682, 2147483648
  %v1695 = vor.u32 1.1754944e-38, %v1694
  %v1696 = vsel %vm1693, %v1695, %v1691
  %v1697 = vmul.f32 1.0, %v1696
  %v1698 = vxor.u32 %v1676, 2147483648
  %v1699 = vmul.f32 %v1698, 1.442695
  %v1700 = vpow.pop %v1699
  %v1701 = vadd.f32 %v1700, 1.0
  %v1702 = vrcp.pop %v1701
  %v1703 = vmul.f32 %v1701, %v1702
  %v1704 = vsub.f32 1.0, %v1703
  %v1705 = vmul.f32 %v1702, %v1704
  %v1706 = vadd.f32 %v1702, %v1705
  %vm1707 = vweird.f32 %v1701
  %vm1708 = vweird.f32 %v1702
  %vm1709 = vmor %vm1707, %vm1708
  %v1710 = vsel %vm1709, %v1702, %v1706
  %v1711 = vand.u32 2147483647, %v1701
  %vm1712 = vcmp.eq.f32.partialorder %v1711, 8.507059e+37
  %v1713 = vand.u32 %v1701, 2147483648
  %v1714 = vor.u32 1.1754944e-38, %v1713
  %v1715 = vsel %vm1712, %v1714, %v1710
  %v1716 = vmul.f32 1.0, %v1715
  %v1717 = vtanh.pop %v1677
  %v1718 = vxor.u32 %v1678, 2147483648
  %v1719 = vmul.f32 %v1718, 1.442695
  %v1720 = vpow.pop %v1719
  %v1721 = vadd.f32 %v1720, 1.0
  %v1722 = vrcp.pop %v1721
  %v1723 = vmul.f32 %v1721, %v1722
  %v1724 = vsub.f32 1.0, %v1723
  %v1725 = vmul.f32 %v1722, %v1724
  %v1726 = vadd.f32 %v1722, %v1725
  %vm1727 = vweird.f32 %v1721
  %vm1728 = vweird.f32 %v1722
  %vm1729 = vmor %vm1727, %vm1728
  %v1730 = vsel %vm1729, %v1722, %v1726
  %v1731 = vand.u32 2147483647, %v1721
  %vm1732 = vcmp.eq.f32.partialorder %v1731, 8.507059e+37
  %v1733 = vand.u32 %v1721, 2147483648
  %v1734 = vor.u32 1.1754944e-38, %v1733
  %v1735 = vsel %vm1732, %v1734, %v1730
  %v1736 = vmul.f32 1.0, %v1735
  %v1737 = vmul.f32 %v1716, %v1612
  %v1738 = vmul.f32 %v1697, %v1717
  %v1739 = vadd.f32 %v1737, %v1738
  %v1740 = vtanh.pop %v1739
  %v1741 = vmul.f32 %v1736, %v1740
  %v1742 = vpack.c.bf16 %v1741, %v1741
  %s1743 = scalar_lea.vmem %s4, 44
  %1744 = vst [vmem:[%s1743] sm:$0xf] %v1742
  %s1745 = scalar_lea.vmem %s0, 384
  %v1746 = vld [vmem:[%s1745] sm:$0xff]
  %v1747 = vld [vmem:[%s1745 + $0x8] sm:$0xff]
  %v1748 = vld [vmem:[%s1745 + $0x10] sm:$0xff]
  %v1749 = vld [vmem:[%s1745 + $0x18] sm:$0xff]
  %1750 = vmatpush.bf16.msra.mxu0 %v191
  %1751 = vmatpush.bf16.msra.mxu0 %v187
  %1752 = vmatpush.bf16.msra.mxu0 %v183
  %1753 = vmatpush.bf16.msra.mxu0 %v179
  %1754 = vmatpush.bf16.msra.mxu0 %v175
  %1755 = vmatpush.bf16.msra.mxu0 %v171
  %1756 = vmatpush.bf16.msra.mxu0 %v167
  %1757 = vmatpush.bf16.msra.mxu0 %v163
  %1758 = vmatmul.bf16.gmra.mxu0 %v1742
  %v1759 = vpop.f32.mrf.mxu0
  %v1760 = vadd.f32 0.0, %v1759
  %v1761 = vpop.f32.mrf.mxu0
  %1762 = vdwg.mxu0
  %1763 = vmatpush.bf16.msra.mxu0 %v192
  %1764 = vmatpush.bf16.msra.mxu0 %v188
  %1765 = vmatpush.bf16.msra.mxu0 %v184
  %1766 = vmatpush.bf16.msra.mxu0 %v180
  %1767 = vmatpush.bf16.msra.mxu0 %v176
  %1768 = vmatpush.bf16.msra.mxu0 %v172
  %1769 = vmatpush.bf16.msra.mxu0 %v168
  %1770 = vmatpush.bf16.msra.mxu0 %v164
  %1771 = vmatmul.bf16.gmra.mxu0 %v1742
  %v1772 = vpop.f32.mrf.mxu0
  %v1773 = vadd.f32 0.0, %v1772
  %v1774 = vpop.f32.mrf.mxu0
  %1775 = vdwg.mxu0
  %1776 = vmatpush.bf16.msra.mxu0 %v193
  %1777 = vmatpush.bf16.msra.mxu0 %v189
  %1778 = vmatpush.bf16.msra.mxu0 %v185
  %1779 = vmatpush.bf16.msra.mxu0 %v181
  %1780 = vmatpush.bf16.msra.mxu0 %v177
  %1781 = vmatpush.bf16.msra.mxu0 %v173
  %1782 = vmatpush.bf16.msra.mxu0 %v169
  %1783 = vmatpush.bf16.msra.mxu0 %v165
  %1784 = vmatmul.bf16.gmra.mxu0 %v1742
  %v1785 = vpop.f32.mrf.mxu0
  %v1786 = vadd.f32 0.0, %v1785
  %v1787 = vpop.f32.mrf.mxu0
  %1788 = vdwg.mxu0
  %1789 = vmatpush.bf16.msra.mxu0 %v194
  %1790 = vmatpush.bf16.msra.mxu0 %v190
  %1791 = vmatpush.bf16.msra.mxu0 %v186
  %1792 = vmatpush.bf16.msra.mxu0 %v182
  %1793 = vmatpush.bf16.msra.mxu0 %v178
  %1794 = vmatpush.bf16.msra.mxu0 %v174
  %1795 = vmatpush.bf16.msra.mxu0 %v170
  %1796 = vmatpush.bf16.msra.mxu0 %v166
  %1797 = vmatmul.bf16.gmra.mxu0 %v1742
  %v1798 = vpop.f32.mrf.mxu0
  %v1799 = vadd.f32 0.0, %v1798
  %v1800 = vpop.f32.mrf.mxu0
  %1801 = vdwg.mxu0
  %v1802 = vadd.f32 %v1746, %v1760
  %v1803 = vadd.f32 %v1747, %v1773
  %v1804 = vadd.f32 %v1748, %v1786
  %v1805 = vadd.f32 %v1749, %v1799
  %v1806 = vxor.u32 %v1802, 2147483648
  %v1807 = vmul.f32 %v1806, 1.442695
  %v1808 = vpow.pop %v1807
  %v1809 = vadd.f32 %v1808, 1.0
  %v1810 = vrcp.pop %v1809
  %v1811 = vmul.f32 %v1809, %v1810
  %v1812 = vsub.f32 1.0, %v1811
  %v1813 = vmul.f32 %v1810, %v1812
  %v1814 = vadd.f32 %v1810, %v1813
  %vm1815 = vweird.f32 %v1809
  %vm1816 = vweird.f32 %v1810
  %vm1817 = vmor %vm1815, %vm1816
  %v1818 = vsel %vm1817, %v1810, %v1814
  %v1819 = vand.u32 2147483647, %v1809
  %vm1820 = vcmp.eq.f32.partialorder %v1819, 8.507059e+37
  %v1821 = vand.u32 %v1809, 2147483648
  %v1822 = vor.u32 1.1754944e-38, %v1821
  %v1823 = vsel %vm1820, %v1822, %v1818
  %v1824 = vmul.f32 1.0, %v1823
  %v1825 = vxor.u32 %v1803, 2147483648
  %v1826 = vmul.f32 %v1825, 1.442695
  %v1827 = vpow.pop %v1826
  %v1828 = vadd.f32 %v1827, 1.0
  %v1829 = vrcp.pop %v1828
  %v1830 = vmul.f32 %v1828, %v1829
  %v1831 = vsub.f32 1.0, %v1830
  %v1832 = vmul.f32 %v1829, %v1831
  %v1833 = vadd.f32 %v1829, %v1832
  %vm1834 = vweird.f32 %v1828
  %vm1835 = vweird.f32 %v1829
  %vm1836 = vmor %vm1834, %vm1835
  %v1837 = vsel %vm1836, %v1829, %v1833
  %v1838 = vand.u32 2147483647, %v1828
  %vm1839 = vcmp.eq.f32.partialorder %v1838, 8.507059e+37
  %v1840 = vand.u32 %v1828, 2147483648
  %v1841 = vor.u32 1.1754944e-38, %v1840
  %v1842 = vsel %vm1839, %v1841, %v1837
  %v1843 = vmul.f32 1.0, %v1842
  %v1844 = vtanh.pop %v1804
  %v1845 = vxor.u32 %v1805, 2147483648
  %v1846 = vmul.f32 %v1845, 1.442695
  %v1847 = vpow.pop %v1846
  %v1848 = vadd.f32 %v1847, 1.0
  %v1849 = vrcp.pop %v1848
  %v1850 = vmul.f32 %v1848, %v1849
  %v1851 = vsub.f32 1.0, %v1850
  %v1852 = vmul.f32 %v1849, %v1851
  %v1853 = vadd.f32 %v1849, %v1852
  %vm1854 = vweird.f32 %v1848
  %vm1855 = vweird.f32 %v1849
  %vm1856 = vmor %vm1854, %vm1855
  %v1857 = vsel %vm1856, %v1849, %v1853
  %v1858 = vand.u32 2147483647, %v1848
  %vm1859 = vcmp.eq.f32.partialorder %v1858, 8.507059e+37
  %v1860 = vand.u32 %v1848, 2147483648
  %v1861 = vor.u32 1.1754944e-38, %v1860
  %v1862 = vsel %vm1859, %v1861, %v1857
  %v1863 = vmul.f32 1.0, %v1862
  %v1864 = vmul.f32 %v1843, %v1739
  %v1865 = vmul.f32 %v1824, %v1844
  %v1866 = vadd.f32 %v1864, %v1865
  %v1867 = vtanh.pop %v1866
  %v1868 = vmul.f32 %v1863, %v1867
  %v1869 = vpack.c.bf16 %v1868, %v1868
  %s1870 = scalar_lea.vmem %s4, 48
  %1871 = vst [vmem:[%s1870] sm:$0xf] %v1869
  %s1872 = scalar_lea.vmem %s0, 416
  %v1873 = vld [vmem:[%s1872] sm:$0xff]
  %v1874 = vld [vmem:[%s1872 + $0x8] sm:$0xff]
  %v1875 = vld [vmem:[%s1872 + $0x10] sm:$0xff]
  %v1876 = vld [vmem:[%s1872 + $0x18] sm:$0xff]
  %1877 = vmatpush.bf16.msra.mxu0 %v191
  %1878 = vmatpush.bf16.msra.mxu0 %v187
  %1879 = vmatpush.bf16.msra.mxu0 %v183
  %1880 = vmatpush.bf16.msra.mxu0 %v179
  %1881 = vmatpush.bf16.msra.mxu0 %v175
  %1882 = vmatpush.bf16.msra.mxu0 %v171
  %1883 = vmatpush.bf16.msra.mxu0 %v167
  %1884 = vmatpush.bf16.msra.mxu0 %v163
  %1885 = vmatmul.bf16.gmra.mxu0 %v1869
  %v1886 = vpop.f32.mrf.mxu0
  %v1887 = vadd.f32 0.0, %v1886
  %v1888 = vpop.f32.mrf.mxu0
  %1889 = vdwg.mxu0
  %1890 = vmatpush.bf16.msra.mxu0 %v192
  %1891 = vmatpush.bf16.msra.mxu0 %v188
  %1892 = vmatpush.bf16.msra.mxu0 %v184
  %1893 = vmatpush.bf16.msra.mxu0 %v180
  %1894 = vmatpush.bf16.msra.mxu0 %v176
  %1895 = vmatpush.bf16.msra.mxu0 %v172
  %1896 = vmatpush.bf16.msra.mxu0 %v168
  %1897 = vmatpush.bf16.msra.mxu0 %v164
  %1898 = vmatmul.bf16.gmra.mxu0 %v1869
  %v1899 = vpop.f32.mrf.mxu0
  %v1900 = vadd.f32 0.0, %v1899
  %v1901 = vpop.f32.mrf.mxu0
  %1902 = vdwg.mxu0
  %1903 = vmatpush.bf16.msra.mxu0 %v193
  %1904 = vmatpush.bf16.msra.mxu0 %v189
  %1905 = vmatpush.bf16.msra.mxu0 %v185
  %1906 = vmatpush.bf16.msra.mxu0 %v181
  %1907 = vmatpush.bf16.msra.mxu0 %v177
  %1908 = vmatpush.bf16.msra.mxu0 %v173
  %1909 = vmatpush.bf16.msra.mxu0 %v169
  %1910 = vmatpush.bf16.msra.mxu0 %v165
  %1911 = vmatmul.bf16.gmra.mxu0 %v1869
  %v1912 = vpop.f32.mrf.mxu0
  %v1913 = vadd.f32 0.0, %v1912
  %v1914 = vpop.f32.mrf.mxu0
  %1915 = vdwg.mxu0
  %1916 = vmatpush.bf16.msra.mxu0 %v194
  %1917 = vmatpush.bf16.msra.mxu0 %v190
  %1918 = vmatpush.bf16.msra.mxu0 %v186
  %1919 = vmatpush.bf16.msra.mxu0 %v182
  %1920 = vmatpush.bf16.msra.mxu0 %v178
  %1921 = vmatpush.bf16.msra.mxu0 %v174
  %1922 = vmatpush.bf16.msra.mxu0 %v170
  %1923 = vmatpush.bf16.msra.mxu0 %v166
  %1924 = vmatmul.bf16.gmra.mxu0 %v1869
  %v1925 = vpop.f32.mrf.mxu0
  %v1926 = vadd.f32 0.0, %v1925
  %v1927 = vpop.f32.mrf.mxu0
  %1928 = vdwg.mxu0
  %v1929 = vadd.f32 %v1873, %v1887
  %v1930 = vadd.f32 %v1874, %v1900
  %v1931 = vadd.f32 %v1875, %v1913
  %v1932 = vadd.f32 %v1876, %v1926
  %v1933 = vxor.u32 %v1929, 2147483648
  %v1934 = vmul.f32 %v1933, 1.442695
  %v1935 = vpow.pop %v1934
  %v1936 = vadd.f32 %v1935, 1.0
  %v1937 = vrcp.pop %v1936
  %v1938 = vmul.f32 %v1936, %v1937
  %v1939 = vsub.f32 1.0, %v1938
  %v1940 = vmul.f32 %v1937, %v1939
  %v1941 = vadd.f32 %v1937, %v1940
  %vm1942 = vweird.f32 %v1936
  %vm1943 = vweird.f32 %v1937
  %vm1944 = vmor %vm1942, %vm1943
  %v1945 = vsel %vm1944, %v1937, %v1941
  %v1946 = vand.u32 2147483647, %v1936
  %vm1947 = vcmp.eq.f32.partialorder %v1946, 8.507059e+37
  %v1948 = vand.u32 %v1936, 2147483648
  %v1949 = vor.u32 1.1754944e-38, %v1948
  %v1950 = vsel %vm1947, %v1949, %v1945
  %v1951 = vmul.f32 1.0, %v1950
  %v1952 = vxor.u32 %v1930, 2147483648
  %v1953 = vmul.f32 %v1952, 1.442695
  %v1954 = vpow.pop %v1953
  %v1955 = vadd.f32 %v1954, 1.0
  %v1956 = vrcp.pop %v1955
  %v1957 = vmul.f32 %v1955, %v1956
  %v1958 = vsub.f32 1.0, %v1957
  %v1959 = vmul.f32 %v1956, %v1958
  %v1960 = vadd.f32 %v1956, %v1959
  %vm1961 = vweird.f32 %v1955
  %vm1962 = vweird.f32 %v1956
  %vm1963 = vmor %vm1961, %vm1962
  %v1964 = vsel %vm1963, %v1956, %v1960
  %v1965 = vand.u32 2147483647, %v1955
  %vm1966 = vcmp.eq.f32.partialorder %v1965, 8.507059e+37
  %v1967 = vand.u32 %v1955, 2147483648
  %v1968 = vor.u32 1.1754944e-38, %v1967
  %v1969 = vsel %vm1966, %v1968, %v1964
  %v1970 = vmul.f32 1.0, %v1969
  %v1971 = vtanh.pop %v1931
  %v1972 = vxor.u32 %v1932, 2147483648
  %v1973 = vmul.f32 %v1972, 1.442695
  %v1974 = vpow.pop %v1973
  %v1975 = vadd.f32 %v1974, 1.0
  %v1976 = vrcp.pop %v1975
  %v1977 = vmul.f32 %v1975, %v1976
  %v1978 = vsub.f32 1.0, %v1977
  %v1979 = vmul.f32 %v1976, %v1978
  %v1980 = vadd.f32 %v1976, %v1979
  %vm1981 = vweird.f32 %v1975
  %vm1982 = vweird.f32 %v1976
  %vm1983 = vmor %vm1981, %vm1982
  %v1984 = vsel %vm1983, %v1976, %v1980
  %v1985 = vand.u32 2147483647, %v1975
  %vm1986 = vcmp.eq.f32.partialorder %v1985, 8.507059e+37
  %v1987 = vand.u32 %v1975, 2147483648
  %v1988 = vor.u32 1.1754944e-38, %v1987
  %v1989 = vsel %vm1986, %v1988, %v1984
  %v1990 = vmul.f32 1.0, %v1989
  %v1991 = vmul.f32 %v1970, %v1866
  %v1992 = vmul.f32 %v1951, %v1971
  %v1993 = vadd.f32 %v1991, %v1992
  %v1994 = vtanh.pop %v1993
  %v1995 = vmul.f32 %v1990, %v1994
  %v1996 = vpack.c.bf16 %v1995, %v1995
  %s1997 = scalar_lea.vmem %s4, 52
  %1998 = vst [vmem:[%s1997] sm:$0xf] %v1996
  %s1999 = scalar_lea.vmem %s0, 448
  %v2000 = vld [vmem:[%s1999] sm:$0xff]
  %v2001 = vld [vmem:[%s1999 + $0x8] sm:$0xff]
  %v2002 = vld [vmem:[%s1999 + $0x10] sm:$0xff]
  %v2003 = vld [vmem:[%s1999 + $0x18] sm:$0xff]
  %2004 = vmatpush.bf16.msra.mxu0 %v191
  %2005 = vmatpush.bf16.msra.mxu0 %v187
  %2006 = vmatpush.bf16.msra.mxu0 %v183
  %2007 = vmatpush.bf16.msra.mxu0 %v179
  %2008 = vmatpush.bf16.msra.mxu0 %v175
  %2009 = vmatpush.bf16.msra.mxu0 %v171
  %2010 = vmatpush.bf16.msra.mxu0 %v167
  %2011 = vmatpush.bf16.msra.mxu0 %v163
  %2012 = vmatmul.bf16.gmra.mxu0 %v1996
  %v2013 = vpop.f32.mrf.mxu0
  %v2014 = vadd.f32 0.0, %v2013
  %v2015 = vpop.f32.mrf.mxu0
  %2016 = vdwg.mxu0
  %2017 = vmatpush.bf16.msra.mxu0 %v192
  %2018 = vmatpush.bf16.msra.mxu0 %v188
  %2019 = vmatpush.bf16.msra.mxu0 %v184
  %2020 = vmatpush.bf16.msra.mxu0 %v180
  %2021 = vmatpush.bf16.msra.mxu0 %v176
  %2022 = vmatpush.bf16.msra.mxu0 %v172
  %2023 = vmatpush.bf16.msra.mxu0 %v168
  %2024 = vmatpush.bf16.msra.mxu0 %v164
  %2025 = vmatmul.bf16.gmra.mxu0 %v1996
  %v2026 = vpop.f32.mrf.mxu0
  %v2027 = vadd.f32 0.0, %v2026
  %v2028 = vpop.f32.mrf.mxu0
  %2029 = vdwg.mxu0
  %2030 = vmatpush.bf16.msra.mxu0 %v193
  %2031 = vmatpush.bf16.msra.mxu0 %v189
  %2032 = vmatpush.bf16.msra.mxu0 %v185
  %2033 = vmatpush.bf16.msra.mxu0 %v181
  %2034 = vmatpush.bf16.msra.mxu0 %v177
  %2035 = vmatpush.bf16.msra.mxu0 %v173
  %2036 = vmatpush.bf16.msra.mxu0 %v169
  %2037 = vmatpush.bf16.msra.mxu0 %v165
  %2038 = vmatmul.bf16.gmra.mxu0 %v1996
  %v2039 = vpop.f32.mrf.mxu0
  %v2040 = vadd.f32 0.0, %v2039
  %v2041 = vpop.f32.mrf.mxu0
  %2042 = vdwg.mxu0
  %2043 = vmatpush.bf16.msra.mxu0 %v194
  %2044 = vmatpush.bf16.msra.mxu0 %v190
  %2045 = vmatpush.bf16.msra.mxu0 %v186
  %2046 = vmatpush.bf16.msra.mxu0 %v182
  %2047 = vmatpush.bf16.msra.mxu0 %v178
  %2048 = vmatpush.bf16.msra.mxu0 %v174
  %2049 = vmatpush.bf16.msra.mxu0 %v170
  %2050 = vmatpush.bf16.msra.mxu0 %v166
  %2051 = vmatmul.bf16.gmra.mxu0 %v1996
  %v2052 = vpop.f32.mrf.mxu0
  %v2053 = vadd.f32 0.0, %v2052
  %v2054 = vpop.f32.mrf.mxu0
  %2055 = vdwg.mxu0
  %v2056 = vadd.f32 %v2000, %v2014
  %v2057 = vadd.f32 %v2001, %v2027
  %v2058 = vadd.f32 %v2002, %v2040
  %v2059 = vadd.f32 %v2003, %v2053
  %v2060 = vxor.u32 %v2056, 2147483648
  %v2061 = vmul.f32 %v2060, 1.442695
  %v2062 = vpow.pop %v2061
  %v2063 = vadd.f32 %v2062, 1.0
  %v2064 = vrcp.pop %v2063
  %v2065 = vmul.f32 %v2063, %v2064
  %v2066 = vsub.f32 1.0, %v2065
  %v2067 = vmul.f32 %v2064, %v2066
  %v2068 = vadd.f32 %v2064, %v2067
  %vm2069 = vweird.f32 %v2063
  %vm2070 = vweird.f32 %v2064
  %vm2071 = vmor %vm2069, %vm2070
  %v2072 = vsel %vm2071, %v2064, %v2068
  %v2073 = vand.u32 2147483647, %v2063
  %vm2074 = vcmp.eq.f32.partialorder %v2073, 8.507059e+37
  %v2075 = vand.u32 %v2063, 2147483648
  %v2076 = vor.u32 1.1754944e-38, %v2075
  %v2077 = vsel %vm2074, %v2076, %v2072
  %v2078 = vmul.f32 1.0, %v2077
  %v2079 = vxor.u32 %v2057, 2147483648
  %v2080 = vmul.f32 %v2079, 1.442695
  %v2081 = vpow.pop %v2080
  %v2082 = vadd.f32 %v2081, 1.0
  %v2083 = vrcp.pop %v2082
  %v2084 = vmul.f32 %v2082, %v2083
  %v2085 = vsub.f32 1.0, %v2084
  %v2086 = vmul.f32 %v2083, %v2085
  %v2087 = vadd.f32 %v2083, %v2086
  %vm2088 = vweird.f32 %v2082
  %vm2089 = vweird.f32 %v2083
  %vm2090 = vmor %vm2088, %vm2089
  %v2091 = vsel %vm2090, %v2083, %v2087
  %v2092 = vand.u32 2147483647, %v2082
  %vm2093 = vcmp.eq.f32.partialorder %v2092, 8.507059e+37
  %v2094 = vand.u32 %v2082, 2147483648
  %v2095 = vor.u32 1.1754944e-38, %v2094
  %v2096 = vsel %vm2093, %v2095, %v2091
  %v2097 = vmul.f32 1.0, %v2096
  %v2098 = vtanh.pop %v2058
  %v2099 = vxor.u32 %v2059, 2147483648
  %v2100 = vmul.f32 %v2099, 1.442695
  %v2101 = vpow.pop %v2100
  %v2102 = vadd.f32 %v2101, 1.0
  %v2103 = vrcp.pop %v2102
  %v2104 = vmul.f32 %v2102, %v2103
  %v2105 = vsub.f32 1.0, %v2104
  %v2106 = vmul.f32 %v2103, %v2105
  %v2107 = vadd.f32 %v2103, %v2106
  %vm2108 = vweird.f32 %v2102
  %vm2109 = vweird.f32 %v2103
  %vm2110 = vmor %vm2108, %vm2109
  %v2111 = vsel %vm2110, %v2103, %v2107
  %v2112 = vand.u32 2147483647, %v2102
  %vm2113 = vcmp.eq.f32.partialorder %v2112, 8.507059e+37
  %v2114 = vand.u32 %v2102, 2147483648
  %v2115 = vor.u32 1.1754944e-38, %v2114
  %v2116 = vsel %vm2113, %v2115, %v2111
  %v2117 = vmul.f32 1.0, %v2116
  %v2118 = vmul.f32 %v2097, %v1993
  %v2119 = vmul.f32 %v2078, %v2098
  %v2120 = vadd.f32 %v2118, %v2119
  %v2121 = vtanh.pop %v2120
  %v2122 = vmul.f32 %v2117, %v2121
  %v2123 = vpack.c.bf16 %v2122, %v2122
  %s2124 = scalar_lea.vmem %s4, 56
  %2125 = vst [vmem:[%s2124] sm:$0xf] %v2123
  %s2126 = scalar_lea.vmem %s0, 480
  %v2127 = vld [vmem:[%s2126] sm:$0xff]
  %v2128 = vld [vmem:[%s2126 + $0x8] sm:$0xff]
  %v2129 = vld [vmem:[%s2126 + $0x10] sm:$0xff]
  %v2130 = vld [vmem:[%s2126 + $0x18] sm:$0xff]
  %2131 = vmatpush.bf16.msra.mxu0 %v191
  %2132 = vmatpush.bf16.msra.mxu0 %v187
  %2133 = vmatpush.bf16.msra.mxu0 %v183
  %2134 = vmatpush.bf16.msra.mxu0 %v179
  %2135 = vmatpush.bf16.msra.mxu0 %v175
  %2136 = vmatpush.bf16.msra.mxu0 %v171
  %2137 = vmatpush.bf16.msra.mxu0 %v167
  %2138 = vmatpush.bf16.msra.mxu0 %v163
  %2139 = vmatmul.bf16.gmra.mxu0 %v2123
  %v2140 = vpop.f32.mrf.mxu0
  %v2141 = vadd.f32 0.0, %v2140
  %v2142 = vpop.f32.mrf.mxu0
  %2143 = vdwg.mxu0
  %2144 = vmatpush.bf16.msra.mxu0 %v192
  %2145 = vmatpush.bf16.msra.mxu0 %v188
  %2146 = vmatpush.bf16.msra.mxu0 %v184
  %2147 = vmatpush.bf16.msra.mxu0 %v180
  %2148 = vmatpush.bf16.msra.mxu0 %v176
  %2149 = vmatpush.bf16.msra.mxu0 %v172
  %2150 = vmatpush.bf16.msra.mxu0 %v168
  %2151 = vmatpush.bf16.msra.mxu0 %v164
  %2152 = vmatmul.bf16.gmra.mxu0 %v2123
  %v2153 = vpop.f32.mrf.mxu0
  %v2154 = vadd.f32 0.0, %v2153
  %v2155 = vpop.f32.mrf.mxu0
  %2156 = vdwg.mxu0
  %2157 = vmatpush.bf16.msra.mxu0 %v193
  %2158 = vmatpush.bf16.msra.mxu0 %v189
  %2159 = vmatpush.bf16.msra.mxu0 %v185
  %2160 = vmatpush.bf16.msra.mxu0 %v181
  %2161 = vmatpush.bf16.msra.mxu0 %v177
  %2162 = vmatpush.bf16.msra.mxu0 %v173
  %2163 = vmatpush.bf16.msra.mxu0 %v169
  %2164 = vmatpush.bf16.msra.mxu0 %v165
  %2165 = vmatmul.bf16.gmra.mxu0 %v2123
  %v2166 = vpop.f32.mrf.mxu0
  %v2167 = vadd.f32 0.0, %v2166
  %v2168 = vpop.f32.mrf.mxu0
  %2169 = vdwg.mxu0
  %2170 = vmatpush.bf16.msra.mxu0 %v194
  %2171 = vmatpush.bf16.msra.mxu0 %v190
  %2172 = vmatpush.bf16.msra.mxu0 %v186
  %2173 = vmatpush.bf16.msra.mxu0 %v182
  %2174 = vmatpush.bf16.msra.mxu0 %v178
  %2175 = vmatpush.bf16.msra.mxu0 %v174
  %2176 = vmatpush.bf16.msra.mxu0 %v170
  %2177 = vmatpush.bf16.msra.mxu0 %v166
  %2178 = vmatmul.bf16.gmra.mxu0 %v2123
  %v2179 = vpop.f32.mrf.mxu0
  %v2180 = vadd.f32 0.0, %v2179
  %v2181 = vpop.f32.mrf.mxu0
  %2182 = vdwg.mxu0
  %v2183 = vadd.f32 %v2127, %v2141
  %v2184 = vadd.f32 %v2128, %v2154
  %v2185 = vadd.f32 %v2129, %v2167
  %v2186 = vadd.f32 %v2130, %v2180
  %v2187 = vxor.u32 %v2183, 2147483648
  %v2188 = vmul.f32 %v2187, 1.442695
  %v2189 = vpow.pop %v2188
  %v2190 = vadd.f32 %v2189, 1.0
  %v2191 = vrcp.pop %v2190
  %v2192 = vmul.f32 %v2190, %v2191
  %v2193 = vsub.f32 1.0, %v2192
  %v2194 = vmul.f32 %v2191, %v2193
  %v2195 = vadd.f32 %v2191, %v2194
  %vm2196 = vweird.f32 %v2190
  %vm2197 = vweird.f32 %v2191
  %vm2198 = vmor %vm2196, %vm2197
  %v2199 = vsel %vm2198, %v2191, %v2195
  %v2200 = vand.u32 2147483647, %v2190
  %vm2201 = vcmp.eq.f32.partialorder %v2200, 8.507059e+37
  %v2202 = vand.u32 %v2190, 2147483648
  %v2203 = vor.u32 1.1754944e-38, %v2202
  %v2204 = vsel %vm2201, %v2203, %v2199
  %v2205 = vmul.f32 1.0, %v2204
  %v2206 = vxor.u32 %v2184, 2147483648
  %v2207 = vmul.f32 %v2206, 1.442695
  %v2208 = vpow.pop %v2207
  %v2209 = vadd.f32 %v2208, 1.0
  %v2210 = vrcp.pop %v2209
  %v2211 = vmul.f32 %v2209, %v2210
  %v2212 = vsub.f32 1.0, %v2211
  %v2213 = vmul.f32 %v2210, %v2212
  %v2214 = vadd.f32 %v2210, %v2213
  %vm2215 = vweird.f32 %v2209
  %vm2216 = vweird.f32 %v2210
  %vm2217 = vmor %vm2215, %vm2216
  %v2218 = vsel %vm2217, %v2210, %v2214
  %v2219 = vand.u32 2147483647, %v2209
  %vm2220 = vcmp.eq.f32.partialorder %v2219, 8.507059e+37
  %v2221 = vand.u32 %v2209, 2147483648
  %v2222 = vor.u32 1.1754944e-38, %v2221
  %v2223 = vsel %vm2220, %v2222, %v2218
  %v2224 = vmul.f32 1.0, %v2223
  %v2225 = vtanh.pop %v2185
  %v2226 = vxor.u32 %v2186, 2147483648
  %v2227 = vmul.f32 %v2226, 1.442695
  %v2228 = vpow.pop %v2227
  %v2229 = vadd.f32 %v2228, 1.0
  %v2230 = vrcp.pop %v2229
  %v2231 = vmul.f32 %v2229, %v2230
  %v2232 = vsub.f32 1.0, %v2231
  %v2233 = vmul.f32 %v2230, %v2232
  %v2234 = vadd.f32 %v2230, %v2233
  %vm2235 = vweird.f32 %v2229
  %vm2236 = vweird.f32 %v2230
  %vm2237 = vmor %vm2235, %vm2236
  %v2238 = vsel %vm2237, %v2230, %v2234
  %v2239 = vand.u32 2147483647, %v2229
  %vm2240 = vcmp.eq.f32.partialorder %v2239, 8.507059e+37
  %v2241 = vand.u32 %v2229, 2147483648
  %v2242 = vor.u32 1.1754944e-38, %v2241
  %v2243 = vsel %vm2240, %v2242, %v2238
  %v2244 = vmul.f32 1.0, %v2243
  %v2245 = vmul.f32 %v2224, %v2120
  %v2246 = vmul.f32 %v2205, %v2225
  %v2247 = vadd.f32 %v2245, %v2246
  %v2248 = vtanh.pop %v2247
  %v2249 = vmul.f32 %v2244, %v2248
  %v2250 = vpack.c.bf16 %v2249, %v2249
  %s2251 = scalar_lea.vmem %s4, 60
  %2252 = vst [vmem:[%s2251] sm:$0xf] %v2250
  %2253 = vst [vmem:[#allocation2] sm:$0xff] %v2249
  %2254 = vst [vmem:[#allocation3] sm:$0xff] %v2247
  // Predicated region
  $region22: #{lstm_model_forward.6} parent=0 // pred_check
    %p2255 = pneg %p20
  $region23: #{lstm_model_forward.6} parent=0 // pred_check_branch
    %2257 = sbr.rel (%p2255) target = $region25
  $region24: #{lstm_model_forward.6} parent=0 // pred_region
    %2258 = vst [vmem:[%s5] sm:$0xff] %v2249
    %2259 = vst [vmem:[%s6] sm:$0xff] %v2247
  $region25: #{lstm_model_forward.6} parent=0 // pred_fallthru
    _
  // Predicated region
  $region26: #{lstm_model_forward.6} parent=0 // pred_check
    _
  $region27: #{lstm_model_forward.6} parent=0 // pred_check_branch
    %2261 = sbr.rel (0) target = $region29
  $region28: #{lstm_model_forward.6} parent=0 // pred_region
    _
  $region29: #{lstm_model_forward.6} parent=0 // pred_fallthru
    _
  // Predicated region
  $region30: #{lstm_model_forward.6} parent=0 // pred_check
    _
  $region31: #{lstm_model_forward.6} parent=0 // pred_check_branch
    %2263 = sbr.rel (0) target = $region33
  $region32: #{lstm_model_forward.6} parent=0 // pred_region
    _
  $region33: #{lstm_model_forward.6} parent=0 // pred_fallthru
    _
  // Predicated region
  $region34: #{lstm_model_forward.6} parent=0 // pred_check
    _
  $region35: #{lstm_model_forward.6} parent=0 // pred_check_branch
    %2265 = sbr.rel (0) target = $region37
  $region36: #{lstm_model_forward.6} parent=0 // pred_region
    _
  $region37: #{lstm_model_forward.6} parent=0 // pred_fallthru
    _
  // Predicated region
  $region38: #{lstm_model_forward.6} parent=0 // pred_check
    _
  $region39: #{lstm_model_forward.6} parent=0 // pred_check_branch
    %2267 = sbr.rel (0) target = $region41
  $region40: #{lstm_model_forward.6} parent=0 // pred_region
    _
  $region41: #{lstm_model_forward.6} parent=0 // pred_fallthru
    _
  // Predicated region
  $region42: #{lstm_model_forward.6} parent=0 // pred_check
    _
  $region43: #{lstm_model_forward.6} parent=0 // pred_check_branch
    %2269 = sbr.rel (0) target = $region45
  $region44: #{lstm_model_forward.6} parent=0 // pred_region
    _
  $region45: #{lstm_model_forward.6} parent=0 // pred_fallthru
    _
  // Predicated region
  $region46: #{lstm_model_forward.6} parent=0 // pred_check
    _
  $region47: #{lstm_model_forward.6} parent=0 // pred_check_branch
    %2271 = sbr.rel (0) target = $region49
  $region48: #{lstm_model_forward.6} parent=0 // pred_region
    _
  $region49: #{lstm_model_forward.6} parent=0 // pred_fallthru
    _

// kernel: lstm_model_forward.8
$region0: #{lstm_model_forward.8}
  #allocation0 [shape = 'u32[]', space=smem, size = 0x4, offset = 0x4, fixed_abs, tag = 'smem constant byte address 0x4 - core index']
  #allocation1 [shape = 'u32[72,128]{1,0:T(1,128)}', space=vmem, size = 0x9000, scoped, tag = 'internal scratch']
  #allocation2 [shape = 'f32[8,128]{1,0:T(8,128)}', space=vmem, size = 0x1000, scoped, tag = 'scratch operand']
  #allocation3 [shape = 'f32[8,128]{1,0:T(8,128)}', space=vmem, size = 0x1000, scoped, tag = 'scratch operand']
  %s0 = inlined_call_operand.vmem [shape: f32[16,8,512], index: 0, kind: input, shape index: {}]
  %s1 = inlined_call_operand.hbm [shape: bf16[128,512], index: 1, kind: input, shape index: {}]
  %s2 = inlined_call_operand.vmem [shape: f32[8,128], index: 2, kind: input, shape index: {}]
  %s3 = inlined_call_operand.vmem [shape: f32[8,128], index: 3, kind: input, shape index: {}]
  %s4 = inlined_call_operand.vmem [shape: bf16[16,8,128], index: 4, kind: output, shape index: {0}]
  %s5 = inlined_call_operand.vmem [shape: f32[8,128], index: 5, kind: output, shape index: {1}]
  %s6 = inlined_call_operand.vmem [shape: f32[8,128], index: 6, kind: output, shape index: {2}]
  %7 = xla_tuple %s4, %s5, %s6
  %s8 = sld [smem:[#allocation0]]
  $region54: #{lstm_model_forward.8} parent=0
    _
  %s10 = ssub.s32 1, %s8
  %s11 = scalar_select 0, %s10, %s8
  $region1: #{lstm_model_forward.8} parent=0
    #allocation4 [shape = 'u8[131072]{0}', space=vmem, size = 0x20000, scoped, tag = 'input window, operand 1, single buffered']
    #allocation5 [shape = 's32[1]{0}', space=sflag, size = 0x4, scoped, tag = 'scoped memory for lstm_model_forward.8']
    %12 = vsyncpa [#allocation5], 0
    // Predicated region
    $region2: #{lstm_model_forward.8} parent=1 // pred_check
      _
    $region3: #{lstm_model_forward.8} parent=1 // pred_check_branch
      %14 = sbr.rel (0) target = $region5
    $region4: #{lstm_model_forward.8} parent=1 // pred_region
      _
    $region5: #{lstm_model_forward.8} parent=1 // pred_fallthru
      _
    // Predicated region
    $region6: #{lstm_model_forward.8} parent=1 // pred_check
      _
    $region7: #{lstm_model_forward.8} parent=1 // pred_check_branch
      %16 = sbr.rel (0) target = $region9
    $region8: #{lstm_model_forward.8} parent=1 // pred_region
      %18 = vsyncadd [#allocation5], 0
      %s19 = sshll.u32 %s1, 4
      %s20 = int_to_ptr.hbm [resolvable:$true] %s19
      %s21 = sshll.u32 [#allocation4], 4
      %s22 = int_to_ptr.vmem [resolvable:$true] %s21
      %27 = dma.hbm_to_vmem [thread:$0]  %s20, 4096, %s22, [#allocation5], 256, 256, 16
    $region9: #{lstm_model_forward.8} parent=1 // pred_fallthru
      _
    // Predicated region
    $region10: #{lstm_model_forward.8} parent=1 // pred_check
      _
    $region11: #{lstm_model_forward.8} parent=1 // pred_check_branch
      %29 = sbr.rel (0) target = $region13
    $region12: #{lstm_model_forward.8} parent=1 // pred_region
      _
    $region13: #{lstm_model_forward.8} parent=1 // pred_fallthru
      _
    // Predicated region
    $region14: #{lstm_model_forward.8} parent=1 // pred_check
      _
    $region15: #{lstm_model_forward.8} parent=1 // pred_check_branch
      %31 = sbr.rel (0) target = $region17
    $region16: #{lstm_model_forward.8} parent=1 // pred_region
      _
    $region17: #{lstm_model_forward.8} parent=1 // pred_fallthru
      _
    // Predicated region
    $region18: #{lstm_model_forward.8} parent=1 // pred_check
      _
    $region19: #{lstm_model_forward.8} parent=1 // pred_check_branch
      %33 = sbr.rel (0) target = $region21
    $region20: #{lstm_model_forward.8} parent=1 // pred_region
      %35 = dma.done [#allocation5], 4096
    $region21: #{lstm_model_forward.8} parent=1 // pred_fallthru
      _
    %p36 = scmp.eq.s32.totalorder 0, 0
    // Predicated region
    $region22: #{lstm_model_forward.8} parent=1 // pred_check
      %p37 = pneg %p36
    $region23: #{lstm_model_forward.8} parent=1 // pred_check_branch
      %39 = sbr.rel (%p37) target = $region25
    $region24: #{lstm_model_forward.8} parent=1 // pred_region
      %v40 = vld [vmem:[%s2] sm:$0xff]
      %41 = vst [vmem:[#allocation2] sm:$0xff] %v40
      %v42 = vld [vmem:[%s3] sm:$0xff]
      %43 = vst [vmem:[#allocation3] sm:$0xff] %v42
    $region25: #{lstm_model_forward.8} parent=1 // pred_fallthru
      _
    %v44 = vld [vmem:[#allocation4] sm:$0xff]
    %v45 = vld [vmem:[#allocation4 + $0x8] sm:$0xff]
    %v46 = vld [vmem:[#allocation4 + $0x10] sm:$0xff]
    %v47 = vld [vmem:[#allocation4 + $0x18] sm:$0xff]
    %v48 = vld [vmem:[#allocation4 + $0x20] sm:$0xff]
    %v49 = vld [vmem:[#allocation4 + $0x28] sm:$0xff]
    %v50 = vld [vmem:[#allocation4 + $0x30] sm:$0xff]
    %v51 = vld [vmem:[#allocation4 + $0x38] sm:$0xff]
    %v52 = vld [vmem:[#allocation4 + $0x40] sm:$0xff]
    %v53 = vld [vmem:[#allocation4 + $0x48] sm:$0xff]
    %v54 = vld [vmem:[#allocation4 + $0x50] sm:$0xff]
    %v55 = vld [vmem:[#allocation4 + $0x58] sm:$0xff]
    %v56 = vld [vmem:[#allocation4 + $0x60] sm:$0xff]
    %v57 = vld [vmem:[#allocation4 + $0x68] sm:$0xff]
    %v58 = vld [vmem:[#allocation4 + $0x70] sm:$0xff]
    %v59 = vld [vmem:[#allocation4 + $0x78] sm:$0xff]
    %v60 = vld [vmem:[#allocation4 + $0x80] sm:$0xff]
    %v61 = vld [vmem:[#allocation4 + $0x88] sm:$0xff]
    %v62 = vld [vmem:[#allocation4 + $0x90] sm:$0xff]
    %v63 = vld [vmem:[#allocation4 + $0x98] sm:$0xff]
    %v64 = vld [vmem:[#allocation4 + $0xa0] sm:$0xff]
    %v65 = vld [vmem:[#allocation4 + $0xa8] sm:$0xff]
    %v66 = vld [vmem:[#allocation4 + $0xb0] sm:$0xff]
    %v67 = vld [vmem:[#allocation4 + $0xb8] sm:$0xff]
    %v68 = vld [vmem:[#allocation4 + $0xc0] sm:$0xff]
    %v69 = vld [vmem:[#allocation4 + $0xc8] sm:$0xff]
    %v70 = vld [vmem:[#allocation4 + $0xd0] sm:$0xff]
    %v71 = vld [vmem:[#allocation4 + $0xd8] sm:$0xff]
    %v72 = vld [vmem:[#allocation4 + $0xe0] sm:$0xff]
    %v73 = vld [vmem:[#allocation4 + $0xe8] sm:$0xff]
    %v74 = vld [vmem:[#allocation4 + $0xf0] sm:$0xff]
    %v75 = vld [vmem:[#allocation4 + $0xf8] sm:$0xff]
    %v76 = vld [vmem:[#allocation2] sm:$0xff]
    %v77 = vld [vmem:[#allocation3] sm:$0xff]
    %v78 = vld [vmem:[%s0] sm:$0xff]
    %v79 = vld [vmem:[%s0 + $0x8] sm:$0xff]
    %v80 = vld [vmem:[%s0 + $0x10] sm:$0xff]
    %v81 = vld [vmem:[%s0 + $0x18] sm:$0xff]
    %v82 = vpack.c.bf16 %v76, %v76
    %v115 = vunpack.c.l.b16 %v44
    %v116 = vunpack.c.h.b16 %v44
    %v117 = vunpack.c.l.b16 %v45
    %v118 = vunpack.c.h.b16 %v45
    %v119 = vunpack.c.l.b16 %v46
    %v120 = vunpack.c.h.b16 %v46
    %v121 = vunpack.c.l.b16 %v47
    %v122 = vunpack.c.h.b16 %v47
    %v123 = vunpack.c.l.b16 %v48
    %v124 = vunpack.c.h.b16 %v48
    %v125 = vunpack.c.l.b16 %v49
    %v126 = vunpack.c.h.b16 %v49
    %v127 = vunpack.c.l.b16 %v50
    %v128 = vunpack.c.h.b16 %v50
    %v129 = vunpack.c.l.b16 %v51
    %v130 = vunpack.c.h.b16 %v51
    %v131 = vunpack.c.l.b16 %v52
    %v132 = vunpack.c.h.b16 %v52
    %v133 = vunpack.c.l.b16 %v53
    %v134 = vunpack.c.h.b16 %v53
    %v135 = vunpack.c.l.b16 %v54
    %v136 = vunpack.c.h.b16 %v54
    %v137 = vunpack.c.l.b16 %v55
    %v138 = vunpack.c.h.b16 %v55
    %v139 = vunpack.c.l.b16 %v56
    %v140 = vunpack.c.h.b16 %v56
    %v141 = vunpack.c.l.b16 %v57
    %v142 = vunpack.c.h.b16 %v57
    %v143 = vunpack.c.l.b16 %v58
    %v144 = vunpack.c.h.b16 %v58
    %v145 = vunpack.c.l.b16 %v59
    %v146 = vunpack.c.h.b16 %v59
    %v147 = vunpack.c.l.b16 %v60
    %v148 = vunpack.c.h.b16 %v60
    %v149 = vunpack.c.l.b16 %v61
    %v150 = vunpack.c.h.b16 %v61
    %v151 = vunpack.c.l.b16 %v62
    %v152 = vunpack.c.h.b16 %v62
    %v153 = vunpack.c.l.b16 %v63
    %v154 = vunpack.c.h.b16 %v63
    %v155 = vunpack.c.l.b16 %v64
    %v156 = vunpack.c.h.b16 %v64
    %v157 = vunpack.c.l.b16 %v65
    %v158 = vunpack.c.h.b16 %v65
    %v159 = vunpack.c.l.b16 %v66
    %v160 = vunpack.c.h.b16 %v66
    %v161 = vunpack.c.l.b16 %v67
    %v162 = vunpack.c.h.b16 %v67
    %v163 = vunpack.c.l.b16 %v68
    %v164 = vunpack.c.h.b16 %v68
    %v165 = vunpack.c.l.b16 %v69
    %v166 = vunpack.c.h.b16 %v69
    %v167 = vunpack.c.l.b16 %v70
    %v168 = vunpack.c.h.b16 %v70
    %v169 = vunpack.c.l.b16 %v71
    %v170 = vunpack.c.h.b16 %v71
    %v171 = vunpack.c.l.b16 %v72
    %v172 = vunpack.c.h.b16 %v72
    %v173 = vunpack.c.l.b16 %v73
    %v174 = vunpack.c.h.b16 %v73
    %v175 = vunpack.c.l.b16 %v74
    %v176 = vunpack.c.h.b16 %v74
    %v177 = vunpack.c.l.b16 %v75
    %v178 = vunpack.c.h.b16 %v75
    %v179 = vpack.c.b16 %v119, %v115
    %v180 = vpack.c.b16 %v120, %v116
    %v181 = vpack.c.b16 %v121, %v117
    %v182 = vpack.c.b16 %v122, %v118
    %v183 = vpack.c.b16 %v127, %v123
    %v184 = vpack.c.b16 %v128, %v124
    %v185 = vpack.c.b16 %v129, %v125
    %v186 = vpack.c.b16 %v130, %v126
    %v187 = vpack.c.b16 %v135, %v131
    %v188 = vpack.c.b16 %v136, %v132
    %v189 = vpack.c.b16 %v137, %v133
    %v190 = vpack.c.b16 %v138, %v134
    %v191 = vpack.c.b16 %v143, %v139
    %v192 = vpack.c.b16 %v144, %v140
    %v193 = vpack.c.b16 %v145, %v141
    %v194 = vpack.c.b16 %v146, %v142
    %v195 = vpack.c.b16 %v151, %v147
    %v196 = vpack.c.b16 %v152, %v148
    %v197 = vpack.c.b16 %v153, %v149
    %v198 = vpack.c.b16 %v154, %v150
    %v199 = vpack.c.b16 %v159, %v155
    %v200 = vpack.c.b16 %v160, %v156
    %v201 = vpack.c.b16 %v161, %v157
    %v202 = vpack.c.b16 %v162, %v158
    %v203 = vpack.c.b16 %v167, %v163
    %v204 = vpack.c.b16 %v168, %v164
    %v205 = vpack.c.b16 %v169, %v165
    %v206 = vpack.c.b16 %v170, %v166
    %v207 = vpack.c.b16 %v175, %v171
    %v208 = vpack.c.b16 %v176, %v172
    %v209 = vpack.c.b16 %v177, %v173
    %v210 = vpack.c.b16 %v178, %v174
    %243 = vmatpush.bf16.msra.mxu0 %v207
    %244 = vmatpush.bf16.msra.mxu0 %v203
    %245 = vmatpush.bf16.msra.mxu0 %v199
    %246 = vmatpush.bf16.msra.mxu0 %v195
    %247 = vmatpush.bf16.msra.mxu0 %v191
    %248 = vmatpush.bf16.msra.mxu0 %v187
    %249 = vmatpush.bf16.msra.mxu0 %v183
    %250 = vmatpush.bf16.msra.mxu0 %v179
    %251 = vmatmul.bf16.gmra.mxu0 %v82
    %v252 = vpop.f32.mrf.mxu0
    %v253 = vadd.f32 0.0, %v252
    %v254 = vpop.f32.mrf.mxu0
    %255 = vdwg.mxu0
    %256 = vmatpush.bf16.msra.mxu0 %v208
    %257 = vmatpush.bf16.msra.mxu0 %v204
    %258 = vmatpush.bf16.msra.mxu0 %v200
    %259 = vmatpush.bf16.msra.mxu0 %v196
    %260 = vmatpush.bf16.msra.mxu0 %v192
    %261 = vmatpush.bf16.msra.mxu0 %v188
    %262 = vmatpush.bf16.msra.mxu0 %v184
    %263 = vmatpush.bf16.msra.mxu0 %v180
    %264 = vmatmul.bf16.gmra.mxu0 %v82
    %v265 = vpop.f32.mrf.mxu0
    %v266 = vadd.f32 0.0, %v265
    %v267 = vpop.f32.mrf.mxu0
    %268 = vdwg.mxu0
    %269 = vmatpush.bf16.msra.mxu0 %v209
    %270 = vmatpush.bf16.msra.mxu0 %v205
    %271 = vmatpush.bf16.msra.mxu0 %v201
    %272 = vmatpush.bf16.msra.mxu0 %v197
    %273 = vmatpush.bf16.msra.mxu0 %v193
    %274 = vmatpush.bf16.msra.mxu0 %v189
    %275 = vmatpush.bf16.msra.mxu0 %v185
    %276 = vmatpush.bf16.msra.mxu0 %v181
    %277 = vmatmul.bf16.gmra.mxu0 %v82
    %v278 = vpop.f32.mrf.mxu0
    %v279 = vadd.f32 0.0, %v278
    %v280 = vpop.f32.mrf.mxu0
    %281 = vdwg.mxu0
    %282 = vmatpush.bf16.msra.mxu0 %v210
    %283 = vmatpush.bf16.msra.mxu0 %v206
    %284 = vmatpush.bf16.msra.mxu0 %v202
    %285 = vmatpush.bf16.msra.mxu0 %v198
    %286 = vmatpush.bf16.msra.mxu0 %v194
    %287 = vmatpush.bf16.msra.mxu0 %v190
    %288 = vmatpush.bf16.msra.mxu0 %v186
    %289 = vmatpush.bf16.msra.mxu0 %v182
    %290 = vmatmul.bf16.gmra.mxu0 %v82
    %v291 = vpop.f32.mrf.mxu0
    %v292 = vadd.f32 0.0, %v291
    %v293 = vpop.f32.mrf.mxu0
    %294 = vdwg.mxu0
    %v295 = vadd.f32 %v78, %v253
    %v296 = vadd.f32 %v79, %v266
    %v297 = vadd.f32 %v80, %v279
    %v298 = vadd.f32 %v81, %v292
    %v299 = vxor.u32 %v295, 2147483648
    %v300 = vmul.f32 %v299, 1.442695
    %v301 = vpow.pop %v300
    %v302 = vadd.f32 %v301, 1.0
    %v303 = vrcp.pop %v302
    %v304 = vmul.f32 %v302, %v303
    %v305 = vsub.f32 1.0, %v304
    %v306 = vmul.f32 %v303, %v305
    %v307 = vadd.f32 %v303, %v306
    %vm308 = vweird.f32 %v302
    %vm309 = vweird.f32 %v303
    %vm310 = vmor %vm308, %vm309
    %v311 = vsel %vm310, %v303, %v307
    %v312 = vand.u32 2147483647, %v302
    %vm313 = vcmp.eq.f32.partialorder %v312, 8.507059e+37
    %v314 = vand.u32 %v302, 2147483648
    %v315 = vor.u32 1.1754944e-38, %v314
    %v316 = vsel %vm313, %v315, %v311
    %v317 = vmul.f32 1.0, %v316
    %v318 = vxor.u32 %v296, 2147483648
    %v319 = vmul.f32 %v318, 1.442695
    %v320 = vpow.pop %v319
    %v321 = vadd.f32 %v320, 1.0
    %v322 = vrcp.pop %v321
    %v323 = vmul.f32 %v321, %v322
    %v324 = vsub.f32 1.0, %v323
    %v325 = vmul.f32 %v322, %v324
    %v326 = vadd.f32 %v322, %v325
    %vm327 = vweird.f32 %v321
    %vm328 = vweird.f32 %v322
    %vm329 = vmor %vm327, %vm328
    %v330 = vsel %vm329, %v322, %v326
    %v331 = vand.u32 2147483647, %v321
    %vm332 = vcmp.eq.f32.partialorder %v331, 8.507059e+37
    %v333 = vand.u32 %v321, 2147483648
    %v334 = vor.u32 1.1754944e-38, %v333
    %v335 = vsel %vm332, %v334, %v330
    %v336 = vmul.f32 1.0, %v335
    %v337 = vtanh.pop %v297
    %v338 = vxor.u32 %v298, 2147483648
    %v339 = vmul.f32 %v338, 1.442695
    %v340 = vpow.pop %v339
    %v341 = vadd.f32 %v340, 1.0
    %v342 = vrcp.pop %v341
    %v343 = vmul.f32 %v341, %v342
    %v344 = vsub.f32 1.0, %v343
    %v345 = vmul.f32 %v342, %v344
    %v346 = vadd.f32 %v342, %v345
    %vm347 = vweird.f32 %v341
    %vm348 = vweird.f32 %v342
    %vm349 = vmor %vm347, %vm348
    %v350 = vsel %vm349, %v342, %v346
    %v351 = vand.u32 2147483647, %v341
    %vm352 = vcmp.eq.f32.partialorder %v351, 8.507059e+37
    %v353 = vand.u32 %v341, 2147483648
    %v354 = vor.u32 1.1754944e-38, %v353
    %v355 = vsel %vm352, %v354, %v350
    %v356 = vmul.f32 1.0, %v355
    %v357 = vmul.f32 %v336, %v77
    %v358 = vmul.f32 %v317, %v337
    %v359 = vadd.f32 %v357, %v358
    %v360 = vtanh.pop %v359
    %v361 = vmul.f32 %v356, %v360
    %v362 = vpack.c.bf16 %v361, %v361
    %363 = vst [vmem:[%s4] sm:$0xf] %v362
    %s364 = scalar_lea.vmem %s0, 32
    %v365 = vld [vmem:[%s364] sm:$0xff]
    %v366 = vld [vmem:[%s364 + $0x8] sm:$0xff]
    %v367 = vld [vmem:[%s364 + $0x10] sm:$0xff]
    %v368 = vld [vmem:[%s364 + $0x18] sm:$0xff]
    %369 = vmatpush.bf16.msra.mxu0 %v207
    %370 = vmatpush.bf16.msra.mxu0 %v203
    %371 = vmatpush.bf16.msra.mxu0 %v199
    %372 = vmatpush.bf16.msra.mxu0 %v195
    %373 = vmatpush.bf16.msra.mxu0 %v191
    %374 = vmatpush.bf16.msra.mxu0 %v187
    %375 = vmatpush.bf16.msra.mxu0 %v183
    %376 = vmatpush.bf16.msra.mxu0 %v179
    %377 = vmatmul.bf16.gmra.mxu0 %v362
    %v378 = vpop.f32.mrf.mxu0
    %v379 = vadd.f32 0.0, %v378
    %v380 = vpop.f32.mrf.mxu0
    %381 = vdwg.mxu0
    %382 = vmatpush.bf16.msra.mxu0 %v208
    %383 = vmatpush.bf16.msra.mxu0 %v204
    %384 = vmatpush.bf16.msra.mxu0 %v200
    %385 = vmatpush.bf16.msra.mxu0 %v196
    %386 = vmatpush.bf16.msra.mxu0 %v192
    %387 = vmatpush.bf16.msra.mxu0 %v188
    %388 = vmatpush.bf16.msra.mxu0 %v184
    %389 = vmatpush.bf16.msra.mxu0 %v180
    %390 = vmatmul.bf16.gmra.mxu0 %v362
    %v391 = vpop.f32.mrf.mxu0
    %v392 = vadd.f32 0.0, %v391
    %v393 = vpop.f32.mrf.mxu0
    %394 = vdwg.mxu0
    %395 = vmatpush.bf16.msra.mxu0 %v209
    %396 = vmatpush.bf16.msra.mxu0 %v205
    %397 = vmatpush.bf16.msra.mxu0 %v201
    %398 = vmatpush.bf16.msra.mxu0 %v197
    %399 = vmatpush.bf16.msra.mxu0 %v193
    %400 = vmatpush.bf16.msra.mxu0 %v189
    %401 = vmatpush.bf16.msra.mxu0 %v185
    %402 = vmatpush.bf16.msra.mxu0 %v181
    %403 = vmatmul.bf16.gmra.mxu0 %v362
    %v404 = vpop.f32.mrf.mxu0
    %v405 = vadd.f32 0.0, %v404
    %v406 = vpop.f32.mrf.mxu0
    %407 = vdwg.mxu0
    %408 = vmatpush.bf16.msra.mxu0 %v210
    %409 = vmatpush.bf16.msra.mxu0 %v206
    %410 = vmatpush.bf16.msra.mxu0 %v202
    %411 = vmatpush.bf16.msra.mxu0 %v198
    %412 = vmatpush.bf16.msra.mxu0 %v194
    %413 = vmatpush.bf16.msra.mxu0 %v190
    %414 = vmatpush.bf16.msra.mxu0 %v186
    %415 = vmatpush.bf16.msra.mxu0 %v182
    %416 = vmatmul.bf16.gmra.mxu0 %v362
    %v417 = vpop.f32.mrf.mxu0
    %v418 = vadd.f32 0.0, %v417
    %v419 = vpop.f32.mrf.mxu0
    %420 = vdwg.mxu0
    %v421 = vadd.f32 %v365, %v379
    %v422 = vadd.f32 %v366, %v392
    %v423 = vadd.f32 %v367, %v405
    %v424 = vadd.f32 %v368, %v418
    %v425 = vxor.u32 %v421, 2147483648
    %v426 = vmul.f32 %v425, 1.442695
    %v427 = vpow.pop %v426
    %v428 = vadd.f32 %v427, 1.0
    %v429 = vrcp.pop %v428
    %v430 = vmul.f32 %v428, %v429
    %v431 = vsub.f32 1.0, %v430
    %v432 = vmul.f32 %v429, %v431
    %v433 = vadd.f32 %v429, %v432
    %vm434 = vweird.f32 %v428
    %vm435 = vweird.f32 %v429
    %vm436 = vmor %vm434, %vm435
    %v437 = vsel %vm436, %v429, %v433
    %v438 = vand.u32 2147483647, %v428
    %vm439 = vcmp.eq.f32.partialorder %v438, 8.507059e+37
    %v440 = vand.u32 %v428, 2147483648
    %v441 = vor.u32 1.1754944e-38, %v440
    %v442 = vsel %vm439, %v441, %v437
    %v443 = vmul.f32 1.0, %v442
    %v444 = vxor.u32 %v422, 2147483648
    %v445 = vmul.f32 %v444, 1.442695
    %v446 = vpow.pop %v445
    %v447 = vadd.f32 %v446, 1.0
    %v448 = vrcp.pop %v447
    %v449 = vmul.f32 %v447, %v448
    %v450 = vsub.f32 1.0, %v449
    %v451 = vmul.f32 %v448, %v450
    %v452 = vadd.f32 %v448, %v451
    %vm453 = vweird.f32 %v447
    %vm454 = vweird.f32 %v448
    %vm455 = vmor %vm453, %vm454
    %v456 = vsel %vm455, %v448, %v452
    %v457 = vand.u32 2147483647, %v447
    %vm458 = vcmp.eq.f32.partialorder %v457, 8.507059e+37
    %v459 = vand.u32 %v447, 2147483648
    %v460 = vor.u32 1.1754944e-38, %v459
    %v461 = vsel %vm458, %v460, %v456
    %v462 = vmul.f32 1.0, %v461
    %v463 = vtanh.pop %v423
    %v464 = vxor.u32 %v424, 2147483648
    %v465 = vmul.f32 %v464, 1.442695
    %v466 = vpow.pop %v465
    %v467 = vadd.f32 %v466, 1.0
    %v468 = vrcp.pop %v467
    %v469 = vmul.f32 %v467, %v468
    %v470 = vsub.f32 1.0, %v469
    %v471 = vmul.f32 %v468, %v470
    %v472 = vadd.f32 %v468, %v471
    %vm473 = vweird.f32 %v467
    %vm474 = vweird.f32 %v468
    %vm475 = vmor %vm473, %vm474
    %v476 = vsel %vm475, %v468, %v472
    %v477 = vand.u32 2147483647, %v467
    %vm478 = vcmp.eq.f32.partialorder %v477, 8.507059e+37
    %v479 = vand.u32 %v467, 2147483648
    %v480 = vor.u32 1.1754944e-38, %v479
    %v481 = vsel %vm478, %v480, %v476
    %v482 = vmul.f32 1.0, %v481
    %v483 = vmul.f32 %v462, %v359
    %v484 = vmul.f32 %v443, %v463
    %v485 = vadd.f32 %v483, %v484
    %v486 = vtanh.pop %v485
    %v487 = vmul.f32 %v482, %v486
    %v488 = vpack.c.bf16 %v487, %v487
    %s489 = scalar_lea.vmem %s4, 4
    %490 = vst [vmem:[%s489] sm:$0xf] %v488
    %s491 = scalar_lea.vmem %s0, 64
    %v492 = vld [vmem:[%s491] sm:$0xff]
    %v493 = vld [vmem:[%s491 + $0x8] sm:$0xff]
    %v494 = vld [vmem:[%s491 + $0x10] sm:$0xff]
    %v495 = vld [vmem:[%s491 + $0x18] sm:$0xff]
    %496 = vmatpush.bf16.msra.mxu0 %v207
    %497 = vmatpush.bf16.msra.mxu0 %v203
    %498 = vmatpush.bf16.msra.mxu0 %v199
    %499 = vmatpush.bf16.msra.mxu0 %v195
    %500 = vmatpush.bf16.msra.mxu0 %v191
    %501 = vmatpush.bf16.msra.mxu0 %v187
    %502 = vmatpush.bf16.msra.mxu0 %v183
    %503 = vmatpush.bf16.msra.mxu0 %v179
    %504 = vmatmul.bf16.gmra.mxu0 %v488
    %v505 = vpop.f32.mrf.mxu0
    %v506 = vadd.f32 0.0, %v505
    %v507 = vpop.f32.mrf.mxu0
    %508 = vdwg.mxu0
    %509 = vmatpush.bf16.msra.mxu0 %v208
    %510 = vmatpush.bf16.msra.mxu0 %v204
    %511 = vmatpush.bf16.msra.mxu0 %v200
    %512 = vmatpush.bf16.msra.mxu0 %v196
    %513 = vmatpush.bf16.msra.mxu0 %v192
    %514 = vmatpush.bf16.msra.mxu0 %v188
    %515 = vmatpush.bf16.msra.mxu0 %v184
    %516 = vmatpush.bf16.msra.mxu0 %v180
    %517 = vmatmul.bf16.gmra.mxu0 %v488
    %v518 = vpop.f32.mrf.mxu0
    %v519 = vadd.f32 0.0, %v518
    %v520 = vpop.f32.mrf.mxu0
    %521 = vdwg.mxu0
    %522 = vmatpush.bf16.msra.mxu0 %v209
    %523 = vmatpush.bf16.msra.mxu0 %v205
    %524 = vmatpush.bf16.msra.mxu0 %v201
    %525 = vmatpush.bf16.msra.mxu0 %v197
    %526 = vmatpush.bf16.msra.mxu0 %v193
    %527 = vmatpush.bf16.msra.mxu0 %v189
    %528 = vmatpush.bf16.msra.mxu0 %v185
    %529 = vmatpush.bf16.msra.mxu0 %v181
    %530 = vmatmul.bf16.gmra.mxu0 %v488
    %v531 = vpop.f32.mrf.mxu0
    %v532 = vadd.f32 0.0, %v531
    %v533 = vpop.f32.mrf.mxu0
    %534 = vdwg.mxu0
    %535 = vmatpush.bf16.msra.mxu0 %v210
    %536 = vmatpush.bf16.msra.mxu0 %v206
    %537 = vmatpush.bf16.msra.mxu0 %v202
    %538 = vmatpush.bf16.msra.mxu0 %v198
    %539 = vmatpush.bf16.msra.mxu0 %v194
    %540 = vmatpush.bf16.msra.mxu0 %v190
    %541 = vmatpush.bf16.msra.mxu0 %v186
    %542 = vmatpush.bf16.msra.mxu0 %v182
    %543 = vmatmul.bf16.gmra.mxu0 %v488
    %v544 = vpop.f32.mrf.mxu0
    %v545 = vadd.f32 0.0, %v544
    %v546 = vpop.f32.mrf.mxu0
    %547 = vdwg.mxu0
    %v548 = vadd.f32 %v492, %v506
    %v549 = vadd.f32 %v493, %v519
    %v550 = vadd.f32 %v494, %v532
    %v551 = vadd.f32 %v495, %v545
    %v552 = vxor.u32 %v548, 2147483648
    %v553 = vmul.f32 %v552, 1.442695
    %v554 = vpow.pop %v553
    %v555 = vadd.f32 %v554, 1.0
    %v556 = vrcp.pop %v555
    %v557 = vmul.f32 %v555, %v556
    %v558 = vsub.f32 1.0, %v557
    %v559 = vmul.f32 %v556, %v558
    %v560 = vadd.f32 %v556, %v559
    %vm561 = vweird.f32 %v555
    %vm562 = vweird.f32 %v556
    %vm563 = vmor %vm561, %vm562
    %v564 = vsel %vm563, %v556, %v560
    %v565 = vand.u32 2147483647, %v555
    %vm566 = vcmp.eq.f32.partialorder %v565, 8.507059e+37
    %v567 = vand.u32 %v555, 2147483648
    %v568 = vor.u32 1.1754944e-38, %v567
    %v569 = vsel %vm566, %v568, %v564
    %v570 = vmul.f32 1.0, %v569
    %v571 = vxor.u32 %v549, 2147483648
    %v572 = vmul.f32 %v571, 1.442695
    %v573 = vpow.pop %v572
    %v574 = vadd.f32 %v573, 1.0
    %v575 = vrcp.pop %v574
    %v576 = vmul.f32 %v574, %v575
    %v577 = vsub.f32 1.0, %v576
    %v578 = vmul.f32 %v575, %v577
    %v579 = vadd.f32 %v575, %v578
    %vm580 = vweird.f32 %v574
    %vm581 = vweird.f32 %v575
    %vm582 = vmor %vm580, %vm581
    %v583 = vsel %vm582, %v575, %v579
    %v584 = vand.u32 2147483647, %v574
    %vm585 = vcmp.eq.f32.partialorder %v584, 8.507059e+37
    %v586 = vand.u32 %v574, 2147483648
    %v587 = vor.u32 1.1754944e-38, %v586
    %v588 = vsel %vm585, %v587, %v583
    %v589 = vmul.f32 1.0, %v588
    %v590 = vtanh.pop %v550
    %v591 = vxor.u32 %v551, 2147483648
    %v592 = vmul.f32 %v591, 1.442695
    %v593 = vpow.pop %v592
    %v594 = vadd.f32 %v593, 1.0
    %v595 = vrcp.pop %v594
    %v596 = vmul.f32 %v594, %v595
    %v597 = vsub.f32 1.0, %v596
    %v598 = vmul.f32 %v595, %v597
    %v599 = vadd.f32 %v595, %v598
    %vm600 = vweird.f32 %v594
    %vm601 = vweird.f32 %v595
    %vm602 = vmor %vm600, %vm601
    %v603 = vsel %vm602, %v595, %v599
    %v604 = vand.u32 2147483647, %v594
    %vm605 = vcmp.eq.f32.partialorder %v604, 8.507059e+37
    %v606 = vand.u32 %v594, 2147483648
    %v607 = vor.u32 1.1754944e-38, %v606
    %v608 = vsel %vm605, %v607, %v603
    %v609 = vmul.f32 1.0, %v608
    %v610 = vmul.f32 %v589, %v485
    %v611 = vmul.f32 %v570, %v590
    %v612 = vadd.f32 %v610, %v611
    %v613 = vtanh.pop %v612
    %v614 = vmul.f32 %v609, %v613
    %v615 = vpack.c.bf16 %v614, %v614
    %s616 = scalar_lea.vmem %s4, 8
    %617 = vst [vmem:[%s616] sm:$0xf] %v615
    %s618 = scalar_lea.vmem %s0, 96
    %v619 = vld [vmem:[%s618] sm:$0xff]
    %v620 = vld [vmem:[%s618 + $0x8] sm:$0xff]
    %v621 = vld [vmem:[%s618 + $0x10] sm:$0xff]
    %v622 = vld [vmem:[%s618 + $0x18] sm:$0xff]
    %623 = vmatpush.bf16.msra.mxu0 %v207
    %624 = vmatpush.bf16.msra.mxu0 %v203
    %625 = vmatpush.bf16.msra.mxu0 %v199
    %626 = vmatpush.bf16.msra.mxu0 %v195
    %627 = vmatpush.bf16.msra.mxu0 %v191
    %628 = vmatpush.bf16.msra.mxu0 %v187
    %629 = vmatpush.bf16.msra.mxu0 %v183
    %630 = vmatpush.bf16.msra.mxu0 %v179
    %631 = vmatmul.bf16.gmra.mxu0 %v615
    %v632 = vpop.f32.mrf.mxu0
    %v633 = vadd.f32 0.0, %v632
    %v634 = vpop.f32.mrf.mxu0
    %635 = vdwg.mxu0
    %636 = vmatpush.bf16.msra.mxu0 %v208
    %637 = vmatpush.bf16.msra.mxu0 %v204
    %638 = vmatpush.bf16.msra.mxu0 %v200
    %639 = vmatpush.bf16.msra.mxu0 %v196
    %640 = vmatpush.bf16.msra.mxu0 %v192
    %641 = vmatpush.bf16.msra.mxu0 %v188
    %642 = vmatpush.bf16.msra.mxu0 %v184
    %643 = vmatpush.bf16.msra.mxu0 %v180
    %644 = vmatmul.bf16.gmra.mxu0 %v615
    %v645 = vpop.f32.mrf.mxu0
    %v646 = vadd.f32 0.0, %v645
    %v647 = vpop.f32.mrf.mxu0
    %648 = vdwg.mxu0
    %649 = vmatpush.bf16.msra.mxu0 %v209
    %650 = vmatpush.bf16.msra.mxu0 %v205
    %651 = vmatpush.bf16.msra.mxu0 %v201
    %652 = vmatpush.bf16.msra.mxu0 %v197
    %653 = vmatpush.bf16.msra.mxu0 %v193
    %654 = vmatpush.bf16.msra.mxu0 %v189
    %655 = vmatpush.bf16.msra.mxu0 %v185
    %656 = vmatpush.bf16.msra.mxu0 %v181
    %657 = vmatmul.bf16.gmra.mxu0 %v615
    %v658 = vpop.f32.mrf.mxu0
    %v659 = vadd.f32 0.0, %v658
    %v660 = vpop.f32.mrf.mxu0
    %661 = vdwg.mxu0
    %662 = vmatpush.bf16.msra.mxu0 %v210
    %663 = vmatpush.bf16.msra.mxu0 %v206
    %664 = vmatpush.bf16.msra.mxu0 %v202
    %665 = vmatpush.bf16.msra.mxu0 %v198
    %666 = vmatpush.bf16.msra.mxu0 %v194
    %667 = vmatpush.bf16.msra.mxu0 %v190
    %668 = vmatpush.bf16.msra.mxu0 %v186
    %669 = vmatpush.bf16.msra.mxu0 %v182
    %670 = vmatmul.bf16.gmra.mxu0 %v615
    %v671 = vpop.f32.mrf.mxu0
    %v672 = vadd.f32 0.0, %v671
    %v673 = vpop.f32.mrf.mxu0
    %674 = vdwg.mxu0
    %v675 = vadd.f32 %v619, %v633
    %v676 = vadd.f32 %v620, %v646
    %v677 = vadd.f32 %v621, %v659
    %v678 = vadd.f32 %v622, %v672
    %v679 = vxor.u32 %v675, 2147483648
    %v680 = vmul.f32 %v679, 1.442695
    %v681 = vpow.pop %v680
    %v682 = vadd.f32 %v681, 1.0
    %v683 = vrcp.pop %v682
    %v684 = vmul.f32 %v682, %v683
    %v685 = vsub.f32 1.0, %v684
    %v686 = vmul.f32 %v683, %v685
    %v687 = vadd.f32 %v683, %v686
    %vm688 = vweird.f32 %v682
    %vm689 = vweird.f32 %v683
    %vm690 = vmor %vm688, %vm689
    %v691 = vsel %vm690, %v683, %v687
    %v692 = vand.u32 2147483647, %v682
    %vm693 = vcmp.eq.f32.partialorder %v692, 8.507059e+37
    %v694 = vand.u32 %v682, 2147483648
    %v695 = vor.u32 1.1754944e-38, %v694
    %v696 = vsel %vm693, %v695, %v691
    %v697 = vmul.f32 1.0, %v696
    %v698 = vxor.u32 %v676, 2147483648
    %v699 = vmul.f32 %v698, 1.442695
    %v700 = vpow.pop %v699
    %v701 = vadd.f32 %v700, 1.0
    %v702 = vrcp.pop %v701
    %v703 = vmul.f32 %v701, %v702
    %v704 = vsub.f32 1.0, %v703
    %v705 = vmul.f32 %v702, %v704
    %v706 = vadd.f32 %v702, %v705
    %vm707 = vweird.f32 %v701
    %vm708 = vweird.f32 %v702
    %vm709 = vmor %vm707, %vm708
    %v710 = vsel %vm709, %v702, %v706
    %v711 = vand.u32 2147483647, %v701
    %vm712 = vcmp.eq.f32.partialorder %v711, 8.507059e+37
    %v713 = vand.u32 %v701, 2147483648
    %v714 = vor.u32 1.1754944e-38, %v713
    %v715 = vsel %vm712, %v714, %v710
    %v716 = vmul.f32 1.0, %v715
    %v717 = vtanh.pop %v677
    %v718 = vxor.u32 %v678, 2147483648
    %v719 = vmul.f32 %v718, 1.442695
    %v720 = vpow.pop %v719
    %v721 = vadd.f32 %v720, 1.0
    %v722 = vrcp.pop %v721
    %v723 = vmul.f32 %v721, %v722
    %v724 = vsub.f32 1.0, %v723
    %v725 = vmul.f32 %v722, %v724
    %v726 = vadd.f32 %v722, %v725
    %vm727 = vweird.f32 %v721
    %vm728 = vweird.f32 %v722
    %vm729 = vmor %vm727, %vm728
    %v730 = vsel %vm729, %v722, %v726
    %v731 = vand.u32 2147483647, %v721
    %vm732 = vcmp.eq.f32.partialorder %v731, 8.507059e+37
    %v733 = vand.u32 %v721, 2147483648
    %v734 = vor.u32 1.1754944e-38, %v733
    %v735 = vsel %vm732, %v734, %v730
    %v736 = vmul.f32 1.0, %v735
    %v737 = vmul.f32 %v716, %v612
    %v738 = vmul.f32 %v697, %v717
    %v739 = vadd.f32 %v737, %v738
    %v740 = vtanh.pop %v739
    %v741 = vmul.f32 %v736, %v740
    %v742 = vpack.c.bf16 %v741, %v741
    %s743 = scalar_lea.vmem %s4, 12
    %744 = vst [vmem:[%s743] sm:$0xf] %v742
    %s745 = scalar_lea.vmem %s0, 128
    %v746 = vld [vmem:[%s745] sm:$0xff]
    %v747 = vld [vmem:[%s745 + $0x8] sm:$0xff]
    %v748 = vld [vmem:[%s745 + $0x10] sm:$0xff]
    %v749 = vld [vmem:[%s745 + $0x18] sm:$0xff]
    %750 = vmatpush.bf16.msra.mxu0 %v207
    %751 = vmatpush.bf16.msra.mxu0 %v203
    %752 = vmatpush.bf16.msra.mxu0 %v199
    %753 = vmatpush.bf16.msra.mxu0 %v195
    %754 = vmatpush.bf16.msra.mxu0 %v191
    %755 = vmatpush.bf16.msra.mxu0 %v187
    %756 = vmatpush.bf16.msra.mxu0 %v183
    %757 = vmatpush.bf16.msra.mxu0 %v179
    %758 = vmatmul.bf16.gmra.mxu0 %v742
    %v759 = vpop.f32.mrf.mxu0
    %v760 = vadd.f32 0.0, %v759
    %v761 = vpop.f32.mrf.mxu0
    %762 = vdwg.mxu0
    %763 = vmatpush.bf16.msra.mxu0 %v208
    %764 = vmatpush.bf16.msra.mxu0 %v204
    %765 = vmatpush.bf16.msra.mxu0 %v200
    %766 = vmatpush.bf16.msra.mxu0 %v196
    %767 = vmatpush.bf16.msra.mxu0 %v192
    %768 = vmatpush.bf16.msra.mxu0 %v188
    %769 = vmatpush.bf16.msra.mxu0 %v184
    %770 = vmatpush.bf16.msra.mxu0 %v180
    %771 = vmatmul.bf16.gmra.mxu0 %v742
    %v772 = vpop.f32.mrf.mxu0
    %v773 = vadd.f32 0.0, %v772
    %v774 = vpop.f32.mrf.mxu0
    %775 = vdwg.mxu0
    %776 = vmatpush.bf16.msra.mxu0 %v209
    %777 = vmatpush.bf16.msra.mxu0 %v205
    %778 = vmatpush.bf16.msra.mxu0 %v201
    %779 = vmatpush.bf16.msra.mxu0 %v197
    %780 = vmatpush.bf16.msra.mxu0 %v193
    %781 = vmatpush.bf16.msra.mxu0 %v189
    %782 = vmatpush.bf16.msra.mxu0 %v185
    %783 = vmatpush.bf16.msra.mxu0 %v181
    %784 = vmatmul.bf16.gmra.mxu0 %v742
    %v785 = vpop.f32.mrf.mxu0
    %v786 = vadd.f32 0.0, %v785
    %v787 = vpop.f32.mrf.mxu0
    %788 = vdwg.mxu0
    %789 = vmatpush.bf16.msra.mxu0 %v210
    %790 = vmatpush.bf16.msra.mxu0 %v206
    %791 = vmatpush.bf16.msra.mxu0 %v202
    %792 = vmatpush.bf16.msra.mxu0 %v198
    %793 = vmatpush.bf16.msra.mxu0 %v194
    %794 = vmatpush.bf16.msra.mxu0 %v190
    %795 = vmatpush.bf16.msra.mxu0 %v186
    %796 = vmatpush.bf16.msra.mxu0 %v182
    %797 = vmatmul.bf16.gmra.mxu0 %v742
    %v798 = vpop.f32.mrf.mxu0
    %v799 = vadd.f32 0.0, %v798
    %v800 = vpop.f32.mrf.mxu0
    %801 = vdwg.mxu0
    %v802 = vadd.f32 %v746, %v760
    %v803 = vadd.f32 %v747, %v773
    %v804 = vadd.f32 %v748, %v786
    %v805 = vadd.f32 %v749, %v799
    %v806 = vxor.u32 %v802, 2147483648
    %v807 = vmul.f32 %v806, 1.442695
    %v808 = vpow.pop %v807
    %v809 = vadd.f32 %v808, 1.0
    %v810 = vrcp.pop %v809
    %v811 = vmul.f32 %v809, %v810
    %v812 = vsub.f32 1.0, %v811
    %v813 = vmul.f32 %v810, %v812
    %v814 = vadd.f32 %v810, %v813
    %vm815 = vweird.f32 %v809
    %vm816 = vweird.f32 %v810
    %vm817 = vmor %vm815, %vm816
    %v818 = vsel %vm817, %v810, %v814
    %v819 = vand.u32 2147483647, %v809
    %vm820 = vcmp.eq.f32.partialorder %v819, 8.507059e+37
    %v821 = vand.u32 %v809, 2147483648
    %v822 = vor.u32 1.1754944e-38, %v821
    %v823 = vsel %vm820, %v822, %v818
    %v824 = vmul.f32 1.0, %v823
    %v825 = vxor.u32 %v803, 2147483648
    %v826 = vmul.f32 %v825, 1.442695
    %v827 = vpow.pop %v826
    %v828 = vadd.f32 %v827, 1.0
    %v829 = vrcp.pop %v828
    %v830 = vmul.f32 %v828, %v829
    %v831 = vsub.f32 1.0, %v830
    %v832 = vmul.f32 %v829, %v831
    %v833 = vadd.f32 %v829, %v832
    %vm834 = vweird.f32 %v828
    %vm835 = vweird.f32 %v829
    %vm836 = vmor %vm834, %vm835
    %v837 = vsel %vm836, %v829, %v833
    %v838 = vand.u32 2147483647, %v828
    %vm839 = vcmp.eq.f32.partialorder %v838, 8.507059e+37
    %v840 = vand.u32 %v828, 2147483648
    %v841 = vor.u32 1.1754944e-38, %v840
    %v842 = vsel %vm839, %v841, %v837
    %v843 = vmul.f32 1.0, %v842
    %v844 = vtanh.pop %v804
    %v845 = vxor.u32 %v805, 2147483648
    %v846 = vmul.f32 %v845, 1.442695
    %v847 = vpow.pop %v846
    %v848 = vadd.f32 %v847, 1.0
    %v849 = vrcp.pop %v848
    %v850 = vmul.f32 %v848, %v849
    %v851 = vsub.f32 1.0, %v850
    %v852 = vmul.f32 %v849, %v851
    %v853 = vadd.f32 %v849, %v852
    %vm854 = vweird.f32 %v848
    %vm855 = vweird.f32 %v849
    %vm856 = vmor %vm854, %vm855
    %v857 = vsel %vm856, %v849, %v853
    %v858 = vand.u32 2147483647, %v848
    %vm859 = vcmp.eq.f32.partialorder %v858, 8.507059e+37
    %v860 = vand.u32 %v848, 2147483648
    %v861 = vor.u32 1.1754944e-38, %v860
    %v862 = vsel %vm859, %v861, %v857
    %v863 = vmul.f32 1.0, %v862
    %v864 = vmul.f32 %v843, %v739
    %v865 = vmul.f32 %v824, %v844
    %v866 = vadd.f32 %v864, %v865
    %v867 = vtanh.pop %v866
    %v868 = vmul.f32 %v863, %v867
    %v869 = vpack.c.bf16 %v868, %v868
    %s870 = scalar_lea.vmem %s4, 16
    %871 = vst [vmem:[%s870] sm:$0xf] %v869
    %s872 = scalar_lea.vmem %s0, 160
    %v873 = vld [vmem:[%s872] sm:$0xff]
    %v874 = vld [vmem:[%s872 + $0x8] sm:$0xff]
    %v875 = vld [vmem:[%s872 + $0x10] sm:$0xff]
    %v876 = vld [vmem:[%s872 + $0x18] sm:$0xff]
    %877 = vmatpush.bf16.msra.mxu0 %v207
    %878 = vmatpush.bf16.msra.mxu0 %v203
    %879 = vmatpush.bf16.msra.mxu0 %v199
    %880 = vmatpush.bf16.msra.mxu0 %v195
    %881 = vmatpush.bf16.msra.mxu0 %v191
    %882 = vmatpush.bf16.msra.mxu0 %v187
    %883 = vmatpush.bf16.msra.mxu0 %v183
    %884 = vmatpush.bf16.msra.mxu0 %v179
    %885 = vmatmul.bf16.gmra.mxu0 %v869
    %v886 = vpop.f32.mrf.mxu0
    %v887 = vadd.f32 0.0, %v886
    %v888 = vpop.f32.mrf.mxu0
    %889 = vdwg.mxu0
    %890 = vmatpush.bf16.msra.mxu0 %v208
    %891 = vmatpush.bf16.msra.mxu0 %v204
    %892 = vmatpush.bf16.msra.mxu0 %v200
    %893 = vmatpush.bf16.msra.mxu0 %v196
    %894 = vmatpush.bf16.msra.mxu0 %v192
    %895 = vmatpush.bf16.msra.mxu0 %v188
    %896 = vmatpush.bf16.msra.mxu0 %v184
    %897 = vmatpush.bf16.msra.mxu0 %v180
    %898 = vmatmul.bf16.gmra.mxu0 %v869
    %v899 = vpop.f32.mrf.mxu0
    %v900 = vadd.f32 0.0, %v899
    %v901 = vpop.f32.mrf.mxu0
    %902 = vdwg.mxu0
    %903 = vmatpush.bf16.msra.mxu0 %v209
    %904 = vmatpush.bf16.msra.mxu0 %v205
    %905 = vmatpush.bf16.msra.mxu0 %v201
    %906 = vmatpush.bf16.msra.mxu0 %v197
    %907 = vmatpush.bf16.msra.mxu0 %v193
    %908 = vmatpush.bf16.msra.mxu0 %v189
    %909 = vmatpush.bf16.msra.mxu0 %v185
    %910 = vmatpush.bf16.msra.mxu0 %v181
    %911 = vmatmul.bf16.gmra.mxu0 %v869
    %v912 = vpop.f32.mrf.mxu0
    %v913 = vadd.f32 0.0, %v912
    %v914 = vpop.f32.mrf.mxu0
    %915 = vdwg.mxu0
    %916 = vmatpush.bf16.msra.mxu0 %v210
    %917 = vmatpush.bf16.msra.mxu0 %v206
    %918 = vmatpush.bf16.msra.mxu0 %v202
    %919 = vmatpush.bf16.msra.mxu0 %v198
    %920 = vmatpush.bf16.msra.mxu0 %v194
    %921 = vmatpush.bf16.msra.mxu0 %v190
    %922 = vmatpush.bf16.msra.mxu0 %v186
    %923 = vmatpush.bf16.msra.mxu0 %v182
    %924 = vmatmul.bf16.gmra.mxu0 %v869
    %v925 = vpop.f32.mrf.mxu0
    %v926 = vadd.f32 0.0, %v925
    %v927 = vpop.f32.mrf.mxu0
    %928 = vdwg.mxu0
    %v929 = vadd.f32 %v873, %v887
    %v930 = vadd.f32 %v874, %v900
    %v931 = vadd.f32 %v875, %v913
    %v932 = vadd.f32 %v876, %v926
    %v933 = vxor.u32 %v929, 2147483648
    %v934 = vmul.f32 %v933, 1.442695
    %v935 = vpow.pop %v934
    %v936 = vadd.f32 %v935, 1.0
    %v937 = vrcp.pop %v936
    %v938 = vmul.f32 %v936, %v937
    %v939 = vsub.f32 1.0, %v938
    %v940 = vmul.f32 %v937, %v939
    %v941 = vadd.f32 %v937, %v940
    %vm942 = vweird.f32 %v936
    %vm943 = vweird.f32 %v937
    %vm944 = vmor %vm942, %vm943
    %v945 = vsel %vm944, %v937, %v941
    %v946 = vand.u32 2147483647, %v936
    %vm947 = vcmp.eq.f32.partialorder %v946, 8.507059e+37
    %v948 = vand.u32 %v936, 2147483648
    %v949 = vor.u32 1.1754944e-38, %v948
    %v950 = vsel %vm947, %v949, %v945
    %v951 = vmul.f32 1.0, %v950
    %v952 = vxor.u32 %v930, 2147483648
    %v953 = vmul.f32 %v952, 1.442695
    %v954 = vpow.pop %v953
    %v955 = vadd.f32 %v954, 1.0
    %v956 = vrcp.pop %v955
    %v957 = vmul.f32 %v955, %v956
    %v958 = vsub.f32 1.0, %v957
    %v959 = vmul.f32 %v956, %v958
    %v960 = vadd.f32 %v956, %v959
    %vm961 = vweird.f32 %v955
    %vm962 = vweird.f32 %v956
    %vm963 = vmor %vm961, %vm962
    %v964 = vsel %vm963, %v956, %v960
    %v965 = vand.u32 2147483647, %v955
    %vm966 = vcmp.eq.f32.partialorder %v965, 8.507059e+37
    %v967 = vand.u32 %v955, 2147483648
    %v968 = vor.u32 1.1754944e-38, %v967
    %v969 = vsel %vm966, %v968, %v964
    %v970 = vmul.f32 1.0, %v969
    %v971 = vtanh.pop %v931
    %v972 = vxor.u32 %v932, 2147483648
    %v973 = vmul.f32 %v972, 1.442695
    %v974 = vpow.pop %v973
    %v975 = vadd.f32 %v974, 1.0
    %v976 = vrcp.pop %v975
    %v977 = vmul.f32 %v975, %v976
    %v978 = vsub.f32 1.0, %v977
    %v979 = vmul.f32 %v976, %v978
    %v980 = vadd.f32 %v976, %v979
    %vm981 = vweird.f32 %v975
    %vm982 = vweird.f32 %v976
    %vm983 = vmor %vm981, %vm982
    %v984 = vsel %vm983, %v976, %v980
    %v985 = vand.u32 2147483647, %v975
    %vm986 = vcmp.eq.f32.partialorder %v985, 8.507059e+37
    %v987 = vand.u32 %v975, 2147483648
    %v988 = vor.u32 1.1754944e-38, %v987
    %v989 = vsel %vm986, %v988, %v984
    %v990 = vmul.f32 1.0, %v989
    %v991 = vmul.f32 %v970, %v866
    %v992 = vmul.f32 %v951, %v971
    %v993 = vadd.f32 %v991, %v992
    %v994 = vtanh.pop %v993
    %v995 = vmul.f32 %v990, %v994
    %v996 = vpack.c.bf16 %v995, %v995
    %s997 = scalar_lea.vmem %s4, 20
    %998 = vst [vmem:[%s997] sm:$0xf] %v996
    %s999 = scalar_lea.vmem %s0, 192
    %v1000 = vld [vmem:[%s999] sm:$0xff]
    %v1001 = vld [vmem:[%s999 + $0x8] sm:$0xff]
    %v1002 = vld [vmem:[%s999 + $0x10] sm:$0xff]
    %v1003 = vld [vmem:[%s999 + $0x18] sm:$0xff]
    %1004 = vmatpush.bf16.msra.mxu0 %v207
    %1005 = vmatpush.bf16.msra.mxu0 %v203
    %1006 = vmatpush.bf16.msra.mxu0 %v199
    %1007 = vmatpush.bf16.msra.mxu0 %v195
    %1008 = vmatpush.bf16.msra.mxu0 %v191
    %1009 = vmatpush.bf16.msra.mxu0 %v187
    %1010 = vmatpush.bf16.msra.mxu0 %v183
    %1011 = vmatpush.bf16.msra.mxu0 %v179
    %1012 = vmatmul.bf16.gmra.mxu0 %v996
    %v1013 = vpop.f32.mrf.mxu0
    %v1014 = vadd.f32 0.0, %v1013
    %v1015 = vpop.f32.mrf.mxu0
    %1016 = vdwg.mxu0
    %1017 = vmatpush.bf16.msra.mxu0 %v208
    %1018 = vmatpush.bf16.msra.mxu0 %v204
    %1019 = vmatpush.bf16.msra.mxu0 %v200
    %1020 = vmatpush.bf16.msra.mxu0 %v196
    %1021 = vmatpush.bf16.msra.mxu0 %v192
    %1022 = vmatpush.bf16.msra.mxu0 %v188
    %1023 = vmatpush.bf16.msra.mxu0 %v184
    %1024 = vmatpush.bf16.msra.mxu0 %v180
    %1025 = vmatmul.bf16.gmra.mxu0 %v996
    %v1026 = vpop.f32.mrf.mxu0
    %v1027 = vadd.f32 0.0, %v1026
    %v1028 = vpop.f32.mrf.mxu0
    %1029 = vdwg.mxu0
    %1030 = vmatpush.bf16.msra.mxu0 %v209
    %1031 = vmatpush.bf16.msra.mxu0 %v205
    %1032 = vmatpush.bf16.msra.mxu0 %v201
    %1033 = vmatpush.bf16.msra.mxu0 %v197
    %1034 = vmatpush.bf16.msra.mxu0 %v193
    %1035 = vmatpush.bf16.msra.mxu0 %v189
    %1036 = vmatpush.bf16.msra.mxu0 %v185
    %1037 = vmatpush.bf16.msra.mxu0 %v181
    %1038 = vmatmul.bf16.gmra.mxu0 %v996
    %v1039 = vpop.f32.mrf.mxu0
    %v1040 = vadd.f32 0.0, %v1039
    %v1041 = vpop.f32.mrf.mxu0
    %1042 = vdwg.mxu0
    %1043 = vmatpush.bf16.msra.mxu0 %v210
    %1044 = vmatpush.bf16.msra.mxu0 %v206
    %1045 = vmatpush.bf16.msra.mxu0 %v202
    %1046 = vmatpush.bf16.msra.mxu0 %v198
    %1047 = vmatpush.bf16.msra.mxu0 %v194
    %1048 = vmatpush.bf16.msra.mxu0 %v190
    %1049 = vmatpush.bf16.msra.mxu0 %v186
    %1050 = vmatpush.bf16.msra.mxu0 %v182
    %1051 = vmatmul.bf16.gmra.mxu0 %v996
    %v1052 = vpop.f32.mrf.mxu0
    %v1053 = vadd.f32 0.0, %v1052
    %v1054 = vpop.f32.mrf.mxu0
    %1055 = vdwg.mxu0
    %v1056 = vadd.f32 %v1000, %v1014
    %v1057 = vadd.f32 %v1001, %v1027
    %v1058 = vadd.f32 %v1002, %v1040
    %v1059 = vadd.f32 %v1003, %v1053
    %v1060 = vxor.u32 %v1056, 2147483648
    %v1061 = vmul.f32 %v1060, 1.442695
    %v1062 = vpow.pop %v1061
    %v1063 = vadd.f32 %v1062, 1.0
    %v1064 = vrcp.pop %v1063
    %v1065 = vmul.f32 %v1063, %v1064
    %v1066 = vsub.f32 1.0, %v1065
    %v1067 = vmul.f32 %v1064, %v1066
    %v1068 = vadd.f32 %v1064, %v1067
    %vm1069 = vweird.f32 %v1063
    %vm1070 = vweird.f32 %v1064
    %vm1071 = vmor %vm1069, %vm1070
    %v1072 = vsel %vm1071, %v1064, %v1068
    %v1073 = vand.u32 2147483647, %v1063
    %vm1074 = vcmp.eq.f32.partialorder %v1073, 8.507059e+37
    %v1075 = vand.u32 %v1063, 2147483648
    %v1076 = vor.u32 1.1754944e-38, %v1075
    %v1077 = vsel %vm1074, %v1076, %v1072
    %v1078 = vmul.f32 1.0, %v1077
    %v1079 = vxor.u32 %v1057, 2147483648
    %v1080 = vmul.f32 %v1079, 1.442695
    %v1081 = vpow.pop %v1080
    %v1082 = vadd.f32 %v1081, 1.0
    %v1083 = vrcp.pop %v1082
    %v1084 = vmul.f32 %v1082, %v1083
    %v1085 = vsub.f32 1.0, %v1084
    %v1086 = vmul.f32 %v1083, %v1085
    %v1087 = vadd.f32 %v1083, %v1086
    %vm1088 = vweird.f32 %v1082
    %vm1089 = vweird.f32 %v1083
    %vm1090 = vmor %vm1088, %vm1089
    %v1091 = vsel %vm1090, %v1083, %v1087
    %v1092 = vand.u32 2147483647, %v1082
    %vm1093 = vcmp.eq.f32.partialorder %v1092, 8.507059e+37
    %v1094 = vand.u32 %v1082, 2147483648
    %v1095 = vor.u32 1.1754944e-38, %v1094
    %v1096 = vsel %vm1093, %v1095, %v1091
    %v1097 = vmul.f32 1.0, %v1096
    %v1098 = vtanh.pop %v1058
    %v1099 = vxor.u32 %v1059, 2147483648
    %v1100 = vmul.f32 %v1099, 1.442695
    %v1101 = vpow.pop %v1100
    %v1102 = vadd.f32 %v1101, 1.0
    %v1103 = vrcp.pop %v1102
    %v1104 = vmul.f32 %v1102, %v1103
    %v1105 = vsub.f32 1.0, %v1104
    %v1106 = vmul.f32 %v1103, %v1105
    %v1107 = vadd.f32 %v1103, %v1106
    %vm1108 = vweird.f32 %v1102
    %vm1109 = vweird.f32 %v1103
    %vm1110 = vmor %vm1108, %vm1109
    %v1111 = vsel %vm1110, %v1103, %v1107
    %v1112 = vand.u32 2147483647, %v1102
    %vm1113 = vcmp.eq.f32.partialorder %v1112, 8.507059e+37
    %v1114 = vand.u32 %v1102, 2147483648
    %v1115 = vor.u32 1.1754944e-38, %v1114
    %v1116 = vsel %vm1113, %v1115, %v1111
    %v1117 = vmul.f32 1.0, %v1116
    %v1118 = vmul.f32 %v1097, %v993
    %v1119 = vmul.f32 %v1078, %v1098
    %v1120 = vadd.f32 %v1118, %v1119
    %v1121 = vtanh.pop %v1120
    %v1122 = vmul.f32 %v1117, %v1121
    %v1123 = vpack.c.bf16 %v1122, %v1122
    %s1124 = scalar_lea.vmem %s4, 24
    %1125 = vst [vmem:[%s1124] sm:$0xf] %v1123
    %s1126 = scalar_lea.vmem %s0, 224
    %v1127 = vld [vmem:[%s1126] sm:$0xff]
    %v1128 = vld [vmem:[%s1126 + $0x8] sm:$0xff]
    %v1129 = vld [vmem:[%s1126 + $0x10] sm:$0xff]
    %v1130 = vld [vmem:[%s1126 + $0x18] sm:$0xff]
    %1131 = vmatpush.bf16.msra.mxu0 %v207
    %1132 = vmatpush.bf16.msra.mxu0 %v203
    %1133 = vmatpush.bf16.msra.mxu0 %v199
    %1134 = vmatpush.bf16.msra.mxu0 %v195
    %1135 = vmatpush.bf16.msra.mxu0 %v191
    %1136 = vmatpush.bf16.msra.mxu0 %v187
    %1137 = vmatpush.bf16.msra.mxu0 %v183
    %1138 = vmatpush.bf16.msra.mxu0 %v179
    %1139 = vmatmul.bf16.gmra.mxu0 %v1123
    %v1140 = vpop.f32.mrf.mxu0
    %v1141 = vadd.f32 0.0, %v1140
    %v1142 = vpop.f32.mrf.mxu0
    %1143 = vdwg.mxu0
    %1144 = vmatpush.bf16.msra.mxu0 %v208
    %1145 = vmatpush.bf16.msra.mxu0 %v204
    %1146 = vmatpush.bf16.msra.mxu0 %v200
    %1147 = vmatpush.bf16.msra.mxu0 %v196
    %1148 = vmatpush.bf16.msra.mxu0 %v192
    %1149 = vmatpush.bf16.msra.mxu0 %v188
    %1150 = vmatpush.bf16.msra.mxu0 %v184
    %1151 = vmatpush.bf16.msra.mxu0 %v180
    %1152 = vmatmul.bf16.gmra.mxu0 %v1123
    %v1153 = vpop.f32.mrf.mxu0
    %v1154 = vadd.f32 0.0, %v1153
    %v1155 = vpop.f32.mrf.mxu0
    %1156 = vdwg.mxu0
    %1157 = vmatpush.bf16.msra.mxu0 %v209
    %1158 = vmatpush.bf16.msra.mxu0 %v205
    %1159 = vmatpush.bf16.msra.mxu0 %v201
    %1160 = vmatpush.bf16.msra.mxu0 %v197
    %1161 = vmatpush.bf16.msra.mxu0 %v193
    %1162 = vmatpush.bf16.msra.mxu0 %v189
    %1163 = vmatpush.bf16.msra.mxu0 %v185
    %1164 = vmatpush.bf16.msra.mxu0 %v181
    %1165 = vmatmul.bf16.gmra.mxu0 %v1123
    %v1166 = vpop.f32.mrf.mxu0
    %v1167 = vadd.f32 0.0, %v1166
    %v1168 = vpop.f32.mrf.mxu0
    %1169 = vdwg.mxu0
    %1170 = vmatpush.bf16.msra.mxu0 %v210
    %1171 = vmatpush.bf16.msra.mxu0 %v206
    %1172 = vmatpush.bf16.msra.mxu0 %v202
    %1173 = vmatpush.bf16.msra.mxu0 %v198
    %1174 = vmatpush.bf16.msra.mxu0 %v194
    %1175 = vmatpush.bf16.msra.mxu0 %v190
    %1176 = vmatpush.bf16.msra.mxu0 %v186
    %1177 = vmatpush.bf16.msra.mxu0 %v182
    %1178 = vmatmul.bf16.gmra.mxu0 %v1123
    %v1179 = vpop.f32.mrf.mxu0
    %v1180 = vadd.f32 0.0, %v1179
    %v1181 = vpop.f32.mrf.mxu0
    %1182 = vdwg.mxu0
    %v1183 = vadd.f32 %v1127, %v1141
    %v1184 = vadd.f32 %v1128, %v1154
    %v1185 = vadd.f32 %v1129, %v1167
    %v1186 = vadd.f32 %v1130, %v1180
    %v1187 = vxor.u32 %v1183, 2147483648
    %v1188 = vmul.f32 %v1187, 1.442695
    %v1189 = vpow.pop %v1188
    %v1190 = vadd.f32 %v1189, 1.0
    %v1191 = vrcp.pop %v1190
    %v1192 = vmul.f32 %v1190, %v1191
    %v1193 = vsub.f32 1.0, %v1192
    %v1194 = vmul.f32 %v1191, %v1193
    %v1195 = vadd.f32 %v1191, %v1194
    %vm1196 = vweird.f32 %v1190
    %vm1197 = vweird.f32 %v1191
    %vm1198 = vmor %vm1196, %vm1197
    %v1199 = vsel %vm1198, %v1191, %v1195
    %v1200 = vand.u32 2147483647, %v1190
    %vm1201 = vcmp.eq.f32.partialorder %v1200, 8.507059e+37
    %v1202 = vand.u32 %v1190, 2147483648
    %v1203 = vor.u32 1.1754944e-38, %v1202
    %v1204 = vsel %vm1201, %v1203, %v1199
    %v1205 = vmul.f32 1.0, %v1204
    %v1206 = vxor.u32 %v1184, 2147483648
    %v1207 = vmul.f32 %v1206, 1.442695
    %v1208 = vpow.pop %v1207
    %v1209 = vadd.f32 %v1208, 1.0
    %v1210 = vrcp.pop %v1209
    %v1211 = vmul.f32 %v1209, %v1210
    %v1212 = vsub.f32 1.0, %v1211
    %v1213 = vmul.f32 %v1210, %v1212
    %v1214 = vadd.f32 %v1210, %v1213
    %vm1215 = vweird.f32 %v1209
    %vm1216 = vweird.f32 %v1210
    %vm1217 = vmor %vm1215, %vm1216
    %v1218 = vsel %vm1217, %v1210, %v1214
    %v1219 = vand.u32 2147483647, %v1209
    %vm1220 = vcmp.eq.f32.partialorder %v1219, 8.507059e+37
    %v1221 = vand.u32 %v1209, 2147483648
    %v1222 = vor.u32 1.1754944e-38, %v1221
    %v1223 = vsel %vm1220, %v1222, %v1218
    %v1224 = vmul.f32 1.0, %v1223
    %v1225 = vtanh.pop %v1185
    %v1226 = vxor.u32 %v1186, 2147483648
    %v1227 = vmul.f32 %v1226, 1.442695
    %v1228 = vpow.pop %v1227
    %v1229 = vadd.f32 %v1228, 1.0
    %v1230 = vrcp.pop %v1229
    %v1231 = vmul.f32 %v1229, %v1230
    %v1232 = vsub.f32 1.0, %v1231
    %v1233 = vmul.f32 %v1230, %v1232
    %v1234 = vadd.f32 %v1230, %v1233
    %vm1235 = vweird.f32 %v1229
    %vm1236 = vweird.f32 %v1230
    %vm1237 = vmor %vm1235, %vm1236
    %v1238 = vsel %vm1237, %v1230, %v1234
    %v1239 = vand.u32 2147483647, %v1229
    %vm1240 = vcmp.eq.f32.partialorder %v1239, 8.507059e+37
    %v1241 = vand.u32 %v1229, 2147483648
    %v1242 = vor.u32 1.1754944e-38, %v1241
    %v1243 = vsel %vm1240, %v1242, %v1238
    %v1244 = vmul.f32 1.0, %v1243
    %v1245 = vmul.f32 %v1224, %v1120
    %v1246 = vmul.f32 %v1205, %v1225
    %v1247 = vadd.f32 %v1245, %v1246
    %v1248 = vtanh.pop %v1247
    %v1249 = vmul.f32 %v1244, %v1248
    %v1250 = vpack.c.bf16 %v1249, %v1249
    %s1251 = scalar_lea.vmem %s4, 28
    %1252 = vst [vmem:[%s1251] sm:$0xf] %v1250
    %s1253 = scalar_lea.vmem %s0, 256
    %v1254 = vld [vmem:[%s1253] sm:$0xff]
    %v1255 = vld [vmem:[%s1253 + $0x8] sm:$0xff]
    %v1256 = vld [vmem:[%s1253 + $0x10] sm:$0xff]
    %v1257 = vld [vmem:[%s1253 + $0x18] sm:$0xff]
    %1258 = vmatpush.bf16.msra.mxu0 %v207
    %1259 = vmatpush.bf16.msra.mxu0 %v203
    %1260 = vmatpush.bf16.msra.mxu0 %v199
    %1261 = vmatpush.bf16.msra.mxu0 %v195
    %1262 = vmatpush.bf16.msra.mxu0 %v191
    %1263 = vmatpush.bf16.msra.mxu0 %v187
    %1264 = vmatpush.bf16.msra.mxu0 %v183
    %1265 = vmatpush.bf16.msra.mxu0 %v179
    %1266 = vmatmul.bf16.gmra.mxu0 %v1250
    %v1267 = vpop.f32.mrf.mxu0
    %v1268 = vadd.f32 0.0, %v1267
    %v1269 = vpop.f32.mrf.mxu0
    %1270 = vdwg.mxu0
    %1271 = vmatpush.bf16.msra.mxu0 %v208
    %1272 = vmatpush.bf16.msra.mxu0 %v204
    %1273 = vmatpush.bf16.msra.mxu0 %v200
    %1274 = vmatpush.bf16.msra.mxu0 %v196
    %1275 = vmatpush.bf16.msra.mxu0 %v192
    %1276 = vmatpush.bf16.msra.mxu0 %v188
    %1277 = vmatpush.bf16.msra.mxu0 %v184
    %1278 = vmatpush.bf16.msra.mxu0 %v180
    %1279 = vmatmul.bf16.gmra.mxu0 %v1250
    %v1280 = vpop.f32.mrf.mxu0
    %v1281 = vadd.f32 0.0, %v1280
    %v1282 = vpop.f32.mrf.mxu0
    %1283 = vdwg.mxu0
    %1284 = vmatpush.bf16.msra.mxu0 %v209
    %1285 = vmatpush.bf16.msra.mxu0 %v205
    %1286 = vmatpush.bf16.msra.mxu0 %v201
    %1287 = vmatpush.bf16.msra.mxu0 %v197
    %1288 = vmatpush.bf16.msra.mxu0 %v193
    %1289 = vmatpush.bf16.msra.mxu0 %v189
    %1290 = vmatpush.bf16.msra.mxu0 %v185
    %1291 = vmatpush.bf16.msra.mxu0 %v181
    %1292 = vmatmul.bf16.gmra.mxu0 %v1250
    %v1293 = vpop.f32.mrf.mxu0
    %v1294 = vadd.f32 0.0, %v1293
    %v1295 = vpop.f32.mrf.mxu0
    %1296 = vdwg.mxu0
    %1297 = vmatpush.bf16.msra.mxu0 %v210
    %1298 = vmatpush.bf16.msra.mxu0 %v206
    %1299 = vmatpush.bf16.msra.mxu0 %v202
    %1300 = vmatpush.bf16.msra.mxu0 %v198
    %1301 = vmatpush.bf16.msra.mxu0 %v194
    %1302 = vmatpush.bf16.msra.mxu0 %v190
    %1303 = vmatpush.bf16.msra.mxu0 %v186
    %1304 = vmatpush.bf16.msra.mxu0 %v182
    %1305 = vmatmul.bf16.gmra.mxu0 %v1250
    %v1306 = vpop.f32.mrf.mxu0
    %v1307 = vadd.f32 0.0, %v1306
    %v1308 = vpop.f32.mrf.mxu0
    %1309 = vdwg.mxu0
    %v1310 = vadd.f32 %v1254, %v1268
    %v1311 = vadd.f32 %v1255, %v1281
    %v1312 = vadd.f32 %v1256, %v1294
    %v1313 = vadd.f32 %v1257, %v1307
    %v1314 = vxor.u32 %v1310, 2147483648
    %v1315 = vmul.f32 %v1314, 1.442695
    %v1316 = vpow.pop %v1315
    %v1317 = vadd.f32 %v1316, 1.0
    %v1318 = vrcp.pop %v1317
    %v1319 = vmul.f32 %v1317, %v1318
    %v1320 = vsub.f32 1.0, %v1319
    %v1321 = vmul.f32 %v1318, %v1320
    %v1322 = vadd.f32 %v1318, %v1321
    %vm1323 = vweird.f32 %v1317
    %vm1324 = vweird.f32 %v1318
    %vm1325 = vmor %vm1323, %vm1324
    %v1326 = vsel %vm1325, %v1318, %v1322
    %v1327 = vand.u32 2147483647, %v1317
    %vm1328 = vcmp.eq.f32.partialorder %v1327, 8.507059e+37
    %v1329 = vand.u32 %v1317, 2147483648
    %v1330 = vor.u32 1.1754944e-38, %v1329
    %v1331 = vsel %vm1328, %v1330, %v1326
    %v1332 = vmul.f32 1.0, %v1331
    %v1333 = vxor.u32 %v1311, 2147483648
    %v1334 = vmul.f32 %v1333, 1.442695
    %v1335 = vpow.pop %v1334
    %v1336 = vadd.f32 %v1335, 1.0
    %v1337 = vrcp.pop %v1336
    %v1338 = vmul.f32 %v1336, %v1337
    %v1339 = vsub.f32 1.0, %v1338
    %v1340 = vmul.f32 %v1337, %v1339
    %v1341 = vadd.f32 %v1337, %v1340
    %vm1342 = vweird.f32 %v1336
    %vm1343 = vweird.f32 %v1337
    %vm1344 = vmor %vm1342, %vm1343
    %v1345 = vsel %vm1344, %v1337, %v1341
    %v1346 = vand.u32 2147483647, %v1336
    %vm1347 = vcmp.eq.f32.partialorder %v1346, 8.507059e+37
    %v1348 = vand.u32 %v1336, 2147483648
    %v1349 = vor.u32 1.1754944e-38, %v1348
    %v1350 = vsel %vm1347, %v1349, %v1345
    %v1351 = vmul.f32 1.0, %v1350
    %v1352 = vtanh.pop %v1312
    %v1353 = vxor.u32 %v1313, 2147483648
    %v1354 = vmul.f32 %v1353, 1.442695
    %v1355 = vpow.pop %v1354
    %v1356 = vadd.f32 %v1355, 1.0
    %v1357 = vrcp.pop %v1356
    %v1358 = vmul.f32 %v1356, %v1357
    %v1359 = vsub.f32 1.0, %v1358
    %v1360 = vmul.f32 %v1357, %v1359
    %v1361 = vadd.f32 %v1357, %v1360
    %vm1362 = vweird.f32 %v1356
    %vm1363 = vweird.f32 %v1357
    %vm1364 = vmor %vm1362, %vm1363
    %v1365 = vsel %vm1364, %v1357, %v1361
    %v1366 = vand.u32 2147483647, %v1356
    %vm1367 = vcmp.eq.f32.partialorder %v1366, 8.507059e+37
    %v1368 = vand.u32 %v1356, 2147483648
    %v1369 = vor.u32 1.1754944e-38, %v1368
    %v1370 = vsel %vm1367, %v1369, %v1365
    %v1371 = vmul.f32 1.0, %v1370
    %v1372 = vmul.f32 %v1351, %v1247
    %v1373 = vmul.f32 %v1332, %v1352
    %v1374 = vadd.f32 %v1372, %v1373
    %v1375 = vtanh.pop %v1374
    %v1376 = vmul.f32 %v1371, %v1375
    %v1377 = vpack.c.bf16 %v1376, %v1376
    %s1378 = scalar_lea.vmem %s4, 32
    %1379 = vst [vmem:[%s1378] sm:$0xf] %v1377
    %s1380 = scalar_lea.vmem %s0, 288
    %v1381 = vld [vmem:[%s1380] sm:$0xff]
    %v1382 = vld [vmem:[%s1380 + $0x8] sm:$0xff]
    %v1383 = vld [vmem:[%s1380 + $0x10] sm:$0xff]
    %v1384 = vld [vmem:[%s1380 + $0x18] sm:$0xff]
    %1385 = vmatpush.bf16.msra.mxu0 %v207
    %1386 = vmatpush.bf16.msra.mxu0 %v203
    %1387 = vmatpush.bf16.msra.mxu0 %v199
    %1388 = vmatpush.bf16.msra.mxu0 %v195
    %1389 = vmatpush.bf16.msra.mxu0 %v191
    %1390 = vmatpush.bf16.msra.mxu0 %v187
    %1391 = vmatpush.bf16.msra.mxu0 %v183
    %1392 = vmatpush.bf16.msra.mxu0 %v179
    %1393 = vmatmul.bf16.gmra.mxu0 %v1377
    %v1394 = vpop.f32.mrf.mxu0
    %v1395 = vadd.f32 0.0, %v1394
    %v1396 = vpop.f32.mrf.mxu0
    %1397 = vdwg.mxu0
    %1398 = vmatpush.bf16.msra.mxu0 %v208
    %1399 = vmatpush.bf16.msra.mxu0 %v204
    %1400 = vmatpush.bf16.msra.mxu0 %v200
    %1401 = vmatpush.bf16.msra.mxu0 %v196
    %1402 = vmatpush.bf16.msra.mxu0 %v192
    %1403 = vmatpush.bf16.msra.mxu0 %v188
    %1404 = vmatpush.bf16.msra.mxu0 %v184
    %1405 = vmatpush.bf16.msra.mxu0 %v180
    %1406 = vmatmul.bf16.gmra.mxu0 %v1377
    %v1407 = vpop.f32.mrf.mxu0
    %v1408 = vadd.f32 0.0, %v1407
    %v1409 = vpop.f32.mrf.mxu0
    %1410 = vdwg.mxu0
    %1411 = vmatpush.bf16.msra.mxu0 %v209
    %1412 = vmatpush.bf16.msra.mxu0 %v205
    %1413 = vmatpush.bf16.msra.mxu0 %v201
    %1414 = vmatpush.bf16.msra.mxu0 %v197
    %1415 = vmatpush.bf16.msra.mxu0 %v193
    %1416 = vmatpush.bf16.msra.mxu0 %v189
    %1417 = vmatpush.bf16.msra.mxu0 %v185
    %1418 = vmatpush.bf16.msra.mxu0 %v181
    %1419 = vmatmul.bf16.gmra.mxu0 %v1377
    %v1420 = vpop.f32.mrf.mxu0
    %v1421 = vadd.f32 0.0, %v1420
    %v1422 = vpop.f32.mrf.mxu0
    %1423 = vdwg.mxu0
    %1424 = vmatpush.bf16.msra.mxu0 %v210
    %1425 = vmatpush.bf16.msra.mxu0 %v206
    %1426 = vmatpush.bf16.msra.mxu0 %v202
    %1427 = vmatpush.bf16.msra.mxu0 %v198
    %1428 = vmatpush.bf16.msra.mxu0 %v194
    %1429 = vmatpush.bf16.msra.mxu0 %v190
    %1430 = vmatpush.bf16.msra.mxu0 %v186
    %1431 = vmatpush.bf16.msra.mxu0 %v182
    %1432 = vmatmul.bf16.gmra.mxu0 %v1377
    %v1433 = vpop.f32.mrf.mxu0
    %v1434 = vadd.f32 0.0, %v1433
    %v1435 = vpop.f32.mrf.mxu0
    %1436 = vdwg.mxu0
    %v1437 = vadd.f32 %v1381, %v1395
    %v1438 = vadd.f32 %v1382, %v1408
    %v1439 = vadd.f32 %v1383, %v1421
    %v1440 = vadd.f32 %v1384, %v1434
    %v1441 = vxor.u32 %v1437, 2147483648
    %v1442 = vmul.f32 %v1441, 1.442695
    %v1443 = vpow.pop %v1442
    %v1444 = vadd.f32 %v1443, 1.0
    %v1445 = vrcp.pop %v1444
    %v1446 = vmul.f32 %v1444, %v1445
    %v1447 = vsub.f32 1.0, %v1446
    %v1448 = vmul.f32 %v1445, %v1447
    %v1449 = vadd.f32 %v1445, %v1448
    %vm1450 = vweird.f32 %v1444
    %vm1451 = vweird.f32 %v1445
    %vm1452 = vmor %vm1450, %vm1451
    %v1453 = vsel %vm1452, %v1445, %v1449
    %v1454 = vand.u32 2147483647, %v1444
    %vm1455 = vcmp.eq.f32.partialorder %v1454, 8.507059e+37
    %v1456 = vand.u32 %v1444, 2147483648
    %v1457 = vor.u32 1.1754944e-38, %v1456
    %v1458 = vsel %vm1455, %v1457, %v1453
    %v1459 = vmul.f32 1.0, %v1458
    %v1460 = vxor.u32 %v1438, 2147483648
    %v1461 = vmul.f32 %v1460, 1.442695
    %v1462 = vpow.pop %v1461
    %v1463 = vadd.f32 %v1462, 1.0
    %v1464 = vrcp.pop %v1463
    %v1465 = vmul.f32 %v1463, %v1464
    %v1466 = vsub.f32 1.0, %v1465
    %v1467 = vmul.f32 %v1464, %v1466
    %v1468 = vadd.f32 %v1464, %v1467
    %vm1469 = vweird.f32 %v1463
    %vm1470 = vweird.f32 %v1464
    %vm1471 = vmor %vm1469, %vm1470
    %v1472 = vsel %vm1471, %v1464, %v1468
    %v1473 = vand.u32 2147483647, %v1463
    %vm1474 = vcmp.eq.f32.partialorder %v1473, 8.507059e+37
    %v1475 = vand.u32 %v1463, 2147483648
    %v1476 = vor.u32 1.1754944e-38, %v1475
    %v1477 = vsel %vm1474, %v1476, %v1472
    %v1478 = vmul.f32 1.0, %v1477
    %v1479 = vtanh.pop %v1439
    %v1480 = vxor.u32 %v1440, 2147483648
    %v1481 = vmul.f32 %v1480, 1.442695
    %v1482 = vpow.pop %v1481
    %v1483 = vadd.f32 %v1482, 1.0
    %v1484 = vrcp.pop %v1483
    %v1485 = vmul.f32 %v1483, %v1484
    %v1486 = vsub.f32 1.0, %v1485
    %v1487 = vmul.f32 %v1484, %v1486
    %v1488 = vadd.f32 %v1484, %v1487
    %vm1489 = vweird.f32 %v1483
    %vm1490 = vweird.f32 %v1484
    %vm1491 = vmor %vm1489, %vm1490
    %v1492 = vsel %vm1491, %v1484, %v1488
    %v1493 = vand.u32 2147483647, %v1483
    %vm1494 = vcmp.eq.f32.partialorder %v1493, 8.507059e+37
    %v1495 = vand.u32 %v1483, 2147483648
    %v1496 = vor.u32 1.1754944e-38, %v1495
    %v1497 = vsel %vm1494, %v1496, %v1492
    %v1498 = vmul.f32 1.0, %v1497
    %v1499 = vmul.f32 %v1478, %v1374
    %v1500 = vmul.f32 %v1459, %v1479
    %v1501 = vadd.f32 %v1499, %v1500
    %v1502 = vtanh.pop %v1501
    %v1503 = vmul.f32 %v1498, %v1502
    %v1504 = vpack.c.bf16 %v1503, %v1503
    %s1505 = scalar_lea.vmem %s4, 36
    %1506 = vst [vmem:[%s1505] sm:$0xf] %v1504
    %s1507 = scalar_lea.vmem %s0, 320
    %v1508 = vld [vmem:[%s1507] sm:$0xff]
    %v1509 = vld [vmem:[%s1507 + $0x8] sm:$0xff]
    %v1510 = vld [vmem:[%s1507 + $0x10] sm:$0xff]
    %v1511 = vld [vmem:[%s1507 + $0x18] sm:$0xff]
    %1512 = vmatpush.bf16.msra.mxu0 %v207
    %1513 = vmatpush.bf16.msra.mxu0 %v203
    %1514 = vmatpush.bf16.msra.mxu0 %v199
    %1515 = vmatpush.bf16.msra.mxu0 %v195
    %1516 = vmatpush.bf16.msra.mxu0 %v191
    %1517 = vmatpush.bf16.msra.mxu0 %v187
    %1518 = vmatpush.bf16.msra.mxu0 %v183
    %1519 = vmatpush.bf16.msra.mxu0 %v179
    %1520 = vmatmul.bf16.gmra.mxu0 %v1504
    %v1521 = vpop.f32.mrf.mxu0
    %v1522 = vadd.f32 0.0, %v1521
    %v1523 = vpop.f32.mrf.mxu0
    %1524 = vdwg.mxu0
    %1525 = vmatpush.bf16.msra.mxu0 %v208
    %1526 = vmatpush.bf16.msra.mxu0 %v204
    %1527 = vmatpush.bf16.msra.mxu0 %v200
    %1528 = vmatpush.bf16.msra.mxu0 %v196
    %1529 = vmatpush.bf16.msra.mxu0 %v192
    %1530 = vmatpush.bf16.msra.mxu0 %v188
    %1531 = vmatpush.bf16.msra.mxu0 %v184
    %1532 = vmatpush.bf16.msra.mxu0 %v180
    %1533 = vmatmul.bf16.gmra.mxu0 %v1504
    %v1534 = vpop.f32.mrf.mxu0
    %v1535 = vadd.f32 0.0, %v1534
    %v1536 = vpop.f32.mrf.mxu0
    %1537 = vdwg.mxu0
    %1538 = vmatpush.bf16.msra.mxu0 %v209
    %1539 = vmatpush.bf16.msra.mxu0 %v205
    %1540 = vmatpush.bf16.msra.mxu0 %v201
    %1541 = vmatpush.bf16.msra.mxu0 %v197
    %1542 = vmatpush.bf16.msra.mxu0 %v193
    %1543 = vmatpush.bf16.msra.mxu0 %v189
    %1544 = vmatpush.bf16.msra.mxu0 %v185
    %1545 = vmatpush.bf16.msra.mxu0 %v181
    %1546 = vmatmul.bf16.gmra.mxu0 %v1504
    %v1547 = vpop.f32.mrf.mxu0
    %v1548 = vadd.f32 0.0, %v1547
    %v1549 = vpop.f32.mrf.mxu0
    %1550 = vdwg.mxu0
    %1551 = vmatpush.bf16.msra.mxu0 %v210
    %1552 = vmatpush.bf16.msra.mxu0 %v206
    %1553 = vmatpush.bf16.msra.mxu0 %v202
    %1554 = vmatpush.bf16.msra.mxu0 %v198
    %1555 = vmatpush.bf16.msra.mxu0 %v194
    %1556 = vmatpush.bf16.msra.mxu0 %v190
    %1557 = vmatpush.bf16.msra.mxu0 %v186
    %1558 = vmatpush.bf16.msra.mxu0 %v182
    %1559 = vmatmul.bf16.gmra.mxu0 %v1504
    %v1560 = vpop.f32.mrf.mxu0
    %v1561 = vadd.f32 0.0, %v1560
    %v1562 = vpop.f32.mrf.mxu0
    %1563 = vdwg.mxu0
    %v1564 = vadd.f32 %v1508, %v1522
    %v1565 = vadd.f32 %v1509, %v1535
    %v1566 = vadd.f32 %v1510, %v1548
    %v1567 = vadd.f32 %v1511, %v1561
    %v1568 = vxor.u32 %v1564, 2147483648
    %v1569 = vmul.f32 %v1568, 1.442695
    %v1570 = vpow.pop %v1569
    %v1571 = vadd.f32 %v1570, 1.0
    %v1572 = vrcp.pop %v1571
    %v1573 = vmul.f32 %v1571, %v1572
    %v1574 = vsub.f32 1.0, %v1573
    %v1575 = vmul.f32 %v1572, %v1574
    %v1576 = vadd.f32 %v1572, %v1575
    %vm1577 = vweird.f32 %v1571
    %vm1578 = vweird.f32 %v1572
    %vm1579 = vmor %vm1577, %vm1578
    %v1580 = vsel %vm1579, %v1572, %v1576
    %v1581 = vand.u32 2147483647, %v1571
    %vm1582 = vcmp.eq.f32.partialorder %v1581, 8.507059e+37
    %v1583 = vand.u32 %v1571, 2147483648
    %v1584 = vor.u32 1.1754944e-38, %v1583
    %v1585 = vsel %vm1582, %v1584, %v1580
    %v1586 = vmul.f32 1.0, %v1585
    %v1587 = vxor.u32 %v1565, 2147483648
    %v1588 = vmul.f32 %v1587, 1.442695
    %v1589 = vpow.pop %v1588
    %v1590 = vadd.f32 %v1589, 1.0
    %v1591 = vrcp.pop %v1590
    %v1592 = vmul.f32 %v1590, %v1591
    %v1593 = vsub.f32 1.0, %v1592
    %v1594 = vmul.f32 %v1591, %v1593
    %v1595 = vadd.f32 %v1591, %v1594
    %vm1596 = vweird.f32 %v1590
    %vm1597 = vweird.f32 %v1591
    %vm1598 = vmor %vm1596, %vm1597
    %v1599 = vsel %vm1598, %v1591, %v1595
    %v1600 = vand.u32 2147483647, %v1590
    %vm1601 = vcmp.eq.f32.partialorder %v1600, 8.507059e+37
    %v1602 = vand.u32 %v1590, 2147483648
    %v1603 = vor.u32 1.1754944e-38, %v1602
    %v1604 = vsel %vm1601, %v1603, %v1599
    %v1605 = vmul.f32 1.0, %v1604
    %v1606 = vtanh.pop %v1566
    %v1607 = vxor.u32 %v1567, 2147483648
    %v1608 = vmul.f32 %v1607, 1.442695
    %v1609 = vpow.pop %v1608
    %v1610 = vadd.f32 %v1609, 1.0
    %v1611 = vrcp.pop %v1610
    %v1612 = vmul.f32 %v1610, %v1611
    %v1613 = vsub.f32 1.0, %v1612
    %v1614 = vmul.f32 %v1611, %v1613
    %v1615 = vadd.f32 %v1611, %v1614
    %vm1616 = vweird.f32 %v1610
    %vm1617 = vweird.f32 %v1611
    %vm1618 = vmor %vm1616, %vm1617
    %v1619 = vsel %vm1618, %v1611, %v1615
    %v1620 = vand.u32 2147483647, %v1610
    %vm1621 = vcmp.eq.f32.partialorder %v1620, 8.507059e+37
    %v1622 = vand.u32 %v1610, 2147483648
    %v1623 = vor.u32 1.1754944e-38, %v1622
    %v1624 = vsel %vm1621, %v1623, %v1619
    %v1625 = vmul.f32 1.0, %v1624
    %v1626 = vmul.f32 %v1605, %v1501
    %v1627 = vmul.f32 %v1586, %v1606
    %v1628 = vadd.f32 %v1626, %v1627
    %v1629 = vtanh.pop %v1628
    %v1630 = vmul.f32 %v1625, %v1629
    %v1631 = vpack.c.bf16 %v1630, %v1630
    %s1632 = scalar_lea.vmem %s4, 40
    %1633 = vst [vmem:[%s1632] sm:$0xf] %v1631
    %s1634 = scalar_lea.vmem %s0, 352
    %v1635 = vld [vmem:[%s1634] sm:$0xff]
    %v1636 = vld [vmem:[%s1634 + $0x8] sm:$0xff]
    %v1637 = vld [vmem:[%s1634 + $0x10] sm:$0xff]
    %v1638 = vld [vmem:[%s1634 + $0x18] sm:$0xff]
    %1639 = vmatpush.bf16.msra.mxu0 %v207
    %1640 = vmatpush.bf16.msra.mxu0 %v203
    %1641 = vmatpush.bf16.msra.mxu0 %v199
    %1642 = vmatpush.bf16.msra.mxu0 %v195
    %1643 = vmatpush.bf16.msra.mxu0 %v191
    %1644 = vmatpush.bf16.msra.mxu0 %v187
    %1645 = vmatpush.bf16.msra.mxu0 %v183
    %1646 = vmatpush.bf16.msra.mxu0 %v179
    %1647 = vmatmul.bf16.gmra.mxu0 %v1631
    %v1648 = vpop.f32.mrf.mxu0
    %v1649 = vadd.f32 0.0, %v1648
    %v1650 = vpop.f32.mrf.mxu0
    %1651 = vdwg.mxu0
    %1652 = vmatpush.bf16.msra.mxu0 %v208
    %1653 = vmatpush.bf16.msra.mxu0 %v204
    %1654 = vmatpush.bf16.msra.mxu0 %v200
    %1655 = vmatpush.bf16.msra.mxu0 %v196
    %1656 = vmatpush.bf16.msra.mxu0 %v192
    %1657 = vmatpush.bf16.msra.mxu0 %v188
    %1658 = vmatpush.bf16.msra.mxu0 %v184
    %1659 = vmatpush.bf16.msra.mxu0 %v180
    %1660 = vmatmul.bf16.gmra.mxu0 %v1631
    %v1661 = vpop.f32.mrf.mxu0
    %v1662 = vadd.f32 0.0, %v1661
    %v1663 = vpop.f32.mrf.mxu0
    %1664 = vdwg.mxu0
    %1665 = vmatpush.bf16.msra.mxu0 %v209
    %1666 = vmatpush.bf16.msra.mxu0 %v205
    %1667 = vmatpush.bf16.msra.mxu0 %v201
    %1668 = vmatpush.bf16.msra.mxu0 %v197
    %1669 = vmatpush.bf16.msra.mxu0 %v193
    %1670 = vmatpush.bf16.msra.mxu0 %v189
    %1671 = vmatpush.bf16.msra.mxu0 %v185
    %1672 = vmatpush.bf16.msra.mxu0 %v181
    %1673 = vmatmul.bf16.gmra.mxu0 %v1631
    %v1674 = vpop.f32.mrf.mxu0
    %v1675 = vadd.f32 0.0, %v1674
    %v1676 = vpop.f32.mrf.mxu0
    %1677 = vdwg.mxu0
    %1678 = vmatpush.bf16.msra.mxu0 %v210
    %1679 = vmatpush.bf16.msra.mxu0 %v206
    %1680 = vmatpush.bf16.msra.mxu0 %v202
    %1681 = vmatpush.bf16.msra.mxu0 %v198
    %1682 = vmatpush.bf16.msra.mxu0 %v194
    %1683 = vmatpush.bf16.msra.mxu0 %v190
    %1684 = vmatpush.bf16.msra.mxu0 %v186
    %1685 = vmatpush.bf16.msra.mxu0 %v182
    %1686 = vmatmul.bf16.gmra.mxu0 %v1631
    %v1687 = vpop.f32.mrf.mxu0
    %v1688 = vadd.f32 0.0, %v1687
    %v1689 = vpop.f32.mrf.mxu0
    %1690 = vdwg.mxu0
    %v1691 = vadd.f32 %v1635, %v1649
    %v1692 = vadd.f32 %v1636, %v1662
    %v1693 = vadd.f32 %v1637, %v1675
    %v1694 = vadd.f32 %v1638, %v1688
    %v1695 = vxor.u32 %v1691, 2147483648
    %v1696 = vmul.f32 %v1695, 1.442695
    %v1697 = vpow.pop %v1696
    %v1698 = vadd.f32 %v1697, 1.0
    %v1699 = vrcp.pop %v1698
    %v1700 = vmul.f32 %v1698, %v1699
    %v1701 = vsub.f32 1.0, %v1700
    %v1702 = vmul.f32 %v1699, %v1701
    %v1703 = vadd.f32 %v1699, %v1702
    %vm1704 = vweird.f32 %v1698
    %vm1705 = vweird.f32 %v1699
    %vm1706 = vmor %vm1704, %vm1705
    %v1707 = vsel %vm1706, %v1699, %v1703
    %v1708 = vand.u32 2147483647, %v1698
    %vm1709 = vcmp.eq.f32.partialorder %v1708, 8.507059e+37
    %v1710 = vand.u32 %v1698, 2147483648
    %v1711 = vor.u32 1.1754944e-38, %v1710
    %v1712 = vsel %vm1709, %v1711, %v1707
    %v1713 = vmul.f32 1.0, %v1712
    %v1714 = vxor.u32 %v1692, 2147483648
    %v1715 = vmul.f32 %v1714, 1.442695
    %v1716 = vpow.pop %v1715
    %v1717 = vadd.f32 %v1716, 1.0
    %v1718 = vrcp.pop %v1717
    %v1719 = vmul.f32 %v1717, %v1718
    %v1720 = vsub.f32 1.0, %v1719
    %v1721 = vmul.f32 %v1718, %v1720
    %v1722 = vadd.f32 %v1718, %v1721
    %vm1723 = vweird.f32 %v1717
    %vm1724 = vweird.f32 %v1718
    %vm1725 = vmor %vm1723, %vm1724
    %v1726 = vsel %vm1725, %v1718, %v1722
    %v1727 = vand.u32 2147483647, %v1717
    %vm1728 = vcmp.eq.f32.partialorder %v1727, 8.507059e+37
    %v1729 = vand.u32 %v1717, 2147483648
    %v1730 = vor.u32 1.1754944e-38, %v1729
    %v1731 = vsel %vm1728, %v1730, %v1726
    %v1732 = vmul.f32 1.0, %v1731
    %v1733 = vtanh.pop %v1693
    %v1734 = vxor.u32 %v1694, 2147483648
    %v1735 = vmul.f32 %v1734, 1.442695
    %v1736 = vpow.pop %v1735
    %v1737 = vadd.f32 %v1736, 1.0
    %v1738 = vrcp.pop %v1737
    %v1739 = vmul.f32 %v1737, %v1738
    %v1740 = vsub.f32 1.0, %v1739
    %v1741 = vmul.f32 %v1738, %v1740
    %v1742 = vadd.f32 %v1738, %v1741
    %vm1743 = vweird.f32 %v1737
    %vm1744 = vweird.f32 %v1738
    %vm1745 = vmor %vm1743, %vm1744
    %v1746 = vsel %vm1745, %v1738, %v1742
    %v1747 = vand.u32 2147483647, %v1737
    %vm1748 = vcmp.eq.f32.partialorder %v1747, 8.507059e+37
    %v1749 = vand.u32 %v1737, 2147483648
    %v1750 = vor.u32 1.1754944e-38, %v1749
    %v1751 = vsel %vm1748, %v1750, %v1746
    %v1752 = vmul.f32 1.0, %v1751
    %v1753 = vmul.f32 %v1732, %v1628
    %v1754 = vmul.f32 %v1713, %v1733
    %v1755 = vadd.f32 %v1753, %v1754
    %v1756 = vtanh.pop %v1755
    %v1757 = vmul.f32 %v1752, %v1756
    %v1758 = vpack.c.bf16 %v1757, %v1757
    %s1759 = scalar_lea.vmem %s4, 44
    %1760 = vst [vmem:[%s1759] sm:$0xf] %v1758
    %s1761 = scalar_lea.vmem %s0, 384
    %v1762 = vld [vmem:[%s1761] sm:$0xff]
    %v1763 = vld [vmem:[%s1761 + $0x8] sm:$0xff]
    %v1764 = vld [vmem:[%s1761 + $0x10] sm:$0xff]
    %v1765 = vld [vmem:[%s1761 + $0x18] sm:$0xff]
    %1766 = vmatpush.bf16.msra.mxu0 %v207
    %1767 = vmatpush.bf16.msra.mxu0 %v203
    %1768 = vmatpush.bf16.msra.mxu0 %v199
    %1769 = vmatpush.bf16.msra.mxu0 %v195
    %1770 = vmatpush.bf16.msra.mxu0 %v191
    %1771 = vmatpush.bf16.msra.mxu0 %v187
    %1772 = vmatpush.bf16.msra.mxu0 %v183
    %1773 = vmatpush.bf16.msra.mxu0 %v179
    %1774 = vmatmul.bf16.gmra.mxu0 %v1758
    %v1775 = vpop.f32.mrf.mxu0
    %v1776 = vadd.f32 0.0, %v1775
    %v1777 = vpop.f32.mrf.mxu0
    %1778 = vdwg.mxu0
    %1779 = vmatpush.bf16.msra.mxu0 %v208
    %1780 = vmatpush.bf16.msra.mxu0 %v204
    %1781 = vmatpush.bf16.msra.mxu0 %v200
    %1782 = vmatpush.bf16.msra.mxu0 %v196
    %1783 = vmatpush.bf16.msra.mxu0 %v192
    %1784 = vmatpush.bf16.msra.mxu0 %v188
    %1785 = vmatpush.bf16.msra.mxu0 %v184
    %1786 = vmatpush.bf16.msra.mxu0 %v180
    %1787 = vmatmul.bf16.gmra.mxu0 %v1758
    %v1788 = vpop.f32.mrf.mxu0
    %v1789 = vadd.f32 0.0, %v1788
    %v1790 = vpop.f32.mrf.mxu0
    %1791 = vdwg.mxu0
    %1792 = vmatpush.bf16.msra.mxu0 %v209
    %1793 = vmatpush.bf16.msra.mxu0 %v205
    %1794 = vmatpush.bf16.msra.mxu0 %v201
    %1795 = vmatpush.bf16.msra.mxu0 %v197
    %1796 = vmatpush.bf16.msra.mxu0 %v193
    %1797 = vmatpush.bf16.msra.mxu0 %v189
    %1798 = vmatpush.bf16.msra.mxu0 %v185
    %1799 = vmatpush.bf16.msra.mxu0 %v181
    %1800 = vmatmul.bf16.gmra.mxu0 %v1758
    %v1801 = vpop.f32.mrf.mxu0
    %v1802 = vadd.f32 0.0, %v1801
    %v1803 = vpop.f32.mrf.mxu0
    %1804 = vdwg.mxu0
    %1805 = vmatpush.bf16.msra.mxu0 %v210
    %1806 = vmatpush.bf16.msra.mxu0 %v206
    %1807 = vmatpush.bf16.msra.mxu0 %v202
    %1808 = vmatpush.bf16.msra.mxu0 %v198
    %1809 = vmatpush.bf16.msra.mxu0 %v194
    %1810 = vmatpush.bf16.msra.mxu0 %v190
    %1811 = vmatpush.bf16.msra.mxu0 %v186
    %1812 = vmatpush.bf16.msra.mxu0 %v182
    %1813 = vmatmul.bf16.gmra.mxu0 %v1758
    %v1814 = vpop.f32.mrf.mxu0
    %v1815 = vadd.f32 0.0, %v1814
    %v1816 = vpop.f32.mrf.mxu0
    %1817 = vdwg.mxu0
    %v1818 = vadd.f32 %v1762, %v1776
    %v1819 = vadd.f32 %v1763, %v1789
    %v1820 = vadd.f32 %v1764, %v1802
    %v1821 = vadd.f32 %v1765, %v1815
    %v1822 = vxor.u32 %v1818, 2147483648
    %v1823 = vmul.f32 %v1822, 1.442695
    %v1824 = vpow.pop %v1823
    %v1825 = vadd.f32 %v1824, 1.0
    %v1826 = vrcp.pop %v1825
    %v1827 = vmul.f32 %v1825, %v1826
    %v1828 = vsub.f32 1.0, %v1827
    %v1829 = vmul.f32 %v1826, %v1828
    %v1830 = vadd.f32 %v1826, %v1829
    %vm1831 = vweird.f32 %v1825
    %vm1832 = vweird.f32 %v1826
    %vm1833 = vmor %vm1831, %vm1832
    %v1834 = vsel %vm1833, %v1826, %v1830
    %v1835 = vand.u32 2147483647, %v1825
    %vm1836 = vcmp.eq.f32.partialorder %v1835, 8.507059e+37
    %v1837 = vand.u32 %v1825, 2147483648
    %v1838 = vor.u32 1.1754944e-38, %v1837
    %v1839 = vsel %vm1836, %v1838, %v1834
    %v1840 = vmul.f32 1.0, %v1839
    %v1841 = vxor.u32 %v1819, 2147483648
    %v1842 = vmul.f32 %v1841, 1.442695
    %v1843 = vpow.pop %v1842
    %v1844 = vadd.f32 %v1843, 1.0
    %v1845 = vrcp.pop %v1844
    %v1846 = vmul.f32 %v1844, %v1845
    %v1847 = vsub.f32 1.0, %v1846
    %v1848 = vmul.f32 %v1845, %v1847
    %v1849 = vadd.f32 %v1845, %v1848
    %vm1850 = vweird.f32 %v1844
    %vm1851 = vweird.f32 %v1845
    %vm1852 = vmor %vm1850, %vm1851
    %v1853 = vsel %vm1852, %v1845, %v1849
    %v1854 = vand.u32 2147483647, %v1844
    %vm1855 = vcmp.eq.f32.partialorder %v1854, 8.507059e+37
    %v1856 = vand.u32 %v1844, 2147483648
    %v1857 = vor.u32 1.1754944e-38, %v1856
    %v1858 = vsel %vm1855, %v1857, %v1853
    %v1859 = vmul.f32 1.0, %v1858
    %v1860 = vtanh.pop %v1820
    %v1861 = vxor.u32 %v1821, 2147483648
    %v1862 = vmul.f32 %v1861, 1.442695
    %v1863 = vpow.pop %v1862
    %v1864 = vadd.f32 %v1863, 1.0
    %v1865 = vrcp.pop %v1864
    %v1866 = vmul.f32 %v1864, %v1865
    %v1867 = vsub.f32 1.0, %v1866
    %v1868 = vmul.f32 %v1865, %v1867
    %v1869 = vadd.f32 %v1865, %v1868
    %vm1870 = vweird.f32 %v1864
    %vm1871 = vweird.f32 %v1865
    %vm1872 = vmor %vm1870, %vm1871
    %v1873 = vsel %vm1872, %v1865, %v1869
    %v1874 = vand.u32 2147483647, %v1864
    %vm1875 = vcmp.eq.f32.partialorder %v1874, 8.507059e+37
    %v1876 = vand.u32 %v1864, 2147483648
    %v1877 = vor.u32 1.1754944e-38, %v1876
    %v1878 = vsel %vm1875, %v1877, %v1873
    %v1879 = vmul.f32 1.0, %v1878
    %v1880 = vmul.f32 %v1859, %v1755
    %v1881 = vmul.f32 %v1840, %v1860
    %v1882 = vadd.f32 %v1880, %v1881
    %v1883 = vtanh.pop %v1882
    %v1884 = vmul.f32 %v1879, %v1883
    %v1885 = vpack.c.bf16 %v1884, %v1884
    %s1886 = scalar_lea.vmem %s4, 48
    %1887 = vst [vmem:[%s1886] sm:$0xf] %v1885
    %s1888 = scalar_lea.vmem %s0, 416
    %v1889 = vld [vmem:[%s1888] sm:$0xff]
    %v1890 = vld [vmem:[%s1888 + $0x8] sm:$0xff]
    %v1891 = vld [vmem:[%s1888 + $0x10] sm:$0xff]
    %v1892 = vld [vmem:[%s1888 + $0x18] sm:$0xff]
    %1893 = vmatpush.bf16.msra.mxu0 %v207
    %1894 = vmatpush.bf16.msra.mxu0 %v203
    %1895 = vmatpush.bf16.msra.mxu0 %v199
    %1896 = vmatpush.bf16.msra.mxu0 %v195
    %1897 = vmatpush.bf16.msra.mxu0 %v191
    %1898 = vmatpush.bf16.msra.mxu0 %v187
    %1899 = vmatpush.bf16.msra.mxu0 %v183
    %1900 = vmatpush.bf16.msra.mxu0 %v179
    %1901 = vmatmul.bf16.gmra.mxu0 %v1885
    %v1902 = vpop.f32.mrf.mxu0
    %v1903 = vadd.f32 0.0, %v1902
    %v1904 = vpop.f32.mrf.mxu0
    %1905 = vdwg.mxu0
    %1906 = vmatpush.bf16.msra.mxu0 %v208
    %1907 = vmatpush.bf16.msra.mxu0 %v204
    %1908 = vmatpush.bf16.msra.mxu0 %v200
    %1909 = vmatpush.bf16.msra.mxu0 %v196
    %1910 = vmatpush.bf16.msra.mxu0 %v192
    %1911 = vmatpush.bf16.msra.mxu0 %v188
    %1912 = vmatpush.bf16.msra.mxu0 %v184
    %1913 = vmatpush.bf16.msra.mxu0 %v180
    %1914 = vmatmul.bf16.gmra.mxu0 %v1885
    %v1915 = vpop.f32.mrf.mxu0
    %v1916 = vadd.f32 0.0, %v1915
    %v1917 = vpop.f32.mrf.mxu0
    %1918 = vdwg.mxu0
    %1919 = vmatpush.bf16.msra.mxu0 %v209
    %1920 = vmatpush.bf16.msra.mxu0 %v205
    %1921 = vmatpush.bf16.msra.mxu0 %v201
    %1922 = vmatpush.bf16.msra.mxu0 %v197
    %1923 = vmatpush.bf16.msra.mxu0 %v193
    %1924 = vmatpush.bf16.msra.mxu0 %v189
    %1925 = vmatpush.bf16.msra.mxu0 %v185
    %1926 = vmatpush.bf16.msra.mxu0 %v181
    %1927 = vmatmul.bf16.gmra.mxu0 %v1885
    %v1928 = vpop.f32.mrf.mxu0
    %v1929 = vadd.f32 0.0, %v1928
    %v1930 = vpop.f32.mrf.mxu0
    %1931 = vdwg.mxu0
    %1932 = vmatpush.bf16.msra.mxu0 %v210
    %1933 = vmatpush.bf16.msra.mxu0 %v206
    %1934 = vmatpush.bf16.msra.mxu0 %v202
    %1935 = vmatpush.bf16.msra.mxu0 %v198
    %1936 = vmatpush.bf16.msra.mxu0 %v194
    %1937 = vmatpush.bf16.msra.mxu0 %v190
    %1938 = vmatpush.bf16.msra.mxu0 %v186
    %1939 = vmatpush.bf16.msra.mxu0 %v182
    %1940 = vmatmul.bf16.gmra.mxu0 %v1885
    %v1941 = vpop.f32.mrf.mxu0
    %v1942 = vadd.f32 0.0, %v1941
    %v1943 = vpop.f32.mrf.mxu0
    %1944 = vdwg.mxu0
    %v1945 = vadd.f32 %v1889, %v1903
    %v1946 = vadd.f32 %v1890, %v1916
    %v1947 = vadd.f32 %v1891, %v1929
    %v1948 = vadd.f32 %v1892, %v1942
    %v1949 = vxor.u32 %v1945, 2147483648
    %v1950 = vmul.f32 %v1949, 1.442695
    %v1951 = vpow.pop %v1950
    %v1952 = vadd.f32 %v1951, 1.0
    %v1953 = vrcp.pop %v1952
    %v1954 = vmul.f32 %v1952, %v1953
    %v1955 = vsub.f32 1.0, %v1954
    %v1956 = vmul.f32 %v1953, %v1955
    %v1957 = vadd.f32 %v1953, %v1956
    %vm1958 = vweird.f32 %v1952
    %vm1959 = vweird.f32 %v1953
    %vm1960 = vmor %vm1958, %vm1959
    %v1961 = vsel %vm1960, %v1953, %v1957
    %v1962 = vand.u32 2147483647, %v1952
    %vm1963 = vcmp.eq.f32.partialorder %v1962, 8.507059e+37
    %v1964 = vand.u32 %v1952, 2147483648
    %v1965 = vor.u32 1.1754944e-38, %v1964
    %v1966 = vsel %vm1963, %v1965, %v1961
    %v1967 = vmul.f32 1.0, %v1966
    %v1968 = vxor.u32 %v1946, 2147483648
    %v1969 = vmul.f32 %v1968, 1.442695
    %v1970 = vpow.pop %v1969
    %v1971 = vadd.f32 %v1970, 1.0
    %v1972 = vrcp.pop %v1971
    %v1973 = vmul.f32 %v1971, %v1972
    %v1974 = vsub.f32 1.0, %v1973
    %v1975 = vmul.f32 %v1972, %v1974
    %v1976 = vadd.f32 %v1972, %v1975
    %vm1977 = vweird.f32 %v1971
    %vm1978 = vweird.f32 %v1972
    %vm1979 = vmor %vm1977, %vm1978
    %v1980 = vsel %vm1979, %v1972, %v1976
    %v1981 = vand.u32 2147483647, %v1971
    %vm1982 = vcmp.eq.f32.partialorder %v1981, 8.507059e+37
    %v1983 = vand.u32 %v1971, 2147483648
    %v1984 = vor.u32 1.1754944e-38, %v1983
    %v1985 = vsel %vm1982, %v1984, %v1980
    %v1986 = vmul.f32 1.0, %v1985
    %v1987 = vtanh.pop %v1947
    %v1988 = vxor.u32 %v1948, 2147483648
    %v1989 = vmul.f32 %v1988, 1.442695
    %v1990 = vpow.pop %v1989
    %v1991 = vadd.f32 %v1990, 1.0
    %v1992 = vrcp.pop %v1991
    %v1993 = vmul.f32 %v1991, %v1992
    %v1994 = vsub.f32 1.0, %v1993
    %v1995 = vmul.f32 %v1992, %v1994
    %v1996 = vadd.f32 %v1992, %v1995
    %vm1997 = vweird.f32 %v1991
    %vm1998 = vweird.f32 %v1992
    %vm1999 = vmor %vm1997, %vm1998
    %v2000 = vsel %vm1999, %v1992, %v1996
    %v2001 = vand.u32 2147483647, %v1991
    %vm2002 = vcmp.eq.f32.partialorder %v2001, 8.507059e+37
    %v2003 = vand.u32 %v1991, 2147483648
    %v2004 = vor.u32 1.1754944e-38, %v2003
    %v2005 = vsel %vm2002, %v2004, %v2000
    %v2006 = vmul.f32 1.0, %v2005
    %v2007 = vmul.f32 %v1986, %v1882
    %v2008 = vmul.f32 %v1967, %v1987
    %v2009 = vadd.f32 %v2007, %v2008
    %v2010 = vtanh.pop %v2009
    %v2011 = vmul.f32 %v2006, %v2010
    %v2012 = vpack.c.bf16 %v2011, %v2011
    %s2013 = scalar_lea.vmem %s4, 52
    %2014 = vst [vmem:[%s2013] sm:$0xf] %v2012
    %s2015 = scalar_lea.vmem %s0, 448
    %v2016 = vld [vmem:[%s2015] sm:$0xff]
    %v2017 = vld [vmem:[%s2015 + $0x8] sm:$0xff]
    %v2018 = vld [vmem:[%s2015 + $0x10] sm:$0xff]
    %v2019 = vld [vmem:[%s2015 + $0x18] sm:$0xff]
    %2020 = vmatpush.bf16.msra.mxu0 %v207
    %2021 = vmatpush.bf16.msra.mxu0 %v203
    %2022 = vmatpush.bf16.msra.mxu0 %v199
    %2023 = vmatpush.bf16.msra.mxu0 %v195
    %2024 = vmatpush.bf16.msra.mxu0 %v191
    %2025 = vmatpush.bf16.msra.mxu0 %v187
    %2026 = vmatpush.bf16.msra.mxu0 %v183
    %2027 = vmatpush.bf16.msra.mxu0 %v179
    %2028 = vmatmul.bf16.gmra.mxu0 %v2012
    %v2029 = vpop.f32.mrf.mxu0
    %v2030 = vadd.f32 0.0, %v2029
    %v2031 = vpop.f32.mrf.mxu0
    %2032 = vdwg.mxu0
    %2033 = vmatpush.bf16.msra.mxu0 %v208
    %2034 = vmatpush.bf16.msra.mxu0 %v204
    %2035 = vmatpush.bf16.msra.mxu0 %v200
    %2036 = vmatpush.bf16.msra.mxu0 %v196
    %2037 = vmatpush.bf16.msra.mxu0 %v192
    %2038 = vmatpush.bf16.msra.mxu0 %v188
    %2039 = vmatpush.bf16.msra.mxu0 %v184
    %2040 = vmatpush.bf16.msra.mxu0 %v180
    %2041 = vmatmul.bf16.gmra.mxu0 %v2012
    %v2042 = vpop.f32.mrf.mxu0
    %v2043 = vadd.f32 0.0, %v2042
    %v2044 = vpop.f32.mrf.mxu0
    %2045 = vdwg.mxu0
    %2046 = vmatpush.bf16.msra.mxu0 %v209
    %2047 = vmatpush.bf16.msra.mxu0 %v205
    %2048 = vmatpush.bf16.msra.mxu0 %v201
    %2049 = vmatpush.bf16.msra.mxu0 %v197
    %2050 = vmatpush.bf16.msra.mxu0 %v193
    %2051 = vmatpush.bf16.msra.mxu0 %v189
    %2052 = vmatpush.bf16.msra.mxu0 %v185
    %2053 = vmatpush.bf16.msra.mxu0 %v181
    %2054 = vmatmul.bf16.gmra.mxu0 %v2012
    %v2055 = vpop.f32.mrf.mxu0
    %v2056 = vadd.f32 0.0, %v2055
    %v2057 = vpop.f32.mrf.mxu0
    %2058 = vdwg.mxu0
    %2059 = vmatpush.bf16.msra.mxu0 %v210
    %2060 = vmatpush.bf16.msra.mxu0 %v206
    %2061 = vmatpush.bf16.msra.mxu0 %v202
    %2062 = vmatpush.bf16.msra.mxu0 %v198
    %2063 = vmatpush.bf16.msra.mxu0 %v194
    %2064 = vmatpush.bf16.msra.mxu0 %v190
    %2065 = vmatpush.bf16.msra.mxu0 %v186
    %2066 = vmatpush.bf16.msra.mxu0 %v182
    %2067 = vmatmul.bf16.gmra.mxu0 %v2012
    %v2068 = vpop.f32.mrf.mxu0
    %v2069 = vadd.f32 0.0, %v2068
    %v2070 = vpop.f32.mrf.mxu0
    %2071 = vdwg.mxu0
    %v2072 = vadd.f32 %v2016, %v2030
    %v2073 = vadd.f32 %v2017, %v2043
    %v2074 = vadd.f32 %v2018, %v2056
    %v2075 = vadd.f32 %v2019, %v2069
    %v2076 = vxor.u32 %v2072, 2147483648
    %v2077 = vmul.f32 %v2076, 1.442695
    %v2078 = vpow.pop %v2077
    %v2079 = vadd.f32 %v2078, 1.0
    %v2080 = vrcp.pop %v2079
    %v2081 = vmul.f32 %v2079, %v2080
    %v2082 = vsub.f32 1.0, %v2081
    %v2083 = vmul.f32 %v2080, %v2082
    %v2084 = vadd.f32 %v2080, %v2083
    %vm2085 = vweird.f32 %v2079
    %vm2086 = vweird.f32 %v2080
    %vm2087 = vmor %vm2085, %vm2086
    %v2088 = vsel %vm2087, %v2080, %v2084
    %v2089 = vand.u32 2147483647, %v2079
    %vm2090 = vcmp.eq.f32.partialorder %v2089, 8.507059e+37
    %v2091 = vand.u32 %v2079, 2147483648
    %v2092 = vor.u32 1.1754944e-38, %v2091
    %v2093 = vsel %vm2090, %v2092, %v2088
    %v2094 = vmul.f32 1.0, %v2093
    %v2095 = vxor.u32 %v2073, 2147483648
    %v2096 = vmul.f32 %v2095, 1.442695
    %v2097 = vpow.pop %v2096
    %v2098 = vadd.f32 %v2097, 1.0
    %v2099 = vrcp.pop %v2098
    %v2100 = vmul.f32 %v2098, %v2099
    %v2101 = vsub.f32 1.0, %v2100
    %v2102 = vmul.f32 %v2099, %v2101
    %v2103 = vadd.f32 %v2099, %v2102
    %vm2104 = vweird.f32 %v2098
    %vm2105 = vweird.f32 %v2099
    %vm2106 = vmor %vm2104, %vm2105
    %v2107 = vsel %vm2106, %v2099, %v2103
    %v2108 = vand.u32 2147483647, %v2098
    %vm2109 = vcmp.eq.f32.partialorder %v2108, 8.507059e+37
    %v2110 = vand.u32 %v2098, 2147483648
    %v2111 = vor.u32 1.1754944e-38, %v2110
    %v2112 = vsel %vm2109, %v2111, %v2107
    %v2113 = vmul.f32 1.0, %v2112
    %v2114 = vtanh.pop %v2074
    %v2115 = vxor.u32 %v2075, 2147483648
    %v2116 = vmul.f32 %v2115, 1.442695
    %v2117 = vpow.pop %v2116
    %v2118 = vadd.f32 %v2117, 1.0
    %v2119 = vrcp.pop %v2118
    %v2120 = vmul.f32 %v2118, %v2119
    %v2121 = vsub.f32 1.0, %v2120
    %v2122 = vmul.f32 %v2119, %v2121
    %v2123 = vadd.f32 %v2119, %v2122
    %vm2124 = vweird.f32 %v2118
    %vm2125 = vweird.f32 %v2119
    %vm2126 = vmor %vm2124, %vm2125
    %v2127 = vsel %vm2126, %v2119, %v2123
    %v2128 = vand.u32 2147483647, %v2118
    %vm2129 = vcmp.eq.f32.partialorder %v2128, 8.507059e+37
    %v2130 = vand.u32 %v2118, 2147483648
    %v2131 = vor.u32 1.1754944e-38, %v2130
    %v2132 = vsel %vm2129, %v2131, %v2127
    %v2133 = vmul.f32 1.0, %v2132
    %v2134 = vmul.f32 %v2113, %v2009
    %v2135 = vmul.f32 %v2094, %v2114
    %v2136 = vadd.f32 %v2134, %v2135
    %v2137 = vtanh.pop %v2136
    %v2138 = vmul.f32 %v2133, %v2137
    %v2139 = vpack.c.bf16 %v2138, %v2138
    %s2140 = scalar_lea.vmem %s4, 56
    %2141 = vst [vmem:[%s2140] sm:$0xf] %v2139
    %s2142 = scalar_lea.vmem %s0, 480
    %v2143 = vld [vmem:[%s2142] sm:$0xff]
    %v2144 = vld [vmem:[%s2142 + $0x8] sm:$0xff]
    %v2145 = vld [vmem:[%s2142 + $0x10] sm:$0xff]
    %v2146 = vld [vmem:[%s2142 + $0x18] sm:$0xff]
    %2147 = vmatpush.bf16.msra.mxu0 %v207
    %2148 = vmatpush.bf16.msra.mxu0 %v203
    %2149 = vmatpush.bf16.msra.mxu0 %v199
    %2150 = vmatpush.bf16.msra.mxu0 %v195
    %2151 = vmatpush.bf16.msra.mxu0 %v191
    %2152 = vmatpush.bf16.msra.mxu0 %v187
    %2153 = vmatpush.bf16.msra.mxu0 %v183
    %2154 = vmatpush.bf16.msra.mxu0 %v179
    %2155 = vmatmul.bf16.gmra.mxu0 %v2139
    %v2156 = vpop.f32.mrf.mxu0
    %v2157 = vadd.f32 0.0, %v2156
    %v2158 = vpop.f32.mrf.mxu0
    %2159 = vdwg.mxu0
    %2160 = vmatpush.bf16.msra.mxu0 %v208
    %2161 = vmatpush.bf16.msra.mxu0 %v204
    %2162 = vmatpush.bf16.msra.mxu0 %v200
    %2163 = vmatpush.bf16.msra.mxu0 %v196
    %2164 = vmatpush.bf16.msra.mxu0 %v192
    %2165 = vmatpush.bf16.msra.mxu0 %v188
    %2166 = vmatpush.bf16.msra.mxu0 %v184
    %2167 = vmatpush.bf16.msra.mxu0 %v180
    %2168 = vmatmul.bf16.gmra.mxu0 %v2139
    %v2169 = vpop.f32.mrf.mxu0
    %v2170 = vadd.f32 0.0, %v2169
    %v2171 = vpop.f32.mrf.mxu0
    %2172 = vdwg.mxu0
    %2173 = vmatpush.bf16.msra.mxu0 %v209
    %2174 = vmatpush.bf16.msra.mxu0 %v205
    %2175 = vmatpush.bf16.msra.mxu0 %v201
    %2176 = vmatpush.bf16.msra.mxu0 %v197
    %2177 = vmatpush.bf16.msra.mxu0 %v193
    %2178 = vmatpush.bf16.msra.mxu0 %v189
    %2179 = vmatpush.bf16.msra.mxu0 %v185
    %2180 = vmatpush.bf16.msra.mxu0 %v181
    %2181 = vmatmul.bf16.gmra.mxu0 %v2139
    %v2182 = vpop.f32.mrf.mxu0
    %v2183 = vadd.f32 0.0, %v2182
    %v2184 = vpop.f32.mrf.mxu0
    %2185 = vdwg.mxu0
    %2186 = vmatpush.bf16.msra.mxu0 %v210
    %2187 = vmatpush.bf16.msra.mxu0 %v206
    %2188 = vmatpush.bf16.msra.mxu0 %v202
    %2189 = vmatpush.bf16.msra.mxu0 %v198
    %2190 = vmatpush.bf16.msra.mxu0 %v194
    %2191 = vmatpush.bf16.msra.mxu0 %v190
    %2192 = vmatpush.bf16.msra.mxu0 %v186
    %2193 = vmatpush.bf16.msra.mxu0 %v182
    %2194 = vmatmul.bf16.gmra.mxu0 %v2139
    %v2195 = vpop.f32.mrf.mxu0
    %v2196 = vadd.f32 0.0, %v2195
    %v2197 = vpop.f32.mrf.mxu0
    %2198 = vdwg.mxu0
    %v2199 = vadd.f32 %v2143, %v2157
    %v2200 = vadd.f32 %v2144, %v2170
    %v2201 = vadd.f32 %v2145, %v2183
    %v2202 = vadd.f32 %v2146, %v2196
    %v2203 = vxor.u32 %v2199, 2147483648
    %v2204 = vmul.f32 %v2203, 1.442695
    %v2205 = vpow.pop %v2204
    %v2206 = vadd.f32 %v2205, 1.0
    %v2207 = vrcp.pop %v2206
    %v2208 = vmul.f32 %v2206, %v2207
    %v2209 = vsub.f32 1.0, %v2208
    %v2210 = vmul.f32 %v2207, %v2209
    %v2211 = vadd.f32 %v2207, %v2210
    %vm2212 = vweird.f32 %v2206
    %vm2213 = vweird.f32 %v2207
    %vm2214 = vmor %vm2212, %vm2213
    %v2215 = vsel %vm2214, %v2207, %v2211
    %v2216 = vand.u32 2147483647, %v2206
    %vm2217 = vcmp.eq.f32.partialorder %v2216, 8.507059e+37
    %v2218 = vand.u32 %v2206, 2147483648
    %v2219 = vor.u32 1.1754944e-38, %v2218
    %v2220 = vsel %vm2217, %v2219, %v2215
    %v2221 = vmul.f32 1.0, %v2220
    %v2222 = vxor.u32 %v2200, 2147483648
    %v2223 = vmul.f32 %v2222, 1.442695
    %v2224 = vpow.pop %v2223
    %v2225 = vadd.f32 %v2224, 1.0
    %v2226 = vrcp.pop %v2225
    %v2227 = vmul.f32 %v2225, %v2226
    %v2228 = vsub.f32 1.0, %v2227
    %v2229 = vmul.f32 %v2226, %v2228
    %v2230 = vadd.f32 %v2226, %v2229
    %vm2231 = vweird.f32 %v2225
    %vm2232 = vweird.f32 %v2226
    %vm2233 = vmor %vm2231, %vm2232
    %v2234 = vsel %vm2233, %v2226, %v2230
    %v2235 = vand.u32 2147483647, %v2225
    %vm2236 = vcmp.eq.f32.partialorder %v2235, 8.507059e+37
    %v2237 = vand.u32 %v2225, 2147483648
    %v2238 = vor.u32 1.1754944e-38, %v2237
    %v2239 = vsel %vm2236, %v2238, %v2234
    %v2240 = vmul.f32 1.0, %v2239
    %v2241 = vtanh.pop %v2201
    %v2242 = vxor.u32 %v2202, 2147483648
    %v2243 = vmul.f32 %v2242, 1.442695
    %v2244 = vpow.pop %v2243
    %v2245 = vadd.f32 %v2244, 1.0
    %v2246 = vrcp.pop %v2245
    %v2247 = vmul.f32 %v2245, %v2246
    %v2248 = vsub.f32 1.0, %v2247
    %v2249 = vmul.f32 %v2246, %v2248
    %v2250 = vadd.f32 %v2246, %v2249
    %vm2251 = vweird.f32 %v2245
    %vm2252 = vweird.f32 %v2246
    %vm2253 = vmor %vm2251, %vm2252
    %v2254 = vsel %vm2253, %v2246, %v2250
    %v2255 = vand.u32 2147483647, %v2245
    %vm2256 = vcmp.eq.f32.partialorder %v2255, 8.507059e+37
    %v2257 = vand.u32 %v2245, 2147483648
    %v2258 = vor.u32 1.1754944e-38, %v2257
    %v2259 = vsel %vm2256, %v2258, %v2254
    %v2260 = vmul.f32 1.0, %v2259
    %v2261 = vmul.f32 %v2240, %v2136
    %v2262 = vmul.f32 %v2221, %v2241
    %v2263 = vadd.f32 %v2261, %v2262
    %v2264 = vtanh.pop %v2263
    %v2265 = vmul.f32 %v2260, %v2264
    %v2266 = vpack.c.bf16 %v2265, %v2265
    %s2267 = scalar_lea.vmem %s4, 60
    %2268 = vst [vmem:[%s2267] sm:$0xf] %v2266
    %2269 = vst [vmem:[#allocation2] sm:$0xff] %v2265
    %2270 = vst [vmem:[#allocation3] sm:$0xff] %v2263
    // Predicated region
    $region26: #{lstm_model_forward.8} parent=1 // pred_check
      %p2271 = pneg %p36
    $region27: #{lstm_model_forward.8} parent=1 // pred_check_branch
      %2273 = sbr.rel (%p2271) target = $region29
    $region28: #{lstm_model_forward.8} parent=1 // pred_region
      %2274 = vst [vmem:[%s5] sm:$0xff] %v2265
      %2275 = vst [vmem:[%s6] sm:$0xff] %v2263
    $region29: #{lstm_model_forward.8} parent=1 // pred_fallthru
      _
    // Predicated region
    $region30: #{lstm_model_forward.8} parent=1 // pred_check
      _
    $region31: #{lstm_model_forward.8} parent=1 // pred_check_branch
      %2277 = sbr.rel (0) target = $region33
    $region32: #{lstm_model_forward.8} parent=1 // pred_region
      _
    $region33: #{lstm_model_forward.8} parent=1 // pred_fallthru
      _
    // Predicated region
    $region34: #{lstm_model_forward.8} parent=1 // pred_check
      _
    $region35: #{lstm_model_forward.8} parent=1 // pred_check_branch
      %2279 = sbr.rel (0) target = $region37
    $region36: #{lstm_model_forward.8} parent=1 // pred_region
      _
    $region37: #{lstm_model_forward.8} parent=1 // pred_fallthru
      _
    // Predicated region
    $region38: #{lstm_model_forward.8} parent=1 // pred_check
      _
    $region39: #{lstm_model_forward.8} parent=1 // pred_check_branch
      %2281 = sbr.rel (0) target = $region41
    $region40: #{lstm_model_forward.8} parent=1 // pred_region
      _
    $region41: #{lstm_model_forward.8} parent=1 // pred_fallthru
      _
    // Predicated region
    $region42: #{lstm_model_forward.8} parent=1 // pred_check
      _
    $region43: #{lstm_model_forward.8} parent=1 // pred_check_branch
      %2283 = sbr.rel (0) target = $region45
    $region44: #{lstm_model_forward.8} parent=1 // pred_region
      _
    $region45: #{lstm_model_forward.8} parent=1 // pred_fallthru
      _
    // Predicated region
    $region46: #{lstm_model_forward.8} parent=1 // pred_check
      _
    $region47: #{lstm_model_forward.8} parent=1 // pred_check_branch
      %2285 = sbr.rel (0) target = $region49
    $region48: #{lstm_model_forward.8} parent=1 // pred_region
      _
    $region49: #{lstm_model_forward.8} parent=1 // pred_fallthru
      _
    // Predicated region
    $region50: #{lstm_model_forward.8} parent=1 // pred_check
      _
    $region51: #{lstm_model_forward.8} parent=1 // pred_check_branch
      %2287 = sbr.rel (0) target = $region53
    $region52: #{lstm_model_forward.8} parent=1 // pred_region
      _
    $region53: #{lstm_model_forward.8} parent=1 // pred_fallthru
      _
    %2288 = vsyncpa [#allocation5], 1

</llo_original>
